<compile_context>
chip_gen: v7x
topology: tpu7x:2x2x1
jax: 0.10.0
libtpu: 0.0.40
codegen_flags: <defaults>
</compile_context>

<pallas_src>
import functools

import numpy as np

import jax
import jax.numpy as jnp
from jax.experimental import pallas as pl
from jax.experimental.pallas import tpu as pltpu


# ----------------------------------------------------------------------------
# small helpers
# ----------------------------------------------------------------------------
def _round_up(x, m):
    return (x + m - 1) // m * m


def _pick_tile(dim, pref, quantum):
    t = pref
    while t >= quantum:
        if dim % t == 0:
            return t
        t //= 2
    return dim


def _pick_rows_tile(M, pref=512):
    """Row tile for a (M, N) GEMM grid: divides M, lane/sublane friendly, and gives
    >=2 grid blocks when possible (v7x megacore)."""
    t = min(pref, M)
    while t > 8 and M % t:
        t //= 2
    if M % t:
        t = M
    if M // t < 2:
        for cand in (t // 2, t // 4):
            if cand >= 8 and cand % 8 == 0 and M % cand == 0:
                t = cand
                break
    return t


def _pick_group(B, rows_per_img, target_rows=256):
    """#images folded into one grid step of the fused conv kernel (batch -> M)."""
    bt = max(1, min(B, max(1, target_rows // max(rows_per_img, 1))))
    while B % bt:
        bt -= 1
    # keep >=2 parallel grid blocks when the batch allows (v7x: one per TensorCore)
    while bt > 1 and B // bt < 2:
        bt -= 1
        while B % bt:
            bt -= 1
    return bt


_BUFFERED_OK = None


def _buffered_supported():
    """Probe (once, eagerly) whether pipeline_mode=pl.Buffered(1) is available."""
    global _BUFFERED_OK
    if _BUFFERED_OK is None:
        try:
            spec = pl.BlockSpec((8, 128), lambda i: (0, 0),
                                pipeline_mode=pl.Buffered(1))

            def _k(x_ref, o_ref):
                o_ref[...] = x_ref[...] + 1.0

            fn = pl.pallas_call(
                _k, out_shape=jax.ShapeDtypeStruct((8, 128), jnp.float32),
                grid=(2,), in_specs=[spec],
                out_specs=pl.BlockSpec((8, 128), lambda i: (0, 0)))
            jax.jit(fn).lower(np.zeros((8, 128), np.float32)).compile()
            _BUFFERED_OK = True
        except Exception:
            _BUFFERED_OK = False
    return _BUFFERED_OK


def _invariant_spec(shape, index_map):
    """BlockSpec for a grid-invariant operand; single-buffered where supported."""
    if _buffered_supported():
        return pl.BlockSpec(shape, index_map, pipeline_mode=pl.Buffered(1))
    return pl.BlockSpec(shape, index_map)


# ----------------------------------------------------------------------------
# Kernel 1: conv0 as an im2col GEMM (+ folded conv-bias/BN scale-shift)
#   Cin is tiny (e.g. 4) so K = 9*Cin stays a single full-extent block (no padding).
# ----------------------------------------------------------------------------
def _conv0_kernel(x_ref, w_ref, scale_ref, shift_ref, o_ref):
    acc = jnp.dot(x_ref[...], w_ref[...], preferred_element_type=jnp.float32)
    o_ref[...] = (acc * scale_ref[...] + shift_ref[...]).astype(o_ref.dtype)


def conv0_gemm(cols, w, scale, shift, *, out_dtype=jnp.bfloat16):
    M, K = cols.shape
    _, N = w.shape
    tm = _pick_rows_tile(M, pref=512)
    return pl.pallas_call(
        _conv0_kernel,
        out_shape=jax.ShapeDtypeStruct((M, N), out_dtype),
        grid=(M // tm,),
        in_specs=[
            pl.BlockSpec((tm, K), lambda i: (i, 0)),
            _invariant_spec((K, N), lambda i: (0, 0)),
            _invariant_spec((1, N), lambda i: (0, 0)),
            _invariant_spec((1, N), lambda i: (0, 0)),
        ],
        out_specs=pl.BlockSpec((tm, N), lambda i: (i, 0)),
        compiler_params=pltpu.CompilerParams(
            dimension_semantics=("parallel",),
            vmem_limit_bytes=32 * 1024 * 1024),
    )(cols.astype(jnp.bfloat16), w,
      scale.reshape(1, N).astype(jnp.float32),
      shift.reshape(1, N).astype(jnp.float32))


# ----------------------------------------------------------------------------
# Kernel 2: fused conv1 + BN1 + conv2 + BN2 + ReLU + AdaptiveAvgPool2d((1,1))
#
# The wrapper phase-decomposes conv0's (zero-padded) output per conv1's stride so that
# every (ky,kx) tap of conv1 is a contiguous slab covering ALL bt images of the group.
# conv1 writes its (scale/shift + border-masked) output straight into a VMEM scratch
# that already is conv2's zero-padded input grid; conv2 (stride-1 formulation; a
# stride-2 conv2 is realized by sub-sampling through the pooling selection matrix)
# then runs from that scratch and the per-image pooled mean is one small MXU matmul.
# ----------------------------------------------------------------------------
def _fused_conv_gap_kernel(x_ref, w1_ref, sc1_ref, sh1_ref, m1_ref,
                           w2_ref, sc2_ref, sh2_ref, sel_ref,
                           o_ref, col_sc, mid_sc, *,
                           M, RT, Q, tap_offs1, inv_cnt, C):
    R_mid = mid_sc.shape[0]
    # slack rows are read by junk conv2 output rows -> must be finite (zero)
    mid_sc[pl.ds(M, R_mid - M), :] = jnp.zeros((R_mid - M, C), mid_sc.dtype)

    bt = o_ref.shape[1]
    pooled = jnp.zeros((bt, C), jnp.float32)

    # ---- conv1 + BN1 (border / junk rows masked to zero) -> mid scratch ----
    for r0 in range(0, M, RT):
        rt = min(RT, M - r0)
        for t, off in enumerate(tap_offs1):
            col_sc[pl.ds(0, rt), pl.ds(t * C, C)] = x_ref[0, pl.ds(off + r0, rt), :]
        acc = jnp.dot(col_sc[pl.ds(0, rt), :], w1_ref[...],
                      preferred_element_type=jnp.float32)
        acc = (acc * sc1_ref[...] + sh1_ref[...]) * m1_ref[pl.ds(r0, rt), :]
        mid_sc[pl.ds(r0, rt), :] = acc.astype(mid_sc.dtype)

    # ---- conv2 + BN2 + ReLU + masked per-image global average pool ----
    for r0 in range(0, M, RT):
        rt = min(RT, M - r0)
        for ky in range(3):
            for kx in range(3):
                t = ky * 3 + kx
                col_sc[pl.ds(0, rt), pl.ds(t * C, C)] = (
                    mid_sc[pl.ds(r0 + ky * Q + kx, rt), :])
        acc = jnp.dot(col_sc[pl.ds(0, rt), :], w2_ref[...],
                      preferred_element_type=jnp.float32)
        acc = jnp.maximum(acc * sc2_ref[...] + sh2_ref[...], 0.0)
        pooled = pooled + jnp.dot(sel_ref[:, pl.ds(r0, rt)],
                                  acc.astype(jnp.bfloat16),
                                  preferred_element_type=jnp.float32)

    o_ref[0] = (pooled * inv_cnt).astype(o_ref.dtype)


def fused_conv1_conv2_gap(h0, w1, scale1, shift1, w2, scale2, shift2,
                          *, s1, s2, out_dtype=jnp.bfloat16):
    """h0: (B, H1, W1, 256) conv0 output.  Returns pooled features (B, 256)."""
    B, H1, W1, C = h0.shape
    H2 = (H1 - 1) // s1 + 1
    W2 = (W1 - 1) // s1 + 1
    H3 = (H2 - 1) // s2 + 1
    W3 = (W2 - 1) // s2 + 1

    d1 = 2 // s1                 # max within-phase tap offset for conv1
    e1 = 1 if s1 == 1 else 0     # extra ring so valid taps never leave the block
    P = H2 + 2 + e1              # per-image extended grid (conv2's padded grid fits in it)
    Q = W2 + 2 + e1

    bt = _pick_group(B, P * Q, target_rows=256)
    G = B // bt
    M = bt * P * Q               # rows of every tap matmul (batch folded into M)

    # --- wrapper: zero-pad + stride-phase-decompose + group-batch + flatten (1 pass) ---
    pb = 1 + s1
    X = jnp.pad(h0, ((0, 0),
                     (pb, P * s1 - H1 - pb),
                     (pb, Q * s1 - W1 - pb),
                     (0, 0)))
    X = X.reshape(B, P, s1, Q, s1, C)
    X = jnp.transpose(X, (0, 2, 4, 1, 3, 5))          # (B, py, px, P, Q, C)
    X = X.reshape(G, bt, s1 * s1, P, Q, C)
    X = jnp.transpose(X, (0, 2, 1, 3, 4, 5))          # (G, phase, img, P, Q, C)
    X = X.reshape(G, s1 * s1 * M, C)
    slack = d1 * Q + d1
    rows_g = _round_up(s1 * s1 * M + slack, 8)
    X = jnp.pad(X, ((0, 0), (0, rows_g - s1 * s1 * M), (0, 0)))

    # --- precomputed masks (static geometry; identical for every group) ---
    Mp8 = _round_up(M, 8)
    Msel = _round_up(M, 128)
    m1 = np.zeros((Mp8, 1), np.float32)                 # conv1 border/junk mask
    sel = np.zeros((bt, Msel), np.float32)              # per-image pooling selection
    for b in range(bt):
        for h in range(P):
            for w in range(Q):
                m = (b * P + h) * Q + w
                if 1 <= h <= H2 and 1 <= w <= W2:
                    m1[m, 0] = 1.0
                if h % s2 == 0 and w % s2 == 0 and h // s2 < H3 and w // s2 < W3:
                    sel[b, m] = 1.0

    tap_offs1 = tuple(((ky % s1) * s1 + (kx % s1)) * M + (ky // s1) * Q + (kx // s1)
                      for ky in range(3) for kx in range(3))

    RT = min(256, M)                                    # row tile (bounds vreg pressure)
    col_rows = _round_up(RT, 8)
    R_mid = _round_up(M + 2 * Q + 2, 8)

    kernel = functools.partial(_fused_conv_gap_kernel, M=M, RT=RT, Q=Q,
                               tap_offs1=tap_offs1, inv_cnt=1.0 / (H3 * W3), C=C)

    out = pl.pallas_call(
        kernel,
        out_shape=jax.ShapeDtypeStruct((G, bt, C), out_dtype),
        grid=(G,),
        in_specs=[
            pl.BlockSpec((1, rows_g, C), lambda g: (g, 0, 0)),
            _invariant_spec((9 * C, C), lambda g: (0, 0)),
            _invariant_spec((1, C), lambda g: (0, 0)),
            _invariant_spec((1, C), lambda g: (0, 0)),
            _invariant_spec((Mp8, 1), lambda g: (0, 0)),
            _invariant_spec((9 * C, C), lambda g: (0, 0)),
            _invariant_spec((1, C), lambda g: (0, 0)),
            _invariant_spec((1, C), lambda g: (0, 0)),
            _invariant_spec((bt, Msel), lambda g: (0, 0)),
        ],
        out_specs=pl.BlockSpec((1, bt, C), lambda g: (g, 0, 0)),
        scratch_shapes=[
            pltpu.VMEM((col_rows, 9 * C), jnp.bfloat16),   # im2col gather scratch
            pltpu.VMEM((R_mid, C), jnp.bfloat16),          # conv1->conv2 activation
        ],
        compiler_params=pltpu.CompilerParams(
            dimension_semantics=("parallel",),
            vmem_limit_bytes=32 * 1024 * 1024),
    )(X.astype(jnp.bfloat16), w1,
      scale1.reshape(1, C).astype(jnp.float32), shift1.reshape(1, C).astype(jnp.float32),
      jnp.asarray(m1),
      w2,
      scale2.reshape(1, C).astype(jnp.float32), shift2.reshape(1, C).astype(jnp.float32),
      jnp.asarray(sel, dtype=jnp.bfloat16))
    return out.reshape(B, C)


# ----------------------------------------------------------------------------
# Kernel 3: fused MLP head
#   Linear(256,512)+ReLU, Linear(512,1024) -> x2 ; ReLU, Dropout(eval id),
#   Linear(1024, cates_padded) -> y.  All weights VMEM-resident, one launch.
# ----------------------------------------------------------------------------
def _head_kernel(x_ref, w0_ref, b0_ref, w1_ref, b1_ref, wc_ref, bc_ref,
                 x2_ref, y_ref):
    h0 = jnp.dot(x_ref[...], w0_ref[...], preferred_element_type=jnp.float32)
    h0 = jnp.maximum(h0 + b0_ref[...], 0.0)
    x2 = jnp.dot(h0.astype(jnp.bfloat16), w1_ref[...],
                 preferred_element_type=jnp.float32) + b1_ref[...]
    x2_ref[...] = x2.astype(x2_ref.dtype)
    # classifier: ReLU -> Dropout(0.2) -> Linear
    # TODO(synk): Dropout(0.2) is implemented as eval-mode identity (no RNG mask).
    h2 = jnp.maximum(x2_ref[...], 0.0).astype(jnp.bfloat16)   # re-read: bounds live range
    y_ref[...] = (jnp.dot(h2, wc_ref[...], preferred_element_type=jnp.float32)
                  + bc_ref[...]).astype(y_ref.dtype)


def mlp_head(x1, w0, b0, w1, b1, wc, bc, *, tm=64):
    B, d_in = x1.shape
    n0, n1, nc = w0.shape[1], w1.shape[1], wc.shape[1]
    tm = _pick_tile(B, tm, 8)
    if B // tm < 2 and tm % 16 == 0 and B % (tm // 2) == 0:
        tm //= 2                                        # 2 blocks for v7x when possible
    b0 = b0.reshape(1, n0)
    b1 = b1.reshape(1, n1)
    bc = bc.reshape(1, nc)
    return pl.pallas_call(
        _head_kernel,
        out_shape=(jax.ShapeDtypeStruct((B, n1), jnp.float32),
                   jax.ShapeDtypeStruct((B, nc), jnp.float32)),
        grid=(B // tm,),
        in_specs=[
            pl.BlockSpec((tm, d_in), lambda i: (i, 0)),
            _invariant_spec((d_in, n0), lambda i: (0, 0)),
            _invariant_spec((1, n0), lambda i: (0, 0)),
            _invariant_spec((n0, n1), lambda i: (0, 0)),
            _invariant_spec((1, n1), lambda i: (0, 0)),
            _invariant_spec((n1, nc), lambda i: (0, 0)),
            _invariant_spec((1, nc), lambda i: (0, 0)),
        ],
        out_specs=(pl.BlockSpec((tm, n1), lambda i: (i, 0)),
                   pl.BlockSpec((tm, nc), lambda i: (i, 0))),
        compiler_params=pltpu.CompilerParams(
            dimension_semantics=("parallel",),
            vmem_limit_bytes=32 * 1024 * 1024),
    )(x1.astype(jnp.bfloat16), w0, b0, w1, b1, wc, bc)


# ----------------------------------------------------------------------------
# plain-JAX glue (conv0 im2col only; Cin is tiny) and parameter preparation
# ----------------------------------------------------------------------------
def im2col_3x3(x_nhwc, stride):
    B, H, W, C = x_nhwc.shape
    xp = jnp.pad(x_nhwc, ((0, 0), (1, 1), (1, 1), (0, 0)))
    Ho = (H - 1) // stride + 1
    Wo = (W - 1) // stride + 1
    taps = []
    for ky in range(3):
        for kx in range(3):
            taps.append(xp[:, ky:ky + stride * (Ho - 1) + 1:stride,
                           kx:kx + stride * (Wo - 1) + 1:stride, :])
    p = jnp.stack(taps, axis=3)                      # (B, Ho, Wo, 9, C)
    return p.reshape(B * Ho * Wo, 9 * C), Ho, Wo


def fold_conv_bn(conv_b, gamma, beta, mean, var, eps=1e-5):
    inv = gamma / jnp.sqrt(var + eps)
    return inv, beta + (conv_b - mean) * inv


def strides_for(size):
    if size in (7, 4):
        return [1, 1, 1]
    if size in (14, 8):
        return [2, 1, 1]
    if size in (28, 16):
        return [2, 2, 1]
    return [2, 2, 2]


def init_params(key, channel, cates):
    ks = jax.random.split(key, 32)
    k = iter(range(32))

    def nrm(kk, shape, s=0.05):
        return s * jax.random.normal(ks[kk], shape, dtype=jnp.float32)

    params = {}
    c_in = [channel, 256, 256]
    for li in range(3):
        params[f"conv{li}_w"] = nrm(next(k), (3, 3, c_in[li], 256))   # (KH,KW,Cin,Cout)
        params[f"conv{li}_b"] = nrm(next(k), (256,))
        params[f"bn{li}_gamma"] = 1.0 + nrm(next(k), (256,), 0.02)
        params[f"bn{li}_beta"] = nrm(next(k), (256,), 0.02)
        params[f"bn{li}_mean"] = nrm(next(k), (256,), 0.02)
        params[f"bn{li}_var"] = 1.0 + jnp.abs(nrm(next(k), (256,), 0.05))

    params["lin0_w"] = nrm(next(k), (256, 512))
    params["lin0_b"] = nrm(next(k), (512,))
    params["lin1_w"] = nrm(next(k), (512, 1024))
    params["lin1_b"] = nrm(next(k), (1024,))
    params["cls_w"] = nrm(next(k), (1024, cates))
    params["cls_b"] = nrm(next(k), (cates,))
    return params


def prepare_params(params, channel, cates):
    """One-time prep: fold conv bias + eval-mode BN into per-channel scale/shift,
    cast matmul operands to bf16, reshape conv weights to (9*Cin, Cout), pad the
    classifier output dim to a multiple of 128 for lane-dense stores."""
    p = {}
    p["conv0_w"] = params["conv0_w"].reshape(9 * channel, 256).astype(jnp.bfloat16)
    s, sh = fold_conv_bn(params["conv0_b"], params["bn0_gamma"], params["bn0_beta"],
                         params["bn0_mean"], params["bn0_var"])
    p["conv0_scale"], p["conv0_shift"] = s, sh

    for li in (1, 2):
        p[f"conv{li}_w"] = params[f"conv{li}_w"].reshape(9 * 256, 256).astype(jnp.bfloat16)
        s, sh = fold_conv_bn(params[f"conv{li}_b"], params[f"bn{li}_gamma"],
                             params[f"bn{li}_beta"], params[f"bn{li}_mean"],
                             params[f"bn{li}_var"])
        p[f"conv{li}_scale"], p[f"conv{li}_shift"] = s, sh

    p["lin0_w"] = params["lin0_w"].astype(jnp.bfloat16)
    p["lin0_b"] = params["lin0_b"].astype(jnp.float32)
    p["lin1_w"] = params["lin1_w"].astype(jnp.bfloat16)
    p["lin1_b"] = params["lin1_b"].astype(jnp.float32)
    ncp = _round_up(cates, 128)
    p["cls_w"] = jnp.pad(params["cls_w"], ((0, 0), (0, ncp - cates))).astype(jnp.bfloat16)
    p["cls_b"] = jnp.pad(params["cls_b"], (0, ncp - cates)).astype(jnp.float32)
    return p


# ----------------------------------------------------------------------------
# Forward pass (matches AuxiliaryClassifier.forward in eval mode)
# ----------------------------------------------------------------------------
def auxiliary_classifier_forward(prep, x_nchw, *, size, cates):
    s0, s1, s2 = strides_for(size)
    x = jnp.transpose(x_nchw, (0, 2, 3, 1)).astype(jnp.bfloat16)   # NCHW -> NHWC
    B = x.shape[0]

    # conv0 + BN0 (tiny Cin): cheap im2col -> fused GEMM kernel (no K padding)
    cols, H1, W1 = im2col_3x3(x, s0)
    h0 = conv0_gemm(cols, prep["conv0_w"], prep["conv0_scale"], prep["conv0_shift"])
    h0 = h0.reshape(B, H1, W1, 256)

    # conv1 + BN1 + conv2 + BN2 + ReLU + AdaptiveAvgPool2d((1,1)), fused -> (B, 256)
    x1 = fused_conv1_conv2_gap(h0,
                               prep["conv1_w"], prep["conv1_scale"], prep["conv1_shift"],
                               prep["conv2_w"], prep["conv2_scale"], prep["conv2_shift"],
                               s1=s1, s2=s2)

    # fused head: Linear+ReLU, Linear -> x2 ; ReLU, Dropout(eval id), Linear -> y
    x2, y_pad = mlp_head(x1, prep["lin0_w"], prep["lin0_b"], prep["lin1_w"],
                         prep["lin1_b"], prep["cls_w"], prep["cls_b"])
    return x2, y_pad[:, :cates]


# ----------------------------------------------------------------------------
if __name__ == "__main__":
    channel, size, cates = 4, 16, 10
    batch = 2

    _ = _buffered_supported()     # probe Buffered(1) support once, outside jit

    key = jax.random.PRNGKey(0)
    k_x, k_p = jax.random.split(key)
    x = jax.random.normal(k_x, (batch, channel, size, size), dtype=jnp.float32)  # NCHW
    params = init_params(k_p, channel, cates)
    prep = prepare_params(params, channel, cates)

    fwd = jax.jit(functools.partial(auxiliary_classifier_forward,
                                    size=size, cates=cates))
    x2, y = fwd(prep, x)
    x2 = jax.block_until_ready(x2)
    y = jax.block_until_ready(y)

    assert x2.shape == (batch, 1024), x2.shape
    assert y.shape == (batch, cates), y.shape
    assert jnp.all(jnp.isfinite(x2)) and jnp.all(jnp.isfinite(y))
    print("KERNEL_OK")
</pallas_src>

<mosaic_0001>
module attributes {stable_mosaic.version = 11 : i64} {
  func.func @_conv0_kernel(%arg0: i32, %arg1: memref<64x36xbf16, #tpu.memory_space<vmem>>, %arg2: memref<36x256xbf16, #tpu.memory_space<vmem>>, %arg3: memref<1x256xf32, #tpu.memory_space<vmem>>, %arg4: memref<1x256xf32, #tpu.memory_space<vmem>>, %arg5: memref<64x256xbf16, #tpu.memory_space<vmem>>) attributes {dimension_semantics = [#tpu.dimension_semantics<parallel>], iteration_bounds = array<i64: 2>, scalar_prefetch = 0 : i64, scratch_operands = 0 : i64, tpu.core_type = #tpu.core_type<tc>, window_params = [{transform_indices = @transform_0, window_bounds = array<i64: 64, 36>}, {pipeline_mode = #tpu.pipeline_mode<synchronous>, transform_indices = @transform_1, window_bounds = array<i64: 36, 256>}, {pipeline_mode = #tpu.pipeline_mode<synchronous>, transform_indices = @transform_2, window_bounds = array<i64: 1, 256>}, {pipeline_mode = #tpu.pipeline_mode<synchronous>, transform_indices = @transform_3, window_bounds = array<i64: 1, 256>}, {transform_indices = @transform_4, window_bounds = array<i64: 64, 256>}]} {
    %c0 = arith.constant 0 : index
    %c0_0 = arith.constant 0 : index
    %0 = vector.load %arg1[%c0, %c0_0] : memref<64x36xbf16, #tpu.memory_space<vmem>>, vector<64x36xbf16>
    %c0_1 = arith.constant 0 : index
    %c0_2 = arith.constant 0 : index
    %1 = vector.load %arg2[%c0_1, %c0_2] : memref<36x256xbf16, #tpu.memory_space<vmem>>, vector<36x256xbf16>
    %cst = arith.constant dense<0.000000e+00> : vector<64x256xf32>
    %2 = tpu.matmul %0, %1, %cst {dimension_numbers = #tpu.dot_dimension_numbers<[1], [0], [0], [1], [0, 0, 1, 1], [], []>} : vector<64x36xbf16>, vector<36x256xbf16>, vector<64x256xf32> -> vector<64x256xf32>
    %c0_3 = arith.constant 0 : index
    %c0_4 = arith.constant 0 : index
    %3 = vector.load %arg3[%c0_3, %c0_4] : memref<1x256xf32, #tpu.memory_space<vmem>>, vector<1x256xf32>
    %4 = vector.broadcast %3 : vector<1x256xf32> to vector<64x256xf32>
    %5 = arith.mulf %2, %4 : vector<64x256xf32>
    %c0_5 = arith.constant 0 : index
    %c0_6 = arith.constant 0 : index
    %6 = vector.load %arg4[%c0_5, %c0_6] : memref<1x256xf32, #tpu.memory_space<vmem>>, vector<1x256xf32>
    %7 = vector.broadcast %6 : vector<1x256xf32> to vector<64x256xf32>
    %8 = arith.addf %5, %7 : vector<64x256xf32>
    %9 = arith.truncf %8 : vector<64x256xf32> to vector<64x256xbf16>
    %c0_7 = arith.constant 0 : index
    %c0_8 = arith.constant 0 : index
    %10 = vector.load %arg5[%c0_7, %c0_8] : memref<64x256xbf16, #tpu.memory_space<vmem>>, vector<64x256xbf16>
    tpu.vector_store %arg5[%c0_7, %c0_8], %9 {strides = array<i32>} : memref<64x256xbf16, #tpu.memory_space<vmem>>, vector<64x256xbf16>,
    return
  }
  func.func @transform_0(%arg0: i32) -> (i32, i32) {
    %c0_i32 = arith.constant 0 : i32
    %c0_i32_0 = arith.constant 0 : i32
    return %arg0, %c0_i32 : i32, i32
  }
  func.func @transform_1(%arg0: i32) -> (i32, i32) {
    %c0_i32 = arith.constant 0 : i32
    %c0_i32_0 = arith.constant 0 : i32
    %c0_i32_1 = arith.constant 0 : i32
    return %c0_i32, %c0_i32_0 : i32, i32
  }
  func.func @transform_2(%arg0: i32) -> (i32, i32) {
    %c0_i32 = arith.constant 0 : i32
    %c0_i32_0 = arith.constant 0 : i32
    %c0_i32_1 = arith.constant 0 : i32
    return %c0_i32, %c0_i32_0 : i32, i32
  }
  func.func @transform_3(%arg0: i32) -> (i32, i32) {
    %c0_i32 = arith.constant 0 : i32
    %c0_i32_0 = arith.constant 0 : i32
    %c0_i32_1 = arith.constant 0 : i32
    return %c0_i32, %c0_i32_0 : i32, i32
  }
  func.func @transform_4(%arg0: i32) -> (i32, i32) {
    %c0_i32 = arith.constant 0 : i32
    %c0_i32_0 = arith.constant 0 : i32
    return %arg0, %c0_i32 : i32, i32
  }
}

module attributes {stable_mosaic.version = 11 : i64} {
  func.func @_fused_conv_gap_kernel(%arg0: i32, %arg1: memref<1x152x256xbf16, #tpu.memory_space<vmem>>, %arg2: memref<2304x256xbf16, #tpu.memory_space<vmem>>, %arg3: memref<1x256xf32, #tpu.memory_space<vmem>>, %arg4: memref<1x256xf32, #tpu.memory_space<vmem>>, %arg5: memref<40x1xf32, #tpu.memory_space<vmem>>, %arg6: memref<2304x256xbf16, #tpu.memory_space<vmem>>, %arg7: memref<1x256xf32, #tpu.memory_space<vmem>>, %arg8: memref<1x256xf32, #tpu.memory_space<vmem>>, %arg9: memref<1x128xbf16, #tpu.memory_space<vmem>>, %arg10: memref<1x1x256xbf16, #tpu.memory_space<vmem>>, %arg11: memref<40x2304xbf16, #tpu.memory_space<vmem>>, %arg12: memref<56x256xbf16, #tpu.memory_space<vmem>>) attributes {dimension_semantics = [#tpu.dimension_semantics<parallel>], iteration_bounds = array<i64: 2>, scalar_prefetch = 0 : i64, scratch_operands = 2 : i64, tpu.core_type = #tpu.core_type<tc>, window_params = [{transform_indices = @transform_0, window_bounds = array<i64: 1, 152, 256>}, {pipeline_mode = #tpu.pipeline_mode<synchronous>, transform_indices = @transform_1, window_bounds = array<i64: 2304, 256>}, {pipeline_mode = #tpu.pipeline_mode<synchronous>, transform_indices = @transform_2, window_bounds = array<i64: 1, 256>}, {pipeline_mode = #tpu.pipeline_mode<synchronous>, transform_indices = @transform_3, window_bounds = array<i64: 1, 256>}, {pipeline_mode = #tpu.pipeline_mode<synchronous>, transform_indices = @transform_4, window_bounds = array<i64: 40, 1>}, {pipeline_mode = #tpu.pipeline_mode<synchronous>, transform_indices = @transform_5, window_bounds = array<i64: 2304, 256>}, {pipeline_mode = #tpu.pipeline_mode<synchronous>, transform_indices = @transform_6, window_bounds = array<i64: 1, 256>}, {pipeline_mode = #tpu.pipeline_mode<synchronous>, transform_indices = @transform_7, window_bounds = array<i64: 1, 256>}, {pipeline_mode = #tpu.pipeline_mode<synchronous>, transform_indices = @transform_8, window_bounds = array<i64: 1, 128>}, {transform_indices = @transform_9, window_bounds = array<i64: 1, 1, 256>}]} {
    %cst = arith.constant 0.000000e+00 : bf16
    %0 = vector.broadcast %cst : bf16 to vector<20x256xbf16>
    %c36 = arith.constant 36 : index
    %c0 = arith.constant 0 : index
    %1 = vector.load %arg12[%c36, %c0] : memref<56x256xbf16, #tpu.memory_space<vmem>>, vector<20x256xbf16>
    tpu.vector_store %arg12[%c36, %c0], %0 {strides = array<i32>} : memref<56x256xbf16, #tpu.memory_space<vmem>>, vector<20x256xbf16>,
    %cst_0 = arith.constant 0.000000e+00 : f32
    %2 = vector.broadcast %cst_0 : f32 to vector<1x256xf32>
    %c0_1 = arith.constant 0 : index
    %c0_2 = arith.constant 0 : index
    %c0_3 = arith.constant 0 : index
    %3 = vector.load %arg1[%c0_1, %c0_2, %c0_3] : memref<1x152x256xbf16, #tpu.memory_space<vmem>>, vector<1x36x256xbf16>
    %4 = vector.shape_cast %3 : vector<1x36x256xbf16> to vector<36x256xbf16>
    %c0_4 = arith.constant 0 : index
    %c0_5 = arith.constant 0 : index
    %5 = vector.load %arg11[%c0_4, %c0_5] : memref<40x2304xbf16, #tpu.memory_space<vmem>>, vector<36x256xbf16>
    tpu.vector_store %arg11[%c0_4, %c0_5], %4 {strides = array<i32>} : memref<40x2304xbf16, #tpu.memory_space<vmem>>, vector<36x256xbf16>,
    %c0_6 = arith.constant 0 : index
    %c36_7 = arith.constant 36 : index
    %c0_8 = arith.constant 0 : index
    %6 = vector.load %arg1[%c0_6, %c36_7, %c0_8] : memref<1x152x256xbf16, #tpu.memory_space<vmem>>, vector<1x36x256xbf16>
    %7 = vector.shape_cast %6 : vector<1x36x256xbf16> to vector<36x256xbf16>
    %c0_9 = arith.constant 0 : index
    %c256 = arith.constant 256 : index
    %8 = vector.load %arg11[%c0_9, %c256] : memref<40x2304xbf16, #tpu.memory_space<vmem>>, vector<36x256xbf16>
    tpu.vector_store %arg11[%c0_9, %c256], %7 {strides = array<i32>} : memref<40x2304xbf16, #tpu.memory_space<vmem>>, vector<36x256xbf16>,
    %c0_10 = arith.constant 0 : index
    %c1 = arith.constant 1 : index
    %c0_11 = arith.constant 0 : index
    %9 = vector.load %arg1[%c0_10, %c1, %c0_11] : memref<1x152x256xbf16, #tpu.memory_space<vmem>>, vector<1x36x256xbf16>
    %10 = vector.shape_cast %9 : vector<1x36x256xbf16> to vector<36x256xbf16>
    %c0_12 = arith.constant 0 : index
    %c512 = arith.constant 512 : index
    %11 = vector.load %arg11[%c0_12, %c512] : memref<40x2304xbf16, #tpu.memory_space<vmem>>, vector<36x256xbf16>
    tpu.vector_store %arg11[%c0_12, %c512], %10 {strides = array<i32>} : memref<40x2304xbf16, #tpu.memory_space<vmem>>, vector<36x256xbf16>,
    %c0_13 = arith.constant 0 : index
    %c72 = arith.constant 72 : index
    %c0_14 = arith.constant 0 : index
    %12 = vector.load %arg1[%c0_13, %c72, %c0_14] : memref<1x152x256xbf16, #tpu.memory_space<vmem>>, vector<1x36x256xbf16>
    %13 = vector.shape_cast %12 : vector<1x36x256xbf16> to vector<36x256xbf16>
    %c0_15 = arith.constant 0 : index
    %c768 = arith.constant 768 : index
    %14 = vector.load %arg11[%c0_15, %c768] : memref<40x2304xbf16, #tpu.memory_space<vmem>>, vector<36x256xbf16>
    tpu.vector_store %arg11[%c0_15, %c768], %13 {strides = array<i32>} : memref<40x2304xbf16, #tpu.memory_space<vmem>>, vector<36x256xbf16>,
    %c0_16 = arith.constant 0 : index
    %c108 = arith.constant 108 : index
    %c0_17 = arith.constant 0 : index
    %15 = vector.load %arg1[%c0_16, %c108, %c0_17] : memref<1x152x256xbf16, #tpu.memory_space<vmem>>, vector<1x36x256xbf16>
    %16 = vector.shape_cast %15 : vector<1x36x256xbf16> to vector<36x256xbf16>
    %c0_18 = arith.constant 0 : index
    %c1024 = arith.constant 1024 : index
    %17 = vector.load %arg11[%c0_18, %c1024] : memref<40x2304xbf16, #tpu.memory_space<vmem>>, vector<36x256xbf16>
    tpu.vector_store %arg11[%c0_18, %c1024], %16 {strides = array<i32>} : memref<40x2304xbf16, #tpu.memory_space<vmem>>, vector<36x256xbf16>,
    %c0_19 = arith.constant 0 : index
    %c73 = arith.constant 73 : index
    %c0_20 = arith.constant 0 : index
    %18 = vector.load %arg1[%c0_19, %c73, %c0_20] : memref<1x152x256xbf16, #tpu.memory_space<vmem>>, vector<1x36x256xbf16>
    %19 = vector.shape_cast %18 : vector<1x36x256xbf16> to vector<36x256xbf16>
    %c0_21 = arith.constant 0 : index
    %c1280 = arith.constant 1280 : index
    %20 = vector.load %arg11[%c0_21, %c1280] : memref<40x2304xbf16, #tpu.memory_space<vmem>>, vector<36x256xbf16>
    tpu.vector_store %arg11[%c0_21, %c1280], %19 {strides = array<i32>} : memref<40x2304xbf16, #tpu.memory_space<vmem>>, vector<36x256xbf16>,
    %c0_22 = arith.constant 0 : index
    %c6 = arith.constant 6 : index
    %c0_23 = arith.constant 0 : index
    %21 = vector.load %arg1[%c0_22, %c6, %c0_23] : memref<1x152x256xbf16, #tpu.memory_space<vmem>>, vector<1x36x256xbf16>
    %22 = vector.shape_cast %21 : vector<1x36x256xbf16> to vector<36x256xbf16>
    %c0_24 = arith.constant 0 : index
    %c1536 = arith.constant 1536 : index
    %23 = vector.load %arg11[%c0_24, %c1536] : memref<40x2304xbf16, #tpu.memory_space<vmem>>, vector<36x256xbf16>
    tpu.vector_store %arg11[%c0_24, %c1536], %22 {strides = array<i32>} : memref<40x2304xbf16, #tpu.memory_space<vmem>>, vector<36x256xbf16>,
    %c0_25 = arith.constant 0 : index
    %c42 = arith.constant 42 : index
    %c0_26 = arith.constant 0 : index
    %24 = vector.load %arg1[%c0_25, %c42, %c0_26] : memref<1x152x256xbf16, #tpu.memory_space<vmem>>, vector<1x36x256xbf16>
    %25 = vector.shape_cast %24 : vector<1x36x256xbf16> to vector<36x256xbf16>
    %c0_27 = arith.constant 0 : index
    %c1792 = arith.constant 1792 : index
    %26 = vector.load %arg11[%c0_27, %c1792] : memref<40x2304xbf16, #tpu.memory_space<vmem>>, vector<36x256xbf16>
    tpu.vector_store %arg11[%c0_27, %c1792], %25 {strides = array<i32>} : memref<40x2304xbf16, #tpu.memory_space<vmem>>, vector<36x256xbf16>,
    %c0_28 = arith.constant 0 : index
    %c7 = arith.constant 7 : index
    %c0_29 = arith.constant 0 : index
    %27 = vector.load %arg1[%c0_28, %c7, %c0_29] : memref<1x152x256xbf16, #tpu.memory_space<vmem>>, vector<1x36x256xbf16>
    %28 = vector.shape_cast %27 : vector<1x36x256xbf16> to vector<36x256xbf16>
    %c0_30 = arith.constant 0 : index
    %c2048 = arith.constant 2048 : index
    %29 = vector.load %arg11[%c0_30, %c2048] : memref<40x2304xbf16, #tpu.memory_space<vmem>>, vector<36x256xbf16>
    tpu.vector_store %arg11[%c0_30, %c2048], %28 {strides = array<i32>} : memref<40x2304xbf16, #tpu.memory_space<vmem>>, vector<36x256xbf16>,
    %c0_31 = arith.constant 0 : index
    %c0_32 = arith.constant 0 : index
    %30 = vector.load %arg11[%c0_31, %c0_32] : memref<40x2304xbf16, #tpu.memory_space<vmem>>, vector<36x2304xbf16>
    %c0_33 = arith.constant 0 : index
    %c0_34 = arith.constant 0 : index
    %31 = vector.load %arg2[%c0_33, %c0_34] : memref<2304x256xbf16, #tpu.memory_space<vmem>>, vector<2304x256xbf16>
    %cst_35 = arith.constant dense<0.000000e+00> : vector<36x256xf32>
    %32 = tpu.matmul %30, %31, %cst_35 {dimension_numbers = #tpu.dot_dimension_numbers<[1], [0], [0], [1], [0, 0, 1, 1], [], []>} : vector<36x2304xbf16>, vector<2304x256xbf16>, vector<36x256xf32> -> vector<36x256xf32>
    %c0_36 = arith.constant 0 : index
    %c0_37 = arith.constant 0 : index
    %33 = vector.load %arg3[%c0_36, %c0_37] : memref<1x256xf32, #tpu.memory_space<vmem>>, vector<1x256xf32>
    %34 = vector.broadcast %33 : vector<1x256xf32> to vector<36x256xf32>
    %35 = arith.mulf %32, %34 : vector<36x256xf32>
    %c0_38 = arith.constant 0 : index
    %c0_39 = arith.constant 0 : index
    %36 = vector.load %arg4[%c0_38, %c0_39] : memref<1x256xf32, #tpu.memory_space<vmem>>, vector<1x256xf32>
    %37 = vector.broadcast %36 : vector<1x256xf32> to vector<36x256xf32>
    %38 = arith.addf %35, %37 : vector<36x256xf32>
    %c0_40 = arith.constant 0 : index
    %c0_41 = arith.constant 0 : index
    %39 = vector.load %arg5[%c0_40, %c0_41] : memref<40x1xf32, #tpu.memory_space<vmem>>, vector<36x1xf32>
    %40 = vector.broadcast %39 : vector<36x1xf32> to vector<36x256xf32>
    %41 = arith.mulf %38, %40 : vector<36x256xf32>
    %42 = arith.truncf %41 : vector<36x256xf32> to vector<36x256xbf16>
    %c0_42 = arith.constant 0 : index
    %c0_43 = arith.constant 0 : index
    %43 = vector.load %arg12[%c0_42, %c0_43] : memref<56x256xbf16, #tpu.memory_space<vmem>>, vector<36x256xbf16>
    tpu.vector_store %arg12[%c0_42, %c0_43], %42 {strides = array<i32>} : memref<56x256xbf16, #tpu.memory_space<vmem>>, vector<36x256xbf16>,
    %c0_44 = arith.constant 0 : index
    %c0_45 = arith.constant 0 : index
    %44 = vector.load %arg12[%c0_44, %c0_45] : memref<56x256xbf16, #tpu.memory_space<vmem>>, vector<36x256xbf16>
    %c0_46 = arith.constant 0 : index
    %c0_47 = arith.constant 0 : index
    %45 = vector.load %arg11[%c0_46, %c0_47] : memref<40x2304xbf16, #tpu.memory_space<vmem>>, vector<36x256xbf16>
    tpu.vector_store %arg11[%c0_46, %c0_47], %44 {strides = array<i32>} : memref<40x2304xbf16, #tpu.memory_space<vmem>>, vector<36x256xbf16>,
    %c1_48 = arith.constant 1 : index
    %c0_49 = arith.constant 0 : index
    %46 = vector.load %arg12[%c1_48, %c0_49] : memref<56x256xbf16, #tpu.memory_space<vmem>>, vector<36x256xbf16>
    %c0_50 = arith.constant 0 : index
    %c256_51 = arith.constant 256 : index
    %47 = vector.load %arg11[%c0_50, %c256_51] : memref<40x2304xbf16, #tpu.memory_space<vmem>>, vector<36x256xbf16>
    tpu.vector_store %arg11[%c0_50, %c256_51], %46 {strides = array<i32>} : memref<40x2304xbf16, #tpu.memory_space<vmem>>, vector<36x256xbf16>,
    %c2 = arith.constant 2 : index
    %c0_52 = arith.constant 0 : index
    %48 = vector.load %arg12[%c2, %c0_52] : memref<56x256xbf16, #tpu.memory_space<vmem>>, vector<36x256xbf16>
    %c0_53 = arith.constant 0 : index
    %c512_54 = arith.constant 512 : index
    %49 = vector.load %arg11[%c0_53, %c512_54] : memref<40x2304xbf16, #tpu.memory_space<vmem>>, vector<36x256xbf16>
    tpu.vector_store %arg11[%c0_53, %c512_54], %48 {strides = array<i32>} : memref<40x2304xbf16, #tpu.memory_space<vmem>>, vector<36x256xbf16>,
    %c6_55 = arith.constant 6 : index
    %c0_56 = arith.constant 0 : index
    %50 = vector.load %arg12[%c6_55, %c0_56] : memref<56x256xbf16, #tpu.memory_space<vmem>>, vector<36x256xbf16>
    %c0_57 = arith.constant 0 : index
    %c768_58 = arith.constant 768 : index
    %51 = vector.load %arg11[%c0_57, %c768_58] : memref<40x2304xbf16, #tpu.memory_space<vmem>>, vector<36x256xbf16>
    tpu.vector_store %arg11[%c0_57, %c768_58], %50 {strides = array<i32>} : memref<40x2304xbf16, #tpu.memory_space<vmem>>, vector<36x256xbf16>,
    %c7_59 = arith.constant 7 : index
    %c0_60 = arith.constant 0 : index
    %52 = vector.load %arg12[%c7_59, %c0_60] : memref<56x256xbf16, #tpu.memory_space<vmem>>, vector<36x256xbf16>
    %c0_61 = arith.constant 0 : index
    %c1024_62 = arith.constant 1024 : index
    %53 = vector.load %arg11[%c0_61, %c1024_62] : memref<40x2304xbf16, #tpu.memory_space<vmem>>, vector<36x256xbf16>
    tpu.vector_store %arg11[%c0_61, %c1024_62], %52 {strides = array<i32>} : memref<40x2304xbf16, #tpu.memory_space<vmem>>, vector<36x256xbf16>,
    %c8 = arith.constant 8 : index
    %c0_63 = arith.constant 0 : index
    %54 = vector.load %arg12[%c8, %c0_63] : memref<56x256xbf16, #tpu.memory_space<vmem>>, vector<36x256xbf16>
    %c0_64 = arith.constant 0 : index
    %c1280_65 = arith.constant 1280 : index
    %55 = vector.load %arg11[%c0_64, %c1280_65] : memref<40x2304xbf16, #tpu.memory_space<vmem>>, vector<36x256xbf16>
    tpu.vector_store %arg11[%c0_64, %c1280_65], %54 {strides = array<i32>} : memref<40x2304xbf16, #tpu.memory_space<vmem>>, vector<36x256xbf16>,
    %c12 = arith.constant 12 : index
    %c0_66 = arith.constant 0 : index
    %56 = vector.load %arg12[%c12, %c0_66] : memref<56x256xbf16, #tpu.memory_space<vmem>>, vector<36x256xbf16>
    %c0_67 = arith.constant 0 : index
    %c1536_68 = arith.constant 1536 : index
    %57 = vector.load %arg11[%c0_67, %c1536_68] : memref<40x2304xbf16, #tpu.memory_space<vmem>>, vector<36x256xbf16>
    tpu.vector_store %arg11[%c0_67, %c1536_68], %56 {strides = array<i32>} : memref<40x2304xbf16, #tpu.memory_space<vmem>>, vector<36x256xbf16>,
    %c13 = arith.constant 13 : index
    %c0_69 = arith.constant 0 : index
    %58 = vector.load %arg12[%c13, %c0_69] : memref<56x256xbf16, #tpu.memory_space<vmem>>, vector<36x256xbf16>
    %c0_70 = arith.constant 0 : index
    %c1792_71 = arith.constant 1792 : index
    %59 = vector.load %arg11[%c0_70, %c1792_71] : memref<40x2304xbf16, #tpu.memory_space<vmem>>, vector<36x256xbf16>
    tpu.vector_store %arg11[%c0_70, %c1792_71], %58 {strides = array<i32>} : memref<40x2304xbf16, #tpu.memory_space<vmem>>, vector<36x256xbf16>,
    %c14 = arith.constant 14 : index
    %c0_72 = arith.constant 0 : index
    %60 = vector.load %arg12[%c14, %c0_72] : memref<56x256xbf16, #tpu.memory_space<vmem>>, vector<36x256xbf16>
    %c0_73 = arith.constant 0 : index
    %c2048_74 = arith.constant 2048 : index
    %61 = vector.load %arg11[%c0_73, %c2048_74] : memref<40x2304xbf16, #tpu.memory_space<vmem>>, vector<36x256xbf16>
    tpu.vector_store %arg11[%c0_73, %c2048_74], %60 {strides = array<i32>} : memref<40x2304xbf16, #tpu.memory_space<vmem>>, vector<36x256xbf16>,
    %c0_75 = arith.constant 0 : index
    %c0_76 = arith.constant 0 : index
    %62 = vector.load %arg11[%c0_75, %c0_76] : memref<40x2304xbf16, #tpu.memory_space<vmem>>, vector<36x2304xbf16>
    %c0_77 = arith.constant 0 : index
    %c0_78 = arith.constant 0 : index
    %63 = vector.load %arg6[%c0_77, %c0_78] : memref<2304x256xbf16, #tpu.memory_space<vmem>>, vector<2304x256xbf16>
    %cst_79 = arith.constant dense<0.000000e+00> : vector<36x256xf32>
    %64 = tpu.matmul %62, %63, %cst_79 {dimension_numbers = #tpu.dot_dimension_numbers<[1], [0], [0], [1], [0, 0, 1, 1], [], []>} : vector<36x2304xbf16>, vector<2304x256xbf16>, vector<36x256xf32> -> vector<36x256xf32>
    %c0_80 = arith.constant 0 : index
    %c0_81 = arith.constant 0 : index
    %65 = vector.load %arg7[%c0_80, %c0_81] : memref<1x256xf32, #tpu.memory_space<vmem>>, vector<1x256xf32>
    %66 = vector.broadcast %65 : vector<1x256xf32> to vector<36x256xf32>
    %67 = arith.mulf %64, %66 : vector<36x256xf32>
    %c0_82 = arith.constant 0 : index
    %c0_83 = arith.constant 0 : index
    %68 = vector.load %arg8[%c0_82, %c0_83] : memref<1x256xf32, #tpu.memory_space<vmem>>, vector<1x256xf32>
    %69 = vector.broadcast %68 : vector<1x256xf32> to vector<36x256xf32>
    %70 = arith.addf %67, %69 : vector<36x256xf32>
    %cst_84 = arith.constant 0.000000e+00 : f32
    %71 = vector.broadcast %cst_84 : f32 to vector<36x256xf32>
    %72 = arith.maximumf %70, %71 : vector<36x256xf32>
    %c0_85 = arith.constant 0 : index
    %c0_86 = arith.constant 0 : index
    %73 = vector.load %arg9[%c0_85, %c0_86] : memref<1x128xbf16, #tpu.memory_space<vmem>>, vector<1x36xbf16>
    %74 = arith.truncf %72 : vector<36x256xf32> to vector<36x256xbf16>
    %cst_87 = arith.constant dense<0.000000e+00> : vector<1x256xf32>
    %75 = tpu.matmul %73, %74, %cst_87 {dimension_numbers = #tpu.dot_dimension_numbers<[1], [0], [0], [1], [0, 0, 1, 1], [], []>} : vector<1x36xbf16>, vector<36x256xbf16>, vector<1x256xf32> -> vector<1x256xf32>
    %76 = arith.addf %2, %75 : vector<1x256xf32>
    %cst_88 = arith.constant 6.250000e-02 : f32
    %77 = vector.broadcast %cst_88 : f32 to vector<1x256xf32>
    %78 = arith.mulf %76, %77 : vector<1x256xf32>
    %79 = arith.truncf %78 : vector<1x256xf32> to vector<1x256xbf16>
    %c0_89 = arith.constant 0 : index
    %c0_90 = arith.constant 0 : index
    %c0_91 = arith.constant 0 : index
    %80 = vector.load %arg10[%c0_89, %c0_90, %c0_91] : memref<1x1x256xbf16, #tpu.memory_space<vmem>>, vector<1x1x256xbf16>
    %81 = vector.shape_cast %80 : vector<1x1x256xbf16> to vector<1x256xbf16>
    %82 = vector.shape_cast %79 : vector<1x256xbf16> to vector<1x1x256xbf16>
    tpu.vector_store %arg10[%c0_89, %c0_90, %c0_91], %82 {strides = array<i32>} : memref<1x1x256xbf16, #tpu.memory_space<vmem>>, vector<1x1x256xbf16>,
    return
  }
  func.func @transform_0(%arg0: i32) -> (i32, i32, i32) {
    %c0_i32 = arith.constant 0 : i32
    %c0_i32_0 = arith.constant 0 : i32
    %c0_i32_1 = arith.constant 0 : i32
    return %arg0, %c0_i32, %c0_i32_0 : i32, i32, i32
  }
  func.func @transform_1(%arg0: i32) -> (i32, i32) {
    %c0_i32 = arith.constant 0 : i32
    %c0_i32_0 = arith.constant 0 : i32
    %c0_i32_1 = arith.constant 0 : i32
    return %c0_i32, %c0_i32_0 : i32, i32
  }
  func.func @transform_2(%arg0: i32) -> (i32, i32) {
    %c0_i32 = arith.constant 0 : i32
    %c0_i32_0 = arith.constant 0 : i32
    %c0_i32_1 = arith.constant 0 : i32
    return %c0_i32, %c0_i32_0 : i32, i32
  }
  func.func @transform_3(%arg0: i32) -> (i32, i32) {
    %c0_i32 = arith.constant 0 : i32
    %c0_i32_0 = arith.constant 0 : i32
    %c0_i32_1 = arith.constant 0 : i32
    return %c0_i32, %c0_i32_0 : i32, i32
  }
  func.func @transform_4(%arg0: i32) -> (i32, i32) {
    %c0_i32 = arith.constant 0 : i32
    %c0_i32_0 = arith.constant 0 : i32
    %c0_i32_1 = arith.constant 0 : i32
    return %c0_i32, %c0_i32_0 : i32, i32
  }
  func.func @transform_5(%arg0: i32) -> (i32, i32) {
    %c0_i32 = arith.constant 0 : i32
    %c0_i32_0 = arith.constant 0 : i32
    %c0_i32_1 = arith.constant 0 : i32
    return %c0_i32, %c0_i32_0 : i32, i32
  }
  func.func @transform_6(%arg0: i32) -> (i32, i32) {
    %c0_i32 = arith.constant 0 : i32
    %c0_i32_0 = arith.constant 0 : i32
    %c0_i32_1 = arith.constant 0 : i32
    return %c0_i32, %c0_i32_0 : i32, i32
  }
  func.func @transform_7(%arg0: i32) -> (i32, i32) {
    %c0_i32 = arith.constant 0 : i32
    %c0_i32_0 = arith.constant 0 : i32
    %c0_i32_1 = arith.constant 0 : i32
    return %c0_i32, %c0_i32_0 : i32, i32
  }
  func.func @transform_8(%arg0: i32) -> (i32, i32) {
    %c0_i32 = arith.constant 0 : i32
    %c0_i32_0 = arith.constant 0 : i32
    %c0_i32_1 = arith.constant 0 : i32
    return %c0_i32, %c0_i32_0 : i32, i32
  }
  func.func @transform_9(%arg0: i32) -> (i32, i32, i32) {
    %c0_i32 = arith.constant 0 : i32
    %c0_i32_0 = arith.constant 0 : i32
    %c0_i32_1 = arith.constant 0 : i32
    return %arg0, %c0_i32, %c0_i32_0 : i32, i32, i32
  }
}

module attributes {stable_mosaic.version = 11 : i64} {
  func.func @_head_kernel(%arg0: i32, %arg1: memref<2x256xbf16, #tpu.memory_space<vmem>>, %arg2: memref<256x512xbf16, #tpu.memory_space<vmem>>, %arg3: memref<1x512xf32, #tpu.memory_space<vmem>>, %arg4: memref<512x1024xbf16, #tpu.memory_space<vmem>>, %arg5: memref<1x1024xf32, #tpu.memory_space<vmem>>, %arg6: memref<1024x128xbf16, #tpu.memory_space<vmem>>, %arg7: memref<1x128xf32, #tpu.memory_space<vmem>>, %arg8: memref<2x1024xf32, #tpu.memory_space<vmem>>, %arg9: memref<2x128xf32, #tpu.memory_space<vmem>>) attributes {dimension_semantics = [#tpu.dimension_semantics<parallel>], iteration_bounds = array<i64: 1>, scalar_prefetch = 0 : i64, scratch_operands = 0 : i64, tpu.core_type = #tpu.core_type<tc>, window_params = [{transform_indices = @transform_0, window_bounds = array<i64: 2, 256>}, {pipeline_mode = #tpu.pipeline_mode<synchronous>, transform_indices = @transform_1, window_bounds = array<i64: 256, 512>}, {pipeline_mode = #tpu.pipeline_mode<synchronous>, transform_indices = @transform_2, window_bounds = array<i64: 1, 512>}, {pipeline_mode = #tpu.pipeline_mode<synchronous>, transform_indices = @transform_3, window_bounds = array<i64: 512, 1024>}, {pipeline_mode = #tpu.pipeline_mode<synchronous>, transform_indices = @transform_4, window_bounds = array<i64: 1, 1024>}, {pipeline_mode = #tpu.pipeline_mode<synchronous>, transform_indices = @transform_5, window_bounds = array<i64: 1024, 128>}, {pipeline_mode = #tpu.pipeline_mode<synchronous>, transform_indices = @transform_6, window_bounds = array<i64: 1, 128>}, {transform_indices = @transform_7, window_bounds = array<i64: 2, 1024>}, {transform_indices = @transform_8, window_bounds = array<i64: 2, 128>}]} {
    %c0 = arith.constant 0 : index
    %c0_0 = arith.constant 0 : index
    %0 = vector.load %arg1[%c0, %c0_0] : memref<2x256xbf16, #tpu.memory_space<vmem>>, vector<2x256xbf16>
    %c0_1 = arith.constant 0 : index
    %c0_2 = arith.constant 0 : index
    %1 = vector.load %arg2[%c0_1, %c0_2] : memref<256x512xbf16, #tpu.memory_space<vmem>>, vector<256x512xbf16>
    %cst = arith.constant dense<0.000000e+00> : vector<2x512xf32>
    %2 = tpu.matmul %0, %1, %cst {dimension_numbers = #tpu.dot_dimension_numbers<[1], [0], [0], [1], [0, 0, 1, 1], [], []>} : vector<2x256xbf16>, vector<256x512xbf16>, vector<2x512xf32> -> vector<2x512xf32>
    %c0_3 = arith.constant 0 : index
    %c0_4 = arith.constant 0 : index
    %3 = vector.load %arg3[%c0_3, %c0_4] : memref<1x512xf32, #tpu.memory_space<vmem>>, vector<1x512xf32>
    %4 = vector.broadcast %3 : vector<1x512xf32> to vector<2x512xf32>
    %5 = arith.addf %2, %4 : vector<2x512xf32>
    %cst_5 = arith.constant 0.000000e+00 : f32
    %6 = vector.broadcast %cst_5 : f32 to vector<2x512xf32>
    %7 = arith.maximumf %5, %6 : vector<2x512xf32>
    %8 = arith.truncf %7 : vector<2x512xf32> to vector<2x512xbf16>
    %c0_6 = arith.constant 0 : index
    %c0_7 = arith.constant 0 : index
    %9 = vector.load %arg4[%c0_6, %c0_7] : memref<512x1024xbf16, #tpu.memory_space<vmem>>, vector<512x1024xbf16>
    %cst_8 = arith.constant dense<0.000000e+00> : vector<2x1024xf32>
    %10 = tpu.matmul %8, %9, %cst_8 {dimension_numbers = #tpu.dot_dimension_numbers<[1], [0], [0], [1], [0, 0, 1, 1], [], []>} : vector<2x512xbf16>, vector<512x1024xbf16>, vector<2x1024xf32> -> vector<2x1024xf32>
    %c0_9 = arith.constant 0 : index
    %c0_10 = arith.constant 0 : index
    %11 = vector.load %arg5[%c0_9, %c0_10] : memref<1x1024xf32, #tpu.memory_space<vmem>>, vector<1x1024xf32>
    %12 = vector.broadcast %11 : vector<1x1024xf32> to vector<2x1024xf32>
    %13 = arith.addf %10, %12 : vector<2x1024xf32>
    %c0_11 = arith.constant 0 : index
    %c0_12 = arith.constant 0 : index
    %14 = vector.load %arg8[%c0_11, %c0_12] : memref<2x1024xf32, #tpu.memory_space<vmem>>, vector<2x1024xf32>
    tpu.vector_store %arg8[%c0_11, %c0_12], %13 {strides = array<i32>} : memref<2x1024xf32, #tpu.memory_space<vmem>>, vector<2x1024xf32>,
    %c0_13 = arith.constant 0 : index
    %c0_14 = arith.constant 0 : index
    %15 = vector.load %arg8[%c0_13, %c0_14] : memref<2x1024xf32, #tpu.memory_space<vmem>>, vector<2x1024xf32>
    %cst_15 = arith.constant 0.000000e+00 : f32
    %16 = vector.broadcast %cst_15 : f32 to vector<2x1024xf32>
    %17 = arith.maximumf %15, %16 : vector<2x1024xf32>
    %18 = arith.truncf %17 : vector<2x1024xf32> to vector<2x1024xbf16>
    %c0_16 = arith.constant 0 : index
    %c0_17 = arith.constant 0 : index
    %19 = vector.load %arg6[%c0_16, %c0_17] : memref<1024x128xbf16, #tpu.memory_space<vmem>>, vector<1024x128xbf16>
    %cst_18 = arith.constant dense<0.000000e+00> : vector<2x128xf32>
    %20 = tpu.matmul %18, %19, %cst_18 {dimension_numbers = #tpu.dot_dimension_numbers<[1], [0], [0], [1], [0, 0, 1, 1], [], []>} : vector<2x1024xbf16>, vector<1024x128xbf16>, vector<2x128xf32> -> vector<2x128xf32>
    %c0_19 = arith.constant 0 : index
    %c0_20 = arith.constant 0 : index
    %21 = vector.load %arg7[%c0_19, %c0_20] : memref<1x128xf32, #tpu.memory_space<vmem>>, vector<1x128xf32>
    %22 = vector.broadcast %21 : vector<1x128xf32> to vector<2x128xf32>
    %23 = arith.addf %20, %22 : vector<2x128xf32>
    %c0_21 = arith.constant 0 : index
    %c0_22 = arith.constant 0 : index
    %24 = vector.load %arg9[%c0_21, %c0_22] : memref<2x128xf32, #tpu.memory_space<vmem>>, vector<2x128xf32>
    tpu.vector_store %arg9[%c0_21, %c0_22], %23 {strides = array<i32>} : memref<2x128xf32, #tpu.memory_space<vmem>>, vector<2x128xf32>,
    return
  }
  func.func @transform_0(%arg0: i32) -> (i32, i32) {
    %c0_i32 = arith.constant 0 : i32
    %c0_i32_0 = arith.constant 0 : i32
    return %arg0, %c0_i32 : i32, i32
  }
  func.func @transform_1(%arg0: i32) -> (i32, i32) {
    %c0_i32 = arith.constant 0 : i32
    %c0_i32_0 = arith.constant 0 : i32
    %c0_i32_1 = arith.constant 0 : i32
    return %c0_i32, %c0_i32_0 : i32, i32
  }
  func.func @transform_2(%arg0: i32) -> (i32, i32) {
    %c0_i32 = arith.constant 0 : i32
    %c0_i32_0 = arith.constant 0 : i32
    %c0_i32_1 = arith.constant 0 : i32
    return %c0_i32, %c0_i32_0 : i32, i32
  }
  func.func @transform_3(%arg0: i32) -> (i32, i32) {
    %c0_i32 = arith.constant 0 : i32
    %c0_i32_0 = arith.constant 0 : i32
    %c0_i32_1 = arith.constant 0 : i32
    return %c0_i32, %c0_i32_0 : i32, i32
  }
  func.func @transform_4(%arg0: i32) -> (i32, i32) {
    %c0_i32 = arith.constant 0 : i32
    %c0_i32_0 = arith.constant 0 : i32
    %c0_i32_1 = arith.constant 0 : i32
    return %c0_i32, %c0_i32_0 : i32, i32
  }
  func.func @transform_5(%arg0: i32) -> (i32, i32) {
    %c0_i32 = arith.constant 0 : i32
    %c0_i32_0 = arith.constant 0 : i32
    %c0_i32_1 = arith.constant 0 : i32
    return %c0_i32, %c0_i32_0 : i32, i32
  }
  func.func @transform_6(%arg0: i32) -> (i32, i32) {
    %c0_i32 = arith.constant 0 : i32
    %c0_i32_0 = arith.constant 0 : i32
    %c0_i32_1 = arith.constant 0 : i32
    return %c0_i32, %c0_i32_0 : i32, i32
  }
  func.func @transform_7(%arg0: i32) -> (i32, i32) {
    %c0_i32 = arith.constant 0 : i32
    %c0_i32_0 = arith.constant 0 : i32
    return %arg0, %c0_i32 : i32, i32
  }
  func.func @transform_8(%arg0: i32) -> (i32, i32) {
    %c0_i32 = arith.constant 0 : i32
    %c0_i32_0 = arith.constant 0 : i32
    return %arg0, %c0_i32 : i32, i32
  }
}

</mosaic_0001>

<llo_original>
// kernel: auxiliary_classifier_forward.3
$region0: #{auxiliary_classifier_forward.3}
  #allocation0 [shape = 'u32[]', space=smem, size = 0x4, offset = 0x4, fixed_abs, tag = 'smem constant byte address 0x4 - core index']
  #allocation1 [shape = 'u32[144,128]{1,0:T(1,128)}', space=vmem, size = 0x12000, scoped, tag = 'internal scratch']
  %s0 = inlined_call_operand.vmem [shape: bf16[128,36], index: 0, kind: input, shape index: {}]
  %s1 = inlined_call_operand.vmem [shape: bf16[36,256], index: 1, kind: input, shape index: {}]
  %s2 = inlined_call_operand.vmem [shape: f32[1,256], index: 2, kind: input, shape index: {}]
  %s3 = inlined_call_operand.vmem [shape: f32[1,256], index: 3, kind: input, shape index: {}]
  %s4 = inlined_call_operand.vmem [shape: bf16[128,256], index: 4, kind: output, shape index: {}]
  %s5 = sld [smem:[#allocation0]]
  $region49: #{auxiliary_classifier_forward.3} parent=0
    _
  %s7 = ssub.s32 1, %s5
  %s8 = scalar_select 0, %s7, %s5
  loop: start=0, step=1, limit=4
  $region2: #{auxiliary_classifier_forward.3} parent=0 // loop_pre_header
    _
  $region3: #{auxiliary_classifier_forward.3} parent=0 // loop_header
    %s10 = sphi 0, %s14
    %p11 = scmp.ge.s32.totalorder %s10, 4
    %s20 = sphi 0, %s22
    %s23 = sphi 0, %s20
    %s24 = sphi 0, %s23
    %s40 = sphi 0, %s24
    %s44 = sphi 0, %s44
    %s46 = sphi 0, %s44
    %s47 = sphi 0, %s46
    %s61 = sphi 0, %s47
    %s65 = sphi 0, %s65
    %s67 = sphi 0, %s65
    %s68 = sphi 0, %s67
    %s82 = sphi 0, %s68
    %s86 = sphi 0, %s86
    %s88 = sphi 0, %s86
    %s89 = sphi 0, %s88
    %s103 = sphi 0, %s89
    %s109 = sphi 0, %s111
    %s112 = sphi 0, %s109
    %s113 = sphi 0, %s112
    %s129 = sphi 0, %s113
  $region4: #{auxiliary_classifier_forward.3} parent=0 // loop_header_branch
    %13 = sbr.rel (%p11) target = $region8
  $region5: #{auxiliary_classifier_forward.3} parent=0 // loop_body
    %s15 = ssub.s32 %s10, 1
    %s16 = ssub.s32 %s10, 2
    %s17 = sadd.s32 %s10, 1
    %s18 = ssub.s32 %s10, %s17
    %p19 = scmp.eq.s32.totalorder %s18, 0
    %s21 = sadd.s32 %s20, 1
    %s22 = scalar_select %p19, %s20, %s21
    %p25 = pneg %p19
    %p26 = scmp.eq.s32.totalorder %s10, 1
    %p27 = por %p25, %p26
    %p28 = scmp.ne.s32.totalorder %s20, %s23
    %p29 = scmp.eq.s32.totalorder %s10, 0
    %p30 = por %p28, %p29
    %p31 = scmp.ne.s32.totalorder %s20, %s23
    %p32 = scmp.eq.s32.totalorder %s15, 1
    %p33 = por %p31, %p32
    %p34 = scmp.ne.s32.totalorder %s23, %s24
    %p35 = scmp.eq.s32.totalorder %s15, 0
    %p36 = por %p34, %p35
    %p37 = scmp.ne.s32.totalorder %s23, %s24
    %p38 = scmp.eq.s32.totalorder %s16, 1
    %p39 = por %p37, %p38
    %p41 = scmp.ne.s32.totalorder %s24, %s40
    %p42 = scmp.eq.s32.totalorder %s16, 0
    %p43 = por %p41, %p42
    %s45 = sadd.s32 %s44, 1
    %p48 = scmp.eq.s32.totalorder %s10, 1
    %p49 = scmp.ne.s32.totalorder %s44, %s46
    %p50 = scmp.eq.s32.totalorder %s10, 0
    %p51 = por %p49, %p50
    %p52 = scmp.ne.s32.totalorder %s44, %s46
    %p53 = scmp.eq.s32.totalorder %s15, 1
    %p54 = por %p52, %p53
    %p55 = scmp.ne.s32.totalorder %s46, %s47
    %p56 = scmp.eq.s32.totalorder %s15, 0
    %p57 = por %p55, %p56
    %p58 = scmp.ne.s32.totalorder %s46, %s47
    %p59 = scmp.eq.s32.totalorder %s16, 1
    %p60 = por %p58, %p59
    %p62 = scmp.ne.s32.totalorder %s47, %s61
    %p63 = scmp.eq.s32.totalorder %s16, 0
    %p64 = por %p62, %p63
    %s66 = sadd.s32 %s65, 1
    %p69 = scmp.eq.s32.totalorder %s10, 1
    %p70 = scmp.ne.s32.totalorder %s65, %s67
    %p71 = scmp.eq.s32.totalorder %s10, 0
    %p72 = por %p70, %p71
    %p73 = scmp.ne.s32.totalorder %s65, %s67
    %p74 = scmp.eq.s32.totalorder %s15, 1
    %p75 = por %p73, %p74
    %p76 = scmp.ne.s32.totalorder %s67, %s68
    %p77 = scmp.eq.s32.totalorder %s15, 0
    %p78 = por %p76, %p77
    %p79 = scmp.ne.s32.totalorder %s67, %s68
    %p80 = scmp.eq.s32.totalorder %s16, 1
    %p81 = por %p79, %p80
    %p83 = scmp.ne.s32.totalorder %s68, %s82
    %p84 = scmp.eq.s32.totalorder %s16, 0
    %p85 = por %p83, %p84
    %s87 = sadd.s32 %s86, 1
    %p90 = scmp.eq.s32.totalorder %s10, 1
    %p91 = scmp.ne.s32.totalorder %s86, %s88
    %p92 = scmp.eq.s32.totalorder %s10, 0
    %p93 = por %p91, %p92
    %p94 = scmp.ne.s32.totalorder %s86, %s88
    %p95 = scmp.eq.s32.totalorder %s15, 1
    %p96 = por %p94, %p95
    %p97 = scmp.ne.s32.totalorder %s88, %s89
    %p98 = scmp.eq.s32.totalorder %s15, 0
    %p99 = por %p97, %p98
    %p100 = scmp.ne.s32.totalorder %s88, %s89
    %p101 = scmp.eq.s32.totalorder %s16, 1
    %p102 = por %p100, %p101
    %p104 = scmp.ne.s32.totalorder %s89, %s103
    %p105 = scmp.eq.s32.totalorder %s16, 0
    %p106 = por %p104, %p105
    %s107 = ssub.s32 %s10, %s17
    %p108 = scmp.eq.s32.totalorder %s107, 0
    %s110 = sadd.s32 %s109, 1
    %s111 = scalar_select %p108, %s109, %s110
    %p114 = pneg %p108
    %p115 = scmp.eq.s32.totalorder %s10, 1
    %p116 = por %p114, %p115
    %p117 = scmp.ne.s32.totalorder %s109, %s112
    %p118 = scmp.eq.s32.totalorder %s10, 0
    %p119 = por %p117, %p118
    %p120 = scmp.ne.s32.totalorder %s109, %s112
    %p121 = scmp.eq.s32.totalorder %s15, 1
    %p122 = por %p120, %p121
    %p123 = scmp.ne.s32.totalorder %s112, %s113
    %p124 = scmp.eq.s32.totalorder %s15, 0
    %p125 = por %p123, %p124
    %p126 = scmp.ne.s32.totalorder %s112, %s113
    %p127 = scmp.eq.s32.totalorder %s16, 1
    %p128 = por %p126, %p127
    %p130 = scmp.ne.s32.totalorder %s113, %s129
    %p131 = scmp.eq.s32.totalorder %s16, 0
    %p132 = por %p130, %p131
    %p133 = scmp.le.s32.totalorder 1, %s10
    %p134 = scmp.lt.s32.totalorder %s10, 3
    %p135 = pnand %p133, %p134
    %p136 = pneg %p135
    // Predicated region
    $region9: #{auxiliary_classifier_forward.3} parent=5 // pred_check
      _
    $region10: #{auxiliary_classifier_forward.3} parent=5 // pred_check_branch
      %138 = sbr.rel (%p135) target = $region12
    $region11: #{auxiliary_classifier_forward.3} parent=5 // pred_region
      %s139 = ssub.s32 %s10, 1
      // Predicated region
      $region13: #{auxiliary_classifier_forward.3} parent=11 // pred_check
        %p140 = pneg %p57
      $region14: #{auxiliary_classifier_forward.3} parent=11 // pred_check_branch
        %142 = sbr.rel (%p140) target = $region16
      $region15: #{auxiliary_classifier_forward.3} parent=11 // pred_region
        _
      $region16: #{auxiliary_classifier_forward.3} parent=11 // pred_fallthru
        _
      // Predicated region
      $region17: #{auxiliary_classifier_forward.3} parent=11 // pred_check
        %p143 = pneg %p78
      $region18: #{auxiliary_classifier_forward.3} parent=11 // pred_check_branch
        %145 = sbr.rel (%p143) target = $region20
      $region19: #{auxiliary_classifier_forward.3} parent=11 // pred_region
        _
      $region20: #{auxiliary_classifier_forward.3} parent=11 // pred_fallthru
        _
      // Predicated region
      $region21: #{auxiliary_classifier_forward.3} parent=11 // pred_check
        %p146 = pneg %p99
      $region22: #{auxiliary_classifier_forward.3} parent=11 // pred_check_branch
        %148 = sbr.rel (%p146) target = $region24
      $region23: #{auxiliary_classifier_forward.3} parent=11 // pred_region
        _
      $region24: #{auxiliary_classifier_forward.3} parent=11 // pred_fallthru
        _
    $region12: #{auxiliary_classifier_forward.3} parent=5 // pred_fallthru
      _
    %p149 = scmp.lt.s32.totalorder %s10, 2
    // Predicated region
    $region25: #{auxiliary_classifier_forward.3} parent=5 // pred_check
      %p150 = pneg %p149
    $region26: #{auxiliary_classifier_forward.3} parent=5 // pred_check_branch
      %152 = sbr.rel (%p150) target = $region28
    $region27: #{auxiliary_classifier_forward.3} parent=5 // pred_region
      // Predicated region
      $region29: #{auxiliary_classifier_forward.3} parent=27 // pred_check
        %p153 = pneg %p30
      $region30: #{auxiliary_classifier_forward.3} parent=27 // pred_check_branch
        %155 = sbr.rel (%p153) target = $region32
      $region31: #{auxiliary_classifier_forward.3} parent=27 // pred_region
        %s156 = smul.u32 8, %s10
        %p157 = scmp.lt.s32.totalorder %s156, 15
        %s158 = scalar_select %p157, %s156, 15
        %s159 = smul.addr %s158, 4
        %s160 = scalar_lea.vmem %s0, %s159
        %s161 = smul.u32 8, %s10
      $region32: #{auxiliary_classifier_forward.3} parent=27 // pred_fallthru
        _
    $region28: #{auxiliary_classifier_forward.3} parent=5 // pred_fallthru
      _
    %p162 = scmp.le.s32.totalorder 1, %s10
    %p163 = scmp.lt.s32.totalorder %s10, 3
    %p164 = pnand %p162, %p163
    %p165 = pneg %p164
    // Predicated region
    $region33: #{auxiliary_classifier_forward.3} parent=5 // pred_check
      _
    $region34: #{auxiliary_classifier_forward.3} parent=5 // pred_check_branch
      %167 = sbr.rel (%p164) target = $region36
    $region35: #{auxiliary_classifier_forward.3} parent=5 // pred_region
      %s168 = ssub.s32 %s10, 1
      %s169 = smul.u32 8, %s15
      %p170 = scmp.lt.s32.totalorder %s169, 15
      %s171 = scalar_select %p170, %s169, 15
      %s172 = smul.addr %s171, 4
      %s173 = scalar_lea.vmem %s0, %s172
      %p174 = pneg %p36
      %p175 = pneg %p33
      %p176 = pneg %p57
      %p177 = pneg %p54
      %p178 = pneg %p78
      %p179 = pneg %p75
      %p180 = pneg %p99
      %p181 = pneg %p96
      %p182 = pneg %p125
      %p183 = pneg %p122
      %s184 = smul.u32 8, %s15
      %p185 = scmp.lt.s32.totalorder %s184, 15
      %s186 = scalar_select %p185, %s184, 15
      %s187 = smul.addr %s186, 2
      %s188 = smul.addr %s187, 4
      %s189 = scalar_lea.vmem %s4, %s188
      %s190 = smul.u32 8, %s15
      %p191 = scmp.lt.s32.totalorder %s190, 15
      %s192 = scalar_select %p191, %s190, 15
      %s193 = smul.addr %s192, 4
      %s194 = scalar_lea.vmem %s0, %s193
      %s195 = smul.u32 8, %s15
      %s196 = smul.u32 8, %s15
      %p197 = scmp.lt.s32.totalorder %s196, 15
      %s198 = scalar_select %p197, %s196, 15
      %s199 = smul.addr %s198, 2
      %s200 = smul.addr %s199, 4
      %s201 = scalar_lea.vmem %s4, %s200
      %s202 = smul.u32 8, %s15
      %v204 = vld [vmem:[%s194] sm:$0xf]
      %v205 = vld [vmem:[%s194 + $0x4] sm:$0xf]
      %v206 = vld [vmem:[%s194 + $0x8] sm:$0xf]
      %v207 = vld [vmem:[%s194 + $0xc] sm:$0xf]
      %v208 = vld [vmem:[%s194 + $0x10] sm:$0xf]
      %v209 = vld [vmem:[%s194 + $0x14] sm:$0xf]
      %v210 = vld [vmem:[%s194 + $0x18] sm:$0xf]
      %v211 = vld [vmem:[%s194 + $0x1c] sm:$0xf]
      %v212 = vld [vmem:[%s1] sm:$0xff]
      %v213 = vld [vmem:[%s1 + $0x8] sm:$0xff]
      %v214 = vld [vmem:[%s1 + $0x10] sm:$0xff]
      %v215 = vld [vmem:[%s1 + $0x18] sm:$0xff]
      %v216 = vld [vmem:[%s1 + $0x20] sm:$0x33]
      %v225 = vunpack.c.l.b16 %v204
      %v226 = vunpack.c.l.b16 %v205
      %v227 = vunpack.c.l.b16 %v206
      %v228 = vunpack.c.l.b16 %v207
      %v229 = vunpack.c.l.b16 %v208
      %v230 = vunpack.c.l.b16 %v209
      %v231 = vunpack.c.l.b16 %v210
      %v232 = vunpack.c.l.b16 %v211
      %v233 = vpack.c.b16 %v226, %v225
      %v234 = vpack.c.b16 %v228, %v227
      %v235 = vpack.c.b16 %v230, %v229
      %v236 = vpack.c.b16 %v232, %v231
      %v242 = vunpack.c.l.b16 %v212
      %v243 = vunpack.c.h.b16 %v212
      %v244 = vunpack.c.l.b16 %v213
      %v245 = vunpack.c.h.b16 %v213
      %v246 = vunpack.c.l.b16 %v214
      %v247 = vunpack.c.h.b16 %v214
      %v248 = vunpack.c.l.b16 %v215
      %v249 = vunpack.c.h.b16 %v215
      %v250 = vunpack.c.l.b16 %v216
      %v251 = vunpack.c.h.b16 %v216
      %v252 = vpack.c.b16 %v244, %v242
      %v253 = vpack.c.b16 %v245, %v243
      %v254 = vpack.c.b16 %v248, %v246
      %v255 = vpack.c.b16 %v249, %v247
      %v256 = vpack.c.b16 %v250, %v250
      %v257 = vpack.c.b16 %v251, %v251
      %vm262 = vcmask 293888
      %v264 = vsel %vm262, %v233, 0
      %v267 = vsel %vm262, %v234, 0
      %v270 = vsel %vm262, %v235, 0
      %v273 = vsel %vm262, %v236, 0
      %vm275 = vcmask 1041408
      %v277 = vsel %vm275, %v256, 0
      %v280 = vsel %vm275, %v257, 0
      %282 = vmatprep.subr.bf16.mxu0 %v253
      %283 = vmatpush1.bf16.msra.mxu0 %v252
      %284 = vmatprep.subr.bf16.mxu0 %v255
      %285 = vmatpush1.bf16.msra.mxu0 %v254
      %286 = vmatprep.subr.bf16.mxu0 %v280
      %287 = vmatpush1.bf16.msra.mxu0 %v277
      %288 = vmatprep.subr.bf16.mxu0 0
      %289 = vmatpush1.bf16.msra.mxu0 0
      %290 = vmatprep.subr.bf16.mxu0 0
      %291 = vmatpush1.bf16.msra.mxu0 0
      %292 = vmatprep.subr.bf16.mxu0 0
      %293 = vmatpush1.bf16.msra.mxu0 0
      %294 = vmatprep.subr.bf16.mxu0 0
      %295 = vmatpush1.bf16.msra.mxu0 0
      %296 = vmatprep.subr.bf16.mxu0 0
      %297 = vmatpush1.bf16.msra.mxu0 0
      %298 = vmatprep.subr.bf16.mxu0 0
      %299 = vmatpush1.bf16.msra.mxu0 0
      %300 = vmatprep.subr.bf16.mxu0 0
      %301 = vmatpush1.bf16.msra.mxu0 0
      %302 = vmatprep.subr.bf16.mxu0 0
      %303 = vmatpush1.bf16.msra.mxu0 0
      %304 = vmatprep.subr.bf16.mxu0 0
      %305 = vmatpush1.bf16.msra.mxu0 0
      %306 = vmatprep.subr.bf16.mxu0 0
      %307 = vmatpush1.bf16.msra.mxu0 0
      %308 = vmatprep.subr.bf16.mxu0 0
      %309 = vmatpush1.bf16.msra.mxu0 0
      %310 = vmatprep.subr.bf16.mxu0 0
      %311 = vmatpush1.bf16.msra.mxu0 0
      %312 = vmatprep.subr.bf16.mxu0 0
      %313 = vmatpush1.bf16.msra.mxu0 0
      %314 = vmatprep.mubr.bf16.mxu0 0
      %315 = vmatmul.mubr.bf16.gmra.mrb[0].mxu0 %v264
      %v316 = vpop.f32.mrb[0].mxu0
      %v317 = vadd.f32 0.0, %v316
      %v318 = vpop.f32.mrb[0].mxu0
      %v319 = vadd.f32 0.0, %v318
      %v320 = vpop.f32.mrb[0].mxu0
      %v321 = vadd.f32 0.0, %v320
      %v322 = vpop.f32.mrb[0].mxu0
      %v323 = vadd.f32 0.0, %v322
      %324 = vmatprep.mubr.bf16.mxu0 0
      %325 = vmatmul.mubr.bf16.gmra.mrb[0].mxu0 %v267
      %v326 = vpop.f32.mrb[0].mxu0
      %v327 = vadd.f32 0.0, %v326
      %v328 = vpop.f32.mrb[0].mxu0
      %v329 = vadd.f32 0.0, %v328
      %v330 = vpop.f32.mrb[0].mxu0
      %v331 = vadd.f32 0.0, %v330
      %v332 = vpop.f32.mrb[0].mxu0
      %v333 = vadd.f32 0.0, %v332
      %334 = vmatprep.mubr.bf16.mxu0 0
      %335 = vmatmul.mubr.bf16.gmra.mrb[0].mxu0 %v270
      %v336 = vpop.f32.mrb[0].mxu0
      %v337 = vadd.f32 0.0, %v336
      %v338 = vpop.f32.mrb[0].mxu0
      %v339 = vadd.f32 0.0, %v338
      %v340 = vpop.f32.mrb[0].mxu0
      %v341 = vadd.f32 0.0, %v340
      %v342 = vpop.f32.mrb[0].mxu0
      %v343 = vadd.f32 0.0, %v342
      %344 = vmatprep.mubr.bf16.mxu0 0
      %345 = vmatmul.mubr.bf16.gmra.mrb[0].mxu0 %v273
      %v346 = vpop.f32.mrb[0].mxu0
      %v347 = vadd.f32 0.0, %v346
      %v348 = vpop.f32.mrb[0].mxu0
      %v349 = vadd.f32 0.0, %v348
      %v350 = vpop.f32.mrb[0].mxu0
      %v351 = vadd.f32 0.0, %v350
      %v352 = vpop.f32.mrb[0].mxu0
      %v353 = vadd.f32 0.0, %v352
      %354 = vdwg.mxu0
      %v355 = vld [vmem:[%s2] sm:$0x3]
      %v357 = vlaneseq
      %v358 = vshrl.u32 %v357, 7
      %v359 = vsub.s32 0, %v358
      %v360 = vrot.slane %v355, %v359
      %v361 = vlaneseq
      %v362 = vshrl.u32 %v361, 7
      %v363 = vsub.s32 1, %v362
      %v364 = vrot.slane %v355, %v363
      %v367 = vmul.f32 %v317, %v360
      %v368 = vmul.f32 %v319, %v364
      %v369 = vmul.f32 %v321, %v360
      %v370 = vmul.f32 %v323, %v364
      %v371 = vmul.f32 %v327, %v360
      %v372 = vmul.f32 %v329, %v364
      %v373 = vmul.f32 %v331, %v360
      %v374 = vmul.f32 %v333, %v364
      %v375 = vmul.f32 %v337, %v360
      %v376 = vmul.f32 %v339, %v364
      %v377 = vmul.f32 %v341, %v360
      %v378 = vmul.f32 %v343, %v364
      %v379 = vmul.f32 %v347, %v360
      %v380 = vmul.f32 %v349, %v364
      %v381 = vmul.f32 %v351, %v360
      %v382 = vmul.f32 %v353, %v364
      %v383 = vld [vmem:[%s3] sm:$0x3]
      %v385 = vlaneseq
      %v386 = vshrl.u32 %v385, 7
      %v387 = vsub.s32 0, %v386
      %v388 = vrot.slane %v383, %v387
      %v389 = vlaneseq
      %v390 = vshrl.u32 %v389, 7
      %v391 = vsub.s32 1, %v390
      %v392 = vrot.slane %v383, %v391
      %v395 = vadd.f32 %v367, %v388
      %v396 = vadd.f32 %v368, %v392
      %v397 = vadd.f32 %v369, %v388
      %v398 = vadd.f32 %v370, %v392
      %v399 = vadd.f32 %v371, %v388
      %v400 = vadd.f32 %v372, %v392
      %v401 = vadd.f32 %v373, %v388
      %v402 = vadd.f32 %v374, %v392
      %v403 = vadd.f32 %v375, %v388
      %v404 = vadd.f32 %v376, %v392
      %v405 = vadd.f32 %v377, %v388
      %v406 = vadd.f32 %v378, %v392
      %v407 = vadd.f32 %v379, %v388
      %v408 = vadd.f32 %v380, %v392
      %v409 = vadd.f32 %v381, %v388
      %v410 = vadd.f32 %v382, %v392
      %v411 = vpack.c.bf16 %v397, %v395
      %v412 = vpack.c.bf16 %v398, %v396
      %v413 = vpack.c.bf16 %v401, %v399
      %v414 = vpack.c.bf16 %v402, %v400
      %v415 = vpack.c.bf16 %v405, %v403
      %v416 = vpack.c.bf16 %v406, %v404
      %v417 = vpack.c.bf16 %v409, %v407
      %v418 = vpack.c.bf16 %v410, %v408
      %v427 = vunpack.c.l.b16 %v411
      %v428 = vunpack.c.l.b16 %v412
      %v429 = vunpack.c.h.b16 %v411
      %v430 = vunpack.c.h.b16 %v412
      %v431 = vunpack.c.l.b16 %v413
      %v432 = vunpack.c.l.b16 %v414
      %v433 = vunpack.c.h.b16 %v413
      %v434 = vunpack.c.h.b16 %v414
      %v435 = vunpack.c.l.b16 %v415
      %v436 = vunpack.c.l.b16 %v416
      %v437 = vunpack.c.h.b16 %v415
      %v438 = vunpack.c.h.b16 %v416
      %v439 = vunpack.c.l.b16 %v417
      %v440 = vunpack.c.l.b16 %v418
      %v441 = vunpack.c.h.b16 %v417
      %v442 = vunpack.c.h.b16 %v418
      %v443 = vpack.c.b16 %v428, %v427
      %v444 = vpack.c.b16 %v430, %v429
      %v445 = vpack.c.b16 %v432, %v431
      %v446 = vpack.c.b16 %v434, %v433
      %v447 = vpack.c.b16 %v436, %v435
      %v448 = vpack.c.b16 %v438, %v437
      %v449 = vpack.c.b16 %v440, %v439
      %v450 = vpack.c.b16 %v442, %v441
      %459 = vst [vmem:[%s201] sm:$0xff] %v443
      %460 = vst [vmem:[%s201 + $0x8] sm:$0xff] %v444
      %461 = vst [vmem:[%s201 + $0x10] sm:$0xff] %v445
      %462 = vst [vmem:[%s201 + $0x18] sm:$0xff] %v446
      %463 = vst [vmem:[%s201 + $0x20] sm:$0xff] %v447
      %464 = vst [vmem:[%s201 + $0x28] sm:$0xff] %v448
      %465 = vst [vmem:[%s201 + $0x30] sm:$0xff] %v449
      %466 = vst [vmem:[%s201 + $0x38] sm:$0xff] %v450
      %s467 = smul.u32 8, %s15
      %p468 = scmp.lt.s32.totalorder %s467, 15
      %s469 = scalar_select %p468, %s467, 15
      %s470 = smul.addr %s469, 2
      %s471 = smul.addr %s470, 4
      %s472 = scalar_lea.vmem %s4, %s471
      // Predicated region
      $region37: #{auxiliary_classifier_forward.3} parent=35 // pred_check
        %p473 = pneg %p122
      $region38: #{auxiliary_classifier_forward.3} parent=35 // pred_check_branch
        %475 = sbr.rel (%p473) target = $region40
      $region39: #{auxiliary_classifier_forward.3} parent=35 // pred_region
        %s476 = smul.u32 8, %s15
      $region40: #{auxiliary_classifier_forward.3} parent=35 // pred_fallthru
        _
    $region36: #{auxiliary_classifier_forward.3} parent=5 // pred_fallthru
      _
    %p477 = scmp.le.s32.totalorder 2, %s10
    // Predicated region
    $region41: #{auxiliary_classifier_forward.3} parent=5 // pred_check
      %p478 = pneg %p477
    $region42: #{auxiliary_classifier_forward.3} parent=5 // pred_check_branch
      %480 = sbr.rel (%p478) target = $region44
    $region43: #{auxiliary_classifier_forward.3} parent=5 // pred_region
      %s481 = ssub.s32 %s10, 2
      // Predicated region
      $region45: #{auxiliary_classifier_forward.3} parent=43 // pred_check
        %p482 = pneg %p128
      $region46: #{auxiliary_classifier_forward.3} parent=43 // pred_check_branch
        %484 = sbr.rel (%p482) target = $region48
      $region47: #{auxiliary_classifier_forward.3} parent=43 // pred_region
        %s485 = smul.u32 8, %s16
        %p486 = scmp.lt.s32.totalorder %s485, 15
        %s487 = scalar_select %p486, %s485, 15
        %s488 = smul.addr %s487, 2
        %s489 = smul.addr %s488, 4
        %s490 = scalar_lea.vmem %s4, %s489
      $region48: #{auxiliary_classifier_forward.3} parent=43 // pred_fallthru
        _
    $region44: #{auxiliary_classifier_forward.3} parent=5 // pred_fallthru
      _
  $region6: #{auxiliary_classifier_forward.3} parent=0 // loop_footer
    %s14 = sadd.s32 1, %s10
  $region7: #{auxiliary_classifier_forward.3} parent=0 // loop_footer_branch
    %9 = sbr.rel target = $region3
  $region8: #{auxiliary_classifier_forward.3} parent=0 // loop_exit
    _

// kernel: auxiliary_classifier_forward.5
$region0: #{auxiliary_classifier_forward.5}
  #allocation0 [shape = 'u32[]', space=smem, size = 0x4, offset = 0x4, fixed_abs, tag = 'smem constant byte address 0x4 - core index']
  #allocation1 [shape = 'u32[144,128]{1,0:T(1,128)}', space=vmem, size = 0x12000, scoped, tag = 'internal scratch']
  %s0 = inlined_call_operand.vmem [shape: bf16[2,256], index: 0, kind: input, shape index: {}]
  %s1 = inlined_call_operand.vmem [shape: bf16[256,512], index: 1, kind: input, shape index: {}]
  %s2 = inlined_call_operand.vmem [shape: f32[1,512], index: 2, kind: input, shape index: {}]
  %s3 = inlined_call_operand.vmem [shape: bf16[512,1024], index: 3, kind: input, shape index: {}]
  %s4 = inlined_call_operand.vmem [shape: f32[1,1024], index: 4, kind: input, shape index: {}]
  %s5 = inlined_call_operand.vmem [shape: bf16[1024,128], index: 5, kind: input, shape index: {}]
  %s6 = inlined_call_operand.vmem [shape: f32[1,128], index: 6, kind: input, shape index: {}]
  %s7 = inlined_call_operand.hbm [shape: f32[2,1024], index: 7, kind: output, shape index: {0}]
  %s8 = inlined_call_operand.hbm [shape: f32[2,128], index: 8, kind: output, shape index: {1}]
  %9 = xla_tuple %s7, %s8
  %s10 = sld [smem:[#allocation0]]
  $region46: #{auxiliary_classifier_forward.5} parent=0
    _
  %s12 = ssub.s32 1, %s10
  %s13 = scalar_select 0, %s12, %s10
  $region1: #{auxiliary_classifier_forward.5} parent=0
    #allocation2 [shape = 'u8[8192]{0}', space=vmem, size = 0x2000, scoped, tag = 'output window, operand 0, single buffered']
    #allocation3 [shape = 's32[1]{0}', space=sflag, size = 0x4, scoped, tag = 'scoped memory for auxiliary_classifier_forward.5']
    #allocation4 [shape = 'u8[1024]{0}', space=vmem, size = 0x400, scoped, tag = 'output window, operand 1, single buffered']
    #allocation5 [shape = 's32[1]{0}', space=sflag, size = 0x4, scoped, tag = 'scoped memory for auxiliary_classifier_forward.5']
    %14 = vsyncpa [#allocation3], 0
    %15 = vsyncpa [#allocation5], 0
    // Predicated region
    $region2: #{auxiliary_classifier_forward.5} parent=1 // pred_check
      _
    $region3: #{auxiliary_classifier_forward.5} parent=1 // pred_check_branch
      %17 = sbr.rel (0) target = $region5
    $region4: #{auxiliary_classifier_forward.5} parent=1 // pred_region
      _
    $region5: #{auxiliary_classifier_forward.5} parent=1 // pred_fallthru
      _
    // Predicated region
    $region6: #{auxiliary_classifier_forward.5} parent=1 // pred_check
      _
    $region7: #{auxiliary_classifier_forward.5} parent=1 // pred_check_branch
      %19 = sbr.rel (0) target = $region9
    $region8: #{auxiliary_classifier_forward.5} parent=1 // pred_region
      _
    $region9: #{auxiliary_classifier_forward.5} parent=1 // pred_fallthru
      _
    // Predicated region
    $region10: #{auxiliary_classifier_forward.5} parent=1 // pred_check
      _
    $region11: #{auxiliary_classifier_forward.5} parent=1 // pred_check_branch
      %21 = sbr.rel (0) target = $region13
    $region12: #{auxiliary_classifier_forward.5} parent=1 // pred_region
      _
    $region13: #{auxiliary_classifier_forward.5} parent=1 // pred_fallthru
      _
    // Predicated region
    $region14: #{auxiliary_classifier_forward.5} parent=1 // pred_check
      _
    $region15: #{auxiliary_classifier_forward.5} parent=1 // pred_check_branch
      %23 = sbr.rel (0) target = $region17
    $region16: #{auxiliary_classifier_forward.5} parent=1 // pred_region
      _
    $region17: #{auxiliary_classifier_forward.5} parent=1 // pred_fallthru
      _
    // Predicated region
    $region18: #{auxiliary_classifier_forward.5} parent=1 // pred_check
      _
    $region19: #{auxiliary_classifier_forward.5} parent=1 // pred_check_branch
      %25 = sbr.rel (0) target = $region21
    $region20: #{auxiliary_classifier_forward.5} parent=1 // pred_region
      _
    $region21: #{auxiliary_classifier_forward.5} parent=1 // pred_fallthru
      _
    // Predicated region
    $region22: #{auxiliary_classifier_forward.5} parent=1 // pred_check
      _
    $region23: #{auxiliary_classifier_forward.5} parent=1 // pred_check_branch
      %27 = sbr.rel (0) target = $region25
    $region24: #{auxiliary_classifier_forward.5} parent=1 // pred_region
      _
    $region25: #{auxiliary_classifier_forward.5} parent=1 // pred_fallthru
      _
    // Predicated region
    $region26: #{auxiliary_classifier_forward.5} parent=1 // pred_check
      _
    $region27: #{auxiliary_classifier_forward.5} parent=1 // pred_check_branch
      %29 = sbr.rel (0) target = $region29
    $region28: #{auxiliary_classifier_forward.5} parent=1 // pred_region
      _
    $region29: #{auxiliary_classifier_forward.5} parent=1 // pred_fallthru
      _
    %v31 = vld [vmem:[%s0] sm:$0x3]
    %v32 = vld [vmem:[%s1] sm:$0xff]
    %v33 = vld [vmem:[%s1 + $0x8] sm:$0xff]
    %v34 = vld [vmem:[%s1 + $0x10] sm:$0xff]
    %v35 = vld [vmem:[%s1 + $0x18] sm:$0xff]
    %v36 = vld [vmem:[%s1 + $0x20] sm:$0xff]
    %v37 = vld [vmem:[%s1 + $0x28] sm:$0xff]
    %v38 = vld [vmem:[%s1 + $0x30] sm:$0xff]
    %v39 = vld [vmem:[%s1 + $0x38] sm:$0xff]
    %v40 = vld [vmem:[%s1 + $0x40] sm:$0xff]
    %v41 = vld [vmem:[%s1 + $0x48] sm:$0xff]
    %v42 = vld [vmem:[%s1 + $0x50] sm:$0xff]
    %v43 = vld [vmem:[%s1 + $0x58] sm:$0xff]
    %v44 = vld [vmem:[%s1 + $0x60] sm:$0xff]
    %v45 = vld [vmem:[%s1 + $0x68] sm:$0xff]
    %v46 = vld [vmem:[%s1 + $0x70] sm:$0xff]
    %v47 = vld [vmem:[%s1 + $0x78] sm:$0xff]
    %v48 = vld [vmem:[%s1 + $0x80] sm:$0xff]
    %v49 = vld [vmem:[%s1 + $0x88] sm:$0xff]
    %v50 = vld [vmem:[%s1 + $0x90] sm:$0xff]
    %v51 = vld [vmem:[%s1 + $0x98] sm:$0xff]
    %v52 = vld [vmem:[%s1 + $0xa0] sm:$0xff]
    %v53 = vld [vmem:[%s1 + $0xa8] sm:$0xff]
    %v54 = vld [vmem:[%s1 + $0xb0] sm:$0xff]
    %v55 = vld [vmem:[%s1 + $0xb8] sm:$0xff]
    %v56 = vld [vmem:[%s1 + $0xc0] sm:$0xff]
    %v57 = vld [vmem:[%s1 + $0xc8] sm:$0xff]
    %v58 = vld [vmem:[%s1 + $0xd0] sm:$0xff]
    %v59 = vld [vmem:[%s1 + $0xd8] sm:$0xff]
    %v60 = vld [vmem:[%s1 + $0xe0] sm:$0xff]
    %v61 = vld [vmem:[%s1 + $0xe8] sm:$0xff]
    %v62 = vld [vmem:[%s1 + $0xf0] sm:$0xff]
    %v63 = vld [vmem:[%s1 + $0xf8] sm:$0xff]
    %v64 = vld [vmem:[%s1 + $0x100] sm:$0xff]
    %v65 = vld [vmem:[%s1 + $0x108] sm:$0xff]
    %v66 = vld [vmem:[%s1 + $0x110] sm:$0xff]
    %v67 = vld [vmem:[%s1 + $0x118] sm:$0xff]
    %v68 = vld [vmem:[%s1 + $0x120] sm:$0xff]
    %v69 = vld [vmem:[%s1 + $0x128] sm:$0xff]
    %v70 = vld [vmem:[%s1 + $0x130] sm:$0xff]
    %v71 = vld [vmem:[%s1 + $0x138] sm:$0xff]
    %v72 = vld [vmem:[%s1 + $0x140] sm:$0xff]
    %v73 = vld [vmem:[%s1 + $0x148] sm:$0xff]
    %v74 = vld [vmem:[%s1 + $0x150] sm:$0xff]
    %v75 = vld [vmem:[%s1 + $0x158] sm:$0xff]
    %v76 = vld [vmem:[%s1 + $0x160] sm:$0xff]
    %v77 = vld [vmem:[%s1 + $0x168] sm:$0xff]
    %v78 = vld [vmem:[%s1 + $0x170] sm:$0xff]
    %v79 = vld [vmem:[%s1 + $0x178] sm:$0xff]
    %v80 = vld [vmem:[%s1 + $0x180] sm:$0xff]
    %v81 = vld [vmem:[%s1 + $0x188] sm:$0xff]
    %v82 = vld [vmem:[%s1 + $0x190] sm:$0xff]
    %v83 = vld [vmem:[%s1 + $0x198] sm:$0xff]
    %v84 = vld [vmem:[%s1 + $0x1a0] sm:$0xff]
    %v85 = vld [vmem:[%s1 + $0x1a8] sm:$0xff]
    %v86 = vld [vmem:[%s1 + $0x1b0] sm:$0xff]
    %v87 = vld [vmem:[%s1 + $0x1b8] sm:$0xff]
    %v88 = vld [vmem:[%s1 + $0x1c0] sm:$0xff]
    %v89 = vld [vmem:[%s1 + $0x1c8] sm:$0xff]
    %v90 = vld [vmem:[%s1 + $0x1d0] sm:$0xff]
    %v91 = vld [vmem:[%s1 + $0x1d8] sm:$0xff]
    %v92 = vld [vmem:[%s1 + $0x1e0] sm:$0xff]
    %v93 = vld [vmem:[%s1 + $0x1e8] sm:$0xff]
    %v94 = vld [vmem:[%s1 + $0x1f0] sm:$0xff]
    %v95 = vld [vmem:[%s1 + $0x1f8] sm:$0xff]
    %v96 = vld [vmem:[%s2] sm:$0xf]
    %v98 = vlaneseq
    %v99 = vshrl.u32 %v98, 7
    %v100 = vsub.s32 0, %v99
    %v101 = vrot.slane %v96, %v100
    %v102 = vlaneseq
    %v103 = vshrl.u32 %v102, 7
    %v104 = vsub.s32 1, %v103
    %v105 = vrot.slane %v96, %v104
    %v106 = vlaneseq
    %v107 = vshrl.u32 %v106, 7
    %v108 = vsub.s32 2, %v107
    %v109 = vrot.slane %v96, %v108
    %v110 = vlaneseq
    %v111 = vshrl.u32 %v110, 7
    %v112 = vsub.s32 3, %v111
    %v113 = vrot.slane %v96, %v112
    %v120 = vunpack.c.l.s4 1966171168
    %v121 = vunpack.c.0.s8 %v120
    %v122 = vlaneseq
    %v123 = vshrl.u32 %v122, 7
    %v124 = vsub.s32 %v121, %v123
    %v125 = vrot.slane %v31, %v124
    %v126 = vcombine.high %v125, %v125
    %v128 = vunpack.c.l.s4 1966171168
    %v129 = vunpack.c.0.s8 %v128
    %v130 = vlaneseq
    %v131 = vshrl.u32 %v130, 7
    %v132 = vsub.s32 %v129, %v131
    %v133 = vrot.slane %v125, %v132
    %v135 = vunpack.c.l.s4 1966171168
    %v136 = vunpack.c.0.s8 %v135
    %v137 = vlaneseq
    %v138 = vshrl.u32 %v137, 7
    %v139 = vsub.s32 %v136, %v138
    %v140 = vrot.slane %v126, %v139
    %v207 = vunpack.c.l.b16 %v32
    %v208 = vunpack.c.h.b16 %v32
    %v209 = vunpack.c.l.b16 %v33
    %v210 = vunpack.c.h.b16 %v33
    %v211 = vunpack.c.l.b16 %v34
    %v212 = vunpack.c.h.b16 %v34
    %v213 = vunpack.c.l.b16 %v35
    %v214 = vunpack.c.h.b16 %v35
    %v215 = vunpack.c.l.b16 %v36
    %v216 = vunpack.c.h.b16 %v36
    %v217 = vunpack.c.l.b16 %v37
    %v218 = vunpack.c.h.b16 %v37
    %v219 = vunpack.c.l.b16 %v38
    %v220 = vunpack.c.h.b16 %v38
    %v221 = vunpack.c.l.b16 %v39
    %v222 = vunpack.c.h.b16 %v39
    %v223 = vunpack.c.l.b16 %v40
    %v224 = vunpack.c.h.b16 %v40
    %v225 = vunpack.c.l.b16 %v41
    %v226 = vunpack.c.h.b16 %v41
    %v227 = vunpack.c.l.b16 %v42
    %v228 = vunpack.c.h.b16 %v42
    %v229 = vunpack.c.l.b16 %v43
    %v230 = vunpack.c.h.b16 %v43
    %v231 = vunpack.c.l.b16 %v44
    %v232 = vunpack.c.h.b16 %v44
    %v233 = vunpack.c.l.b16 %v45
    %v234 = vunpack.c.h.b16 %v45
    %v235 = vunpack.c.l.b16 %v46
    %v236 = vunpack.c.h.b16 %v46
    %v237 = vunpack.c.l.b16 %v47
    %v238 = vunpack.c.h.b16 %v47
    %v239 = vunpack.c.l.b16 %v48
    %v240 = vunpack.c.h.b16 %v48
    %v241 = vunpack.c.l.b16 %v49
    %v242 = vunpack.c.h.b16 %v49
    %v243 = vunpack.c.l.b16 %v50
    %v244 = vunpack.c.h.b16 %v50
    %v245 = vunpack.c.l.b16 %v51
    %v246 = vunpack.c.h.b16 %v51
    %v247 = vunpack.c.l.b16 %v52
    %v248 = vunpack.c.h.b16 %v52
    %v249 = vunpack.c.l.b16 %v53
    %v250 = vunpack.c.h.b16 %v53
    %v251 = vunpack.c.l.b16 %v54
    %v252 = vunpack.c.h.b16 %v54
    %v253 = vunpack.c.l.b16 %v55
    %v254 = vunpack.c.h.b16 %v55
    %v255 = vunpack.c.l.b16 %v56
    %v256 = vunpack.c.h.b16 %v56
    %v257 = vunpack.c.l.b16 %v57
    %v258 = vunpack.c.h.b16 %v57
    %v259 = vunpack.c.l.b16 %v58
    %v260 = vunpack.c.h.b16 %v58
    %v261 = vunpack.c.l.b16 %v59
    %v262 = vunpack.c.h.b16 %v59
    %v263 = vunpack.c.l.b16 %v60
    %v264 = vunpack.c.h.b16 %v60
    %v265 = vunpack.c.l.b16 %v61
    %v266 = vunpack.c.h.b16 %v61
    %v267 = vunpack.c.l.b16 %v62
    %v268 = vunpack.c.h.b16 %v62
    %v269 = vunpack.c.l.b16 %v63
    %v270 = vunpack.c.h.b16 %v63
    %v271 = vunpack.c.l.b16 %v64
    %v272 = vunpack.c.h.b16 %v64
    %v273 = vunpack.c.l.b16 %v65
    %v274 = vunpack.c.h.b16 %v65
    %v275 = vunpack.c.l.b16 %v66
    %v276 = vunpack.c.h.b16 %v66
    %v277 = vunpack.c.l.b16 %v67
    %v278 = vunpack.c.h.b16 %v67
    %v279 = vunpack.c.l.b16 %v68
    %v280 = vunpack.c.h.b16 %v68
    %v281 = vunpack.c.l.b16 %v69
    %v282 = vunpack.c.h.b16 %v69
    %v283 = vunpack.c.l.b16 %v70
    %v284 = vunpack.c.h.b16 %v70
    %v285 = vunpack.c.l.b16 %v71
    %v286 = vunpack.c.h.b16 %v71
    %v287 = vunpack.c.l.b16 %v72
    %v288 = vunpack.c.h.b16 %v72
    %v289 = vunpack.c.l.b16 %v73
    %v290 = vunpack.c.h.b16 %v73
    %v291 = vunpack.c.l.b16 %v74
    %v292 = vunpack.c.h.b16 %v74
    %v293 = vunpack.c.l.b16 %v75
    %v294 = vunpack.c.h.b16 %v75
    %v295 = vunpack.c.l.b16 %v76
    %v296 = vunpack.c.h.b16 %v76
    %v297 = vunpack.c.l.b16 %v77
    %v298 = vunpack.c.h.b16 %v77
    %v299 = vunpack.c.l.b16 %v78
    %v300 = vunpack.c.h.b16 %v78
    %v301 = vunpack.c.l.b16 %v79
    %v302 = vunpack.c.h.b16 %v79
    %v303 = vunpack.c.l.b16 %v80
    %v304 = vunpack.c.h.b16 %v80
    %v305 = vunpack.c.l.b16 %v81
    %v306 = vunpack.c.h.b16 %v81
    %v307 = vunpack.c.l.b16 %v82
    %v308 = vunpack.c.h.b16 %v82
    %v309 = vunpack.c.l.b16 %v83
    %v310 = vunpack.c.h.b16 %v83
    %v311 = vunpack.c.l.b16 %v84
    %v312 = vunpack.c.h.b16 %v84
    %v313 = vunpack.c.l.b16 %v85
    %v314 = vunpack.c.h.b16 %v85
    %v315 = vunpack.c.l.b16 %v86
    %v316 = vunpack.c.h.b16 %v86
    %v317 = vunpack.c.l.b16 %v87
    %v318 = vunpack.c.h.b16 %v87
    %v319 = vunpack.c.l.b16 %v88
    %v320 = vunpack.c.h.b16 %v88
    %v321 = vunpack.c.l.b16 %v89
    %v322 = vunpack.c.h.b16 %v89
    %v323 = vunpack.c.l.b16 %v90
    %v324 = vunpack.c.h.b16 %v90
    %v325 = vunpack.c.l.b16 %v91
    %v326 = vunpack.c.h.b16 %v91
    %v327 = vunpack.c.l.b16 %v92
    %v328 = vunpack.c.h.b16 %v92
    %v329 = vunpack.c.l.b16 %v93
    %v330 = vunpack.c.h.b16 %v93
    %v331 = vunpack.c.l.b16 %v94
    %v332 = vunpack.c.h.b16 %v94
    %v333 = vunpack.c.l.b16 %v95
    %v334 = vunpack.c.h.b16 %v95
    %v335 = vpack.c.b16 %v211, %v207
    %v336 = vpack.c.b16 %v212, %v208
    %v337 = vpack.c.b16 %v213, %v209
    %v338 = vpack.c.b16 %v214, %v210
    %v339 = vpack.c.b16 %v219, %v215
    %v340 = vpack.c.b16 %v220, %v216
    %v341 = vpack.c.b16 %v221, %v217
    %v342 = vpack.c.b16 %v222, %v218
    %v343 = vpack.c.b16 %v227, %v223
    %v344 = vpack.c.b16 %v228, %v224
    %v345 = vpack.c.b16 %v229, %v225
    %v346 = vpack.c.b16 %v230, %v226
    %v347 = vpack.c.b16 %v235, %v231
    %v348 = vpack.c.b16 %v236, %v232
    %v349 = vpack.c.b16 %v237, %v233
    %v350 = vpack.c.b16 %v238, %v234
    %v351 = vpack.c.b16 %v243, %v239
    %v352 = vpack.c.b16 %v244, %v240
    %v353 = vpack.c.b16 %v245, %v241
    %v354 = vpack.c.b16 %v246, %v242
    %v355 = vpack.c.b16 %v251, %v247
    %v356 = vpack.c.b16 %v252, %v248
    %v357 = vpack.c.b16 %v253, %v249
    %v358 = vpack.c.b16 %v254, %v250
    %v359 = vpack.c.b16 %v259, %v255
    %v360 = vpack.c.b16 %v260, %v256
    %v361 = vpack.c.b16 %v261, %v257
    %v362 = vpack.c.b16 %v262, %v258
    %v363 = vpack.c.b16 %v267, %v263
    %v364 = vpack.c.b16 %v268, %v264
    %v365 = vpack.c.b16 %v269, %v265
    %v366 = vpack.c.b16 %v270, %v266
    %v367 = vpack.c.b16 %v275, %v271
    %v368 = vpack.c.b16 %v276, %v272
    %v369 = vpack.c.b16 %v277, %v273
    %v370 = vpack.c.b16 %v278, %v274
    %v371 = vpack.c.b16 %v283, %v279
    %v372 = vpack.c.b16 %v284, %v280
    %v373 = vpack.c.b16 %v285, %v281
    %v374 = vpack.c.b16 %v286, %v282
    %v375 = vpack.c.b16 %v291, %v287
    %v376 = vpack.c.b16 %v292, %v288
    %v377 = vpack.c.b16 %v293, %v289
    %v378 = vpack.c.b16 %v294, %v290
    %v379 = vpack.c.b16 %v299, %v295
    %v380 = vpack.c.b16 %v300, %v296
    %v381 = vpack.c.b16 %v301, %v297
    %v382 = vpack.c.b16 %v302, %v298
    %v383 = vpack.c.b16 %v307, %v303
    %v384 = vpack.c.b16 %v308, %v304
    %v385 = vpack.c.b16 %v309, %v305
    %v386 = vpack.c.b16 %v310, %v306
    %v387 = vpack.c.b16 %v315, %v311
    %v388 = vpack.c.b16 %v316, %v312
    %v389 = vpack.c.b16 %v317, %v313
    %v390 = vpack.c.b16 %v318, %v314
    %v391 = vpack.c.b16 %v323, %v319
    %v392 = vpack.c.b16 %v324, %v320
    %v393 = vpack.c.b16 %v325, %v321
    %v394 = vpack.c.b16 %v326, %v322
    %v395 = vpack.c.b16 %v331, %v327
    %v396 = vpack.c.b16 %v332, %v328
    %v397 = vpack.c.b16 %v333, %v329
    %v398 = vpack.c.b16 %v334, %v330
    %463 = vmatprep.subr.bf16.mxu0 %v336
    %464 = vmatpush1.bf16.msra.mxu0 %v335
    %465 = vmatprep.subr.bf16.mxu0 %v340
    %466 = vmatpush1.bf16.msra.mxu0 %v339
    %467 = vmatprep.subr.bf16.mxu0 %v344
    %468 = vmatpush1.bf16.msra.mxu0 %v343
    %469 = vmatprep.subr.bf16.mxu0 %v348
    %470 = vmatpush1.bf16.msra.mxu0 %v347
    %471 = vmatprep.subr.bf16.mxu0 %v352
    %472 = vmatpush1.bf16.msra.mxu0 %v351
    %473 = vmatprep.subr.bf16.mxu0 %v356
    %474 = vmatpush1.bf16.msra.mxu0 %v355
    %475 = vmatprep.subr.bf16.mxu0 %v360
    %476 = vmatpush1.bf16.msra.mxu0 %v359
    %477 = vmatprep.subr.bf16.mxu0 %v364
    %478 = vmatpush1.bf16.msra.mxu0 %v363
    %479 = vmatprep.subr.bf16.mxu0 %v368
    %480 = vmatpush1.bf16.msra.mxu0 %v367
    %481 = vmatprep.subr.bf16.mxu0 %v372
    %482 = vmatpush1.bf16.msra.mxu0 %v371
    %483 = vmatprep.subr.bf16.mxu0 %v376
    %484 = vmatpush1.bf16.msra.mxu0 %v375
    %485 = vmatprep.subr.bf16.mxu0 %v380
    %486 = vmatpush1.bf16.msra.mxu0 %v379
    %487 = vmatprep.subr.bf16.mxu0 %v384
    %488 = vmatpush1.bf16.msra.mxu0 %v383
    %489 = vmatprep.subr.bf16.mxu0 %v388
    %490 = vmatpush1.bf16.msra.mxu0 %v387
    %491 = vmatprep.subr.bf16.mxu0 %v392
    %492 = vmatpush1.bf16.msra.mxu0 %v391
    %493 = vmatprep.subr.bf16.mxu0 %v396
    %494 = vmatpush1.bf16.msra.mxu0 %v395
    %495 = vmatprep.mubr.bf16.mxu0 %v140
    %496 = vmatmul.mubr.bf16.gmra.mrb[0].mxu0 %v133
    %v497 = vpop.f32.mrb[0].mxu0
    %v498 = vadd.f32 %v101, %v497
    %v499 = vpop.f32.mrb[0].mxu0
    %v500 = vadd.f32 %v105, %v499
    %v501 = vpop.f32.mrb[0].mxu0
    %v502 = vpop.f32.mrb[0].mxu0
    %503 = vdwg.mxu0
    %504 = vmatprep.subr.bf16.mxu0 %v338
    %505 = vmatpush1.bf16.msra.mxu0 %v337
    %506 = vmatprep.subr.bf16.mxu0 %v342
    %507 = vmatpush1.bf16.msra.mxu0 %v341
    %508 = vmatprep.subr.bf16.mxu0 %v346
    %509 = vmatpush1.bf16.msra.mxu0 %v345
    %510 = vmatprep.subr.bf16.mxu0 %v350
    %511 = vmatpush1.bf16.msra.mxu0 %v349
    %512 = vmatprep.subr.bf16.mxu0 %v354
    %513 = vmatpush1.bf16.msra.mxu0 %v353
    %514 = vmatprep.subr.bf16.mxu0 %v358
    %515 = vmatpush1.bf16.msra.mxu0 %v357
    %516 = vmatprep.subr.bf16.mxu0 %v362
    %517 = vmatpush1.bf16.msra.mxu0 %v361
    %518 = vmatprep.subr.bf16.mxu0 %v366
    %519 = vmatpush1.bf16.msra.mxu0 %v365
    %520 = vmatprep.subr.bf16.mxu0 %v370
    %521 = vmatpush1.bf16.msra.mxu0 %v369
    %522 = vmatprep.subr.bf16.mxu0 %v374
    %523 = vmatpush1.bf16.msra.mxu0 %v373
    %524 = vmatprep.subr.bf16.mxu0 %v378
    %525 = vmatpush1.bf16.msra.mxu0 %v377
    %526 = vmatprep.subr.bf16.mxu0 %v382
    %527 = vmatpush1.bf16.msra.mxu0 %v381
    %528 = vmatprep.subr.bf16.mxu0 %v386
    %529 = vmatpush1.bf16.msra.mxu0 %v385
    %530 = vmatprep.subr.bf16.mxu0 %v390
    %531 = vmatpush1.bf16.msra.mxu0 %v389
    %532 = vmatprep.subr.bf16.mxu0 %v394
    %533 = vmatpush1.bf16.msra.mxu0 %v393
    %534 = vmatprep.subr.bf16.mxu0 %v398
    %535 = vmatpush1.bf16.msra.mxu0 %v397
    %536 = vmatprep.mubr.bf16.mxu0 %v140
    %537 = vmatmul.mubr.bf16.gmra.mrb[0].mxu0 %v133
    %v538 = vpop.f32.mrb[0].mxu0
    %v539 = vadd.f32 %v109, %v538
    %v540 = vpop.f32.mrb[0].mxu0
    %v541 = vadd.f32 %v113, %v540
    %v542 = vpop.f32.mrb[0].mxu0
    %v543 = vpop.f32.mrb[0].mxu0
    %544 = vdwg.mxu0
    %v545 = vmax.f32 %v498, 0.0
    %v546 = vmax.f32 %v500, 0.0
    %v547 = vmax.f32 %v539, 0.0
    %v548 = vmax.f32 %v541, 0.0
    %v549 = vpack.c.bf16 %v545, %v545
    %v550 = vpack.c.bf16 %v546, %v546
    %v551 = vpack.c.bf16 %v547, %v547
    %v552 = vpack.c.bf16 %v548, %v548
    %v553 = vld [vmem:[%s3] sm:$0xff]
    %v554 = vld [vmem:[%s3 + $0x8] sm:$0xff]
    %v555 = vld [vmem:[%s3 + $0x10] sm:$0xff]
    %v556 = vld [vmem:[%s3 + $0x18] sm:$0xff]
    %v557 = vld [vmem:[%s3 + $0x20] sm:$0xff]
    %v558 = vld [vmem:[%s3 + $0x28] sm:$0xff]
    %v559 = vld [vmem:[%s3 + $0x30] sm:$0xff]
    %v560 = vld [vmem:[%s3 + $0x38] sm:$0xff]
    %v561 = vld [vmem:[%s3 + $0x40] sm:$0xff]
    %v562 = vld [vmem:[%s3 + $0x48] sm:$0xff]
    %v563 = vld [vmem:[%s3 + $0x50] sm:$0xff]
    %v564 = vld [vmem:[%s3 + $0x58] sm:$0xff]
    %v565 = vld [vmem:[%s3 + $0x60] sm:$0xff]
    %v566 = vld [vmem:[%s3 + $0x68] sm:$0xff]
    %v567 = vld [vmem:[%s3 + $0x70] sm:$0xff]
    %v568 = vld [vmem:[%s3 + $0x78] sm:$0xff]
    %v569 = vld [vmem:[%s3 + $0x80] sm:$0xff]
    %v570 = vld [vmem:[%s3 + $0x88] sm:$0xff]
    %v571 = vld [vmem:[%s3 + $0x90] sm:$0xff]
    %v572 = vld [vmem:[%s3 + $0x98] sm:$0xff]
    %v573 = vld [vmem:[%s3 + $0xa0] sm:$0xff]
    %v574 = vld [vmem:[%s3 + $0xa8] sm:$0xff]
    %v575 = vld [vmem:[%s3 + $0xb0] sm:$0xff]
    %v576 = vld [vmem:[%s3 + $0xb8] sm:$0xff]
    %v577 = vld [vmem:[%s3 + $0xc0] sm:$0xff]
    %v578 = vld [vmem:[%s3 + $0xc8] sm:$0xff]
    %v579 = vld [vmem:[%s3 + $0xd0] sm:$0xff]
    %v580 = vld [vmem:[%s3 + $0xd8] sm:$0xff]
    %v581 = vld [vmem:[%s3 + $0xe0] sm:$0xff]
    %v582 = vld [vmem:[%s3 + $0xe8] sm:$0xff]
    %v583 = vld [vmem:[%s3 + $0xf0] sm:$0xff]
    %v584 = vld [vmem:[%s3 + $0xf8] sm:$0xff]
    %v585 = vld [vmem:[%s3 + $0x100] sm:$0xff]
    %v586 = vld [vmem:[%s3 + $0x108] sm:$0xff]
    %v587 = vld [vmem:[%s3 + $0x110] sm:$0xff]
    %v588 = vld [vmem:[%s3 + $0x118] sm:$0xff]
    %v589 = vld [vmem:[%s3 + $0x120] sm:$0xff]
    %v590 = vld [vmem:[%s3 + $0x128] sm:$0xff]
    %v591 = vld [vmem:[%s3 + $0x130] sm:$0xff]
    %v592 = vld [vmem:[%s3 + $0x138] sm:$0xff]
    %v593 = vld [vmem:[%s3 + $0x140] sm:$0xff]
    %v594 = vld [vmem:[%s3 + $0x148] sm:$0xff]
    %v595 = vld [vmem:[%s3 + $0x150] sm:$0xff]
    %v596 = vld [vmem:[%s3 + $0x158] sm:$0xff]
    %v597 = vld [vmem:[%s3 + $0x160] sm:$0xff]
    %v598 = vld [vmem:[%s3 + $0x168] sm:$0xff]
    %v599 = vld [vmem:[%s3 + $0x170] sm:$0xff]
    %v600 = vld [vmem:[%s3 + $0x178] sm:$0xff]
    %v601 = vld [vmem:[%s3 + $0x180] sm:$0xff]
    %v602 = vld [vmem:[%s3 + $0x188] sm:$0xff]
    %v603 = vld [vmem:[%s3 + $0x190] sm:$0xff]
    %v604 = vld [vmem:[%s3 + $0x198] sm:$0xff]
    %v605 = vld [vmem:[%s3 + $0x1a0] sm:$0xff]
    %v606 = vld [vmem:[%s3 + $0x1a8] sm:$0xff]
    %v607 = vld [vmem:[%s3 + $0x1b0] sm:$0xff]
    %v608 = vld [vmem:[%s3 + $0x1b8] sm:$0xff]
    %v609 = vld [vmem:[%s3 + $0x1c0] sm:$0xff]
    %v610 = vld [vmem:[%s3 + $0x1c8] sm:$0xff]
    %v611 = vld [vmem:[%s3 + $0x1d0] sm:$0xff]
    %v612 = vld [vmem:[%s3 + $0x1d8] sm:$0xff]
    %v613 = vld [vmem:[%s3 + $0x1e0] sm:$0xff]
    %v614 = vld [vmem:[%s3 + $0x1e8] sm:$0xff]
    %v615 = vld [vmem:[%s3 + $0x1f0] sm:$0xff]
    %v616 = vld [vmem:[%s3 + $0x1f8] sm:$0xff]
    %v617 = vld [vmem:[%s3 + $0x200] sm:$0xff]
    %v618 = vld [vmem:[%s3 + $0x208] sm:$0xff]
    %v619 = vld [vmem:[%s3 + $0x210] sm:$0xff]
    %v620 = vld [vmem:[%s3 + $0x218] sm:$0xff]
    %v621 = vld [vmem:[%s3 + $0x220] sm:$0xff]
    %v622 = vld [vmem:[%s3 + $0x228] sm:$0xff]
    %v623 = vld [vmem:[%s3 + $0x230] sm:$0xff]
    %v624 = vld [vmem:[%s3 + $0x238] sm:$0xff]
    %v625 = vld [vmem:[%s3 + $0x240] sm:$0xff]
    %v626 = vld [vmem:[%s3 + $0x248] sm:$0xff]
    %v627 = vld [vmem:[%s3 + $0x250] sm:$0xff]
    %v628 = vld [vmem:[%s3 + $0x258] sm:$0xff]
    %v629 = vld [vmem:[%s3 + $0x260] sm:$0xff]
    %v630 = vld [vmem:[%s3 + $0x268] sm:$0xff]
    %v631 = vld [vmem:[%s3 + $0x270] sm:$0xff]
    %v632 = vld [vmem:[%s3 + $0x278] sm:$0xff]
    %v633 = vld [vmem:[%s3 + $0x280] sm:$0xff]
    %v634 = vld [vmem:[%s3 + $0x288] sm:$0xff]
    %v635 = vld [vmem:[%s3 + $0x290] sm:$0xff]
    %v636 = vld [vmem:[%s3 + $0x298] sm:$0xff]
    %v637 = vld [vmem:[%s3 + $0x2a0] sm:$0xff]
    %v638 = vld [vmem:[%s3 + $0x2a8] sm:$0xff]
    %v639 = vld [vmem:[%s3 + $0x2b0] sm:$0xff]
    %v640 = vld [vmem:[%s3 + $0x2b8] sm:$0xff]
    %v641 = vld [vmem:[%s3 + $0x2c0] sm:$0xff]
    %v642 = vld [vmem:[%s3 + $0x2c8] sm:$0xff]
    %v643 = vld [vmem:[%s3 + $0x2d0] sm:$0xff]
    %v644 = vld [vmem:[%s3 + $0x2d8] sm:$0xff]
    %v645 = vld [vmem:[%s3 + $0x2e0] sm:$0xff]
    %v646 = vld [vmem:[%s3 + $0x2e8] sm:$0xff]
    %v647 = vld [vmem:[%s3 + $0x2f0] sm:$0xff]
    %v648 = vld [vmem:[%s3 + $0x2f8] sm:$0xff]
    %v649 = vld [vmem:[%s3 + $0x300] sm:$0xff]
    %v650 = vld [vmem:[%s3 + $0x308] sm:$0xff]
    %v651 = vld [vmem:[%s3 + $0x310] sm:$0xff]
    %v652 = vld [vmem:[%s3 + $0x318] sm:$0xff]
    %v653 = vld [vmem:[%s3 + $0x320] sm:$0xff]
    %v654 = vld [vmem:[%s3 + $0x328] sm:$0xff]
    %v655 = vld [vmem:[%s3 + $0x330] sm:$0xff]
    %v656 = vld [vmem:[%s3 + $0x338] sm:$0xff]
    %v657 = vld [vmem:[%s3 + $0x340] sm:$0xff]
    %v658 = vld [vmem:[%s3 + $0x348] sm:$0xff]
    %v659 = vld [vmem:[%s3 + $0x350] sm:$0xff]
    %v660 = vld [vmem:[%s3 + $0x358] sm:$0xff]
    %v661 = vld [vmem:[%s3 + $0x360] sm:$0xff]
    %v662 = vld [vmem:[%s3 + $0x368] sm:$0xff]
    %v663 = vld [vmem:[%s3 + $0x370] sm:$0xff]
    %v664 = vld [vmem:[%s3 + $0x378] sm:$0xff]
    %v665 = vld [vmem:[%s3 + $0x380] sm:$0xff]
    %v666 = vld [vmem:[%s3 + $0x388] sm:$0xff]
    %v667 = vld [vmem:[%s3 + $0x390] sm:$0xff]
    %v668 = vld [vmem:[%s3 + $0x398] sm:$0xff]
    %v669 = vld [vmem:[%s3 + $0x3a0] sm:$0xff]
    %v670 = vld [vmem:[%s3 + $0x3a8] sm:$0xff]
    %v671 = vld [vmem:[%s3 + $0x3b0] sm:$0xff]
    %v672 = vld [vmem:[%s3 + $0x3b8] sm:$0xff]
    %v673 = vld [vmem:[%s3 + $0x3c0] sm:$0xff]
    %v674 = vld [vmem:[%s3 + $0x3c8] sm:$0xff]
    %v675 = vld [vmem:[%s3 + $0x3d0] sm:$0xff]
    %v676 = vld [vmem:[%s3 + $0x3d8] sm:$0xff]
    %v677 = vld [vmem:[%s3 + $0x3e0] sm:$0xff]
    %v678 = vld [vmem:[%s3 + $0x3e8] sm:$0xff]
    %v679 = vld [vmem:[%s3 + $0x3f0] sm:$0xff]
    %v680 = vld [vmem:[%s3 + $0x3f8] sm:$0xff]
    %v681 = vld [vmem:[%s3 + $0x400] sm:$0xff]
    %v682 = vld [vmem:[%s3 + $0x408] sm:$0xff]
    %v683 = vld [vmem:[%s3 + $0x410] sm:$0xff]
    %v684 = vld [vmem:[%s3 + $0x418] sm:$0xff]
    %v685 = vld [vmem:[%s3 + $0x420] sm:$0xff]
    %v686 = vld [vmem:[%s3 + $0x428] sm:$0xff]
    %v687 = vld [vmem:[%s3 + $0x430] sm:$0xff]
    %v688 = vld [vmem:[%s3 + $0x438] sm:$0xff]
    %v689 = vld [vmem:[%s3 + $0x440] sm:$0xff]
    %v690 = vld [vmem:[%s3 + $0x448] sm:$0xff]
    %v691 = vld [vmem:[%s3 + $0x450] sm:$0xff]
    %v692 = vld [vmem:[%s3 + $0x458] sm:$0xff]
    %v693 = vld [vmem:[%s3 + $0x460] sm:$0xff]
    %v694 = vld [vmem:[%s3 + $0x468] sm:$0xff]
    %v695 = vld [vmem:[%s3 + $0x470] sm:$0xff]
    %v696 = vld [vmem:[%s3 + $0x478] sm:$0xff]
    %v697 = vld [vmem:[%s3 + $0x480] sm:$0xff]
    %v698 = vld [vmem:[%s3 + $0x488] sm:$0xff]
    %v699 = vld [vmem:[%s3 + $0x490] sm:$0xff]
    %v700 = vld [vmem:[%s3 + $0x498] sm:$0xff]
    %v701 = vld [vmem:[%s3 + $0x4a0] sm:$0xff]
    %v702 = vld [vmem:[%s3 + $0x4a8] sm:$0xff]
    %v703 = vld [vmem:[%s3 + $0x4b0] sm:$0xff]
    %v704 = vld [vmem:[%s3 + $0x4b8] sm:$0xff]
    %v705 = vld [vmem:[%s3 + $0x4c0] sm:$0xff]
    %v706 = vld [vmem:[%s3 + $0x4c8] sm:$0xff]
    %v707 = vld [vmem:[%s3 + $0x4d0] sm:$0xff]
    %v708 = vld [vmem:[%s3 + $0x4d8] sm:$0xff]
    %v709 = vld [vmem:[%s3 + $0x4e0] sm:$0xff]
    %v710 = vld [vmem:[%s3 + $0x4e8] sm:$0xff]
    %v711 = vld [vmem:[%s3 + $0x4f0] sm:$0xff]
    %v712 = vld [vmem:[%s3 + $0x4f8] sm:$0xff]
    %v713 = vld [vmem:[%s3 + $0x500] sm:$0xff]
    %v714 = vld [vmem:[%s3 + $0x508] sm:$0xff]
    %v715 = vld [vmem:[%s3 + $0x510] sm:$0xff]
    %v716 = vld [vmem:[%s3 + $0x518] sm:$0xff]
    %v717 = vld [vmem:[%s3 + $0x520] sm:$0xff]
    %v718 = vld [vmem:[%s3 + $0x528] sm:$0xff]
    %v719 = vld [vmem:[%s3 + $0x530] sm:$0xff]
    %v720 = vld [vmem:[%s3 + $0x538] sm:$0xff]
    %v721 = vld [vmem:[%s3 + $0x540] sm:$0xff]
    %v722 = vld [vmem:[%s3 + $0x548] sm:$0xff]
    %v723 = vld [vmem:[%s3 + $0x550] sm:$0xff]
    %v724 = vld [vmem:[%s3 + $0x558] sm:$0xff]
    %v725 = vld [vmem:[%s3 + $0x560] sm:$0xff]
    %v726 = vld [vmem:[%s3 + $0x568] sm:$0xff]
    %v727 = vld [vmem:[%s3 + $0x570] sm:$0xff]
    %v728 = vld [vmem:[%s3 + $0x578] sm:$0xff]
    %v729 = vld [vmem:[%s3 + $0x580] sm:$0xff]
    %v730 = vld [vmem:[%s3 + $0x588] sm:$0xff]
    %v731 = vld [vmem:[%s3 + $0x590] sm:$0xff]
    %v732 = vld [vmem:[%s3 + $0x598] sm:$0xff]
    %v733 = vld [vmem:[%s3 + $0x5a0] sm:$0xff]
    %v734 = vld [vmem:[%s3 + $0x5a8] sm:$0xff]
    %v735 = vld [vmem:[%s3 + $0x5b0] sm:$0xff]
    %v736 = vld [vmem:[%s3 + $0x5b8] sm:$0xff]
    %v737 = vld [vmem:[%s3 + $0x5c0] sm:$0xff]
    %v738 = vld [vmem:[%s3 + $0x5c8] sm:$0xff]
    %v739 = vld [vmem:[%s3 + $0x5d0] sm:$0xff]
    %v740 = vld [vmem:[%s3 + $0x5d8] sm:$0xff]
    %v741 = vld [vmem:[%s3 + $0x5e0] sm:$0xff]
    %v742 = vld [vmem:[%s3 + $0x5e8] sm:$0xff]
    %v743 = vld [vmem:[%s3 + $0x5f0] sm:$0xff]
    %v744 = vld [vmem:[%s3 + $0x5f8] sm:$0xff]
    %v745 = vld [vmem:[%s3 + $0x600] sm:$0xff]
    %v746 = vld [vmem:[%s3 + $0x608] sm:$0xff]
    %v747 = vld [vmem:[%s3 + $0x610] sm:$0xff]
    %v748 = vld [vmem:[%s3 + $0x618] sm:$0xff]
    %v749 = vld [vmem:[%s3 + $0x620] sm:$0xff]
    %v750 = vld [vmem:[%s3 + $0x628] sm:$0xff]
    %v751 = vld [vmem:[%s3 + $0x630] sm:$0xff]
    %v752 = vld [vmem:[%s3 + $0x638] sm:$0xff]
    %v753 = vld [vmem:[%s3 + $0x640] sm:$0xff]
    %v754 = vld [vmem:[%s3 + $0x648] sm:$0xff]
    %v755 = vld [vmem:[%s3 + $0x650] sm:$0xff]
    %v756 = vld [vmem:[%s3 + $0x658] sm:$0xff]
    %v757 = vld [vmem:[%s3 + $0x660] sm:$0xff]
    %v758 = vld [vmem:[%s3 + $0x668] sm:$0xff]
    %v759 = vld [vmem:[%s3 + $0x670] sm:$0xff]
    %v760 = vld [vmem:[%s3 + $0x678] sm:$0xff]
    %v761 = vld [vmem:[%s3 + $0x680] sm:$0xff]
    %v762 = vld [vmem:[%s3 + $0x688] sm:$0xff]
    %v763 = vld [vmem:[%s3 + $0x690] sm:$0xff]
    %v764 = vld [vmem:[%s3 + $0x698] sm:$0xff]
    %v765 = vld [vmem:[%s3 + $0x6a0] sm:$0xff]
    %v766 = vld [vmem:[%s3 + $0x6a8] sm:$0xff]
    %v767 = vld [vmem:[%s3 + $0x6b0] sm:$0xff]
    %v768 = vld [vmem:[%s3 + $0x6b8] sm:$0xff]
    %v769 = vld [vmem:[%s3 + $0x6c0] sm:$0xff]
    %v770 = vld [vmem:[%s3 + $0x6c8] sm:$0xff]
    %v771 = vld [vmem:[%s3 + $0x6d0] sm:$0xff]
    %v772 = vld [vmem:[%s3 + $0x6d8] sm:$0xff]
    %v773 = vld [vmem:[%s3 + $0x6e0] sm:$0xff]
    %v774 = vld [vmem:[%s3 + $0x6e8] sm:$0xff]
    %v775 = vld [vmem:[%s3 + $0x6f0] sm:$0xff]
    %v776 = vld [vmem:[%s3 + $0x6f8] sm:$0xff]
    %v777 = vld [vmem:[%s3 + $0x700] sm:$0xff]
    %v778 = vld [vmem:[%s3 + $0x708] sm:$0xff]
    %v779 = vld [vmem:[%s3 + $0x710] sm:$0xff]
    %v780 = vld [vmem:[%s3 + $0x718] sm:$0xff]
    %v781 = vld [vmem:[%s3 + $0x720] sm:$0xff]
    %v782 = vld [vmem:[%s3 + $0x728] sm:$0xff]
    %v783 = vld [vmem:[%s3 + $0x730] sm:$0xff]
    %v784 = vld [vmem:[%s3 + $0x738] sm:$0xff]
    %v785 = vld [vmem:[%s3 + $0x740] sm:$0xff]
    %v786 = vld [vmem:[%s3 + $0x748] sm:$0xff]
    %v787 = vld [vmem:[%s3 + $0x750] sm:$0xff]
    %v788 = vld [vmem:[%s3 + $0x758] sm:$0xff]
    %v789 = vld [vmem:[%s3 + $0x760] sm:$0xff]
    %v790 = vld [vmem:[%s3 + $0x768] sm:$0xff]
    %v791 = vld [vmem:[%s3 + $0x770] sm:$0xff]
    %v792 = vld [vmem:[%s3 + $0x778] sm:$0xff]
    %v793 = vld [vmem:[%s3 + $0x780] sm:$0xff]
    %v794 = vld [vmem:[%s3 + $0x788] sm:$0xff]
    %v795 = vld [vmem:[%s3 + $0x790] sm:$0xff]
    %v796 = vld [vmem:[%s3 + $0x798] sm:$0xff]
    %v797 = vld [vmem:[%s3 + $0x7a0] sm:$0xff]
    %v798 = vld [vmem:[%s3 + $0x7a8] sm:$0xff]
    %v799 = vld [vmem:[%s3 + $0x7b0] sm:$0xff]
    %v800 = vld [vmem:[%s3 + $0x7b8] sm:$0xff]
    %v801 = vld [vmem:[%s3 + $0x7c0] sm:$0xff]
    %v802 = vld [vmem:[%s3 + $0x7c8] sm:$0xff]
    %v803 = vld [vmem:[%s3 + $0x7d0] sm:$0xff]
    %v804 = vld [vmem:[%s3 + $0x7d8] sm:$0xff]
    %v805 = vld [vmem:[%s3 + $0x7e0] sm:$0xff]
    %v806 = vld [vmem:[%s3 + $0x7e8] sm:$0xff]
    %v807 = vld [vmem:[%s3 + $0x7f0] sm:$0xff]
    %v808 = vld [vmem:[%s3 + $0x7f8] sm:$0xff]
    %v809 = vld [vmem:[%s4] sm:$0xff]
    %v811 = vlaneseq
    %v812 = vshrl.u32 %v811, 7
    %v813 = vsub.s32 0, %v812
    %v814 = vrot.slane %v809, %v813
    %v815 = vlaneseq
    %v816 = vshrl.u32 %v815, 7
    %v817 = vsub.s32 1, %v816
    %v818 = vrot.slane %v809, %v817
    %v819 = vlaneseq
    %v820 = vshrl.u32 %v819, 7
    %v821 = vsub.s32 2, %v820
    %v822 = vrot.slane %v809, %v821
    %v823 = vlaneseq
    %v824 = vshrl.u32 %v823, 7
    %v825 = vsub.s32 3, %v824
    %v826 = vrot.slane %v809, %v825
    %v827 = vlaneseq
    %v828 = vshrl.u32 %v827, 7
    %v829 = vsub.s32 4, %v828
    %v830 = vrot.slane %v809, %v829
    %v831 = vlaneseq
    %v832 = vshrl.u32 %v831, 7
    %v833 = vsub.s32 5, %v832
    %v834 = vrot.slane %v809, %v833
    %v835 = vlaneseq
    %v836 = vshrl.u32 %v835, 7
    %v837 = vsub.s32 6, %v836
    %v838 = vrot.slane %v809, %v837
    %v839 = vlaneseq
    %v840 = vshrl.u32 %v839, 7
    %v841 = vsub.s32 7, %v840
    %v842 = vrot.slane %v809, %v841
    %v1107 = vunpack.c.l.b16 %v553
    %v1108 = vunpack.c.h.b16 %v553
    %v1109 = vunpack.c.l.b16 %v554
    %v1110 = vunpack.c.h.b16 %v554
    %v1111 = vunpack.c.l.b16 %v555
    %v1112 = vunpack.c.h.b16 %v555
    %v1113 = vunpack.c.l.b16 %v556
    %v1114 = vunpack.c.h.b16 %v556
    %v1115 = vunpack.c.l.b16 %v557
    %v1116 = vunpack.c.h.b16 %v557
    %v1117 = vunpack.c.l.b16 %v558
    %v1118 = vunpack.c.h.b16 %v558
    %v1119 = vunpack.c.l.b16 %v559
    %v1120 = vunpack.c.h.b16 %v559
    %v1121 = vunpack.c.l.b16 %v560
    %v1122 = vunpack.c.h.b16 %v560
    %v1123 = vunpack.c.l.b16 %v561
    %v1124 = vunpack.c.h.b16 %v561
    %v1125 = vunpack.c.l.b16 %v562
    %v1126 = vunpack.c.h.b16 %v562
    %v1127 = vunpack.c.l.b16 %v563
    %v1128 = vunpack.c.h.b16 %v563
    %v1129 = vunpack.c.l.b16 %v564
    %v1130 = vunpack.c.h.b16 %v564
    %v1131 = vunpack.c.l.b16 %v565
    %v1132 = vunpack.c.h.b16 %v565
    %v1133 = vunpack.c.l.b16 %v566
    %v1134 = vunpack.c.h.b16 %v566
    %v1135 = vunpack.c.l.b16 %v567
    %v1136 = vunpack.c.h.b16 %v567
    %v1137 = vunpack.c.l.b16 %v568
    %v1138 = vunpack.c.h.b16 %v568
    %v1139 = vunpack.c.l.b16 %v569
    %v1140 = vunpack.c.h.b16 %v569
    %v1141 = vunpack.c.l.b16 %v570
    %v1142 = vunpack.c.h.b16 %v570
    %v1143 = vunpack.c.l.b16 %v571
    %v1144 = vunpack.c.h.b16 %v571
    %v1145 = vunpack.c.l.b16 %v572
    %v1146 = vunpack.c.h.b16 %v572
    %v1147 = vunpack.c.l.b16 %v573
    %v1148 = vunpack.c.h.b16 %v573
    %v1149 = vunpack.c.l.b16 %v574
    %v1150 = vunpack.c.h.b16 %v574
    %v1151 = vunpack.c.l.b16 %v575
    %v1152 = vunpack.c.h.b16 %v575
    %v1153 = vunpack.c.l.b16 %v576
    %v1154 = vunpack.c.h.b16 %v576
    %v1155 = vunpack.c.l.b16 %v577
    %v1156 = vunpack.c.h.b16 %v577
    %v1157 = vunpack.c.l.b16 %v578
    %v1158 = vunpack.c.h.b16 %v578
    %v1159 = vunpack.c.l.b16 %v579
    %v1160 = vunpack.c.h.b16 %v579
    %v1161 = vunpack.c.l.b16 %v580
    %v1162 = vunpack.c.h.b16 %v580
    %v1163 = vunpack.c.l.b16 %v581
    %v1164 = vunpack.c.h.b16 %v581
    %v1165 = vunpack.c.l.b16 %v582
    %v1166 = vunpack.c.h.b16 %v582
    %v1167 = vunpack.c.l.b16 %v583
    %v1168 = vunpack.c.h.b16 %v583
    %v1169 = vunpack.c.l.b16 %v584
    %v1170 = vunpack.c.h.b16 %v584
    %v1171 = vunpack.c.l.b16 %v585
    %v1172 = vunpack.c.h.b16 %v585
    %v1173 = vunpack.c.l.b16 %v586
    %v1174 = vunpack.c.h.b16 %v586
    %v1175 = vunpack.c.l.b16 %v587
    %v1176 = vunpack.c.h.b16 %v587
    %v1177 = vunpack.c.l.b16 %v588
    %v1178 = vunpack.c.h.b16 %v588
    %v1179 = vunpack.c.l.b16 %v589
    %v1180 = vunpack.c.h.b16 %v589
    %v1181 = vunpack.c.l.b16 %v590
    %v1182 = vunpack.c.h.b16 %v590
    %v1183 = vunpack.c.l.b16 %v591
    %v1184 = vunpack.c.h.b16 %v591
    %v1185 = vunpack.c.l.b16 %v592
    %v1186 = vunpack.c.h.b16 %v592
    %v1187 = vunpack.c.l.b16 %v593
    %v1188 = vunpack.c.h.b16 %v593
    %v1189 = vunpack.c.l.b16 %v594
    %v1190 = vunpack.c.h.b16 %v594
    %v1191 = vunpack.c.l.b16 %v595
    %v1192 = vunpack.c.h.b16 %v595
    %v1193 = vunpack.c.l.b16 %v596
    %v1194 = vunpack.c.h.b16 %v596
    %v1195 = vunpack.c.l.b16 %v597
    %v1196 = vunpack.c.h.b16 %v597
    %v1197 = vunpack.c.l.b16 %v598
    %v1198 = vunpack.c.h.b16 %v598
    %v1199 = vunpack.c.l.b16 %v599
    %v1200 = vunpack.c.h.b16 %v599
    %v1201 = vunpack.c.l.b16 %v600
    %v1202 = vunpack.c.h.b16 %v600
    %v1203 = vunpack.c.l.b16 %v601
    %v1204 = vunpack.c.h.b16 %v601
    %v1205 = vunpack.c.l.b16 %v602
    %v1206 = vunpack.c.h.b16 %v602
    %v1207 = vunpack.c.l.b16 %v603
    %v1208 = vunpack.c.h.b16 %v603
    %v1209 = vunpack.c.l.b16 %v604
    %v1210 = vunpack.c.h.b16 %v604
    %v1211 = vunpack.c.l.b16 %v605
    %v1212 = vunpack.c.h.b16 %v605
    %v1213 = vunpack.c.l.b16 %v606
    %v1214 = vunpack.c.h.b16 %v606
    %v1215 = vunpack.c.l.b16 %v607
    %v1216 = vunpack.c.h.b16 %v607
    %v1217 = vunpack.c.l.b16 %v608
    %v1218 = vunpack.c.h.b16 %v608
    %v1219 = vunpack.c.l.b16 %v609
    %v1220 = vunpack.c.h.b16 %v609
    %v1221 = vunpack.c.l.b16 %v610
    %v1222 = vunpack.c.h.b16 %v610
    %v1223 = vunpack.c.l.b16 %v611
    %v1224 = vunpack.c.h.b16 %v611
    %v1225 = vunpack.c.l.b16 %v612
    %v1226 = vunpack.c.h.b16 %v612
    %v1227 = vunpack.c.l.b16 %v613
    %v1228 = vunpack.c.h.b16 %v613
    %v1229 = vunpack.c.l.b16 %v614
    %v1230 = vunpack.c.h.b16 %v614
    %v1231 = vunpack.c.l.b16 %v615
    %v1232 = vunpack.c.h.b16 %v615
    %v1233 = vunpack.c.l.b16 %v616
    %v1234 = vunpack.c.h.b16 %v616
    %v1235 = vunpack.c.l.b16 %v617
    %v1236 = vunpack.c.h.b16 %v617
    %v1237 = vunpack.c.l.b16 %v618
    %v1238 = vunpack.c.h.b16 %v618
    %v1239 = vunpack.c.l.b16 %v619
    %v1240 = vunpack.c.h.b16 %v619
    %v1241 = vunpack.c.l.b16 %v620
    %v1242 = vunpack.c.h.b16 %v620
    %v1243 = vunpack.c.l.b16 %v621
    %v1244 = vunpack.c.h.b16 %v621
    %v1245 = vunpack.c.l.b16 %v622
    %v1246 = vunpack.c.h.b16 %v622
    %v1247 = vunpack.c.l.b16 %v623
    %v1248 = vunpack.c.h.b16 %v623
    %v1249 = vunpack.c.l.b16 %v624
    %v1250 = vunpack.c.h.b16 %v624
    %v1251 = vunpack.c.l.b16 %v625
    %v1252 = vunpack.c.h.b16 %v625
    %v1253 = vunpack.c.l.b16 %v626
    %v1254 = vunpack.c.h.b16 %v626
    %v1255 = vunpack.c.l.b16 %v627
    %v1256 = vunpack.c.h.b16 %v627
    %v1257 = vunpack.c.l.b16 %v628
    %v1258 = vunpack.c.h.b16 %v628
    %v1259 = vunpack.c.l.b16 %v629
    %v1260 = vunpack.c.h.b16 %v629
    %v1261 = vunpack.c.l.b16 %v630
    %v1262 = vunpack.c.h.b16 %v630
    %v1263 = vunpack.c.l.b16 %v631
    %v1264 = vunpack.c.h.b16 %v631
    %v1265 = vunpack.c.l.b16 %v632
    %v1266 = vunpack.c.h.b16 %v632
    %v1267 = vunpack.c.l.b16 %v633
    %v1268 = vunpack.c.h.b16 %v633
    %v1269 = vunpack.c.l.b16 %v634
    %v1270 = vunpack.c.h.b16 %v634
    %v1271 = vunpack.c.l.b16 %v635
    %v1272 = vunpack.c.h.b16 %v635
    %v1273 = vunpack.c.l.b16 %v636
    %v1274 = vunpack.c.h.b16 %v636
    %v1275 = vunpack.c.l.b16 %v637
    %v1276 = vunpack.c.h.b16 %v637
    %v1277 = vunpack.c.l.b16 %v638
    %v1278 = vunpack.c.h.b16 %v638
    %v1279 = vunpack.c.l.b16 %v639
    %v1280 = vunpack.c.h.b16 %v639
    %v1281 = vunpack.c.l.b16 %v640
    %v1282 = vunpack.c.h.b16 %v640
    %v1283 = vunpack.c.l.b16 %v641
    %v1284 = vunpack.c.h.b16 %v641
    %v1285 = vunpack.c.l.b16 %v642
    %v1286 = vunpack.c.h.b16 %v642
    %v1287 = vunpack.c.l.b16 %v643
    %v1288 = vunpack.c.h.b16 %v643
    %v1289 = vunpack.c.l.b16 %v644
    %v1290 = vunpack.c.h.b16 %v644
    %v1291 = vunpack.c.l.b16 %v645
    %v1292 = vunpack.c.h.b16 %v645
    %v1293 = vunpack.c.l.b16 %v646
    %v1294 = vunpack.c.h.b16 %v646
    %v1295 = vunpack.c.l.b16 %v647
    %v1296 = vunpack.c.h.b16 %v647
    %v1297 = vunpack.c.l.b16 %v648
    %v1298 = vunpack.c.h.b16 %v648
    %v1299 = vunpack.c.l.b16 %v649
    %v1300 = vunpack.c.h.b16 %v649
    %v1301 = vunpack.c.l.b16 %v650
    %v1302 = vunpack.c.h.b16 %v650
    %v1303 = vunpack.c.l.b16 %v651
    %v1304 = vunpack.c.h.b16 %v651
    %v1305 = vunpack.c.l.b16 %v652
    %v1306 = vunpack.c.h.b16 %v652
    %v1307 = vunpack.c.l.b16 %v653
    %v1308 = vunpack.c.h.b16 %v653
    %v1309 = vunpack.c.l.b16 %v654
    %v1310 = vunpack.c.h.b16 %v654
    %v1311 = vunpack.c.l.b16 %v655
    %v1312 = vunpack.c.h.b16 %v655
    %v1313 = vunpack.c.l.b16 %v656
    %v1314 = vunpack.c.h.b16 %v656
    %v1315 = vunpack.c.l.b16 %v657
    %v1316 = vunpack.c.h.b16 %v657
    %v1317 = vunpack.c.l.b16 %v658
    %v1318 = vunpack.c.h.b16 %v658
    %v1319 = vunpack.c.l.b16 %v659
    %v1320 = vunpack.c.h.b16 %v659
    %v1321 = vunpack.c.l.b16 %v660
    %v1322 = vunpack.c.h.b16 %v660
    %v1323 = vunpack.c.l.b16 %v661
    %v1324 = vunpack.c.h.b16 %v661
    %v1325 = vunpack.c.l.b16 %v662
    %v1326 = vunpack.c.h.b16 %v662
    %v1327 = vunpack.c.l.b16 %v663
    %v1328 = vunpack.c.h.b16 %v663
    %v1329 = vunpack.c.l.b16 %v664
    %v1330 = vunpack.c.h.b16 %v664
    %v1331 = vunpack.c.l.b16 %v665
    %v1332 = vunpack.c.h.b16 %v665
    %v1333 = vunpack.c.l.b16 %v666
    %v1334 = vunpack.c.h.b16 %v666
    %v1335 = vunpack.c.l.b16 %v667
    %v1336 = vunpack.c.h.b16 %v667
    %v1337 = vunpack.c.l.b16 %v668
    %v1338 = vunpack.c.h.b16 %v668
    %v1339 = vunpack.c.l.b16 %v669
    %v1340 = vunpack.c.h.b16 %v669
    %v1341 = vunpack.c.l.b16 %v670
    %v1342 = vunpack.c.h.b16 %v670
    %v1343 = vunpack.c.l.b16 %v671
    %v1344 = vunpack.c.h.b16 %v671
    %v1345 = vunpack.c.l.b16 %v672
    %v1346 = vunpack.c.h.b16 %v672
    %v1347 = vunpack.c.l.b16 %v673
    %v1348 = vunpack.c.h.b16 %v673
    %v1349 = vunpack.c.l.b16 %v674
    %v1350 = vunpack.c.h.b16 %v674
    %v1351 = vunpack.c.l.b16 %v675
    %v1352 = vunpack.c.h.b16 %v675
    %v1353 = vunpack.c.l.b16 %v676
    %v1354 = vunpack.c.h.b16 %v676
    %v1355 = vunpack.c.l.b16 %v677
    %v1356 = vunpack.c.h.b16 %v677
    %v1357 = vunpack.c.l.b16 %v678
    %v1358 = vunpack.c.h.b16 %v678
    %v1359 = vunpack.c.l.b16 %v679
    %v1360 = vunpack.c.h.b16 %v679
    %v1361 = vunpack.c.l.b16 %v680
    %v1362 = vunpack.c.h.b16 %v680
    %v1363 = vunpack.c.l.b16 %v681
    %v1364 = vunpack.c.h.b16 %v681
    %v1365 = vunpack.c.l.b16 %v682
    %v1366 = vunpack.c.h.b16 %v682
    %v1367 = vunpack.c.l.b16 %v683
    %v1368 = vunpack.c.h.b16 %v683
    %v1369 = vunpack.c.l.b16 %v684
    %v1370 = vunpack.c.h.b16 %v684
    %v1371 = vunpack.c.l.b16 %v685
    %v1372 = vunpack.c.h.b16 %v685
    %v1373 = vunpack.c.l.b16 %v686
    %v1374 = vunpack.c.h.b16 %v686
    %v1375 = vunpack.c.l.b16 %v687
    %v1376 = vunpack.c.h.b16 %v687
    %v1377 = vunpack.c.l.b16 %v688
    %v1378 = vunpack.c.h.b16 %v688
    %v1379 = vunpack.c.l.b16 %v689
    %v1380 = vunpack.c.h.b16 %v689
    %v1381 = vunpack.c.l.b16 %v690
    %v1382 = vunpack.c.h.b16 %v690
    %v1383 = vunpack.c.l.b16 %v691
    %v1384 = vunpack.c.h.b16 %v691
    %v1385 = vunpack.c.l.b16 %v692
    %v1386 = vunpack.c.h.b16 %v692
    %v1387 = vunpack.c.l.b16 %v693
    %v1388 = vunpack.c.h.b16 %v693
    %v1389 = vunpack.c.l.b16 %v694
    %v1390 = vunpack.c.h.b16 %v694
    %v1391 = vunpack.c.l.b16 %v695
    %v1392 = vunpack.c.h.b16 %v695
    %v1393 = vunpack.c.l.b16 %v696
    %v1394 = vunpack.c.h.b16 %v696
    %v1395 = vunpack.c.l.b16 %v697
    %v1396 = vunpack.c.h.b16 %v697
    %v1397 = vunpack.c.l.b16 %v698
    %v1398 = vunpack.c.h.b16 %v698
    %v1399 = vunpack.c.l.b16 %v699
    %v1400 = vunpack.c.h.b16 %v699
    %v1401 = vunpack.c.l.b16 %v700
    %v1402 = vunpack.c.h.b16 %v700
    %v1403 = vunpack.c.l.b16 %v701
    %v1404 = vunpack.c.h.b16 %v701
    %v1405 = vunpack.c.l.b16 %v702
    %v1406 = vunpack.c.h.b16 %v702
    %v1407 = vunpack.c.l.b16 %v703
    %v1408 = vunpack.c.h.b16 %v703
    %v1409 = vunpack.c.l.b16 %v704
    %v1410 = vunpack.c.h.b16 %v704
    %v1411 = vunpack.c.l.b16 %v705
    %v1412 = vunpack.c.h.b16 %v705
    %v1413 = vunpack.c.l.b16 %v706
    %v1414 = vunpack.c.h.b16 %v706
    %v1415 = vunpack.c.l.b16 %v707
    %v1416 = vunpack.c.h.b16 %v707
    %v1417 = vunpack.c.l.b16 %v708
    %v1418 = vunpack.c.h.b16 %v708
    %v1419 = vunpack.c.l.b16 %v709
    %v1420 = vunpack.c.h.b16 %v709
    %v1421 = vunpack.c.l.b16 %v710
    %v1422 = vunpack.c.h.b16 %v710
    %v1423 = vunpack.c.l.b16 %v711
    %v1424 = vunpack.c.h.b16 %v711
    %v1425 = vunpack.c.l.b16 %v712
    %v1426 = vunpack.c.h.b16 %v712
    %v1427 = vunpack.c.l.b16 %v713
    %v1428 = vunpack.c.h.b16 %v713
    %v1429 = vunpack.c.l.b16 %v714
    %v1430 = vunpack.c.h.b16 %v714
    %v1431 = vunpack.c.l.b16 %v715
    %v1432 = vunpack.c.h.b16 %v715
    %v1433 = vunpack.c.l.b16 %v716
    %v1434 = vunpack.c.h.b16 %v716
    %v1435 = vunpack.c.l.b16 %v717
    %v1436 = vunpack.c.h.b16 %v717
    %v1437 = vunpack.c.l.b16 %v718
    %v1438 = vunpack.c.h.b16 %v718
    %v1439 = vunpack.c.l.b16 %v719
    %v1440 = vunpack.c.h.b16 %v719
    %v1441 = vunpack.c.l.b16 %v720
    %v1442 = vunpack.c.h.b16 %v720
    %v1443 = vunpack.c.l.b16 %v721
    %v1444 = vunpack.c.h.b16 %v721
    %v1445 = vunpack.c.l.b16 %v722
    %v1446 = vunpack.c.h.b16 %v722
    %v1447 = vunpack.c.l.b16 %v723
    %v1448 = vunpack.c.h.b16 %v723
    %v1449 = vunpack.c.l.b16 %v724
    %v1450 = vunpack.c.h.b16 %v724
    %v1451 = vunpack.c.l.b16 %v725
    %v1452 = vunpack.c.h.b16 %v725
    %v1453 = vunpack.c.l.b16 %v726
    %v1454 = vunpack.c.h.b16 %v726
    %v1455 = vunpack.c.l.b16 %v727
    %v1456 = vunpack.c.h.b16 %v727
    %v1457 = vunpack.c.l.b16 %v728
    %v1458 = vunpack.c.h.b16 %v728
    %v1459 = vunpack.c.l.b16 %v729
    %v1460 = vunpack.c.h.b16 %v729
    %v1461 = vunpack.c.l.b16 %v730
    %v1462 = vunpack.c.h.b16 %v730
    %v1463 = vunpack.c.l.b16 %v731
    %v1464 = vunpack.c.h.b16 %v731
    %v1465 = vunpack.c.l.b16 %v732
    %v1466 = vunpack.c.h.b16 %v732
    %v1467 = vunpack.c.l.b16 %v733
    %v1468 = vunpack.c.h.b16 %v733
    %v1469 = vunpack.c.l.b16 %v734
    %v1470 = vunpack.c.h.b16 %v734
    %v1471 = vunpack.c.l.b16 %v735
    %v1472 = vunpack.c.h.b16 %v735
    %v1473 = vunpack.c.l.b16 %v736
    %v1474 = vunpack.c.h.b16 %v736
    %v1475 = vunpack.c.l.b16 %v737
    %v1476 = vunpack.c.h.b16 %v737
    %v1477 = vunpack.c.l.b16 %v738
    %v1478 = vunpack.c.h.b16 %v738
    %v1479 = vunpack.c.l.b16 %v739
    %v1480 = vunpack.c.h.b16 %v739
    %v1481 = vunpack.c.l.b16 %v740
    %v1482 = vunpack.c.h.b16 %v740
    %v1483 = vunpack.c.l.b16 %v741
    %v1484 = vunpack.c.h.b16 %v741
    %v1485 = vunpack.c.l.b16 %v742
    %v1486 = vunpack.c.h.b16 %v742
    %v1487 = vunpack.c.l.b16 %v743
    %v1488 = vunpack.c.h.b16 %v743
    %v1489 = vunpack.c.l.b16 %v744
    %v1490 = vunpack.c.h.b16 %v744
    %v1491 = vunpack.c.l.b16 %v745
    %v1492 = vunpack.c.h.b16 %v745
    %v1493 = vunpack.c.l.b16 %v746
    %v1494 = vunpack.c.h.b16 %v746
    %v1495 = vunpack.c.l.b16 %v747
    %v1496 = vunpack.c.h.b16 %v747
    %v1497 = vunpack.c.l.b16 %v748
    %v1498 = vunpack.c.h.b16 %v748
    %v1499 = vunpack.c.l.b16 %v749
    %v1500 = vunpack.c.h.b16 %v749
    %v1501 = vunpack.c.l.b16 %v750
    %v1502 = vunpack.c.h.b16 %v750
    %v1503 = vunpack.c.l.b16 %v751
    %v1504 = vunpack.c.h.b16 %v751
    %v1505 = vunpack.c.l.b16 %v752
    %v1506 = vunpack.c.h.b16 %v752
    %v1507 = vunpack.c.l.b16 %v753
    %v1508 = vunpack.c.h.b16 %v753
    %v1509 = vunpack.c.l.b16 %v754
    %v1510 = vunpack.c.h.b16 %v754
    %v1511 = vunpack.c.l.b16 %v755
    %v1512 = vunpack.c.h.b16 %v755
    %v1513 = vunpack.c.l.b16 %v756
    %v1514 = vunpack.c.h.b16 %v756
    %v1515 = vunpack.c.l.b16 %v757
    %v1516 = vunpack.c.h.b16 %v757
    %v1517 = vunpack.c.l.b16 %v758
    %v1518 = vunpack.c.h.b16 %v758
    %v1519 = vunpack.c.l.b16 %v759
    %v1520 = vunpack.c.h.b16 %v759
    %v1521 = vunpack.c.l.b16 %v760
    %v1522 = vunpack.c.h.b16 %v760
    %v1523 = vunpack.c.l.b16 %v761
    %v1524 = vunpack.c.h.b16 %v761
    %v1525 = vunpack.c.l.b16 %v762
    %v1526 = vunpack.c.h.b16 %v762
    %v1527 = vunpack.c.l.b16 %v763
    %v1528 = vunpack.c.h.b16 %v763
    %v1529 = vunpack.c.l.b16 %v764
    %v1530 = vunpack.c.h.b16 %v764
    %v1531 = vunpack.c.l.b16 %v765
    %v1532 = vunpack.c.h.b16 %v765
    %v1533 = vunpack.c.l.b16 %v766
    %v1534 = vunpack.c.h.b16 %v766
    %v1535 = vunpack.c.l.b16 %v767
    %v1536 = vunpack.c.h.b16 %v767
    %v1537 = vunpack.c.l.b16 %v768
    %v1538 = vunpack.c.h.b16 %v768
    %v1539 = vunpack.c.l.b16 %v769
    %v1540 = vunpack.c.h.b16 %v769
    %v1541 = vunpack.c.l.b16 %v770
    %v1542 = vunpack.c.h.b16 %v770
    %v1543 = vunpack.c.l.b16 %v771
    %v1544 = vunpack.c.h.b16 %v771
    %v1545 = vunpack.c.l.b16 %v772
    %v1546 = vunpack.c.h.b16 %v772
    %v1547 = vunpack.c.l.b16 %v773
    %v1548 = vunpack.c.h.b16 %v773
    %v1549 = vunpack.c.l.b16 %v774
    %v1550 = vunpack.c.h.b16 %v774
    %v1551 = vunpack.c.l.b16 %v775
    %v1552 = vunpack.c.h.b16 %v775
    %v1553 = vunpack.c.l.b16 %v776
    %v1554 = vunpack.c.h.b16 %v776
    %v1555 = vunpack.c.l.b16 %v777
    %v1556 = vunpack.c.h.b16 %v777
    %v1557 = vunpack.c.l.b16 %v778
    %v1558 = vunpack.c.h.b16 %v778
    %v1559 = vunpack.c.l.b16 %v779
    %v1560 = vunpack.c.h.b16 %v779
    %v1561 = vunpack.c.l.b16 %v780
    %v1562 = vunpack.c.h.b16 %v780
    %v1563 = vunpack.c.l.b16 %v781
    %v1564 = vunpack.c.h.b16 %v781
    %v1565 = vunpack.c.l.b16 %v782
    %v1566 = vunpack.c.h.b16 %v782
    %v1567 = vunpack.c.l.b16 %v783
    %v1568 = vunpack.c.h.b16 %v783
    %v1569 = vunpack.c.l.b16 %v784
    %v1570 = vunpack.c.h.b16 %v784
    %v1571 = vunpack.c.l.b16 %v785
    %v1572 = vunpack.c.h.b16 %v785
    %v1573 = vunpack.c.l.b16 %v786
    %v1574 = vunpack.c.h.b16 %v786
    %v1575 = vunpack.c.l.b16 %v787
    %v1576 = vunpack.c.h.b16 %v787
    %v1577 = vunpack.c.l.b16 %v788
    %v1578 = vunpack.c.h.b16 %v788
    %v1579 = vunpack.c.l.b16 %v789
    %v1580 = vunpack.c.h.b16 %v789
    %v1581 = vunpack.c.l.b16 %v790
    %v1582 = vunpack.c.h.b16 %v790
    %v1583 = vunpack.c.l.b16 %v791
    %v1584 = vunpack.c.h.b16 %v791
    %v1585 = vunpack.c.l.b16 %v792
    %v1586 = vunpack.c.h.b16 %v792
    %v1587 = vunpack.c.l.b16 %v793
    %v1588 = vunpack.c.h.b16 %v793
    %v1589 = vunpack.c.l.b16 %v794
    %v1590 = vunpack.c.h.b16 %v794
    %v1591 = vunpack.c.l.b16 %v795
    %v1592 = vunpack.c.h.b16 %v795
    %v1593 = vunpack.c.l.b16 %v796
    %v1594 = vunpack.c.h.b16 %v796
    %v1595 = vunpack.c.l.b16 %v797
    %v1596 = vunpack.c.h.b16 %v797
    %v1597 = vunpack.c.l.b16 %v798
    %v1598 = vunpack.c.h.b16 %v798
    %v1599 = vunpack.c.l.b16 %v799
    %v1600 = vunpack.c.h.b16 %v799
    %v1601 = vunpack.c.l.b16 %v800
    %v1602 = vunpack.c.h.b16 %v800
    %v1603 = vunpack.c.l.b16 %v801
    %v1604 = vunpack.c.h.b16 %v801
    %v1605 = vunpack.c.l.b16 %v802
    %v1606 = vunpack.c.h.b16 %v802
    %v1607 = vunpack.c.l.b16 %v803
    %v1608 = vunpack.c.h.b16 %v803
    %v1609 = vunpack.c.l.b16 %v804
    %v1610 = vunpack.c.h.b16 %v804
    %v1611 = vunpack.c.l.b16 %v805
    %v1612 = vunpack.c.h.b16 %v805
    %v1613 = vunpack.c.l.b16 %v806
    %v1614 = vunpack.c.h.b16 %v806
    %v1615 = vunpack.c.l.b16 %v807
    %v1616 = vunpack.c.h.b16 %v807
    %v1617 = vunpack.c.l.b16 %v808
    %v1618 = vunpack.c.h.b16 %v808
    %v1619 = vpack.c.b16 %v1115, %v1107
    %v1620 = vpack.c.b16 %v1116, %v1108
    %v1621 = vpack.c.b16 %v1117, %v1109
    %v1622 = vpack.c.b16 %v1118, %v1110
    %v1623 = vpack.c.b16 %v1119, %v1111
    %v1624 = vpack.c.b16 %v1120, %v1112
    %v1625 = vpack.c.b16 %v1121, %v1113
    %v1626 = vpack.c.b16 %v1122, %v1114
    %v1627 = vpack.c.b16 %v1131, %v1123
    %v1628 = vpack.c.b16 %v1132, %v1124
    %v1629 = vpack.c.b16 %v1133, %v1125
    %v1630 = vpack.c.b16 %v1134, %v1126
    %v1631 = vpack.c.b16 %v1135, %v1127
    %v1632 = vpack.c.b16 %v1136, %v1128
    %v1633 = vpack.c.b16 %v1137, %v1129
    %v1634 = vpack.c.b16 %v1138, %v1130
    %v1635 = vpack.c.b16 %v1147, %v1139
    %v1636 = vpack.c.b16 %v1148, %v1140
    %v1637 = vpack.c.b16 %v1149, %v1141
    %v1638 = vpack.c.b16 %v1150, %v1142
    %v1639 = vpack.c.b16 %v1151, %v1143
    %v1640 = vpack.c.b16 %v1152, %v1144
    %v1641 = vpack.c.b16 %v1153, %v1145
    %v1642 = vpack.c.b16 %v1154, %v1146
    %v1643 = vpack.c.b16 %v1163, %v1155
    %v1644 = vpack.c.b16 %v1164, %v1156
    %v1645 = vpack.c.b16 %v1165, %v1157
    %v1646 = vpack.c.b16 %v1166, %v1158
    %v1647 = vpack.c.b16 %v1167, %v1159
    %v1648 = vpack.c.b16 %v1168, %v1160
    %v1649 = vpack.c.b16 %v1169, %v1161
    %v1650 = vpack.c.b16 %v1170, %v1162
    %v1651 = vpack.c.b16 %v1179, %v1171
    %v1652 = vpack.c.b16 %v1180, %v1172
    %v1653 = vpack.c.b16 %v1181, %v1173
    %v1654 = vpack.c.b16 %v1182, %v1174
    %v1655 = vpack.c.b16 %v1183, %v1175
    %v1656 = vpack.c.b16 %v1184, %v1176
    %v1657 = vpack.c.b16 %v1185, %v1177
    %v1658 = vpack.c.b16 %v1186, %v1178
    %v1659 = vpack.c.b16 %v1195, %v1187
    %v1660 = vpack.c.b16 %v1196, %v1188
    %v1661 = vpack.c.b16 %v1197, %v1189
    %v1662 = vpack.c.b16 %v1198, %v1190
    %v1663 = vpack.c.b16 %v1199, %v1191
    %v1664 = vpack.c.b16 %v1200, %v1192
    %v1665 = vpack.c.b16 %v1201, %v1193
    %v1666 = vpack.c.b16 %v1202, %v1194
    %v1667 = vpack.c.b16 %v1211, %v1203
    %v1668 = vpack.c.b16 %v1212, %v1204
    %v1669 = vpack.c.b16 %v1213, %v1205
    %v1670 = vpack.c.b16 %v1214, %v1206
    %v1671 = vpack.c.b16 %v1215, %v1207
    %v1672 = vpack.c.b16 %v1216, %v1208
    %v1673 = vpack.c.b16 %v1217, %v1209
    %v1674 = vpack.c.b16 %v1218, %v1210
    %v1675 = vpack.c.b16 %v1227, %v1219
    %v1676 = vpack.c.b16 %v1228, %v1220
    %v1677 = vpack.c.b16 %v1229, %v1221
    %v1678 = vpack.c.b16 %v1230, %v1222
    %v1679 = vpack.c.b16 %v1231, %v1223
    %v1680 = vpack.c.b16 %v1232, %v1224
    %v1681 = vpack.c.b16 %v1233, %v1225
    %v1682 = vpack.c.b16 %v1234, %v1226
    %v1683 = vpack.c.b16 %v1243, %v1235
    %v1684 = vpack.c.b16 %v1244, %v1236
    %v1685 = vpack.c.b16 %v1245, %v1237
    %v1686 = vpack.c.b16 %v1246, %v1238
    %v1687 = vpack.c.b16 %v1247, %v1239
    %v1688 = vpack.c.b16 %v1248, %v1240
    %v1689 = vpack.c.b16 %v1249, %v1241
    %v1690 = vpack.c.b16 %v1250, %v1242
    %v1691 = vpack.c.b16 %v1259, %v1251
    %v1692 = vpack.c.b16 %v1260, %v1252
    %v1693 = vpack.c.b16 %v1261, %v1253
    %v1694 = vpack.c.b16 %v1262, %v1254
    %v1695 = vpack.c.b16 %v1263, %v1255
    %v1696 = vpack.c.b16 %v1264, %v1256
    %v1697 = vpack.c.b16 %v1265, %v1257
    %v1698 = vpack.c.b16 %v1266, %v1258
    %v1699 = vpack.c.b16 %v1275, %v1267
    %v1700 = vpack.c.b16 %v1276, %v1268
    %v1701 = vpack.c.b16 %v1277, %v1269
    %v1702 = vpack.c.b16 %v1278, %v1270
    %v1703 = vpack.c.b16 %v1279, %v1271
    %v1704 = vpack.c.b16 %v1280, %v1272
    %v1705 = vpack.c.b16 %v1281, %v1273
    %v1706 = vpack.c.b16 %v1282, %v1274
    %v1707 = vpack.c.b16 %v1291, %v1283
    %v1708 = vpack.c.b16 %v1292, %v1284
    %v1709 = vpack.c.b16 %v1293, %v1285
    %v1710 = vpack.c.b16 %v1294, %v1286
    %v1711 = vpack.c.b16 %v1295, %v1287
    %v1712 = vpack.c.b16 %v1296, %v1288
    %v1713 = vpack.c.b16 %v1297, %v1289
    %v1714 = vpack.c.b16 %v1298, %v1290
    %v1715 = vpack.c.b16 %v1307, %v1299
    %v1716 = vpack.c.b16 %v1308, %v1300
    %v1717 = vpack.c.b16 %v1309, %v1301
    %v1718 = vpack.c.b16 %v1310, %v1302
    %v1719 = vpack.c.b16 %v1311, %v1303
    %v1720 = vpack.c.b16 %v1312, %v1304
    %v1721 = vpack.c.b16 %v1313, %v1305
    %v1722 = vpack.c.b16 %v1314, %v1306
    %v1723 = vpack.c.b16 %v1323, %v1315
    %v1724 = vpack.c.b16 %v1324, %v1316
    %v1725 = vpack.c.b16 %v1325, %v1317
    %v1726 = vpack.c.b16 %v1326, %v1318
    %v1727 = vpack.c.b16 %v1327, %v1319
    %v1728 = vpack.c.b16 %v1328, %v1320
    %v1729 = vpack.c.b16 %v1329, %v1321
    %v1730 = vpack.c.b16 %v1330, %v1322
    %v1731 = vpack.c.b16 %v1339, %v1331
    %v1732 = vpack.c.b16 %v1340, %v1332
    %v1733 = vpack.c.b16 %v1341, %v1333
    %v1734 = vpack.c.b16 %v1342, %v1334
    %v1735 = vpack.c.b16 %v1343, %v1335
    %v1736 = vpack.c.b16 %v1344, %v1336
    %v1737 = vpack.c.b16 %v1345, %v1337
    %v1738 = vpack.c.b16 %v1346, %v1338
    %v1739 = vpack.c.b16 %v1355, %v1347
    %v1740 = vpack.c.b16 %v1356, %v1348
    %v1741 = vpack.c.b16 %v1357, %v1349
    %v1742 = vpack.c.b16 %v1358, %v1350
    %v1743 = vpack.c.b16 %v1359, %v1351
    %v1744 = vpack.c.b16 %v1360, %v1352
    %v1745 = vpack.c.b16 %v1361, %v1353
    %v1746 = vpack.c.b16 %v1362, %v1354
    %v1747 = vpack.c.b16 %v1371, %v1363
    %v1748 = vpack.c.b16 %v1372, %v1364
    %v1749 = vpack.c.b16 %v1373, %v1365
    %v1750 = vpack.c.b16 %v1374, %v1366
    %v1751 = vpack.c.b16 %v1375, %v1367
    %v1752 = vpack.c.b16 %v1376, %v1368
    %v1753 = vpack.c.b16 %v1377, %v1369
    %v1754 = vpack.c.b16 %v1378, %v1370
    %v1755 = vpack.c.b16 %v1387, %v1379
    %v1756 = vpack.c.b16 %v1388, %v1380
    %v1757 = vpack.c.b16 %v1389, %v1381
    %v1758 = vpack.c.b16 %v1390, %v1382
    %v1759 = vpack.c.b16 %v1391, %v1383
    %v1760 = vpack.c.b16 %v1392, %v1384
    %v1761 = vpack.c.b16 %v1393, %v1385
    %v1762 = vpack.c.b16 %v1394, %v1386
    %v1763 = vpack.c.b16 %v1403, %v1395
    %v1764 = vpack.c.b16 %v1404, %v1396
    %v1765 = vpack.c.b16 %v1405, %v1397
    %v1766 = vpack.c.b16 %v1406, %v1398
    %v1767 = vpack.c.b16 %v1407, %v1399
    %v1768 = vpack.c.b16 %v1408, %v1400
    %v1769 = vpack.c.b16 %v1409, %v1401
    %v1770 = vpack.c.b16 %v1410, %v1402
    %v1771 = vpack.c.b16 %v1419, %v1411
    %v1772 = vpack.c.b16 %v1420, %v1412
    %v1773 = vpack.c.b16 %v1421, %v1413
    %v1774 = vpack.c.b16 %v1422, %v1414
    %v1775 = vpack.c.b16 %v1423, %v1415
    %v1776 = vpack.c.b16 %v1424, %v1416
    %v1777 = vpack.c.b16 %v1425, %v1417
    %v1778 = vpack.c.b16 %v1426, %v1418
    %v1779 = vpack.c.b16 %v1435, %v1427
    %v1780 = vpack.c.b16 %v1436, %v1428
    %v1781 = vpack.c.b16 %v1437, %v1429
    %v1782 = vpack.c.b16 %v1438, %v1430
    %v1783 = vpack.c.b16 %v1439, %v1431
    %v1784 = vpack.c.b16 %v1440, %v1432
    %v1785 = vpack.c.b16 %v1441, %v1433
    %v1786 = vpack.c.b16 %v1442, %v1434
    %v1787 = vpack.c.b16 %v1451, %v1443
    %v1788 = vpack.c.b16 %v1452, %v1444
    %v1789 = vpack.c.b16 %v1453, %v1445
    %v1790 = vpack.c.b16 %v1454, %v1446
    %v1791 = vpack.c.b16 %v1455, %v1447
    %v1792 = vpack.c.b16 %v1456, %v1448
    %v1793 = vpack.c.b16 %v1457, %v1449
    %v1794 = vpack.c.b16 %v1458, %v1450
    %v1795 = vpack.c.b16 %v1467, %v1459
    %v1796 = vpack.c.b16 %v1468, %v1460
    %v1797 = vpack.c.b16 %v1469, %v1461
    %v1798 = vpack.c.b16 %v1470, %v1462
    %v1799 = vpack.c.b16 %v1471, %v1463
    %v1800 = vpack.c.b16 %v1472, %v1464
    %v1801 = vpack.c.b16 %v1473, %v1465
    %v1802 = vpack.c.b16 %v1474, %v1466
    %v1803 = vpack.c.b16 %v1483, %v1475
    %v1804 = vpack.c.b16 %v1484, %v1476
    %v1805 = vpack.c.b16 %v1485, %v1477
    %v1806 = vpack.c.b16 %v1486, %v1478
    %v1807 = vpack.c.b16 %v1487, %v1479
    %v1808 = vpack.c.b16 %v1488, %v1480
    %v1809 = vpack.c.b16 %v1489, %v1481
    %v1810 = vpack.c.b16 %v1490, %v1482
    %v1811 = vpack.c.b16 %v1499, %v1491
    %v1812 = vpack.c.b16 %v1500, %v1492
    %v1813 = vpack.c.b16 %v1501, %v1493
    %v1814 = vpack.c.b16 %v1502, %v1494
    %v1815 = vpack.c.b16 %v1503, %v1495
    %v1816 = vpack.c.b16 %v1504, %v1496
    %v1817 = vpack.c.b16 %v1505, %v1497
    %v1818 = vpack.c.b16 %v1506, %v1498
    %v1819 = vpack.c.b16 %v1515, %v1507
    %v1820 = vpack.c.b16 %v1516, %v1508
    %v1821 = vpack.c.b16 %v1517, %v1509
    %v1822 = vpack.c.b16 %v1518, %v1510
    %v1823 = vpack.c.b16 %v1519, %v1511
    %v1824 = vpack.c.b16 %v1520, %v1512
    %v1825 = vpack.c.b16 %v1521, %v1513
    %v1826 = vpack.c.b16 %v1522, %v1514
    %v1827 = vpack.c.b16 %v1531, %v1523
    %v1828 = vpack.c.b16 %v1532, %v1524
    %v1829 = vpack.c.b16 %v1533, %v1525
    %v1830 = vpack.c.b16 %v1534, %v1526
    %v1831 = vpack.c.b16 %v1535, %v1527
    %v1832 = vpack.c.b16 %v1536, %v1528
    %v1833 = vpack.c.b16 %v1537, %v1529
    %v1834 = vpack.c.b16 %v1538, %v1530
    %v1835 = vpack.c.b16 %v1547, %v1539
    %v1836 = vpack.c.b16 %v1548, %v1540
    %v1837 = vpack.c.b16 %v1549, %v1541
    %v1838 = vpack.c.b16 %v1550, %v1542
    %v1839 = vpack.c.b16 %v1551, %v1543
    %v1840 = vpack.c.b16 %v1552, %v1544
    %v1841 = vpack.c.b16 %v1553, %v1545
    %v1842 = vpack.c.b16 %v1554, %v1546
    %v1843 = vpack.c.b16 %v1563, %v1555
    %v1844 = vpack.c.b16 %v1564, %v1556
    %v1845 = vpack.c.b16 %v1565, %v1557
    %v1846 = vpack.c.b16 %v1566, %v1558
    %v1847 = vpack.c.b16 %v1567, %v1559
    %v1848 = vpack.c.b16 %v1568, %v1560
    %v1849 = vpack.c.b16 %v1569, %v1561
    %v1850 = vpack.c.b16 %v1570, %v1562
    %v1851 = vpack.c.b16 %v1579, %v1571
    %v1852 = vpack.c.b16 %v1580, %v1572
    %v1853 = vpack.c.b16 %v1581, %v1573
    %v1854 = vpack.c.b16 %v1582, %v1574
    %v1855 = vpack.c.b16 %v1583, %v1575
    %v1856 = vpack.c.b16 %v1584, %v1576
    %v1857 = vpack.c.b16 %v1585, %v1577
    %v1858 = vpack.c.b16 %v1586, %v1578
    %v1859 = vpack.c.b16 %v1595, %v1587
    %v1860 = vpack.c.b16 %v1596, %v1588
    %v1861 = vpack.c.b16 %v1597, %v1589
    %v1862 = vpack.c.b16 %v1598, %v1590
    %v1863 = vpack.c.b16 %v1599, %v1591
    %v1864 = vpack.c.b16 %v1600, %v1592
    %v1865 = vpack.c.b16 %v1601, %v1593
    %v1866 = vpack.c.b16 %v1602, %v1594
    %v1867 = vpack.c.b16 %v1611, %v1603
    %v1868 = vpack.c.b16 %v1612, %v1604
    %v1869 = vpack.c.b16 %v1613, %v1605
    %v1870 = vpack.c.b16 %v1614, %v1606
    %v1871 = vpack.c.b16 %v1615, %v1607
    %v1872 = vpack.c.b16 %v1616, %v1608
    %v1873 = vpack.c.b16 %v1617, %v1609
    %v1874 = vpack.c.b16 %v1618, %v1610
    %2131 = vmatprep.subr.bf16.mxu0 %v1620
    %2132 = vmatpush1.bf16.msra.mxu0 %v1619
    %2133 = vmatprep.subr.bf16.mxu0 %v1628
    %2134 = vmatpush1.bf16.msra.mxu0 %v1627
    %2135 = vmatprep.subr.bf16.mxu0 %v1636
    %2136 = vmatpush1.bf16.msra.mxu0 %v1635
    %2137 = vmatprep.subr.bf16.mxu0 %v1644
    %2138 = vmatpush1.bf16.msra.mxu0 %v1643
    %2139 = vmatprep.subr.bf16.mxu0 %v1652
    %2140 = vmatpush1.bf16.msra.mxu0 %v1651
    %2141 = vmatprep.subr.bf16.mxu0 %v1660
    %2142 = vmatpush1.bf16.msra.mxu0 %v1659
    %2143 = vmatprep.subr.bf16.mxu0 %v1668
    %2144 = vmatpush1.bf16.msra.mxu0 %v1667
    %2145 = vmatprep.subr.bf16.mxu0 %v1676
    %2146 = vmatpush1.bf16.msra.mxu0 %v1675
    %2147 = vmatprep.subr.bf16.mxu0 %v1684
    %2148 = vmatpush1.bf16.msra.mxu0 %v1683
    %2149 = vmatprep.subr.bf16.mxu0 %v1692
    %2150 = vmatpush1.bf16.msra.mxu0 %v1691
    %2151 = vmatprep.subr.bf16.mxu0 %v1700
    %2152 = vmatpush1.bf16.msra.mxu0 %v1699
    %2153 = vmatprep.subr.bf16.mxu0 %v1708
    %2154 = vmatpush1.bf16.msra.mxu0 %v1707
    %2155 = vmatprep.subr.bf16.mxu0 %v1716
    %2156 = vmatpush1.bf16.msra.mxu0 %v1715
    %2157 = vmatprep.subr.bf16.mxu0 %v1724
    %2158 = vmatpush1.bf16.msra.mxu0 %v1723
    %2159 = vmatprep.subr.bf16.mxu0 %v1732
    %2160 = vmatpush1.bf16.msra.mxu0 %v1731
    %2161 = vmatprep.subr.bf16.mxu0 %v1740
    %2162 = vmatpush1.bf16.msra.mxu0 %v1739
    %2163 = vmatprep.mubr.bf16.mxu0 %v550
    %2164 = vmatmul.mubr.bf16.gmra.mrb[0].mxu0 %v549
    %v2165 = vpop.f32.mrb[0].mxu0
    %v2166 = vadd.f32 %v814, %v2165
    %v2167 = vpop.f32.mrb[0].mxu0
    %v2168 = vadd.f32 %v818, %v2167
    %v2169 = vpop.f32.mrb[0].mxu0
    %v2170 = vpop.f32.mrb[0].mxu0
    %2171 = vdwg.mxu0
    %2172 = vmatprep.subr.bf16.mxu0 %v1748
    %2173 = vmatpush1.bf16.msra.mxu0 %v1747
    %2174 = vmatprep.subr.bf16.mxu0 %v1756
    %2175 = vmatpush1.bf16.msra.mxu0 %v1755
    %2176 = vmatprep.subr.bf16.mxu0 %v1764
    %2177 = vmatpush1.bf16.msra.mxu0 %v1763
    %2178 = vmatprep.subr.bf16.mxu0 %v1772
    %2179 = vmatpush1.bf16.msra.mxu0 %v1771
    %2180 = vmatprep.subr.bf16.mxu0 %v1780
    %2181 = vmatpush1.bf16.msra.mxu0 %v1779
    %2182 = vmatprep.subr.bf16.mxu0 %v1788
    %2183 = vmatpush1.bf16.msra.mxu0 %v1787
    %2184 = vmatprep.subr.bf16.mxu0 %v1796
    %2185 = vmatpush1.bf16.msra.mxu0 %v1795
    %2186 = vmatprep.subr.bf16.mxu0 %v1804
    %2187 = vmatpush1.bf16.msra.mxu0 %v1803
    %2188 = vmatprep.subr.bf16.mxu0 %v1812
    %2189 = vmatpush1.bf16.msra.mxu0 %v1811
    %2190 = vmatprep.subr.bf16.mxu0 %v1820
    %2191 = vmatpush1.bf16.msra.mxu0 %v1819
    %2192 = vmatprep.subr.bf16.mxu0 %v1828
    %2193 = vmatpush1.bf16.msra.mxu0 %v1827
    %2194 = vmatprep.subr.bf16.mxu0 %v1836
    %2195 = vmatpush1.bf16.msra.mxu0 %v1835
    %2196 = vmatprep.subr.bf16.mxu0 %v1844
    %2197 = vmatpush1.bf16.msra.mxu0 %v1843
    %2198 = vmatprep.subr.bf16.mxu0 %v1852
    %2199 = vmatpush1.bf16.msra.mxu0 %v1851
    %2200 = vmatprep.subr.bf16.mxu0 %v1860
    %2201 = vmatpush1.bf16.msra.mxu0 %v1859
    %2202 = vmatprep.subr.bf16.mxu0 %v1868
    %2203 = vmatpush1.bf16.msra.mxu0 %v1867
    %2204 = vmatprep.mubr.bf16.mxu0 %v552
    %2205 = vmatmul.mubr.bf16.gmra.mrb[0].mxu0 %v551
    %v2206 = vpop.f32.mrb[0].mxu0
    %v2207 = vadd.f32 %v2166, %v2206
    %v2208 = vpop.f32.mrb[0].mxu0
    %v2209 = vadd.f32 %v2168, %v2208
    %v2210 = vpop.f32.mrb[0].mxu0
    %v2211 = vpop.f32.mrb[0].mxu0
    %2212 = vdwg.mxu0
    %2213 = vmatprep.subr.bf16.mxu0 %v1622
    %2214 = vmatpush1.bf16.msra.mxu0 %v1621
    %2215 = vmatprep.subr.bf16.mxu0 %v1630
    %2216 = vmatpush1.bf16.msra.mxu0 %v1629
    %2217 = vmatprep.subr.bf16.mxu0 %v1638
    %2218 = vmatpush1.bf16.msra.mxu0 %v1637
    %2219 = vmatprep.subr.bf16.mxu0 %v1646
    %2220 = vmatpush1.bf16.msra.mxu0 %v1645
    %2221 = vmatprep.subr.bf16.mxu0 %v1654
    %2222 = vmatpush1.bf16.msra.mxu0 %v1653
    %2223 = vmatprep.subr.bf16.mxu0 %v1662
    %2224 = vmatpush1.bf16.msra.mxu0 %v1661
    %2225 = vmatprep.subr.bf16.mxu0 %v1670
    %2226 = vmatpush1.bf16.msra.mxu0 %v1669
    %2227 = vmatprep.subr.bf16.mxu0 %v1678
    %2228 = vmatpush1.bf16.msra.mxu0 %v1677
    %2229 = vmatprep.subr.bf16.mxu0 %v1686
    %2230 = vmatpush1.bf16.msra.mxu0 %v1685
    %2231 = vmatprep.subr.bf16.mxu0 %v1694
    %2232 = vmatpush1.bf16.msra.mxu0 %v1693
    %2233 = vmatprep.subr.bf16.mxu0 %v1702
    %2234 = vmatpush1.bf16.msra.mxu0 %v1701
    %2235 = vmatprep.subr.bf16.mxu0 %v1710
    %2236 = vmatpush1.bf16.msra.mxu0 %v1709
    %2237 = vmatprep.subr.bf16.mxu0 %v1718
    %2238 = vmatpush1.bf16.msra.mxu0 %v1717
    %2239 = vmatprep.subr.bf16.mxu0 %v1726
    %2240 = vmatpush1.bf16.msra.mxu0 %v1725
    %2241 = vmatprep.subr.bf16.mxu0 %v1734
    %2242 = vmatpush1.bf16.msra.mxu0 %v1733
    %2243 = vmatprep.subr.bf16.mxu0 %v1742
    %2244 = vmatpush1.bf16.msra.mxu0 %v1741
    %2245 = vmatprep.mubr.bf16.mxu0 %v550
    %2246 = vmatmul.mubr.bf16.gmra.mrb[0].mxu0 %v549
    %v2247 = vpop.f32.mrb[0].mxu0
    %v2248 = vadd.f32 %v822, %v2247
    %v2249 = vpop.f32.mrb[0].mxu0
    %v2250 = vadd.f32 %v826, %v2249
    %v2251 = vpop.f32.mrb[0].mxu0
    %v2252 = vpop.f32.mrb[0].mxu0
    %2253 = vdwg.mxu0
    %2254 = vmatprep.subr.bf16.mxu0 %v1750
    %2255 = vmatpush1.bf16.msra.mxu0 %v1749
    %2256 = vmatprep.subr.bf16.mxu0 %v1758
    %2257 = vmatpush1.bf16.msra.mxu0 %v1757
    %2258 = vmatprep.subr.bf16.mxu0 %v1766
    %2259 = vmatpush1.bf16.msra.mxu0 %v1765
    %2260 = vmatprep.subr.bf16.mxu0 %v1774
    %2261 = vmatpush1.bf16.msra.mxu0 %v1773
    %2262 = vmatprep.subr.bf16.mxu0 %v1782
    %2263 = vmatpush1.bf16.msra.mxu0 %v1781
    %2264 = vmatprep.subr.bf16.mxu0 %v1790
    %2265 = vmatpush1.bf16.msra.mxu0 %v1789
    %2266 = vmatprep.subr.bf16.mxu0 %v1798
    %2267 = vmatpush1.bf16.msra.mxu0 %v1797
    %2268 = vmatprep.subr.bf16.mxu0 %v1806
    %2269 = vmatpush1.bf16.msra.mxu0 %v1805
    %2270 = vmatprep.subr.bf16.mxu0 %v1814
    %2271 = vmatpush1.bf16.msra.mxu0 %v1813
    %2272 = vmatprep.subr.bf16.mxu0 %v1822
    %2273 = vmatpush1.bf16.msra.mxu0 %v1821
    %2274 = vmatprep.subr.bf16.mxu0 %v1830
    %2275 = vmatpush1.bf16.msra.mxu0 %v1829
    %2276 = vmatprep.subr.bf16.mxu0 %v1838
    %2277 = vmatpush1.bf16.msra.mxu0 %v1837
    %2278 = vmatprep.subr.bf16.mxu0 %v1846
    %2279 = vmatpush1.bf16.msra.mxu0 %v1845
    %2280 = vmatprep.subr.bf16.mxu0 %v1854
    %2281 = vmatpush1.bf16.msra.mxu0 %v1853
    %2282 = vmatprep.subr.bf16.mxu0 %v1862
    %2283 = vmatpush1.bf16.msra.mxu0 %v1861
    %2284 = vmatprep.subr.bf16.mxu0 %v1870
    %2285 = vmatpush1.bf16.msra.mxu0 %v1869
    %2286 = vmatprep.mubr.bf16.mxu0 %v552
    %2287 = vmatmul.mubr.bf16.gmra.mrb[0].mxu0 %v551
    %v2288 = vpop.f32.mrb[0].mxu0
    %v2289 = vadd.f32 %v2248, %v2288
    %v2290 = vpop.f32.mrb[0].mxu0
    %v2291 = vadd.f32 %v2250, %v2290
    %v2292 = vpop.f32.mrb[0].mxu0
    %v2293 = vpop.f32.mrb[0].mxu0
    %2294 = vdwg.mxu0
    %2295 = vmatprep.subr.bf16.mxu0 %v1624
    %2296 = vmatpush1.bf16.msra.mxu0 %v1623
    %2297 = vmatprep.subr.bf16.mxu0 %v1632
    %2298 = vmatpush1.bf16.msra.mxu0 %v1631
    %2299 = vmatprep.subr.bf16.mxu0 %v1640
    %2300 = vmatpush1.bf16.msra.mxu0 %v1639
    %2301 = vmatprep.subr.bf16.mxu0 %v1648
    %2302 = vmatpush1.bf16.msra.mxu0 %v1647
    %2303 = vmatprep.subr.bf16.mxu0 %v1656
    %2304 = vmatpush1.bf16.msra.mxu0 %v1655
    %2305 = vmatprep.subr.bf16.mxu0 %v1664
    %2306 = vmatpush1.bf16.msra.mxu0 %v1663
    %2307 = vmatprep.subr.bf16.mxu0 %v1672
    %2308 = vmatpush1.bf16.msra.mxu0 %v1671
    %2309 = vmatprep.subr.bf16.mxu0 %v1680
    %2310 = vmatpush1.bf16.msra.mxu0 %v1679
    %2311 = vmatprep.subr.bf16.mxu0 %v1688
    %2312 = vmatpush1.bf16.msra.mxu0 %v1687
    %2313 = vmatprep.subr.bf16.mxu0 %v1696
    %2314 = vmatpush1.bf16.msra.mxu0 %v1695
    %2315 = vmatprep.subr.bf16.mxu0 %v1704
    %2316 = vmatpush1.bf16.msra.mxu0 %v1703
    %2317 = vmatprep.subr.bf16.mxu0 %v1712
    %2318 = vmatpush1.bf16.msra.mxu0 %v1711
    %2319 = vmatprep.subr.bf16.mxu0 %v1720
    %2320 = vmatpush1.bf16.msra.mxu0 %v1719
    %2321 = vmatprep.subr.bf16.mxu0 %v1728
    %2322 = vmatpush1.bf16.msra.mxu0 %v1727
    %2323 = vmatprep.subr.bf16.mxu0 %v1736
    %2324 = vmatpush1.bf16.msra.mxu0 %v1735
    %2325 = vmatprep.subr.bf16.mxu0 %v1744
    %2326 = vmatpush1.bf16.msra.mxu0 %v1743
    %2327 = vmatprep.mubr.bf16.mxu0 %v550
    %2328 = vmatmul.mubr.bf16.gmra.mrb[0].mxu0 %v549
    %v2329 = vpop.f32.mrb[0].mxu0
    %v2330 = vadd.f32 %v830, %v2329
    %v2331 = vpop.f32.mrb[0].mxu0
    %v2332 = vadd.f32 %v834, %v2331
    %v2333 = vpop.f32.mrb[0].mxu0
    %v2334 = vpop.f32.mrb[0].mxu0
    %2335 = vdwg.mxu0
    %2336 = vmatprep.subr.bf16.mxu0 %v1752
    %2337 = vmatpush1.bf16.msra.mxu0 %v1751
    %2338 = vmatprep.subr.bf16.mxu0 %v1760
    %2339 = vmatpush1.bf16.msra.mxu0 %v1759
    %2340 = vmatprep.subr.bf16.mxu0 %v1768
    %2341 = vmatpush1.bf16.msra.mxu0 %v1767
    %2342 = vmatprep.subr.bf16.mxu0 %v1776
    %2343 = vmatpush1.bf16.msra.mxu0 %v1775
    %2344 = vmatprep.subr.bf16.mxu0 %v1784
    %2345 = vmatpush1.bf16.msra.mxu0 %v1783
    %2346 = vmatprep.subr.bf16.mxu0 %v1792
    %2347 = vmatpush1.bf16.msra.mxu0 %v1791
    %2348 = vmatprep.subr.bf16.mxu0 %v1800
    %2349 = vmatpush1.bf16.msra.mxu0 %v1799
    %2350 = vmatprep.subr.bf16.mxu0 %v1808
    %2351 = vmatpush1.bf16.msra.mxu0 %v1807
    %2352 = vmatprep.subr.bf16.mxu0 %v1816
    %2353 = vmatpush1.bf16.msra.mxu0 %v1815
    %2354 = vmatprep.subr.bf16.mxu0 %v1824
    %2355 = vmatpush1.bf16.msra.mxu0 %v1823
    %2356 = vmatprep.subr.bf16.mxu0 %v1832
    %2357 = vmatpush1.bf16.msra.mxu0 %v1831
    %2358 = vmatprep.subr.bf16.mxu0 %v1840
    %2359 = vmatpush1.bf16.msra.mxu0 %v1839
    %2360 = vmatprep.subr.bf16.mxu0 %v1848
    %2361 = vmatpush1.bf16.msra.mxu0 %v1847
    %2362 = vmatprep.subr.bf16.mxu0 %v1856
    %2363 = vmatpush1.bf16.msra.mxu0 %v1855
    %2364 = vmatprep.subr.bf16.mxu0 %v1864
    %2365 = vmatpush1.bf16.msra.mxu0 %v1863
    %2366 = vmatprep.subr.bf16.mxu0 %v1872
    %2367 = vmatpush1.bf16.msra.mxu0 %v1871
    %2368 = vmatprep.mubr.bf16.mxu0 %v552
    %2369 = vmatmul.mubr.bf16.gmra.mrb[0].mxu0 %v551
    %v2370 = vpop.f32.mrb[0].mxu0
    %v2371 = vadd.f32 %v2330, %v2370
    %v2372 = vpop.f32.mrb[0].mxu0
    %v2373 = vadd.f32 %v2332, %v2372
    %v2374 = vpop.f32.mrb[0].mxu0
    %v2375 = vpop.f32.mrb[0].mxu0
    %2376 = vdwg.mxu0
    %2377 = vmatprep.subr.bf16.mxu0 %v1626
    %2378 = vmatpush1.bf16.msra.mxu0 %v1625
    %2379 = vmatprep.subr.bf16.mxu0 %v1634
    %2380 = vmatpush1.bf16.msra.mxu0 %v1633
    %2381 = vmatprep.subr.bf16.mxu0 %v1642
    %2382 = vmatpush1.bf16.msra.mxu0 %v1641
    %2383 = vmatprep.subr.bf16.mxu0 %v1650
    %2384 = vmatpush1.bf16.msra.mxu0 %v1649
    %2385 = vmatprep.subr.bf16.mxu0 %v1658
    %2386 = vmatpush1.bf16.msra.mxu0 %v1657
    %2387 = vmatprep.subr.bf16.mxu0 %v1666
    %2388 = vmatpush1.bf16.msra.mxu0 %v1665
    %2389 = vmatprep.subr.bf16.mxu0 %v1674
    %2390 = vmatpush1.bf16.msra.mxu0 %v1673
    %2391 = vmatprep.subr.bf16.mxu0 %v1682
    %2392 = vmatpush1.bf16.msra.mxu0 %v1681
    %2393 = vmatprep.subr.bf16.mxu0 %v1690
    %2394 = vmatpush1.bf16.msra.mxu0 %v1689
    %2395 = vmatprep.subr.bf16.mxu0 %v1698
    %2396 = vmatpush1.bf16.msra.mxu0 %v1697
    %2397 = vmatprep.subr.bf16.mxu0 %v1706
    %2398 = vmatpush1.bf16.msra.mxu0 %v1705
    %2399 = vmatprep.subr.bf16.mxu0 %v1714
    %2400 = vmatpush1.bf16.msra.mxu0 %v1713
    %2401 = vmatprep.subr.bf16.mxu0 %v1722
    %2402 = vmatpush1.bf16.msra.mxu0 %v1721
    %2403 = vmatprep.subr.bf16.mxu0 %v1730
    %2404 = vmatpush1.bf16.msra.mxu0 %v1729
    %2405 = vmatprep.subr.bf16.mxu0 %v1738
    %2406 = vmatpush1.bf16.msra.mxu0 %v1737
    %2407 = vmatprep.subr.bf16.mxu0 %v1746
    %2408 = vmatpush1.bf16.msra.mxu0 %v1745
    %2409 = vmatprep.mubr.bf16.mxu0 %v550
    %2410 = vmatmul.mubr.bf16.gmra.mrb[0].mxu0 %v549
    %v2411 = vpop.f32.mrb[0].mxu0
    %v2412 = vadd.f32 %v838, %v2411
    %v2413 = vpop.f32.mrb[0].mxu0
    %v2414 = vadd.f32 %v842, %v2413
    %v2415 = vpop.f32.mrb[0].mxu0
    %v2416 = vpop.f32.mrb[0].mxu0
    %2417 = vdwg.mxu0
    %2418 = vmatprep.subr.bf16.mxu0 %v1754
    %2419 = vmatpush1.bf16.msra.mxu0 %v1753
    %2420 = vmatprep.subr.bf16.mxu0 %v1762
    %2421 = vmatpush1.bf16.msra.mxu0 %v1761
    %2422 = vmatprep.subr.bf16.mxu0 %v1770
    %2423 = vmatpush1.bf16.msra.mxu0 %v1769
    %2424 = vmatprep.subr.bf16.mxu0 %v1778
    %2425 = vmatpush1.bf16.msra.mxu0 %v1777
    %2426 = vmatprep.subr.bf16.mxu0 %v1786
    %2427 = vmatpush1.bf16.msra.mxu0 %v1785
    %2428 = vmatprep.subr.bf16.mxu0 %v1794
    %2429 = vmatpush1.bf16.msra.mxu0 %v1793
    %2430 = vmatprep.subr.bf16.mxu0 %v1802
    %2431 = vmatpush1.bf16.msra.mxu0 %v1801
    %2432 = vmatprep.subr.bf16.mxu0 %v1810
    %2433 = vmatpush1.bf16.msra.mxu0 %v1809
    %2434 = vmatprep.subr.bf16.mxu0 %v1818
    %2435 = vmatpush1.bf16.msra.mxu0 %v1817
    %2436 = vmatprep.subr.bf16.mxu0 %v1826
    %2437 = vmatpush1.bf16.msra.mxu0 %v1825
    %2438 = vmatprep.subr.bf16.mxu0 %v1834
    %2439 = vmatpush1.bf16.msra.mxu0 %v1833
    %2440 = vmatprep.subr.bf16.mxu0 %v1842
    %2441 = vmatpush1.bf16.msra.mxu0 %v1841
    %2442 = vmatprep.subr.bf16.mxu0 %v1850
    %2443 = vmatpush1.bf16.msra.mxu0 %v1849
    %2444 = vmatprep.subr.bf16.mxu0 %v1858
    %2445 = vmatpush1.bf16.msra.mxu0 %v1857
    %2446 = vmatprep.subr.bf16.mxu0 %v1866
    %2447 = vmatpush1.bf16.msra.mxu0 %v1865
    %2448 = vmatprep.subr.bf16.mxu0 %v1874
    %2449 = vmatpush1.bf16.msra.mxu0 %v1873
    %2450 = vmatprep.mubr.bf16.mxu0 %v552
    %2451 = vmatmul.mubr.bf16.gmra.mrb[0].mxu0 %v551
    %v2452 = vpop.f32.mrb[0].mxu0
    %v2453 = vadd.f32 %v2412, %v2452
    %v2454 = vpop.f32.mrb[0].mxu0
    %v2455 = vadd.f32 %v2414, %v2454
    %v2456 = vpop.f32.mrb[0].mxu0
    %v2457 = vpop.f32.mrb[0].mxu0
    %2458 = vdwg.mxu0
    %v2467 = vcombine.low %v2207, %v2209
    %v2468 = vcombine.low %v2289, %v2291
    %v2470 = vunpack.c.l.s4 1983009808
    %v2471 = vunpack.c.0.s8 %v2470
    %v2472 = vlaneseq
    %v2473 = vshrl.u32 %v2472, 7
    %v2474 = vsub.s32 %v2471, %v2473
    %v2475 = vrot.slane %v2467, %v2474
    %v2477 = vunpack.c.l.s4 1983009808
    %v2478 = vunpack.c.0.s8 %v2477
    %v2479 = vlaneseq
    %v2480 = vshrl.u32 %v2479, 7
    %v2481 = vsub.s32 %v2478, %v2480
    %v2482 = vrot.slane %v2468, %v2481
    %v2483 = vcombine.low %v2475, %v2482
    %v2484 = vcombine.low %v2371, %v2373
    %v2485 = vcombine.low %v2453, %v2455
    %v2487 = vunpack.c.l.s4 1983009808
    %v2488 = vunpack.c.0.s8 %v2487
    %v2489 = vlaneseq
    %v2490 = vshrl.u32 %v2489, 7
    %v2491 = vsub.s32 %v2488, %v2490
    %v2492 = vrot.slane %v2484, %v2491
    %v2494 = vunpack.c.l.s4 1983009808
    %v2495 = vunpack.c.0.s8 %v2494
    %v2496 = vlaneseq
    %v2497 = vshrl.u32 %v2496, 7
    %v2498 = vsub.s32 %v2495, %v2497
    %v2499 = vrot.slane %v2485, %v2498
    %v2500 = vcombine.low %v2492, %v2499
    %2503 = vst [vmem:[#allocation2] sm:$0xff] %v2483
    %2504 = vst [vmem:[#allocation2 + $0x8] sm:$0xff] %v2500
    %v2505 = vld [vmem:[#allocation2] sm:$0xff]
    %v2506 = vld [vmem:[#allocation2 + $0x8] sm:$0xff]
    %v2507 = vmax.f32 %v2505, 0.0
    %v2508 = vmax.f32 %v2506, 0.0
    %v2511 = vcombine.high %v2507, %v2507
    %v2513 = vunpack.c.l.s4 1983009808
    %v2514 = vunpack.c.0.s8 %v2513
    %v2515 = vlaneseq
    %v2516 = vshrl.u32 %v2515, 7
    %v2517 = vsub.s32 %v2514, %v2516
    %v2518 = vrot.slane %v2507, %v2517
    %v2520 = vunpack.c.l.s4 1983009808
    %v2521 = vunpack.c.0.s8 %v2520
    %v2522 = vlaneseq
    %v2523 = vshrl.u32 %v2522, 7
    %v2524 = vsub.s32 %v2521, %v2523
    %v2525 = vrot.slane %v2511, %v2524
    %v2526 = vcombine.high %v2518, %v2518
    %v2527 = vcombine.high %v2525, %v2525
    %v2528 = vcombine.high %v2508, %v2508
    %v2530 = vunpack.c.l.s4 1983009808
    %v2531 = vunpack.c.0.s8 %v2530
    %v2532 = vlaneseq
    %v2533 = vshrl.u32 %v2532, 7
    %v2534 = vsub.s32 %v2531, %v2533
    %v2535 = vrot.slane %v2508, %v2534
    %v2537 = vunpack.c.l.s4 1983009808
    %v2538 = vunpack.c.0.s8 %v2537
    %v2539 = vlaneseq
    %v2540 = vshrl.u32 %v2539, 7
    %v2541 = vsub.s32 %v2538, %v2540
    %v2542 = vrot.slane %v2528, %v2541
    %v2543 = vcombine.high %v2535, %v2535
    %v2544 = vcombine.high %v2542, %v2542
    %v2553 = vpack.c.bf16 %v2518, %v2518
    %v2554 = vpack.c.bf16 %v2526, %v2526
    %v2555 = vpack.c.bf16 %v2525, %v2525
    %v2556 = vpack.c.bf16 %v2527, %v2527
    %v2557 = vpack.c.bf16 %v2535, %v2535
    %v2558 = vpack.c.bf16 %v2543, %v2543
    %v2559 = vpack.c.bf16 %v2542, %v2542
    %v2560 = vpack.c.bf16 %v2544, %v2544
    %v2561 = vld [vmem:[%s5] sm:$0xf]
    %v2562 = vld [vmem:[%s5 + $0x4] sm:$0xf]
    %v2563 = vld [vmem:[%s5 + $0x8] sm:$0xf]
    %v2564 = vld [vmem:[%s5 + $0xc] sm:$0xf]
    %v2565 = vld [vmem:[%s5 + $0x10] sm:$0xf]
    %v2566 = vld [vmem:[%s5 + $0x14] sm:$0xf]
    %v2567 = vld [vmem:[%s5 + $0x18] sm:$0xf]
    %v2568 = vld [vmem:[%s5 + $0x1c] sm:$0xf]
    %v2569 = vld [vmem:[%s5 + $0x20] sm:$0xf]
    %v2570 = vld [vmem:[%s5 + $0x24] sm:$0xf]
    %v2571 = vld [vmem:[%s5 + $0x28] sm:$0xf]
    %v2572 = vld [vmem:[%s5 + $0x2c] sm:$0xf]
    %v2573 = vld [vmem:[%s5 + $0x30] sm:$0xf]
    %v2574 = vld [vmem:[%s5 + $0x34] sm:$0xf]
    %v2575 = vld [vmem:[%s5 + $0x38] sm:$0xf]
    %v2576 = vld [vmem:[%s5 + $0x3c] sm:$0xf]
    %v2577 = vld [vmem:[%s5 + $0x40] sm:$0xf]
    %v2578 = vld [vmem:[%s5 + $0x44] sm:$0xf]
    %v2579 = vld [vmem:[%s5 + $0x48] sm:$0xf]
    %v2580 = vld [vmem:[%s5 + $0x4c] sm:$0xf]
    %v2581 = vld [vmem:[%s5 + $0x50] sm:$0xf]
    %v2582 = vld [vmem:[%s5 + $0x54] sm:$0xf]
    %v2583 = vld [vmem:[%s5 + $0x58] sm:$0xf]
    %v2584 = vld [vmem:[%s5 + $0x5c] sm:$0xf]
    %v2585 = vld [vmem:[%s5 + $0x60] sm:$0xf]
    %v2586 = vld [vmem:[%s5 + $0x64] sm:$0xf]
    %v2587 = vld [vmem:[%s5 + $0x68] sm:$0xf]
    %v2588 = vld [vmem:[%s5 + $0x6c] sm:$0xf]
    %v2589 = vld [vmem:[%s5 + $0x70] sm:$0xf]
    %v2590 = vld [vmem:[%s5 + $0x74] sm:$0xf]
    %v2591 = vld [vmem:[%s5 + $0x78] sm:$0xf]
    %v2592 = vld [vmem:[%s5 + $0x7c] sm:$0xf]
    %v2593 = vld [vmem:[%s5 + $0x80] sm:$0xf]
    %v2594 = vld [vmem:[%s5 + $0x84] sm:$0xf]
    %v2595 = vld [vmem:[%s5 + $0x88] sm:$0xf]
    %v2596 = vld [vmem:[%s5 + $0x8c] sm:$0xf]
    %v2597 = vld [vmem:[%s5 + $0x90] sm:$0xf]
    %v2598 = vld [vmem:[%s5 + $0x94] sm:$0xf]
    %v2599 = vld [vmem:[%s5 + $0x98] sm:$0xf]
    %v2600 = vld [vmem:[%s5 + $0x9c] sm:$0xf]
    %v2601 = vld [vmem:[%s5 + $0xa0] sm:$0xf]
    %v2602 = vld [vmem:[%s5 + $0xa4] sm:$0xf]
    %v2603 = vld [vmem:[%s5 + $0xa8] sm:$0xf]
    %v2604 = vld [vmem:[%s5 + $0xac] sm:$0xf]
    %v2605 = vld [vmem:[%s5 + $0xb0] sm:$0xf]
    %v2606 = vld [vmem:[%s5 + $0xb4] sm:$0xf]
    %v2607 = vld [vmem:[%s5 + $0xb8] sm:$0xf]
    %v2608 = vld [vmem:[%s5 + $0xbc] sm:$0xf]
    %v2609 = vld [vmem:[%s5 + $0xc0] sm:$0xf]
    %v2610 = vld [vmem:[%s5 + $0xc4] sm:$0xf]
    %v2611 = vld [vmem:[%s5 + $0xc8] sm:$0xf]
    %v2612 = vld [vmem:[%s5 + $0xcc] sm:$0xf]
    %v2613 = vld [vmem:[%s5 + $0xd0] sm:$0xf]
    %v2614 = vld [vmem:[%s5 + $0xd4] sm:$0xf]
    %v2615 = vld [vmem:[%s5 + $0xd8] sm:$0xf]
    %v2616 = vld [vmem:[%s5 + $0xdc] sm:$0xf]
    %v2617 = vld [vmem:[%s5 + $0xe0] sm:$0xf]
    %v2618 = vld [vmem:[%s5 + $0xe4] sm:$0xf]
    %v2619 = vld [vmem:[%s5 + $0xe8] sm:$0xf]
    %v2620 = vld [vmem:[%s5 + $0xec] sm:$0xf]
    %v2621 = vld [vmem:[%s5 + $0xf0] sm:$0xf]
    %v2622 = vld [vmem:[%s5 + $0xf4] sm:$0xf]
    %v2623 = vld [vmem:[%s5 + $0xf8] sm:$0xf]
    %v2624 = vld [vmem:[%s5 + $0xfc] sm:$0xf]
    %v2625 = vld [vmem:[%s5 + $0x100] sm:$0xf]
    %v2626 = vld [vmem:[%s5 + $0x104] sm:$0xf]
    %v2627 = vld [vmem:[%s5 + $0x108] sm:$0xf]
    %v2628 = vld [vmem:[%s5 + $0x10c] sm:$0xf]
    %v2629 = vld [vmem:[%s5 + $0x110] sm:$0xf]
    %v2630 = vld [vmem:[%s5 + $0x114] sm:$0xf]
    %v2631 = vld [vmem:[%s5 + $0x118] sm:$0xf]
    %v2632 = vld [vmem:[%s5 + $0x11c] sm:$0xf]
    %v2633 = vld [vmem:[%s5 + $0x120] sm:$0xf]
    %v2634 = vld [vmem:[%s5 + $0x124] sm:$0xf]
    %v2635 = vld [vmem:[%s5 + $0x128] sm:$0xf]
    %v2636 = vld [vmem:[%s5 + $0x12c] sm:$0xf]
    %v2637 = vld [vmem:[%s5 + $0x130] sm:$0xf]
    %v2638 = vld [vmem:[%s5 + $0x134] sm:$0xf]
    %v2639 = vld [vmem:[%s5 + $0x138] sm:$0xf]
    %v2640 = vld [vmem:[%s5 + $0x13c] sm:$0xf]
    %v2641 = vld [vmem:[%s5 + $0x140] sm:$0xf]
    %v2642 = vld [vmem:[%s5 + $0x144] sm:$0xf]
    %v2643 = vld [vmem:[%s5 + $0x148] sm:$0xf]
    %v2644 = vld [vmem:[%s5 + $0x14c] sm:$0xf]
    %v2645 = vld [vmem:[%s5 + $0x150] sm:$0xf]
    %v2646 = vld [vmem:[%s5 + $0x154] sm:$0xf]
    %v2647 = vld [vmem:[%s5 + $0x158] sm:$0xf]
    %v2648 = vld [vmem:[%s5 + $0x15c] sm:$0xf]
    %v2649 = vld [vmem:[%s5 + $0x160] sm:$0xf]
    %v2650 = vld [vmem:[%s5 + $0x164] sm:$0xf]
    %v2651 = vld [vmem:[%s5 + $0x168] sm:$0xf]
    %v2652 = vld [vmem:[%s5 + $0x16c] sm:$0xf]
    %v2653 = vld [vmem:[%s5 + $0x170] sm:$0xf]
    %v2654 = vld [vmem:[%s5 + $0x174] sm:$0xf]
    %v2655 = vld [vmem:[%s5 + $0x178] sm:$0xf]
    %v2656 = vld [vmem:[%s5 + $0x17c] sm:$0xf]
    %v2657 = vld [vmem:[%s5 + $0x180] sm:$0xf]
    %v2658 = vld [vmem:[%s5 + $0x184] sm:$0xf]
    %v2659 = vld [vmem:[%s5 + $0x188] sm:$0xf]
    %v2660 = vld [vmem:[%s5 + $0x18c] sm:$0xf]
    %v2661 = vld [vmem:[%s5 + $0x190] sm:$0xf]
    %v2662 = vld [vmem:[%s5 + $0x194] sm:$0xf]
    %v2663 = vld [vmem:[%s5 + $0x198] sm:$0xf]
    %v2664 = vld [vmem:[%s5 + $0x19c] sm:$0xf]
    %v2665 = vld [vmem:[%s5 + $0x1a0] sm:$0xf]
    %v2666 = vld [vmem:[%s5 + $0x1a4] sm:$0xf]
    %v2667 = vld [vmem:[%s5 + $0x1a8] sm:$0xf]
    %v2668 = vld [vmem:[%s5 + $0x1ac] sm:$0xf]
    %v2669 = vld [vmem:[%s5 + $0x1b0] sm:$0xf]
    %v2670 = vld [vmem:[%s5 + $0x1b4] sm:$0xf]
    %v2671 = vld [vmem:[%s5 + $0x1b8] sm:$0xf]
    %v2672 = vld [vmem:[%s5 + $0x1bc] sm:$0xf]
    %v2673 = vld [vmem:[%s5 + $0x1c0] sm:$0xf]
    %v2674 = vld [vmem:[%s5 + $0x1c4] sm:$0xf]
    %v2675 = vld [vmem:[%s5 + $0x1c8] sm:$0xf]
    %v2676 = vld [vmem:[%s5 + $0x1cc] sm:$0xf]
    %v2677 = vld [vmem:[%s5 + $0x1d0] sm:$0xf]
    %v2678 = vld [vmem:[%s5 + $0x1d4] sm:$0xf]
    %v2679 = vld [vmem:[%s5 + $0x1d8] sm:$0xf]
    %v2680 = vld [vmem:[%s5 + $0x1dc] sm:$0xf]
    %v2681 = vld [vmem:[%s5 + $0x1e0] sm:$0xf]
    %v2682 = vld [vmem:[%s5 + $0x1e4] sm:$0xf]
    %v2683 = vld [vmem:[%s5 + $0x1e8] sm:$0xf]
    %v2684 = vld [vmem:[%s5 + $0x1ec] sm:$0xf]
    %v2685 = vld [vmem:[%s5 + $0x1f0] sm:$0xf]
    %v2686 = vld [vmem:[%s5 + $0x1f4] sm:$0xf]
    %v2687 = vld [vmem:[%s5 + $0x1f8] sm:$0xf]
    %v2688 = vld [vmem:[%s5 + $0x1fc] sm:$0xf]
    %v2689 = vld [vmem:[%s6] sm:$0x1]
    %v2691 = vlaneseq
    %v2692 = vshrl.u32 %v2691, 7
    %v2693 = vsub.s32 0, %v2692
    %v2694 = vrot.slane %v2689, %v2693
    %v2824 = vunpack.c.l.b16 %v2561
    %v2825 = vunpack.c.l.b16 %v2562
    %v2826 = vunpack.c.l.b16 %v2563
    %v2827 = vunpack.c.l.b16 %v2564
    %v2828 = vunpack.c.l.b16 %v2565
    %v2829 = vunpack.c.l.b16 %v2566
    %v2830 = vunpack.c.l.b16 %v2567
    %v2831 = vunpack.c.l.b16 %v2568
    %v2832 = vunpack.c.l.b16 %v2569
    %v2833 = vunpack.c.l.b16 %v2570
    %v2834 = vunpack.c.l.b16 %v2571
    %v2835 = vunpack.c.l.b16 %v2572
    %v2836 = vunpack.c.l.b16 %v2573
    %v2837 = vunpack.c.l.b16 %v2574
    %v2838 = vunpack.c.l.b16 %v2575
    %v2839 = vunpack.c.l.b16 %v2576
    %v2840 = vunpack.c.l.b16 %v2577
    %v2841 = vunpack.c.l.b16 %v2578
    %v2842 = vunpack.c.l.b16 %v2579
    %v2843 = vunpack.c.l.b16 %v2580
    %v2844 = vunpack.c.l.b16 %v2581
    %v2845 = vunpack.c.l.b16 %v2582
    %v2846 = vunpack.c.l.b16 %v2583
    %v2847 = vunpack.c.l.b16 %v2584
    %v2848 = vunpack.c.l.b16 %v2585
    %v2849 = vunpack.c.l.b16 %v2586
    %v2850 = vunpack.c.l.b16 %v2587
    %v2851 = vunpack.c.l.b16 %v2588
    %v2852 = vunpack.c.l.b16 %v2589
    %v2853 = vunpack.c.l.b16 %v2590
    %v2854 = vunpack.c.l.b16 %v2591
    %v2855 = vunpack.c.l.b16 %v2592
    %v2856 = vunpack.c.l.b16 %v2593
    %v2857 = vunpack.c.l.b16 %v2594
    %v2858 = vunpack.c.l.b16 %v2595
    %v2859 = vunpack.c.l.b16 %v2596
    %v2860 = vunpack.c.l.b16 %v2597
    %v2861 = vunpack.c.l.b16 %v2598
    %v2862 = vunpack.c.l.b16 %v2599
    %v2863 = vunpack.c.l.b16 %v2600
    %v2864 = vunpack.c.l.b16 %v2601
    %v2865 = vunpack.c.l.b16 %v2602
    %v2866 = vunpack.c.l.b16 %v2603
    %v2867 = vunpack.c.l.b16 %v2604
    %v2868 = vunpack.c.l.b16 %v2605
    %v2869 = vunpack.c.l.b16 %v2606
    %v2870 = vunpack.c.l.b16 %v2607
    %v2871 = vunpack.c.l.b16 %v2608
    %v2872 = vunpack.c.l.b16 %v2609
    %v2873 = vunpack.c.l.b16 %v2610
    %v2874 = vunpack.c.l.b16 %v2611
    %v2875 = vunpack.c.l.b16 %v2612
    %v2876 = vunpack.c.l.b16 %v2613
    %v2877 = vunpack.c.l.b16 %v2614
    %v2878 = vunpack.c.l.b16 %v2615
    %v2879 = vunpack.c.l.b16 %v2616
    %v2880 = vunpack.c.l.b16 %v2617
    %v2881 = vunpack.c.l.b16 %v2618
    %v2882 = vunpack.c.l.b16 %v2619
    %v2883 = vunpack.c.l.b16 %v2620
    %v2884 = vunpack.c.l.b16 %v2621
    %v2885 = vunpack.c.l.b16 %v2622
    %v2886 = vunpack.c.l.b16 %v2623
    %v2887 = vunpack.c.l.b16 %v2624
    %v2888 = vunpack.c.l.b16 %v2625
    %v2889 = vunpack.c.l.b16 %v2626
    %v2890 = vunpack.c.l.b16 %v2627
    %v2891 = vunpack.c.l.b16 %v2628
    %v2892 = vunpack.c.l.b16 %v2629
    %v2893 = vunpack.c.l.b16 %v2630
    %v2894 = vunpack.c.l.b16 %v2631
    %v2895 = vunpack.c.l.b16 %v2632
    %v2896 = vunpack.c.l.b16 %v2633
    %v2897 = vunpack.c.l.b16 %v2634
    %v2898 = vunpack.c.l.b16 %v2635
    %v2899 = vunpack.c.l.b16 %v2636
    %v2900 = vunpack.c.l.b16 %v2637
    %v2901 = vunpack.c.l.b16 %v2638
    %v2902 = vunpack.c.l.b16 %v2639
    %v2903 = vunpack.c.l.b16 %v2640
    %v2904 = vunpack.c.l.b16 %v2641
    %v2905 = vunpack.c.l.b16 %v2642
    %v2906 = vunpack.c.l.b16 %v2643
    %v2907 = vunpack.c.l.b16 %v2644
    %v2908 = vunpack.c.l.b16 %v2645
    %v2909 = vunpack.c.l.b16 %v2646
    %v2910 = vunpack.c.l.b16 %v2647
    %v2911 = vunpack.c.l.b16 %v2648
    %v2912 = vunpack.c.l.b16 %v2649
    %v2913 = vunpack.c.l.b16 %v2650
    %v2914 = vunpack.c.l.b16 %v2651
    %v2915 = vunpack.c.l.b16 %v2652
    %v2916 = vunpack.c.l.b16 %v2653
    %v2917 = vunpack.c.l.b16 %v2654
    %v2918 = vunpack.c.l.b16 %v2655
    %v2919 = vunpack.c.l.b16 %v2656
    %v2920 = vunpack.c.l.b16 %v2657
    %v2921 = vunpack.c.l.b16 %v2658
    %v2922 = vunpack.c.l.b16 %v2659
    %v2923 = vunpack.c.l.b16 %v2660
    %v2924 = vunpack.c.l.b16 %v2661
    %v2925 = vunpack.c.l.b16 %v2662
    %v2926 = vunpack.c.l.b16 %v2663
    %v2927 = vunpack.c.l.b16 %v2664
    %v2928 = vunpack.c.l.b16 %v2665
    %v2929 = vunpack.c.l.b16 %v2666
    %v2930 = vunpack.c.l.b16 %v2667
    %v2931 = vunpack.c.l.b16 %v2668
    %v2932 = vunpack.c.l.b16 %v2669
    %v2933 = vunpack.c.l.b16 %v2670
    %v2934 = vunpack.c.l.b16 %v2671
    %v2935 = vunpack.c.l.b16 %v2672
    %v2936 = vunpack.c.l.b16 %v2673
    %v2937 = vunpack.c.l.b16 %v2674
    %v2938 = vunpack.c.l.b16 %v2675
    %v2939 = vunpack.c.l.b16 %v2676
    %v2940 = vunpack.c.l.b16 %v2677
    %v2941 = vunpack.c.l.b16 %v2678
    %v2942 = vunpack.c.l.b16 %v2679
    %v2943 = vunpack.c.l.b16 %v2680
    %v2944 = vunpack.c.l.b16 %v2681
    %v2945 = vunpack.c.l.b16 %v2682
    %v2946 = vunpack.c.l.b16 %v2683
    %v2947 = vunpack.c.l.b16 %v2684
    %v2948 = vunpack.c.l.b16 %v2685
    %v2949 = vunpack.c.l.b16 %v2686
    %v2950 = vunpack.c.l.b16 %v2687
    %v2951 = vunpack.c.l.b16 %v2688
    %v2952 = vpack.c.b16 %v2825, %v2824
    %v2953 = vpack.c.b16 %v2827, %v2826
    %v2954 = vpack.c.b16 %v2829, %v2828
    %v2955 = vpack.c.b16 %v2831, %v2830
    %v2956 = vpack.c.b16 %v2833, %v2832
    %v2957 = vpack.c.b16 %v2835, %v2834
    %v2958 = vpack.c.b16 %v2837, %v2836
    %v2959 = vpack.c.b16 %v2839, %v2838
    %v2960 = vpack.c.b16 %v2841, %v2840
    %v2961 = vpack.c.b16 %v2843, %v2842
    %v2962 = vpack.c.b16 %v2845, %v2844
    %v2963 = vpack.c.b16 %v2847, %v2846
    %v2964 = vpack.c.b16 %v2849, %v2848
    %v2965 = vpack.c.b16 %v2851, %v2850
    %v2966 = vpack.c.b16 %v2853, %v2852
    %v2967 = vpack.c.b16 %v2855, %v2854
    %v2968 = vpack.c.b16 %v2857, %v2856
    %v2969 = vpack.c.b16 %v2859, %v2858
    %v2970 = vpack.c.b16 %v2861, %v2860
    %v2971 = vpack.c.b16 %v2863, %v2862
    %v2972 = vpack.c.b16 %v2865, %v2864
    %v2973 = vpack.c.b16 %v2867, %v2866
    %v2974 = vpack.c.b16 %v2869, %v2868
    %v2975 = vpack.c.b16 %v2871, %v2870
    %v2976 = vpack.c.b16 %v2873, %v2872
    %v2977 = vpack.c.b16 %v2875, %v2874
    %v2978 = vpack.c.b16 %v2877, %v2876
    %v2979 = vpack.c.b16 %v2879, %v2878
    %v2980 = vpack.c.b16 %v2881, %v2880
    %v2981 = vpack.c.b16 %v2883, %v2882
    %v2982 = vpack.c.b16 %v2885, %v2884
    %v2983 = vpack.c.b16 %v2887, %v2886
    %v2984 = vpack.c.b16 %v2889, %v2888
    %v2985 = vpack.c.b16 %v2891, %v2890
    %v2986 = vpack.c.b16 %v2893, %v2892
    %v2987 = vpack.c.b16 %v2895, %v2894
    %v2988 = vpack.c.b16 %v2897, %v2896
    %v2989 = vpack.c.b16 %v2899, %v2898
    %v2990 = vpack.c.b16 %v2901, %v2900
    %v2991 = vpack.c.b16 %v2903, %v2902
    %v2992 = vpack.c.b16 %v2905, %v2904
    %v2993 = vpack.c.b16 %v2907, %v2906
    %v2994 = vpack.c.b16 %v2909, %v2908
    %v2995 = vpack.c.b16 %v2911, %v2910
    %v2996 = vpack.c.b16 %v2913, %v2912
    %v2997 = vpack.c.b16 %v2915, %v2914
    %v2998 = vpack.c.b16 %v2917, %v2916
    %v2999 = vpack.c.b16 %v2919, %v2918
    %v3000 = vpack.c.b16 %v2921, %v2920
    %v3001 = vpack.c.b16 %v2923, %v2922
    %v3002 = vpack.c.b16 %v2925, %v2924
    %v3003 = vpack.c.b16 %v2927, %v2926
    %v3004 = vpack.c.b16 %v2929, %v2928
    %v3005 = vpack.c.b16 %v2931, %v2930
    %v3006 = vpack.c.b16 %v2933, %v2932
    %v3007 = vpack.c.b16 %v2935, %v2934
    %v3008 = vpack.c.b16 %v2937, %v2936
    %v3009 = vpack.c.b16 %v2939, %v2938
    %v3010 = vpack.c.b16 %v2941, %v2940
    %v3011 = vpack.c.b16 %v2943, %v2942
    %v3012 = vpack.c.b16 %v2945, %v2944
    %v3013 = vpack.c.b16 %v2947, %v2946
    %v3014 = vpack.c.b16 %v2949, %v2948
    %v3015 = vpack.c.b16 %v2951, %v2950
    %3080 = vmatprep.subr.bf16.mxu0 0
    %3081 = vmatpush1.bf16.msra.mxu0 %v2952
    %3082 = vmatprep.subr.bf16.mxu0 0
    %3083 = vmatpush1.bf16.msra.mxu0 %v2953
    %3084 = vmatprep.subr.bf16.mxu0 0
    %3085 = vmatpush1.bf16.msra.mxu0 %v2954
    %3086 = vmatprep.subr.bf16.mxu0 0
    %3087 = vmatpush1.bf16.msra.mxu0 %v2955
    %3088 = vmatprep.subr.bf16.mxu0 0
    %3089 = vmatpush1.bf16.msra.mxu0 %v2956
    %3090 = vmatprep.subr.bf16.mxu0 0
    %3091 = vmatpush1.bf16.msra.mxu0 %v2957
    %3092 = vmatprep.subr.bf16.mxu0 0
    %3093 = vmatpush1.bf16.msra.mxu0 %v2958
    %3094 = vmatprep.subr.bf16.mxu0 0
    %3095 = vmatpush1.bf16.msra.mxu0 %v2959
    %3096 = vmatprep.subr.bf16.mxu0 0
    %3097 = vmatpush1.bf16.msra.mxu0 %v2960
    %3098 = vmatprep.subr.bf16.mxu0 0
    %3099 = vmatpush1.bf16.msra.mxu0 %v2961
    %3100 = vmatprep.subr.bf16.mxu0 0
    %3101 = vmatpush1.bf16.msra.mxu0 %v2962
    %3102 = vmatprep.subr.bf16.mxu0 0
    %3103 = vmatpush1.bf16.msra.mxu0 %v2963
    %3104 = vmatprep.subr.bf16.mxu0 0
    %3105 = vmatpush1.bf16.msra.mxu0 %v2964
    %3106 = vmatprep.subr.bf16.mxu0 0
    %3107 = vmatpush1.bf16.msra.mxu0 %v2965
    %3108 = vmatprep.subr.bf16.mxu0 0
    %3109 = vmatpush1.bf16.msra.mxu0 %v2966
    %3110 = vmatprep.subr.bf16.mxu0 0
    %3111 = vmatpush1.bf16.msra.mxu0 %v2967
    %3112 = vmatprep.mubr.bf16.mxu0 %v2554
    %3113 = vmatmul.mubr.bf16.gmra.mrb[0].mxu0 %v2553
    %v3114 = vpop.f32.mrb[0].mxu0
    %v3115 = vadd.f32 %v2694, %v3114
    %v3116 = vpop.f32.mrb[0].mxu0
    %v3117 = vpop.f32.mrb[0].mxu0
    %v3118 = vpop.f32.mrb[0].mxu0
    %3119 = vdwg.mxu0
    %3120 = vmatprep.subr.bf16.mxu0 0
    %3121 = vmatpush1.bf16.msra.mxu0 %v2968
    %3122 = vmatprep.subr.bf16.mxu0 0
    %3123 = vmatpush1.bf16.msra.mxu0 %v2969
    %3124 = vmatprep.subr.bf16.mxu0 0
    %3125 = vmatpush1.bf16.msra.mxu0 %v2970
    %3126 = vmatprep.subr.bf16.mxu0 0
    %3127 = vmatpush1.bf16.msra.mxu0 %v2971
    %3128 = vmatprep.subr.bf16.mxu0 0
    %3129 = vmatpush1.bf16.msra.mxu0 %v2972
    %3130 = vmatprep.subr.bf16.mxu0 0
    %3131 = vmatpush1.bf16.msra.mxu0 %v2973
    %3132 = vmatprep.subr.bf16.mxu0 0
    %3133 = vmatpush1.bf16.msra.mxu0 %v2974
    %3134 = vmatprep.subr.bf16.mxu0 0
    %3135 = vmatpush1.bf16.msra.mxu0 %v2975
    %3136 = vmatprep.subr.bf16.mxu0 0
    %3137 = vmatpush1.bf16.msra.mxu0 %v2976
    %3138 = vmatprep.subr.bf16.mxu0 0
    %3139 = vmatpush1.bf16.msra.mxu0 %v2977
    %3140 = vmatprep.subr.bf16.mxu0 0
    %3141 = vmatpush1.bf16.msra.mxu0 %v2978
    %3142 = vmatprep.subr.bf16.mxu0 0
    %3143 = vmatpush1.bf16.msra.mxu0 %v2979
    %3144 = vmatprep.subr.bf16.mxu0 0
    %3145 = vmatpush1.bf16.msra.mxu0 %v2980
    %3146 = vmatprep.subr.bf16.mxu0 0
    %3147 = vmatpush1.bf16.msra.mxu0 %v2981
    %3148 = vmatprep.subr.bf16.mxu0 0
    %3149 = vmatpush1.bf16.msra.mxu0 %v2982
    %3150 = vmatprep.subr.bf16.mxu0 0
    %3151 = vmatpush1.bf16.msra.mxu0 %v2983
    %3152 = vmatprep.mubr.bf16.mxu0 %v2556
    %3153 = vmatmul.mubr.bf16.gmra.mrb[0].mxu0 %v2555
    %v3154 = vpop.f32.mrb[0].mxu0
    %v3155 = vadd.f32 %v3115, %v3154
    %v3156 = vpop.f32.mrb[0].mxu0
    %v3157 = vpop.f32.mrb[0].mxu0
    %v3158 = vpop.f32.mrb[0].mxu0
    %3159 = vdwg.mxu0
    %3160 = vmatprep.subr.bf16.mxu0 0
    %3161 = vmatpush1.bf16.msra.mxu0 %v2984
    %3162 = vmatprep.subr.bf16.mxu0 0
    %3163 = vmatpush1.bf16.msra.mxu0 %v2985
    %3164 = vmatprep.subr.bf16.mxu0 0
    %3165 = vmatpush1.bf16.msra.mxu0 %v2986
    %3166 = vmatprep.subr.bf16.mxu0 0
    %3167 = vmatpush1.bf16.msra.mxu0 %v2987
    %3168 = vmatprep.subr.bf16.mxu0 0
    %3169 = vmatpush1.bf16.msra.mxu0 %v2988
    %3170 = vmatprep.subr.bf16.mxu0 0
    %3171 = vmatpush1.bf16.msra.mxu0 %v2989
    %3172 = vmatprep.subr.bf16.mxu0 0
    %3173 = vmatpush1.bf16.msra.mxu0 %v2990
    %3174 = vmatprep.subr.bf16.mxu0 0
    %3175 = vmatpush1.bf16.msra.mxu0 %v2991
    %3176 = vmatprep.subr.bf16.mxu0 0
    %3177 = vmatpush1.bf16.msra.mxu0 %v2992
    %3178 = vmatprep.subr.bf16.mxu0 0
    %3179 = vmatpush1.bf16.msra.mxu0 %v2993
    %3180 = vmatprep.subr.bf16.mxu0 0
    %3181 = vmatpush1.bf16.msra.mxu0 %v2994
    %3182 = vmatprep.subr.bf16.mxu0 0
    %3183 = vmatpush1.bf16.msra.mxu0 %v2995
    %3184 = vmatprep.subr.bf16.mxu0 0
    %3185 = vmatpush1.bf16.msra.mxu0 %v2996
    %3186 = vmatprep.subr.bf16.mxu0 0
    %3187 = vmatpush1.bf16.msra.mxu0 %v2997
    %3188 = vmatprep.subr.bf16.mxu0 0
    %3189 = vmatpush1.bf16.msra.mxu0 %v2998
    %3190 = vmatprep.subr.bf16.mxu0 0
    %3191 = vmatpush1.bf16.msra.mxu0 %v2999
    %3192 = vmatprep.mubr.bf16.mxu0 %v2558
    %3193 = vmatmul.mubr.bf16.gmra.mrb[0].mxu0 %v2557
    %v3194 = vpop.f32.mrb[0].mxu0
    %v3195 = vadd.f32 %v3155, %v3194
    %v3196 = vpop.f32.mrb[0].mxu0
    %v3197 = vpop.f32.mrb[0].mxu0
    %v3198 = vpop.f32.mrb[0].mxu0
    %3199 = vdwg.mxu0
    %3200 = vmatprep.subr.bf16.mxu0 0
    %3201 = vmatpush1.bf16.msra.mxu0 %v3000
    %3202 = vmatprep.subr.bf16.mxu0 0
    %3203 = vmatpush1.bf16.msra.mxu0 %v3001
    %3204 = vmatprep.subr.bf16.mxu0 0
    %3205 = vmatpush1.bf16.msra.mxu0 %v3002
    %3206 = vmatprep.subr.bf16.mxu0 0
    %3207 = vmatpush1.bf16.msra.mxu0 %v3003
    %3208 = vmatprep.subr.bf16.mxu0 0
    %3209 = vmatpush1.bf16.msra.mxu0 %v3004
    %3210 = vmatprep.subr.bf16.mxu0 0
    %3211 = vmatpush1.bf16.msra.mxu0 %v3005
    %3212 = vmatprep.subr.bf16.mxu0 0
    %3213 = vmatpush1.bf16.msra.mxu0 %v3006
    %3214 = vmatprep.subr.bf16.mxu0 0
    %3215 = vmatpush1.bf16.msra.mxu0 %v3007
    %3216 = vmatprep.subr.bf16.mxu0 0
    %3217 = vmatpush1.bf16.msra.mxu0 %v3008
    %3218 = vmatprep.subr.bf16.mxu0 0
    %3219 = vmatpush1.bf16.msra.mxu0 %v3009
    %3220 = vmatprep.subr.bf16.mxu0 0
    %3221 = vmatpush1.bf16.msra.mxu0 %v3010
    %3222 = vmatprep.subr.bf16.mxu0 0
    %3223 = vmatpush1.bf16.msra.mxu0 %v3011
    %3224 = vmatprep.subr.bf16.mxu0 0
    %3225 = vmatpush1.bf16.msra.mxu0 %v3012
    %3226 = vmatprep.subr.bf16.mxu0 0
    %3227 = vmatpush1.bf16.msra.mxu0 %v3013
    %3228 = vmatprep.subr.bf16.mxu0 0
    %3229 = vmatpush1.bf16.msra.mxu0 %v3014
    %3230 = vmatprep.subr.bf16.mxu0 0
    %3231 = vmatpush1.bf16.msra.mxu0 %v3015
    %3232 = vmatprep.mubr.bf16.mxu0 %v2560
    %3233 = vmatmul.mubr.bf16.gmra.mrb[0].mxu0 %v2559
    %v3234 = vpop.f32.mrb[0].mxu0
    %v3235 = vadd.f32 %v3195, %v3234
    %v3236 = vpop.f32.mrb[0].mxu0
    %v3237 = vpop.f32.mrb[0].mxu0
    %v3238 = vpop.f32.mrb[0].mxu0
    %3239 = vdwg.mxu0
    %3240 = vst [vmem:[#allocation4] sm:$0x3] %v3235
    // Predicated region
    $region30: #{auxiliary_classifier_forward.5} parent=1 // pred_check
      _
    $region31: #{auxiliary_classifier_forward.5} parent=1 // pred_check_branch
      %3242 = sbr.rel (0) target = $region33
    $region32: #{auxiliary_classifier_forward.5} parent=1 // pred_region
      %s3244 = ssub.s32 256, 256
      %3245 = vsyncadd [#allocation3], %s3244
      %s3247 = sshll.u32 [#allocation2], 4
      %s3248 = int_to_ptr.vmem [resolvable:$true] %s3247
      %3250 = dma.vmem_to_hbm [thread:$0]  %s3248, 256, %s7, [#allocation3]
    $region33: #{auxiliary_classifier_forward.5} parent=1 // pred_fallthru
      _
    // Predicated region
    $region34: #{auxiliary_classifier_forward.5} parent=1 // pred_check
      _
    $region35: #{auxiliary_classifier_forward.5} parent=1 // pred_check_branch
      %3252 = sbr.rel (0) target = $region37
    $region36: #{auxiliary_classifier_forward.5} parent=1 // pred_region
      %s3254 = ssub.s32 32, 32
      %3255 = vsyncadd [#allocation5], %s3254
      %s3257 = sshll.u32 [#allocation4], 4
      %s3258 = int_to_ptr.vmem [resolvable:$true] %s3257
      %3260 = dma.vmem_to_hbm [thread:$0]  %s3258, 32, %s8, [#allocation5]
    $region37: #{auxiliary_classifier_forward.5} parent=1 // pred_fallthru
      _
    // Predicated region
    $region38: #{auxiliary_classifier_forward.5} parent=1 // pred_check
      _
    $region39: #{auxiliary_classifier_forward.5} parent=1 // pred_check_branch
      %3262 = sbr.rel (0) target = $region41
    $region40: #{auxiliary_classifier_forward.5} parent=1 // pred_region
      %3263 = dma.done [#allocation3], 256
    $region41: #{auxiliary_classifier_forward.5} parent=1 // pred_fallthru
      _
    // Predicated region
    $region42: #{auxiliary_classifier_forward.5} parent=1 // pred_check
      _
    $region43: #{auxiliary_classifier_forward.5} parent=1 // pred_check_branch
      %3265 = sbr.rel (0) target = $region45
    $region44: #{auxiliary_classifier_forward.5} parent=1 // pred_region
      %3266 = dma.done [#allocation5], 32
    $region45: #{auxiliary_classifier_forward.5} parent=1 // pred_fallthru
      _
    %3267 = vsyncpa [#allocation3], 1
    %3268 = vsyncpa [#allocation5], 1

// kernel: auxiliary_classifier_forward.4
$region0: #{auxiliary_classifier_forward.4}
  #allocation0 [shape = 'u32[]', space=smem, size = 0x4, offset = 0x4, fixed_abs, tag = 'smem constant byte address 0x4 - core index']
  #allocation1 [shape = 'u32[144,128]{1,0:T(1,128)}', space=vmem, size = 0x12000, scoped, tag = 'internal scratch']
  #allocation2 [shape = 'bf16[40,2304]{1,0:T(8,128)(2,1)}', space=vmem, size = 0x2d000, scoped, tag = 'scratch operand']
  #allocation3 [shape = 'bf16[56,256]{1,0:T(8,128)(2,1)}', space=vmem, size = 0x7000, scoped, tag = 'scratch operand']
  %s0 = inlined_call_operand.vmem [shape: bf16[2,152,256], index: 0, kind: input, shape index: {}]
  %s1 = inlined_call_operand.vmem [shape: bf16[2304,256], index: 1, kind: input, shape index: {}]
  %s2 = inlined_call_operand.vmem [shape: f32[1,256], index: 2, kind: input, shape index: {}]
  %s3 = inlined_call_operand.vmem [shape: f32[1,256], index: 3, kind: input, shape index: {}]
  %s4 = inlined_call_operand.vmem [shape: f32[40,1], index: 4, kind: input, shape index: {}]
  %s5 = inlined_call_operand.vmem [shape: bf16[2304,256], index: 5, kind: input, shape index: {}]
  %s6 = inlined_call_operand.vmem [shape: f32[1,256], index: 6, kind: input, shape index: {}]
  %s7 = inlined_call_operand.vmem [shape: f32[1,256], index: 7, kind: input, shape index: {}]
  %s8 = inlined_call_operand.vmem [shape: bf16[1,128], index: 8, kind: input, shape index: {}]
  %s9 = inlined_call_operand.vmem [shape: bf16[2,1,256], index: 9, kind: output, shape index: {}]
  %s10 = sld [smem:[#allocation0]]
  $region69: #{auxiliary_classifier_forward.4} parent=0
    _
  %s12 = ssub.s32 1, %s10
  %s13 = scalar_select 0, %s12, %s10
  loop: start=0, step=1, limit=4
  $region2: #{auxiliary_classifier_forward.4} parent=0 // loop_pre_header
    _
  $region3: #{auxiliary_classifier_forward.4} parent=0 // loop_header
    %s15 = sphi 0, %s19
    %p16 = scmp.ge.s32.totalorder %s15, 4
    %s25 = sphi 0, %s27
    %s28 = sphi 0, %s25
    %s29 = sphi 0, %s28
    %s45 = sphi 0, %s29
    %s49 = sphi 0, %s49
    %s51 = sphi 0, %s49
    %s52 = sphi 0, %s51
    %s66 = sphi 0, %s52
    %s70 = sphi 0, %s70
    %s72 = sphi 0, %s70
    %s73 = sphi 0, %s72
    %s87 = sphi 0, %s73
    %s91 = sphi 0, %s91
    %s93 = sphi 0, %s91
    %s94 = sphi 0, %s93
    %s108 = sphi 0, %s94
    %s112 = sphi 0, %s112
    %s114 = sphi 0, %s112
    %s115 = sphi 0, %s114
    %s129 = sphi 0, %s115
    %s133 = sphi 0, %s133
    %s135 = sphi 0, %s133
    %s136 = sphi 0, %s135
    %s150 = sphi 0, %s136
    %s154 = sphi 0, %s154
    %s156 = sphi 0, %s154
    %s157 = sphi 0, %s156
    %s171 = sphi 0, %s157
    %s175 = sphi 0, %s175
    %s177 = sphi 0, %s175
    %s178 = sphi 0, %s177
    %s192 = sphi 0, %s178
    %s196 = sphi 0, %s196
    %s198 = sphi 0, %s196
    %s199 = sphi 0, %s198
    %s213 = sphi 0, %s199
    %s219 = sphi 0, %s221
    %s222 = sphi 0, %s219
    %s223 = sphi 0, %s222
    %s239 = sphi 0, %s223
  $region4: #{auxiliary_classifier_forward.4} parent=0 // loop_header_branch
    %18 = sbr.rel (%p16) target = $region8
  $region5: #{auxiliary_classifier_forward.4} parent=0 // loop_body
    %s20 = ssub.s32 %s15, 1
    %s21 = ssub.s32 %s15, 2
    %s22 = sadd.s32 %s15, 1
    %s23 = ssub.s32 %s15, %s22
    %p24 = scmp.eq.s32.totalorder %s23, 0
    %s26 = sadd.s32 %s25, 1
    %s27 = scalar_select %p24, %s25, %s26
    %p30 = pneg %p24
    %p31 = scmp.eq.s32.totalorder %s15, 1
    %p32 = por %p30, %p31
    %p33 = scmp.ne.s32.totalorder %s25, %s28
    %p34 = scmp.eq.s32.totalorder %s15, 0
    %p35 = por %p33, %p34
    %p36 = scmp.ne.s32.totalorder %s25, %s28
    %p37 = scmp.eq.s32.totalorder %s20, 1
    %p38 = por %p36, %p37
    %p39 = scmp.ne.s32.totalorder %s28, %s29
    %p40 = scmp.eq.s32.totalorder %s20, 0
    %p41 = por %p39, %p40
    %p42 = scmp.ne.s32.totalorder %s28, %s29
    %p43 = scmp.eq.s32.totalorder %s21, 1
    %p44 = por %p42, %p43
    %p46 = scmp.ne.s32.totalorder %s29, %s45
    %p47 = scmp.eq.s32.totalorder %s21, 0
    %p48 = por %p46, %p47
    %s50 = sadd.s32 %s49, 1
    %p53 = scmp.eq.s32.totalorder %s15, 1
    %p54 = scmp.ne.s32.totalorder %s49, %s51
    %p55 = scmp.eq.s32.totalorder %s15, 0
    %p56 = por %p54, %p55
    %p57 = scmp.ne.s32.totalorder %s49, %s51
    %p58 = scmp.eq.s32.totalorder %s20, 1
    %p59 = por %p57, %p58
    %p60 = scmp.ne.s32.totalorder %s51, %s52
    %p61 = scmp.eq.s32.totalorder %s20, 0
    %p62 = por %p60, %p61
    %p63 = scmp.ne.s32.totalorder %s51, %s52
    %p64 = scmp.eq.s32.totalorder %s21, 1
    %p65 = por %p63, %p64
    %p67 = scmp.ne.s32.totalorder %s52, %s66
    %p68 = scmp.eq.s32.totalorder %s21, 0
    %p69 = por %p67, %p68
    %s71 = sadd.s32 %s70, 1
    %p74 = scmp.eq.s32.totalorder %s15, 1
    %p75 = scmp.ne.s32.totalorder %s70, %s72
    %p76 = scmp.eq.s32.totalorder %s15, 0
    %p77 = por %p75, %p76
    %p78 = scmp.ne.s32.totalorder %s70, %s72
    %p79 = scmp.eq.s32.totalorder %s20, 1
    %p80 = por %p78, %p79
    %p81 = scmp.ne.s32.totalorder %s72, %s73
    %p82 = scmp.eq.s32.totalorder %s20, 0
    %p83 = por %p81, %p82
    %p84 = scmp.ne.s32.totalorder %s72, %s73
    %p85 = scmp.eq.s32.totalorder %s21, 1
    %p86 = por %p84, %p85
    %p88 = scmp.ne.s32.totalorder %s73, %s87
    %p89 = scmp.eq.s32.totalorder %s21, 0
    %p90 = por %p88, %p89
    %s92 = sadd.s32 %s91, 1
    %p95 = scmp.eq.s32.totalorder %s15, 1
    %p96 = scmp.ne.s32.totalorder %s91, %s93
    %p97 = scmp.eq.s32.totalorder %s15, 0
    %p98 = por %p96, %p97
    %p99 = scmp.ne.s32.totalorder %s91, %s93
    %p100 = scmp.eq.s32.totalorder %s20, 1
    %p101 = por %p99, %p100
    %p102 = scmp.ne.s32.totalorder %s93, %s94
    %p103 = scmp.eq.s32.totalorder %s20, 0
    %p104 = por %p102, %p103
    %p105 = scmp.ne.s32.totalorder %s93, %s94
    %p106 = scmp.eq.s32.totalorder %s21, 1
    %p107 = por %p105, %p106
    %p109 = scmp.ne.s32.totalorder %s94, %s108
    %p110 = scmp.eq.s32.totalorder %s21, 0
    %p111 = por %p109, %p110
    %s113 = sadd.s32 %s112, 1
    %p116 = scmp.eq.s32.totalorder %s15, 1
    %p117 = scmp.ne.s32.totalorder %s112, %s114
    %p118 = scmp.eq.s32.totalorder %s15, 0
    %p119 = por %p117, %p118
    %p120 = scmp.ne.s32.totalorder %s112, %s114
    %p121 = scmp.eq.s32.totalorder %s20, 1
    %p122 = por %p120, %p121
    %p123 = scmp.ne.s32.totalorder %s114, %s115
    %p124 = scmp.eq.s32.totalorder %s20, 0
    %p125 = por %p123, %p124
    %p126 = scmp.ne.s32.totalorder %s114, %s115
    %p127 = scmp.eq.s32.totalorder %s21, 1
    %p128 = por %p126, %p127
    %p130 = scmp.ne.s32.totalorder %s115, %s129
    %p131 = scmp.eq.s32.totalorder %s21, 0
    %p132 = por %p130, %p131
    %s134 = sadd.s32 %s133, 1
    %p137 = scmp.eq.s32.totalorder %s15, 1
    %p138 = scmp.ne.s32.totalorder %s133, %s135
    %p139 = scmp.eq.s32.totalorder %s15, 0
    %p140 = por %p138, %p139
    %p141 = scmp.ne.s32.totalorder %s133, %s135
    %p142 = scmp.eq.s32.totalorder %s20, 1
    %p143 = por %p141, %p142
    %p144 = scmp.ne.s32.totalorder %s135, %s136
    %p145 = scmp.eq.s32.totalorder %s20, 0
    %p146 = por %p144, %p145
    %p147 = scmp.ne.s32.totalorder %s135, %s136
    %p148 = scmp.eq.s32.totalorder %s21, 1
    %p149 = por %p147, %p148
    %p151 = scmp.ne.s32.totalorder %s136, %s150
    %p152 = scmp.eq.s32.totalorder %s21, 0
    %p153 = por %p151, %p152
    %s155 = sadd.s32 %s154, 1
    %p158 = scmp.eq.s32.totalorder %s15, 1
    %p159 = scmp.ne.s32.totalorder %s154, %s156
    %p160 = scmp.eq.s32.totalorder %s15, 0
    %p161 = por %p159, %p160
    %p162 = scmp.ne.s32.totalorder %s154, %s156
    %p163 = scmp.eq.s32.totalorder %s20, 1
    %p164 = por %p162, %p163
    %p165 = scmp.ne.s32.totalorder %s156, %s157
    %p166 = scmp.eq.s32.totalorder %s20, 0
    %p167 = por %p165, %p166
    %p168 = scmp.ne.s32.totalorder %s156, %s157
    %p169 = scmp.eq.s32.totalorder %s21, 1
    %p170 = por %p168, %p169
    %p172 = scmp.ne.s32.totalorder %s157, %s171
    %p173 = scmp.eq.s32.totalorder %s21, 0
    %p174 = por %p172, %p173
    %s176 = sadd.s32 %s175, 1
    %p179 = scmp.eq.s32.totalorder %s15, 1
    %p180 = scmp.ne.s32.totalorder %s175, %s177
    %p181 = scmp.eq.s32.totalorder %s15, 0
    %p182 = por %p180, %p181
    %p183 = scmp.ne.s32.totalorder %s175, %s177
    %p184 = scmp.eq.s32.totalorder %s20, 1
    %p185 = por %p183, %p184
    %p186 = scmp.ne.s32.totalorder %s177, %s178
    %p187 = scmp.eq.s32.totalorder %s20, 0
    %p188 = por %p186, %p187
    %p189 = scmp.ne.s32.totalorder %s177, %s178
    %p190 = scmp.eq.s32.totalorder %s21, 1
    %p191 = por %p189, %p190
    %p193 = scmp.ne.s32.totalorder %s178, %s192
    %p194 = scmp.eq.s32.totalorder %s21, 0
    %p195 = por %p193, %p194
    %s197 = sadd.s32 %s196, 1
    %p200 = scmp.eq.s32.totalorder %s15, 1
    %p201 = scmp.ne.s32.totalorder %s196, %s198
    %p202 = scmp.eq.s32.totalorder %s15, 0
    %p203 = por %p201, %p202
    %p204 = scmp.ne.s32.totalorder %s196, %s198
    %p205 = scmp.eq.s32.totalorder %s20, 1
    %p206 = por %p204, %p205
    %p207 = scmp.ne.s32.totalorder %s198, %s199
    %p208 = scmp.eq.s32.totalorder %s20, 0
    %p209 = por %p207, %p208
    %p210 = scmp.ne.s32.totalorder %s198, %s199
    %p211 = scmp.eq.s32.totalorder %s21, 1
    %p212 = por %p210, %p211
    %p214 = scmp.ne.s32.totalorder %s199, %s213
    %p215 = scmp.eq.s32.totalorder %s21, 0
    %p216 = por %p214, %p215
    %s217 = ssub.s32 %s15, %s22
    %p218 = scmp.eq.s32.totalorder %s217, 0
    %s220 = sadd.s32 %s219, 1
    %s221 = scalar_select %p218, %s219, %s220
    %p224 = pneg %p218
    %p225 = scmp.eq.s32.totalorder %s15, 1
    %p226 = por %p224, %p225
    %p227 = scmp.ne.s32.totalorder %s219, %s222
    %p228 = scmp.eq.s32.totalorder %s15, 0
    %p229 = por %p227, %p228
    %p230 = scmp.ne.s32.totalorder %s219, %s222
    %p231 = scmp.eq.s32.totalorder %s20, 1
    %p232 = por %p230, %p231
    %p233 = scmp.ne.s32.totalorder %s222, %s223
    %p234 = scmp.eq.s32.totalorder %s20, 0
    %p235 = por %p233, %p234
    %p236 = scmp.ne.s32.totalorder %s222, %s223
    %p237 = scmp.eq.s32.totalorder %s21, 1
    %p238 = por %p236, %p237
    %p240 = scmp.ne.s32.totalorder %s223, %s239
    %p241 = scmp.eq.s32.totalorder %s21, 0
    %p242 = por %p240, %p241
    %p243 = scmp.le.s32.totalorder 1, %s15
    %p244 = scmp.lt.s32.totalorder %s15, 3
    %p245 = pnand %p243, %p244
    %p246 = pneg %p245
    // Predicated region
    $region9: #{auxiliary_classifier_forward.4} parent=5 // pred_check
      _
    $region10: #{auxiliary_classifier_forward.4} parent=5 // pred_check_branch
      %248 = sbr.rel (%p245) target = $region12
    $region11: #{auxiliary_classifier_forward.4} parent=5 // pred_region
      %s249 = ssub.s32 %s15, 1
      // Predicated region
      $region13: #{auxiliary_classifier_forward.4} parent=11 // pred_check
        %p250 = pneg %p62
      $region14: #{auxiliary_classifier_forward.4} parent=11 // pred_check_branch
        %252 = sbr.rel (%p250) target = $region16
      $region15: #{auxiliary_classifier_forward.4} parent=11 // pred_region
        _
      $region16: #{auxiliary_classifier_forward.4} parent=11 // pred_fallthru
        _
      // Predicated region
      $region17: #{auxiliary_classifier_forward.4} parent=11 // pred_check
        %p253 = pneg %p83
      $region18: #{auxiliary_classifier_forward.4} parent=11 // pred_check_branch
        %255 = sbr.rel (%p253) target = $region20
      $region19: #{auxiliary_classifier_forward.4} parent=11 // pred_region
        _
      $region20: #{auxiliary_classifier_forward.4} parent=11 // pred_fallthru
        _
      // Predicated region
      $region21: #{auxiliary_classifier_forward.4} parent=11 // pred_check
        %p256 = pneg %p104
      $region22: #{auxiliary_classifier_forward.4} parent=11 // pred_check_branch
        %258 = sbr.rel (%p256) target = $region24
      $region23: #{auxiliary_classifier_forward.4} parent=11 // pred_region
        _
      $region24: #{auxiliary_classifier_forward.4} parent=11 // pred_fallthru
        _
      // Predicated region
      $region25: #{auxiliary_classifier_forward.4} parent=11 // pred_check
        %p259 = pneg %p125
      $region26: #{auxiliary_classifier_forward.4} parent=11 // pred_check_branch
        %261 = sbr.rel (%p259) target = $region28
      $region27: #{auxiliary_classifier_forward.4} parent=11 // pred_region
        _
      $region28: #{auxiliary_classifier_forward.4} parent=11 // pred_fallthru
        _
      // Predicated region
      $region29: #{auxiliary_classifier_forward.4} parent=11 // pred_check
        %p262 = pneg %p146
      $region30: #{auxiliary_classifier_forward.4} parent=11 // pred_check_branch
        %264 = sbr.rel (%p262) target = $region32
      $region31: #{auxiliary_classifier_forward.4} parent=11 // pred_region
        _
      $region32: #{auxiliary_classifier_forward.4} parent=11 // pred_fallthru
        _
      // Predicated region
      $region33: #{auxiliary_classifier_forward.4} parent=11 // pred_check
        %p265 = pneg %p167
      $region34: #{auxiliary_classifier_forward.4} parent=11 // pred_check_branch
        %267 = sbr.rel (%p265) target = $region36
      $region35: #{auxiliary_classifier_forward.4} parent=11 // pred_region
        _
      $region36: #{auxiliary_classifier_forward.4} parent=11 // pred_fallthru
        _
      // Predicated region
      $region37: #{auxiliary_classifier_forward.4} parent=11 // pred_check
        %p268 = pneg %p188
      $region38: #{auxiliary_classifier_forward.4} parent=11 // pred_check_branch
        %270 = sbr.rel (%p268) target = $region40
      $region39: #{auxiliary_classifier_forward.4} parent=11 // pred_region
        _
      $region40: #{auxiliary_classifier_forward.4} parent=11 // pred_fallthru
        _
      // Predicated region
      $region41: #{auxiliary_classifier_forward.4} parent=11 // pred_check
        %p271 = pneg %p209
      $region42: #{auxiliary_classifier_forward.4} parent=11 // pred_check_branch
        %273 = sbr.rel (%p271) target = $region44
      $region43: #{auxiliary_classifier_forward.4} parent=11 // pred_region
        _
      $region44: #{auxiliary_classifier_forward.4} parent=11 // pred_fallthru
        _
    $region12: #{auxiliary_classifier_forward.4} parent=5 // pred_fallthru
      _
    %p274 = scmp.lt.s32.totalorder %s15, 2
    // Predicated region
    $region45: #{auxiliary_classifier_forward.4} parent=5 // pred_check
      %p275 = pneg %p274
    $region46: #{auxiliary_classifier_forward.4} parent=5 // pred_check_branch
      %277 = sbr.rel (%p275) target = $region48
    $region47: #{auxiliary_classifier_forward.4} parent=5 // pred_region
      // Predicated region
      $region49: #{auxiliary_classifier_forward.4} parent=47 // pred_check
        %p278 = pneg %p35
      $region50: #{auxiliary_classifier_forward.4} parent=47 // pred_check_branch
        %280 = sbr.rel (%p278) target = $region52
      $region51: #{auxiliary_classifier_forward.4} parent=47 // pred_region
        %p281 = scmp.lt.s32.totalorder %s15, 1
        %s282 = scalar_select %p281, %s15, 1
        %s283 = smul.addr %s282, 38
        %s284 = smul.addr %s283, 4
        %s285 = scalar_lea.vmem %s0, %s284
      $region52: #{auxiliary_classifier_forward.4} parent=47 // pred_fallthru
        _
    $region48: #{auxiliary_classifier_forward.4} parent=5 // pred_fallthru
      _
    %p286 = scmp.le.s32.totalorder 1, %s15
    %p287 = scmp.lt.s32.totalorder %s15, 3
    %p288 = pnand %p286, %p287
    %p289 = pneg %p288
    // Predicated region
    $region53: #{auxiliary_classifier_forward.4} parent=5 // pred_check
      _
    $region54: #{auxiliary_classifier_forward.4} parent=5 // pred_check_branch
      %291 = sbr.rel (%p288) target = $region56
    $region55: #{auxiliary_classifier_forward.4} parent=5 // pred_region
      %s292 = ssub.s32 %s15, 1
      %p293 = scmp.lt.s32.totalorder %s20, 1
      %s294 = scalar_select %p293, %s20, 1
      %s295 = smul.addr %s294, 38
      %s296 = smul.addr %s295, 4
      %s297 = scalar_lea.vmem %s0, %s296
      %p298 = pneg %p41
      %p299 = pneg %p38
      %p300 = pneg %p62
      %p301 = pneg %p59
      %p302 = pneg %p83
      %p303 = pneg %p80
      %p304 = pneg %p104
      %p305 = pneg %p101
      %p306 = pneg %p125
      %p307 = pneg %p122
      %p308 = pneg %p146
      %p309 = pneg %p143
      %p310 = pneg %p167
      %p311 = pneg %p164
      %p312 = pneg %p188
      %p313 = pneg %p185
      %p314 = pneg %p209
      %p315 = pneg %p206
      %p316 = pneg %p235
      %p317 = pneg %p232
      %p318 = scmp.lt.s32.totalorder %s20, 1
      %s319 = scalar_select %p318, %s20, 1
      %s320 = smul.addr %s319, 2
      %s321 = scalar_lea.vmem %s9, %s320
      %p322 = scmp.lt.s32.totalorder %s20, 1
      %s323 = scalar_select %p322, %s20, 1
      %s324 = smul.addr %s323, 38
      %s325 = smul.addr %s324, 4
      %s326 = scalar_lea.vmem %s0, %s325
      %p327 = scmp.lt.s32.totalorder %s20, 1
      %s328 = scalar_select %p327, %s20, 1
      %s329 = smul.addr %s328, 2
      %s330 = scalar_lea.vmem %s9, %s329
      %332 = vst [vmem:[#allocation3 + $0x20] sm:$0xcc] 0
      %333 = vst [vmem:[#allocation3 + $0x28] sm:$0xff] 0
      %334 = vst [vmem:[#allocation3 + $0x30] sm:$0xff] 0
      %v335 = vld [vmem:[%s326] sm:$0xff]
      %v336 = vld [vmem:[%s326 + $0x8] sm:$0xff]
      %v337 = vld [vmem:[%s326 + $0x10] sm:$0xff]
      %v338 = vld [vmem:[%s326 + $0x18] sm:$0xff]
      %v339 = vld [vmem:[%s326 + $0x20] sm:$0x33]
      %340 = vst [vmem:[#allocation2] sm:$0xff] %v335
      %341 = vst [vmem:[#allocation2 + $0x48] sm:$0xff] %v336
      %342 = vst [vmem:[#allocation2 + $0x90] sm:$0xff] %v337
      %343 = vst [vmem:[#allocation2 + $0xd8] sm:$0xff] %v338
      %344 = vst [vmem:[#allocation2 + $0x120] sm:$0x33] %v339
      %v345 = vld [vmem:[%s326 + $0x20] sm:$0xcc]
      %v346 = vld [vmem:[%s326 + $0x28] sm:$0xff]
      %v347 = vld [vmem:[%s326 + $0x30] sm:$0xff]
      %v348 = vld [vmem:[%s326 + $0x38] sm:$0xff]
      %v349 = vld [vmem:[%s326 + $0x40] sm:$0xff]
      %vm355 = vcmask 1041408
      %vm356 = vcmask 1045508
      %vm357 = vmor %vm355, %vm356
      %v358 = vrot.slane %v345, 6
      %v359 = vrot.slane %v358, 4
      %v360 = vrot.slane %v346, 6
      %v361 = vsel %vm357, %v359, %v360
      %v362 = vrot.slane %v360, 4
      %v363 = vrot.slane %v347, 6
      %v364 = vsel %vm357, %v362, %v363
      %v365 = vrot.slane %v363, 4
      %v366 = vrot.slane %v348, 6
      %v367 = vsel %vm357, %v365, %v366
      %v368 = vrot.slane %v366, 4
      %v369 = vrot.slane %v349, 6
      %v370 = vsel %vm357, %v368, %v369
      %v371 = vrot.slane %v369, 4
      %377 = vst [vmem:[#allocation2 + $0x8] sm:$0xff] %v361
      %378 = vst [vmem:[#allocation2 + $0x50] sm:$0xff] %v364
      %379 = vst [vmem:[#allocation2 + $0x98] sm:$0xff] %v367
      %380 = vst [vmem:[#allocation2 + $0xe0] sm:$0xff] %v370
      %381 = vst [vmem:[#allocation2 + $0x128] sm:$0x33] %v371
      %v382 = vld [vmem:[%s326] sm:$0xff]
      %v383 = vld [vmem:[%s326 + $0x8] sm:$0xff]
      %v384 = vld [vmem:[%s326 + $0x10] sm:$0xff]
      %v385 = vld [vmem:[%s326 + $0x18] sm:$0xff]
      %v386 = vld [vmem:[%s326 + $0x20] sm:$0x77]
      %vm387 = vsmask.f32 3328
      %vm388 = vsmask.f32 7440
      %vm389 = vmor %vm387, %vm388
      %v391 = vshrl.u32 %v382, 16
      %v393 = vrot.slane %v391, 4
      %v394 = vshll.u32 %v382, 16
      %v396 = vrot.slane %v394, 5
      %v397 = vor.u32 %v393, %v396
      %v398 = vrot.slane %v397, 4
      %v400 = vshll.u32 %v383, 16
      %v402 = vrot.slane %v400, 5
      %v403 = vsel %vm389, %v398, %v402
      %v404 = vshrl.u32 %v383, 16
      %v406 = vrot.slane %v404, 4
      %v407 = vor.u32 %v406, %v402
      %v408 = vrot.slane %v407, 4
      %v410 = vshll.u32 %v384, 16
      %v412 = vrot.slane %v410, 5
      %v413 = vsel %vm389, %v408, %v412
      %v414 = vshrl.u32 %v384, 16
      %v416 = vrot.slane %v414, 4
      %v417 = vor.u32 %v416, %v412
      %v418 = vrot.slane %v417, 4
      %v420 = vshll.u32 %v385, 16
      %v422 = vrot.slane %v420, 5
      %v423 = vsel %vm389, %v418, %v422
      %v424 = vshrl.u32 %v385, 16
      %v426 = vrot.slane %v424, 4
      %v427 = vor.u32 %v426, %v422
      %v428 = vrot.slane %v427, 4
      %v430 = vshll.u32 %v386, 16
      %v432 = vrot.slane %v430, 5
      %v433 = vsel %vm389, %v428, %v432
      %v434 = vshrl.u32 %v386, 16
      %v436 = vrot.slane %v434, 4
      %v437 = vor.u32 %v436, %v432
      %v438 = vrot.slane %v437, 4
      %444 = vst [vmem:[#allocation2 + $0x10] sm:$0xff] %v403
      %445 = vst [vmem:[#allocation2 + $0x58] sm:$0xff] %v413
      %446 = vst [vmem:[#allocation2 + $0xa0] sm:$0xff] %v423
      %447 = vst [vmem:[#allocation2 + $0xe8] sm:$0xff] %v433
      %448 = vst [vmem:[#allocation2 + $0x130] sm:$0x33] %v438
      %v449 = vld [vmem:[%s326 + $0x48] sm:$0xff]
      %v450 = vld [vmem:[%s326 + $0x50] sm:$0xff]
      %v451 = vld [vmem:[%s326 + $0x58] sm:$0xff]
      %v452 = vld [vmem:[%s326 + $0x60] sm:$0xff]
      %v453 = vld [vmem:[%s326 + $0x68] sm:$0x33]
      %454 = vst [vmem:[#allocation2 + $0x18] sm:$0xff] %v449
      %455 = vst [vmem:[#allocation2 + $0x60] sm:$0xff] %v450
      %456 = vst [vmem:[#allocation2 + $0xa8] sm:$0xff] %v451
      %457 = vst [vmem:[#allocation2 + $0xf0] sm:$0xff] %v452
      %458 = vst [vmem:[#allocation2 + $0x138] sm:$0x33] %v453
      %v459 = vld [vmem:[%s326 + $0x68] sm:$0xcc]
      %v460 = vld [vmem:[%s326 + $0x70] sm:$0xff]
      %v461 = vld [vmem:[%s326 + $0x78] sm:$0xff]
      %v462 = vld [vmem:[%s326 + $0x80] sm:$0xff]
      %v463 = vld [vmem:[%s326 + $0x88] sm:$0xff]
      %v469 = vrot.slane %v459, 6
      %v470 = vrot.slane %v469, 4
      %v471 = vrot.slane %v460, 6
      %v472 = vsel %vm357, %v470, %v471
      %v473 = vrot.slane %v471, 4
      %v474 = vrot.slane %v461, 6
      %v475 = vsel %vm357, %v473, %v474
      %v476 = vrot.slane %v474, 4
      %v477 = vrot.slane %v462, 6
      %v478 = vsel %vm357, %v476, %v477
      %v479 = vrot.slane %v477, 4
      %v480 = vrot.slane %v463, 6
      %v481 = vsel %vm357, %v479, %v480
      %v482 = vrot.slane %v480, 4
      %488 = vst [vmem:[#allocation2 + $0x20] sm:$0xff] %v472
      %489 = vst [vmem:[#allocation2 + $0x68] sm:$0xff] %v475
      %490 = vst [vmem:[#allocation2 + $0xb0] sm:$0xff] %v478
      %491 = vst [vmem:[#allocation2 + $0xf8] sm:$0xff] %v481
      %492 = vst [vmem:[#allocation2 + $0x140] sm:$0x33] %v482
      %v493 = vld [vmem:[%s326 + $0x48] sm:$0xff]
      %v494 = vld [vmem:[%s326 + $0x50] sm:$0xff]
      %v495 = vld [vmem:[%s326 + $0x58] sm:$0xff]
      %v496 = vld [vmem:[%s326 + $0x60] sm:$0xff]
      %v497 = vld [vmem:[%s326 + $0x68] sm:$0x77]
      %v499 = vshrl.u32 %v493, 16
      %v501 = vrot.slane %v499, 4
      %v502 = vshll.u32 %v493, 16
      %v504 = vrot.slane %v502, 5
      %v505 = vor.u32 %v501, %v504
      %v506 = vrot.slane %v505, 4
      %v508 = vshll.u32 %v494, 16
      %v510 = vrot.slane %v508, 5
      %v511 = vsel %vm389, %v506, %v510
      %v512 = vshrl.u32 %v494, 16
      %v514 = vrot.slane %v512, 4
      %v515 = vor.u32 %v514, %v510
      %v516 = vrot.slane %v515, 4
      %v518 = vshll.u32 %v495, 16
      %v520 = vrot.slane %v518, 5
      %v521 = vsel %vm389, %v516, %v520
      %v522 = vshrl.u32 %v495, 16
      %v524 = vrot.slane %v522, 4
      %v525 = vor.u32 %v524, %v520
      %v526 = vrot.slane %v525, 4
      %v528 = vshll.u32 %v496, 16
      %v530 = vrot.slane %v528, 5
      %v531 = vsel %vm389, %v526, %v530
      %v532 = vshrl.u32 %v496, 16
      %v534 = vrot.slane %v532, 4
      %v535 = vor.u32 %v534, %v530
      %v536 = vrot.slane %v535, 4
      %v538 = vshll.u32 %v497, 16
      %v540 = vrot.slane %v538, 5
      %v541 = vsel %vm389, %v536, %v540
      %v542 = vshrl.u32 %v497, 16
      %v544 = vrot.slane %v542, 4
      %v545 = vor.u32 %v544, %v540
      %v546 = vrot.slane %v545, 4
      %552 = vst [vmem:[#allocation2 + $0x28] sm:$0xff] %v511
      %553 = vst [vmem:[#allocation2 + $0x70] sm:$0xff] %v521
      %554 = vst [vmem:[#allocation2 + $0xb8] sm:$0xff] %v531
      %555 = vst [vmem:[#allocation2 + $0x100] sm:$0xff] %v541
      %556 = vst [vmem:[#allocation2 + $0x148] sm:$0x33] %v546
      %v557 = vld [vmem:[%s326] sm:$0x88]
      %v558 = vld [vmem:[%s326 + $0x8] sm:$0xff]
      %v559 = vld [vmem:[%s326 + $0x10] sm:$0xff]
      %v560 = vld [vmem:[%s326 + $0x18] sm:$0xff]
      %v561 = vld [vmem:[%s326 + $0x20] sm:$0xff]
      %v562 = vld [vmem:[%s326 + $0x28] sm:$0x11]
      %vm569 = vcmask 1040384
      %vm570 = vcmask 1044484
      %vm571 = vmor %vm569, %vm570
      %v572 = vrot.slane %v557, 7
      %v573 = vrot.slane %v572, 4
      %v574 = vrot.slane %v558, 7
      %v575 = vsel %vm571, %v573, %v574
      %v576 = vrot.slane %v574, 4
      %v577 = vrot.slane %v559, 7
      %v578 = vsel %vm571, %v576, %v577
      %v579 = vrot.slane %v577, 4
      %v580 = vrot.slane %v560, 7
      %v581 = vsel %vm571, %v579, %v580
      %v582 = vrot.slane %v580, 4
      %v583 = vrot.slane %v561, 7
      %v584 = vsel %vm571, %v582, %v583
      %v585 = vrot.slane %v583, 4
      %v586 = vrot.slane %v562, 7
      %v587 = vsel %vm571, %v585, %v586
      %593 = vst [vmem:[#allocation2 + $0x30] sm:$0xff] %v575
      %594 = vst [vmem:[#allocation2 + $0x78] sm:$0xff] %v578
      %595 = vst [vmem:[#allocation2 + $0xc0] sm:$0xff] %v581
      %596 = vst [vmem:[#allocation2 + $0x108] sm:$0xff] %v584
      %597 = vst [vmem:[#allocation2 + $0x150] sm:$0x33] %v587
      %v598 = vld [vmem:[%s326 + $0x28] sm:$0xee]
      %v599 = vld [vmem:[%s326 + $0x30] sm:$0xff]
      %v600 = vld [vmem:[%s326 + $0x38] sm:$0xff]
      %v601 = vld [vmem:[%s326 + $0x40] sm:$0xff]
      %v602 = vld [vmem:[%s326 + $0x48] sm:$0x77]
      %vm608 = vcmask 1042432
      %vm609 = vcmask 1046532
      %vm610 = vmor %vm608, %vm609
      %v611 = vrot.slane %v598, 5
      %v612 = vrot.slane %v611, 4
      %v613 = vrot.slane %v599, 5
      %v614 = vsel %vm610, %v612, %v613
      %v615 = vrot.slane %v613, 4
      %v616 = vrot.slane %v600, 5
      %v617 = vsel %vm610, %v615, %v616
      %v618 = vrot.slane %v616, 4
      %v619 = vrot.slane %v601, 5
      %v620 = vsel %vm610, %v618, %v619
      %v621 = vrot.slane %v619, 4
      %v622 = vrot.slane %v602, 5
      %v623 = vsel %vm610, %v621, %v622
      %v624 = vrot.slane %v622, 4
      %630 = vst [vmem:[#allocation2 + $0x38] sm:$0xff] %v614
      %631 = vst [vmem:[#allocation2 + $0x80] sm:$0xff] %v617
      %632 = vst [vmem:[#allocation2 + $0xc8] sm:$0xff] %v620
      %633 = vst [vmem:[#allocation2 + $0x110] sm:$0xff] %v623
      %634 = vst [vmem:[#allocation2 + $0x158] sm:$0x33] %v624
      %v635 = vld [vmem:[%s326] sm:$0x88]
      %v636 = vld [vmem:[%s326 + $0x8] sm:$0xff]
      %v637 = vld [vmem:[%s326 + $0x10] sm:$0xff]
      %v638 = vld [vmem:[%s326 + $0x18] sm:$0xff]
      %v639 = vld [vmem:[%s326 + $0x20] sm:$0xff]
      %v640 = vld [vmem:[%s326 + $0x28] sm:$0x33]
      %vm641 = vsmask.f32 256
      %vm642 = vsmask.f32 4368
      %vm643 = vmor %vm641, %vm642
      %v645 = vshrl.u32 %v635, 16
      %v647 = vrot.slane %v645, 7
      %v648 = vrot.slane %v647, 4
      %v650 = vshrl.u32 %v636, 16
      %v652 = vrot.slane %v650, 7
      %v653 = vshll.u32 %v636, 16
      %v655 = vor.u32 %v652, %v653
      %v656 = vsel %vm643, %v648, %v655
      %v657 = vrot.slane %v652, 4
      %v659 = vshrl.u32 %v637, 16
      %v661 = vrot.slane %v659, 7
      %v662 = vshll.u32 %v637, 16
      %v664 = vor.u32 %v661, %v662
      %v665 = vsel %vm643, %v657, %v664
      %v666 = vrot.slane %v661, 4
      %v668 = vshrl.u32 %v638, 16
      %v670 = vrot.slane %v668, 7
      %v671 = vshll.u32 %v638, 16
      %v673 = vor.u32 %v670, %v671
      %v674 = vsel %vm643, %v666, %v673
      %v675 = vrot.slane %v670, 4
      %v677 = vshrl.u32 %v639, 16
      %v679 = vrot.slane %v677, 7
      %v680 = vshll.u32 %v639, 16
      %v682 = vor.u32 %v679, %v680
      %v683 = vsel %vm643, %v675, %v682
      %v684 = vrot.slane %v679, 4
      %v686 = vshrl.u32 %v640, 16
      %v688 = vrot.slane %v686, 7
      %v689 = vshll.u32 %v640, 16
      %v691 = vor.u32 %v688, %v689
      %v692 = vsel %vm643, %v684, %v691
      %698 = vst [vmem:[#allocation2 + $0x40] sm:$0xff] %v656
      %699 = vst [vmem:[#allocation2 + $0x88] sm:$0xff] %v665
      %700 = vst [vmem:[#allocation2 + $0xd0] sm:$0xff] %v674
      %701 = vst [vmem:[#allocation2 + $0x118] sm:$0xff] %v683
      %702 = vst [vmem:[#allocation2 + $0x160] sm:$0x33] %v692
      %v703 = vld [vmem:[#allocation2] sm:$0xff]
      %v704 = vld [vmem:[#allocation2 + $0x8] sm:$0xff]
      %v705 = vld [vmem:[#allocation2 + $0x10] sm:$0xff]
      %v706 = vld [vmem:[#allocation2 + $0x18] sm:$0xff]
      %v707 = vld [vmem:[#allocation2 + $0x20] sm:$0xff]
      %v708 = vld [vmem:[#allocation2 + $0x28] sm:$0xff]
      %v709 = vld [vmem:[#allocation2 + $0x30] sm:$0xff]
      %v710 = vld [vmem:[#allocation2 + $0x38] sm:$0xff]
      %v711 = vld [vmem:[#allocation2 + $0x40] sm:$0xff]
      %v712 = vld [vmem:[#allocation2 + $0x48] sm:$0xff]
      %v713 = vld [vmem:[#allocation2 + $0x50] sm:$0xff]
      %v714 = vld [vmem:[#allocation2 + $0x58] sm:$0xff]
      %v715 = vld [vmem:[#allocation2 + $0x60] sm:$0xff]
      %v716 = vld [vmem:[#allocation2 + $0x68] sm:$0xff]
      %v717 = vld [vmem:[#allocation2 + $0x70] sm:$0xff]
      %v718 = vld [vmem:[#allocation2 + $0x78] sm:$0xff]
      %v719 = vld [vmem:[#allocation2 + $0x80] sm:$0xff]
      %v720 = vld [vmem:[#allocation2 + $0x88] sm:$0xff]
      %v721 = vld [vmem:[#allocation2 + $0x90] sm:$0xff]
      %v722 = vld [vmem:[#allocation2 + $0x98] sm:$0xff]
      %v723 = vld [vmem:[#allocation2 + $0xa0] sm:$0xff]
      %v724 = vld [vmem:[#allocation2 + $0xa8] sm:$0xff]
      %v725 = vld [vmem:[#allocation2 + $0xb0] sm:$0xff]
      %v726 = vld [vmem:[#allocation2 + $0xb8] sm:$0xff]
      %v727 = vld [vmem:[#allocation2 + $0xc0] sm:$0xff]
      %v728 = vld [vmem:[#allocation2 + $0xc8] sm:$0xff]
      %v729 = vld [vmem:[#allocation2 + $0xd0] sm:$0xff]
      %v730 = vld [vmem:[#allocation2 + $0xd8] sm:$0xff]
      %v731 = vld [vmem:[#allocation2 + $0xe0] sm:$0xff]
      %v732 = vld [vmem:[#allocation2 + $0xe8] sm:$0xff]
      %v733 = vld [vmem:[#allocation2 + $0xf0] sm:$0xff]
      %v734 = vld [vmem:[#allocation2 + $0xf8] sm:$0xff]
      %v735 = vld [vmem:[#allocation2 + $0x100] sm:$0xff]
      %v736 = vld [vmem:[#allocation2 + $0x108] sm:$0xff]
      %v737 = vld [vmem:[#allocation2 + $0x110] sm:$0xff]
      %v738 = vld [vmem:[#allocation2 + $0x118] sm:$0xff]
      %v739 = vld [vmem:[#allocation2 + $0x120] sm:$0x33]
      %v740 = vld [vmem:[#allocation2 + $0x128] sm:$0x33]
      %v741 = vld [vmem:[#allocation2 + $0x130] sm:$0x33]
      %v742 = vld [vmem:[#allocation2 + $0x138] sm:$0x33]
      %v743 = vld [vmem:[#allocation2 + $0x140] sm:$0x33]
      %v744 = vld [vmem:[#allocation2 + $0x148] sm:$0x33]
      %v745 = vld [vmem:[#allocation2 + $0x150] sm:$0x33]
      %v746 = vld [vmem:[#allocation2 + $0x158] sm:$0x33]
      %v747 = vld [vmem:[#allocation2 + $0x160] sm:$0x33]
      %v748 = vld [vmem:[%s1] sm:$0xff]
      %v749 = vld [vmem:[%s1 + $0x8] sm:$0xff]
      %v750 = vld [vmem:[%s1 + $0x10] sm:$0xff]
      %v751 = vld [vmem:[%s1 + $0x18] sm:$0xff]
      %v752 = vld [vmem:[%s1 + $0x20] sm:$0xff]
      %v753 = vld [vmem:[%s1 + $0x28] sm:$0xff]
      %v754 = vld [vmem:[%s1 + $0x30] sm:$0xff]
      %v755 = vld [vmem:[%s1 + $0x38] sm:$0xff]
      %v756 = vld [vmem:[%s1 + $0x40] sm:$0xff]
      %v757 = vld [vmem:[%s1 + $0x48] sm:$0xff]
      %v758 = vld [vmem:[%s1 + $0x50] sm:$0xff]
      %v759 = vld [vmem:[%s1 + $0x58] sm:$0xff]
      %v760 = vld [vmem:[%s1 + $0x60] sm:$0xff]
      %v761 = vld [vmem:[%s1 + $0x68] sm:$0xff]
      %v762 = vld [vmem:[%s1 + $0x70] sm:$0xff]
      %v763 = vld [vmem:[%s1 + $0x78] sm:$0xff]
      %v764 = vld [vmem:[%s1 + $0x80] sm:$0xff]
      %v765 = vld [vmem:[%s1 + $0x88] sm:$0xff]
      %v766 = vld [vmem:[%s1 + $0x90] sm:$0xff]
      %v767 = vld [vmem:[%s1 + $0x98] sm:$0xff]
      %v768 = vld [vmem:[%s1 + $0xa0] sm:$0xff]
      %v769 = vld [vmem:[%s1 + $0xa8] sm:$0xff]
      %v770 = vld [vmem:[%s1 + $0xb0] sm:$0xff]
      %v771 = vld [vmem:[%s1 + $0xb8] sm:$0xff]
      %v772 = vld [vmem:[%s1 + $0xc0] sm:$0xff]
      %v773 = vld [vmem:[%s1 + $0xc8] sm:$0xff]
      %v774 = vld [vmem:[%s1 + $0xd0] sm:$0xff]
      %v775 = vld [vmem:[%s1 + $0xd8] sm:$0xff]
      %v776 = vld [vmem:[%s1 + $0xe0] sm:$0xff]
      %v777 = vld [vmem:[%s1 + $0xe8] sm:$0xff]
      %v778 = vld [vmem:[%s1 + $0xf0] sm:$0xff]
      %v779 = vld [vmem:[%s1 + $0xf8] sm:$0xff]
      %v780 = vld [vmem:[%s1 + $0x100] sm:$0xff]
      %v781 = vld [vmem:[%s1 + $0x108] sm:$0xff]
      %v782 = vld [vmem:[%s1 + $0x110] sm:$0xff]
      %v783 = vld [vmem:[%s1 + $0x118] sm:$0xff]
      %v784 = vld [vmem:[%s1 + $0x120] sm:$0xff]
      %v785 = vld [vmem:[%s1 + $0x128] sm:$0xff]
      %v786 = vld [vmem:[%s1 + $0x130] sm:$0xff]
      %v787 = vld [vmem:[%s1 + $0x138] sm:$0xff]
      %v788 = vld [vmem:[%s1 + $0x140] sm:$0xff]
      %v789 = vld [vmem:[%s1 + $0x148] sm:$0xff]
      %v790 = vld [vmem:[%s1 + $0x150] sm:$0xff]
      %v791 = vld [vmem:[%s1 + $0x158] sm:$0xff]
      %v792 = vld [vmem:[%s1 + $0x160] sm:$0xff]
      %v793 = vld [vmem:[%s1 + $0x168] sm:$0xff]
      %v794 = vld [vmem:[%s1 + $0x170] sm:$0xff]
      %v795 = vld [vmem:[%s1 + $0x178] sm:$0xff]
      %v796 = vld [vmem:[%s1 + $0x180] sm:$0xff]
      %v797 = vld [vmem:[%s1 + $0x188] sm:$0xff]
      %v798 = vld [vmem:[%s1 + $0x190] sm:$0xff]
      %v799 = vld [vmem:[%s1 + $0x198] sm:$0xff]
      %v800 = vld [vmem:[%s1 + $0x1a0] sm:$0xff]
      %v801 = vld [vmem:[%s1 + $0x1a8] sm:$0xff]
      %v802 = vld [vmem:[%s1 + $0x1b0] sm:$0xff]
      %v803 = vld [vmem:[%s1 + $0x1b8] sm:$0xff]
      %v804 = vld [vmem:[%s1 + $0x1c0] sm:$0xff]
      %v805 = vld [vmem:[%s1 + $0x1c8] sm:$0xff]
      %v806 = vld [vmem:[%s1 + $0x1d0] sm:$0xff]
      %v807 = vld [vmem:[%s1 + $0x1d8] sm:$0xff]
      %v808 = vld [vmem:[%s1 + $0x1e0] sm:$0xff]
      %v809 = vld [vmem:[%s1 + $0x1e8] sm:$0xff]
      %v810 = vld [vmem:[%s1 + $0x1f0] sm:$0xff]
      %v811 = vld [vmem:[%s1 + $0x1f8] sm:$0xff]
      %v812 = vld [vmem:[%s1 + $0x200] sm:$0xff]
      %v813 = vld [vmem:[%s1 + $0x208] sm:$0xff]
      %v814 = vld [vmem:[%s1 + $0x210] sm:$0xff]
      %v815 = vld [vmem:[%s1 + $0x218] sm:$0xff]
      %v816 = vld [vmem:[%s1 + $0x220] sm:$0xff]
      %v817 = vld [vmem:[%s1 + $0x228] sm:$0xff]
      %v818 = vld [vmem:[%s1 + $0x230] sm:$0xff]
      %v819 = vld [vmem:[%s1 + $0x238] sm:$0xff]
      %v820 = vld [vmem:[%s1 + $0x240] sm:$0xff]
      %v821 = vld [vmem:[%s1 + $0x248] sm:$0xff]
      %v822 = vld [vmem:[%s1 + $0x250] sm:$0xff]
      %v823 = vld [vmem:[%s1 + $0x258] sm:$0xff]
      %v824 = vld [vmem:[%s1 + $0x260] sm:$0xff]
      %v825 = vld [vmem:[%s1 + $0x268] sm:$0xff]
      %v826 = vld [vmem:[%s1 + $0x270] sm:$0xff]
      %v827 = vld [vmem:[%s1 + $0x278] sm:$0xff]
      %v828 = vld [vmem:[%s1 + $0x280] sm:$0xff]
      %v829 = vld [vmem:[%s1 + $0x288] sm:$0xff]
      %v830 = vld [vmem:[%s1 + $0x290] sm:$0xff]
      %v831 = vld [vmem:[%s1 + $0x298] sm:$0xff]
      %v832 = vld [vmem:[%s1 + $0x2a0] sm:$0xff]
      %v833 = vld [vmem:[%s1 + $0x2a8] sm:$0xff]
      %v834 = vld [vmem:[%s1 + $0x2b0] sm:$0xff]
      %v835 = vld [vmem:[%s1 + $0x2b8] sm:$0xff]
      %v836 = vld [vmem:[%s1 + $0x2c0] sm:$0xff]
      %v837 = vld [vmem:[%s1 + $0x2c8] sm:$0xff]
      %v838 = vld [vmem:[%s1 + $0x2d0] sm:$0xff]
      %v839 = vld [vmem:[%s1 + $0x2d8] sm:$0xff]
      %v840 = vld [vmem:[%s1 + $0x2e0] sm:$0xff]
      %v841 = vld [vmem:[%s1 + $0x2e8] sm:$0xff]
      %v842 = vld [vmem:[%s1 + $0x2f0] sm:$0xff]
      %v843 = vld [vmem:[%s1 + $0x2f8] sm:$0xff]
      %v844 = vld [vmem:[%s1 + $0x300] sm:$0xff]
      %v845 = vld [vmem:[%s1 + $0x308] sm:$0xff]
      %v846 = vld [vmem:[%s1 + $0x310] sm:$0xff]
      %v847 = vld [vmem:[%s1 + $0x318] sm:$0xff]
      %v848 = vld [vmem:[%s1 + $0x320] sm:$0xff]
      %v849 = vld [vmem:[%s1 + $0x328] sm:$0xff]
      %v850 = vld [vmem:[%s1 + $0x330] sm:$0xff]
      %v851 = vld [vmem:[%s1 + $0x338] sm:$0xff]
      %v852 = vld [vmem:[%s1 + $0x340] sm:$0xff]
      %v853 = vld [vmem:[%s1 + $0x348] sm:$0xff]
      %v854 = vld [vmem:[%s1 + $0x350] sm:$0xff]
      %v855 = vld [vmem:[%s1 + $0x358] sm:$0xff]
      %v856 = vld [vmem:[%s1 + $0x360] sm:$0xff]
      %v857 = vld [vmem:[%s1 + $0x368] sm:$0xff]
      %v858 = vld [vmem:[%s1 + $0x370] sm:$0xff]
      %v859 = vld [vmem:[%s1 + $0x378] sm:$0xff]
      %v860 = vld [vmem:[%s1 + $0x380] sm:$0xff]
      %v861 = vld [vmem:[%s1 + $0x388] sm:$0xff]
      %v862 = vld [vmem:[%s1 + $0x390] sm:$0xff]
      %v863 = vld [vmem:[%s1 + $0x398] sm:$0xff]
      %v864 = vld [vmem:[%s1 + $0x3a0] sm:$0xff]
      %v865 = vld [vmem:[%s1 + $0x3a8] sm:$0xff]
      %v866 = vld [vmem:[%s1 + $0x3b0] sm:$0xff]
      %v867 = vld [vmem:[%s1 + $0x3b8] sm:$0xff]
      %v868 = vld [vmem:[%s1 + $0x3c0] sm:$0xff]
      %v869 = vld [vmem:[%s1 + $0x3c8] sm:$0xff]
      %v870 = vld [vmem:[%s1 + $0x3d0] sm:$0xff]
      %v871 = vld [vmem:[%s1 + $0x3d8] sm:$0xff]
      %v872 = vld [vmem:[%s1 + $0x3e0] sm:$0xff]
      %v873 = vld [vmem:[%s1 + $0x3e8] sm:$0xff]
      %v874 = vld [vmem:[%s1 + $0x3f0] sm:$0xff]
      %v875 = vld [vmem:[%s1 + $0x3f8] sm:$0xff]
      %v876 = vld [vmem:[%s1 + $0x400] sm:$0xff]
      %v877 = vld [vmem:[%s1 + $0x408] sm:$0xff]
      %v878 = vld [vmem:[%s1 + $0x410] sm:$0xff]
      %v879 = vld [vmem:[%s1 + $0x418] sm:$0xff]
      %v880 = vld [vmem:[%s1 + $0x420] sm:$0xff]
      %v881 = vld [vmem:[%s1 + $0x428] sm:$0xff]
      %v882 = vld [vmem:[%s1 + $0x430] sm:$0xff]
      %v883 = vld [vmem:[%s1 + $0x438] sm:$0xff]
      %v884 = vld [vmem:[%s1 + $0x440] sm:$0xff]
      %v885 = vld [vmem:[%s1 + $0x448] sm:$0xff]
      %v886 = vld [vmem:[%s1 + $0x450] sm:$0xff]
      %v887 = vld [vmem:[%s1 + $0x458] sm:$0xff]
      %v888 = vld [vmem:[%s1 + $0x460] sm:$0xff]
      %v889 = vld [vmem:[%s1 + $0x468] sm:$0xff]
      %v890 = vld [vmem:[%s1 + $0x470] sm:$0xff]
      %v891 = vld [vmem:[%s1 + $0x478] sm:$0xff]
      %v892 = vld [vmem:[%s1 + $0x480] sm:$0xff]
      %v893 = vld [vmem:[%s1 + $0x488] sm:$0xff]
      %v894 = vld [vmem:[%s1 + $0x490] sm:$0xff]
      %v895 = vld [vmem:[%s1 + $0x498] sm:$0xff]
      %v896 = vld [vmem:[%s1 + $0x4a0] sm:$0xff]
      %v897 = vld [vmem:[%s1 + $0x4a8] sm:$0xff]
      %v898 = vld [vmem:[%s1 + $0x4b0] sm:$0xff]
      %v899 = vld [vmem:[%s1 + $0x4b8] sm:$0xff]
      %v900 = vld [vmem:[%s1 + $0x4c0] sm:$0xff]
      %v901 = vld [vmem:[%s1 + $0x4c8] sm:$0xff]
      %v902 = vld [vmem:[%s1 + $0x4d0] sm:$0xff]
      %v903 = vld [vmem:[%s1 + $0x4d8] sm:$0xff]
      %v904 = vld [vmem:[%s1 + $0x4e0] sm:$0xff]
      %v905 = vld [vmem:[%s1 + $0x4e8] sm:$0xff]
      %v906 = vld [vmem:[%s1 + $0x4f0] sm:$0xff]
      %v907 = vld [vmem:[%s1 + $0x4f8] sm:$0xff]
      %v908 = vld [vmem:[%s1 + $0x500] sm:$0xff]
      %v909 = vld [vmem:[%s1 + $0x508] sm:$0xff]
      %v910 = vld [vmem:[%s1 + $0x510] sm:$0xff]
      %v911 = vld [vmem:[%s1 + $0x518] sm:$0xff]
      %v912 = vld [vmem:[%s1 + $0x520] sm:$0xff]
      %v913 = vld [vmem:[%s1 + $0x528] sm:$0xff]
      %v914 = vld [vmem:[%s1 + $0x530] sm:$0xff]
      %v915 = vld [vmem:[%s1 + $0x538] sm:$0xff]
      %v916 = vld [vmem:[%s1 + $0x540] sm:$0xff]
      %v917 = vld [vmem:[%s1 + $0x548] sm:$0xff]
      %v918 = vld [vmem:[%s1 + $0x550] sm:$0xff]
      %v919 = vld [vmem:[%s1 + $0x558] sm:$0xff]
      %v920 = vld [vmem:[%s1 + $0x560] sm:$0xff]
      %v921 = vld [vmem:[%s1 + $0x568] sm:$0xff]
      %v922 = vld [vmem:[%s1 + $0x570] sm:$0xff]
      %v923 = vld [vmem:[%s1 + $0x578] sm:$0xff]
      %v924 = vld [vmem:[%s1 + $0x580] sm:$0xff]
      %v925 = vld [vmem:[%s1 + $0x588] sm:$0xff]
      %v926 = vld [vmem:[%s1 + $0x590] sm:$0xff]
      %v927 = vld [vmem:[%s1 + $0x598] sm:$0xff]
      %v928 = vld [vmem:[%s1 + $0x5a0] sm:$0xff]
      %v929 = vld [vmem:[%s1 + $0x5a8] sm:$0xff]
      %v930 = vld [vmem:[%s1 + $0x5b0] sm:$0xff]
      %v931 = vld [vmem:[%s1 + $0x5b8] sm:$0xff]
      %v932 = vld [vmem:[%s1 + $0x5c0] sm:$0xff]
      %v933 = vld [vmem:[%s1 + $0x5c8] sm:$0xff]
      %v934 = vld [vmem:[%s1 + $0x5d0] sm:$0xff]
      %v935 = vld [vmem:[%s1 + $0x5d8] sm:$0xff]
      %v936 = vld [vmem:[%s1 + $0x5e0] sm:$0xff]
      %v937 = vld [vmem:[%s1 + $0x5e8] sm:$0xff]
      %v938 = vld [vmem:[%s1 + $0x5f0] sm:$0xff]
      %v939 = vld [vmem:[%s1 + $0x5f8] sm:$0xff]
      %v940 = vld [vmem:[%s1 + $0x600] sm:$0xff]
      %v941 = vld [vmem:[%s1 + $0x608] sm:$0xff]
      %v942 = vld [vmem:[%s1 + $0x610] sm:$0xff]
      %v943 = vld [vmem:[%s1 + $0x618] sm:$0xff]
      %v944 = vld [vmem:[%s1 + $0x620] sm:$0xff]
      %v945 = vld [vmem:[%s1 + $0x628] sm:$0xff]
      %v946 = vld [vmem:[%s1 + $0x630] sm:$0xff]
      %v947 = vld [vmem:[%s1 + $0x638] sm:$0xff]
      %v948 = vld [vmem:[%s1 + $0x640] sm:$0xff]
      %v949 = vld [vmem:[%s1 + $0x648] sm:$0xff]
      %v950 = vld [vmem:[%s1 + $0x650] sm:$0xff]
      %v951 = vld [vmem:[%s1 + $0x658] sm:$0xff]
      %v952 = vld [vmem:[%s1 + $0x660] sm:$0xff]
      %v953 = vld [vmem:[%s1 + $0x668] sm:$0xff]
      %v954 = vld [vmem:[%s1 + $0x670] sm:$0xff]
      %v955 = vld [vmem:[%s1 + $0x678] sm:$0xff]
      %v956 = vld [vmem:[%s1 + $0x680] sm:$0xff]
      %v957 = vld [vmem:[%s1 + $0x688] sm:$0xff]
      %v958 = vld [vmem:[%s1 + $0x690] sm:$0xff]
      %v959 = vld [vmem:[%s1 + $0x698] sm:$0xff]
      %v960 = vld [vmem:[%s1 + $0x6a0] sm:$0xff]
      %v961 = vld [vmem:[%s1 + $0x6a8] sm:$0xff]
      %v962 = vld [vmem:[%s1 + $0x6b0] sm:$0xff]
      %v963 = vld [vmem:[%s1 + $0x6b8] sm:$0xff]
      %v964 = vld [vmem:[%s1 + $0x6c0] sm:$0xff]
      %v965 = vld [vmem:[%s1 + $0x6c8] sm:$0xff]
      %v966 = vld [vmem:[%s1 + $0x6d0] sm:$0xff]
      %v967 = vld [vmem:[%s1 + $0x6d8] sm:$0xff]
      %v968 = vld [vmem:[%s1 + $0x6e0] sm:$0xff]
      %v969 = vld [vmem:[%s1 + $0x6e8] sm:$0xff]
      %v970 = vld [vmem:[%s1 + $0x6f0] sm:$0xff]
      %v971 = vld [vmem:[%s1 + $0x6f8] sm:$0xff]
      %v972 = vld [vmem:[%s1 + $0x700] sm:$0xff]
      %v973 = vld [vmem:[%s1 + $0x708] sm:$0xff]
      %v974 = vld [vmem:[%s1 + $0x710] sm:$0xff]
      %v975 = vld [vmem:[%s1 + $0x718] sm:$0xff]
      %v976 = vld [vmem:[%s1 + $0x720] sm:$0xff]
      %v977 = vld [vmem:[%s1 + $0x728] sm:$0xff]
      %v978 = vld [vmem:[%s1 + $0x730] sm:$0xff]
      %v979 = vld [vmem:[%s1 + $0x738] sm:$0xff]
      %v980 = vld [vmem:[%s1 + $0x740] sm:$0xff]
      %v981 = vld [vmem:[%s1 + $0x748] sm:$0xff]
      %v982 = vld [vmem:[%s1 + $0x750] sm:$0xff]
      %v983 = vld [vmem:[%s1 + $0x758] sm:$0xff]
      %v984 = vld [vmem:[%s1 + $0x760] sm:$0xff]
      %v985 = vld [vmem:[%s1 + $0x768] sm:$0xff]
      %v986 = vld [vmem:[%s1 + $0x770] sm:$0xff]
      %v987 = vld [vmem:[%s1 + $0x778] sm:$0xff]
      %v988 = vld [vmem:[%s1 + $0x780] sm:$0xff]
      %v989 = vld [vmem:[%s1 + $0x788] sm:$0xff]
      %v990 = vld [vmem:[%s1 + $0x790] sm:$0xff]
      %v991 = vld [vmem:[%s1 + $0x798] sm:$0xff]
      %v992 = vld [vmem:[%s1 + $0x7a0] sm:$0xff]
      %v993 = vld [vmem:[%s1 + $0x7a8] sm:$0xff]
      %v994 = vld [vmem:[%s1 + $0x7b0] sm:$0xff]
      %v995 = vld [vmem:[%s1 + $0x7b8] sm:$0xff]
      %v996 = vld [vmem:[%s1 + $0x7c0] sm:$0xff]
      %v997 = vld [vmem:[%s1 + $0x7c8] sm:$0xff]
      %v998 = vld [vmem:[%s1 + $0x7d0] sm:$0xff]
      %v999 = vld [vmem:[%s1 + $0x7d8] sm:$0xff]
      %v1000 = vld [vmem:[%s1 + $0x7e0] sm:$0xff]
      %v1001 = vld [vmem:[%s1 + $0x7e8] sm:$0xff]
      %v1002 = vld [vmem:[%s1 + $0x7f0] sm:$0xff]
      %v1003 = vld [vmem:[%s1 + $0x7f8] sm:$0xff]
      %v1004 = vld [vmem:[%s1 + $0x800] sm:$0xff]
      %v1005 = vld [vmem:[%s1 + $0x808] sm:$0xff]
      %v1006 = vld [vmem:[%s1 + $0x810] sm:$0xff]
      %v1007 = vld [vmem:[%s1 + $0x818] sm:$0xff]
      %v1008 = vld [vmem:[%s1 + $0x820] sm:$0xff]
      %v1009 = vld [vmem:[%s1 + $0x828] sm:$0xff]
      %v1010 = vld [vmem:[%s1 + $0x830] sm:$0xff]
      %v1011 = vld [vmem:[%s1 + $0x838] sm:$0xff]
      %v1012 = vld [vmem:[%s1 + $0x840] sm:$0xff]
      %v1013 = vld [vmem:[%s1 + $0x848] sm:$0xff]
      %v1014 = vld [vmem:[%s1 + $0x850] sm:$0xff]
      %v1015 = vld [vmem:[%s1 + $0x858] sm:$0xff]
      %v1016 = vld [vmem:[%s1 + $0x860] sm:$0xff]
      %v1017 = vld [vmem:[%s1 + $0x868] sm:$0xff]
      %v1018 = vld [vmem:[%s1 + $0x870] sm:$0xff]
      %v1019 = vld [vmem:[%s1 + $0x878] sm:$0xff]
      %v1020 = vld [vmem:[%s1 + $0x880] sm:$0xff]
      %v1021 = vld [vmem:[%s1 + $0x888] sm:$0xff]
      %v1022 = vld [vmem:[%s1 + $0x890] sm:$0xff]
      %v1023 = vld [vmem:[%s1 + $0x898] sm:$0xff]
      %v1024 = vld [vmem:[%s1 + $0x8a0] sm:$0xff]
      %v1025 = vld [vmem:[%s1 + $0x8a8] sm:$0xff]
      %v1026 = vld [vmem:[%s1 + $0x8b0] sm:$0xff]
      %v1027 = vld [vmem:[%s1 + $0x8b8] sm:$0xff]
      %v1028 = vld [vmem:[%s1 + $0x8c0] sm:$0xff]
      %v1029 = vld [vmem:[%s1 + $0x8c8] sm:$0xff]
      %v1030 = vld [vmem:[%s1 + $0x8d0] sm:$0xff]
      %v1031 = vld [vmem:[%s1 + $0x8d8] sm:$0xff]
      %v1032 = vld [vmem:[%s1 + $0x8e0] sm:$0xff]
      %v1033 = vld [vmem:[%s1 + $0x8e8] sm:$0xff]
      %v1034 = vld [vmem:[%s1 + $0x8f0] sm:$0xff]
      %v1035 = vld [vmem:[%s1 + $0x8f8] sm:$0xff]
      %v1081 = vunpack.c.l.b16 %v703
      %v1082 = vunpack.c.h.b16 %v703
      %v1083 = vunpack.c.l.b16 %v704
      %v1084 = vunpack.c.h.b16 %v704
      %v1085 = vunpack.c.l.b16 %v705
      %v1086 = vunpack.c.h.b16 %v705
      %v1087 = vunpack.c.l.b16 %v706
      %v1088 = vunpack.c.h.b16 %v706
      %v1089 = vunpack.c.l.b16 %v707
      %v1090 = vunpack.c.h.b16 %v707
      %v1091 = vunpack.c.l.b16 %v708
      %v1092 = vunpack.c.h.b16 %v708
      %v1093 = vunpack.c.l.b16 %v709
      %v1094 = vunpack.c.h.b16 %v709
      %v1095 = vunpack.c.l.b16 %v710
      %v1096 = vunpack.c.h.b16 %v710
      %v1097 = vunpack.c.l.b16 %v711
      %v1098 = vunpack.c.h.b16 %v711
      %v1099 = vunpack.c.l.b16 %v712
      %v1100 = vunpack.c.h.b16 %v712
      %v1101 = vunpack.c.l.b16 %v713
      %v1102 = vunpack.c.h.b16 %v713
      %v1103 = vunpack.c.l.b16 %v714
      %v1104 = vunpack.c.h.b16 %v714
      %v1105 = vunpack.c.l.b16 %v715
      %v1106 = vunpack.c.h.b16 %v715
      %v1107 = vunpack.c.l.b16 %v716
      %v1108 = vunpack.c.h.b16 %v716
      %v1109 = vunpack.c.l.b16 %v717
      %v1110 = vunpack.c.h.b16 %v717
      %v1111 = vunpack.c.l.b16 %v718
      %v1112 = vunpack.c.h.b16 %v718
      %v1113 = vunpack.c.l.b16 %v719
      %v1114 = vunpack.c.h.b16 %v719
      %v1115 = vunpack.c.l.b16 %v720
      %v1116 = vunpack.c.h.b16 %v720
      %v1117 = vunpack.c.l.b16 %v721
      %v1118 = vunpack.c.h.b16 %v721
      %v1119 = vunpack.c.l.b16 %v722
      %v1120 = vunpack.c.h.b16 %v722
      %v1121 = vunpack.c.l.b16 %v723
      %v1122 = vunpack.c.h.b16 %v723
      %v1123 = vunpack.c.l.b16 %v724
      %v1124 = vunpack.c.h.b16 %v724
      %v1125 = vunpack.c.l.b16 %v725
      %v1126 = vunpack.c.h.b16 %v725
      %v1127 = vunpack.c.l.b16 %v726
      %v1128 = vunpack.c.h.b16 %v726
      %v1129 = vunpack.c.l.b16 %v727
      %v1130 = vunpack.c.h.b16 %v727
      %v1131 = vunpack.c.l.b16 %v728
      %v1132 = vunpack.c.h.b16 %v728
      %v1133 = vunpack.c.l.b16 %v729
      %v1134 = vunpack.c.h.b16 %v729
      %v1135 = vunpack.c.l.b16 %v730
      %v1136 = vunpack.c.h.b16 %v730
      %v1137 = vunpack.c.l.b16 %v731
      %v1138 = vunpack.c.h.b16 %v731
      %v1139 = vunpack.c.l.b16 %v732
      %v1140 = vunpack.c.h.b16 %v732
      %v1141 = vunpack.c.l.b16 %v733
      %v1142 = vunpack.c.h.b16 %v733
      %v1143 = vunpack.c.l.b16 %v734
      %v1144 = vunpack.c.h.b16 %v734
      %v1145 = vunpack.c.l.b16 %v735
      %v1146 = vunpack.c.h.b16 %v735
      %v1147 = vunpack.c.l.b16 %v736
      %v1148 = vunpack.c.h.b16 %v736
      %v1149 = vunpack.c.l.b16 %v737
      %v1150 = vunpack.c.h.b16 %v737
      %v1151 = vunpack.c.l.b16 %v738
      %v1152 = vunpack.c.h.b16 %v738
      %v1153 = vunpack.c.l.b16 %v739
      %v1154 = vunpack.c.h.b16 %v739
      %v1155 = vunpack.c.l.b16 %v740
      %v1156 = vunpack.c.h.b16 %v740
      %v1157 = vunpack.c.l.b16 %v741
      %v1158 = vunpack.c.h.b16 %v741
      %v1159 = vunpack.c.l.b16 %v742
      %v1160 = vunpack.c.h.b16 %v742
      %v1161 = vunpack.c.l.b16 %v743
      %v1162 = vunpack.c.h.b16 %v743
      %v1163 = vunpack.c.l.b16 %v744
      %v1164 = vunpack.c.h.b16 %v744
      %v1165 = vunpack.c.l.b16 %v745
      %v1166 = vunpack.c.h.b16 %v745
      %v1167 = vunpack.c.l.b16 %v746
      %v1168 = vunpack.c.h.b16 %v746
      %v1169 = vunpack.c.l.b16 %v747
      %v1170 = vunpack.c.h.b16 %v747
      %v1171 = vpack.c.b16 %v1099, %v1081
      %v1172 = vpack.c.b16 %v1100, %v1082
      %v1173 = vpack.c.b16 %v1101, %v1083
      %v1174 = vpack.c.b16 %v1102, %v1084
      %v1175 = vpack.c.b16 %v1103, %v1085
      %v1176 = vpack.c.b16 %v1104, %v1086
      %v1177 = vpack.c.b16 %v1105, %v1087
      %v1178 = vpack.c.b16 %v1106, %v1088
      %v1179 = vpack.c.b16 %v1107, %v1089
      %v1180 = vpack.c.b16 %v1108, %v1090
      %v1181 = vpack.c.b16 %v1109, %v1091
      %v1182 = vpack.c.b16 %v1110, %v1092
      %v1183 = vpack.c.b16 %v1111, %v1093
      %v1184 = vpack.c.b16 %v1112, %v1094
      %v1185 = vpack.c.b16 %v1113, %v1095
      %v1186 = vpack.c.b16 %v1114, %v1096
      %v1187 = vpack.c.b16 %v1115, %v1097
      %v1188 = vpack.c.b16 %v1116, %v1098
      %v1189 = vpack.c.b16 %v1135, %v1117
      %v1190 = vpack.c.b16 %v1136, %v1118
      %v1191 = vpack.c.b16 %v1137, %v1119
      %v1192 = vpack.c.b16 %v1138, %v1120
      %v1193 = vpack.c.b16 %v1139, %v1121
      %v1194 = vpack.c.b16 %v1140, %v1122
      %v1195 = vpack.c.b16 %v1141, %v1123
      %v1196 = vpack.c.b16 %v1142, %v1124
      %v1197 = vpack.c.b16 %v1143, %v1125
      %v1198 = vpack.c.b16 %v1144, %v1126
      %v1199 = vpack.c.b16 %v1145, %v1127
      %v1200 = vpack.c.b16 %v1146, %v1128
      %v1201 = vpack.c.b16 %v1147, %v1129
      %v1202 = vpack.c.b16 %v1148, %v1130
      %v1203 = vpack.c.b16 %v1149, %v1131
      %v1204 = vpack.c.b16 %v1150, %v1132
      %v1205 = vpack.c.b16 %v1151, %v1133
      %v1206 = vpack.c.b16 %v1152, %v1134
      %v1207 = vpack.c.b16 %v1153, %v1153
      %v1208 = vpack.c.b16 %v1154, %v1154
      %v1209 = vpack.c.b16 %v1155, %v1155
      %v1210 = vpack.c.b16 %v1156, %v1156
      %v1211 = vpack.c.b16 %v1157, %v1157
      %v1212 = vpack.c.b16 %v1158, %v1158
      %v1213 = vpack.c.b16 %v1159, %v1159
      %v1214 = vpack.c.b16 %v1160, %v1160
      %v1215 = vpack.c.b16 %v1161, %v1161
      %v1216 = vpack.c.b16 %v1162, %v1162
      %v1217 = vpack.c.b16 %v1163, %v1163
      %v1218 = vpack.c.b16 %v1164, %v1164
      %v1219 = vpack.c.b16 %v1165, %v1165
      %v1220 = vpack.c.b16 %v1166, %v1166
      %v1221 = vpack.c.b16 %v1167, %v1167
      %v1222 = vpack.c.b16 %v1168, %v1168
      %v1223 = vpack.c.b16 %v1169, %v1169
      %v1224 = vpack.c.b16 %v1170, %v1170
      %v1567 = vunpack.c.l.b16 %v748
      %v1568 = vunpack.c.h.b16 %v748
      %v1569 = vunpack.c.l.b16 %v749
      %v1570 = vunpack.c.h.b16 %v749
      %v1571 = vunpack.c.l.b16 %v750
      %v1572 = vunpack.c.h.b16 %v750
      %v1573 = vunpack.c.l.b16 %v751
      %v1574 = vunpack.c.h.b16 %v751
      %v1575 = vunpack.c.l.b16 %v752
      %v1576 = vunpack.c.h.b16 %v752
      %v1577 = vunpack.c.l.b16 %v753
      %v1578 = vunpack.c.h.b16 %v753
      %v1579 = vunpack.c.l.b16 %v754
      %v1580 = vunpack.c.h.b16 %v754
      %v1581 = vunpack.c.l.b16 %v755
      %v1582 = vunpack.c.h.b16 %v755
      %v1583 = vunpack.c.l.b16 %v756
      %v1584 = vunpack.c.h.b16 %v756
      %v1585 = vunpack.c.l.b16 %v757
      %v1586 = vunpack.c.h.b16 %v757
      %v1587 = vunpack.c.l.b16 %v758
      %v1588 = vunpack.c.h.b16 %v758
      %v1589 = vunpack.c.l.b16 %v759
      %v1590 = vunpack.c.h.b16 %v759
      %v1591 = vunpack.c.l.b16 %v760
      %v1592 = vunpack.c.h.b16 %v760
      %v1593 = vunpack.c.l.b16 %v761
      %v1594 = vunpack.c.h.b16 %v761
      %v1595 = vunpack.c.l.b16 %v762
      %v1596 = vunpack.c.h.b16 %v762
      %v1597 = vunpack.c.l.b16 %v763
      %v1598 = vunpack.c.h.b16 %v763
      %v1599 = vunpack.c.l.b16 %v764
      %v1600 = vunpack.c.h.b16 %v764
      %v1601 = vunpack.c.l.b16 %v765
      %v1602 = vunpack.c.h.b16 %v765
      %v1603 = vunpack.c.l.b16 %v766
      %v1604 = vunpack.c.h.b16 %v766
      %v1605 = vunpack.c.l.b16 %v767
      %v1606 = vunpack.c.h.b16 %v767
      %v1607 = vunpack.c.l.b16 %v768
      %v1608 = vunpack.c.h.b16 %v768
      %v1609 = vunpack.c.l.b16 %v769
      %v1610 = vunpack.c.h.b16 %v769
      %v1611 = vunpack.c.l.b16 %v770
      %v1612 = vunpack.c.h.b16 %v770
      %v1613 = vunpack.c.l.b16 %v771
      %v1614 = vunpack.c.h.b16 %v771
      %v1615 = vunpack.c.l.b16 %v772
      %v1616 = vunpack.c.h.b16 %v772
      %v1617 = vunpack.c.l.b16 %v773
      %v1618 = vunpack.c.h.b16 %v773
      %v1619 = vunpack.c.l.b16 %v774
      %v1620 = vunpack.c.h.b16 %v774
      %v1621 = vunpack.c.l.b16 %v775
      %v1622 = vunpack.c.h.b16 %v775
      %v1623 = vunpack.c.l.b16 %v776
      %v1624 = vunpack.c.h.b16 %v776
      %v1625 = vunpack.c.l.b16 %v777
      %v1626 = vunpack.c.h.b16 %v777
      %v1627 = vunpack.c.l.b16 %v778
      %v1628 = vunpack.c.h.b16 %v778
      %v1629 = vunpack.c.l.b16 %v779
      %v1630 = vunpack.c.h.b16 %v779
      %v1631 = vunpack.c.l.b16 %v780
      %v1632 = vunpack.c.h.b16 %v780
      %v1633 = vunpack.c.l.b16 %v781
      %v1634 = vunpack.c.h.b16 %v781
      %v1635 = vunpack.c.l.b16 %v782
      %v1636 = vunpack.c.h.b16 %v782
      %v1637 = vunpack.c.l.b16 %v783
      %v1638 = vunpack.c.h.b16 %v783
      %v1639 = vunpack.c.l.b16 %v784
      %v1640 = vunpack.c.h.b16 %v784
      %v1641 = vunpack.c.l.b16 %v785
      %v1642 = vunpack.c.h.b16 %v785
      %v1643 = vunpack.c.l.b16 %v786
      %v1644 = vunpack.c.h.b16 %v786
      %v1645 = vunpack.c.l.b16 %v787
      %v1646 = vunpack.c.h.b16 %v787
      %v1647 = vunpack.c.l.b16 %v788
      %v1648 = vunpack.c.h.b16 %v788
      %v1649 = vunpack.c.l.b16 %v789
      %v1650 = vunpack.c.h.b16 %v789
      %v1651 = vunpack.c.l.b16 %v790
      %v1652 = vunpack.c.h.b16 %v790
      %v1653 = vunpack.c.l.b16 %v791
      %v1654 = vunpack.c.h.b16 %v791
      %v1655 = vunpack.c.l.b16 %v792
      %v1656 = vunpack.c.h.b16 %v792
      %v1657 = vunpack.c.l.b16 %v793
      %v1658 = vunpack.c.h.b16 %v793
      %v1659 = vunpack.c.l.b16 %v794
      %v1660 = vunpack.c.h.b16 %v794
      %v1661 = vunpack.c.l.b16 %v795
      %v1662 = vunpack.c.h.b16 %v795
      %v1663 = vunpack.c.l.b16 %v796
      %v1664 = vunpack.c.h.b16 %v796
      %v1665 = vunpack.c.l.b16 %v797
      %v1666 = vunpack.c.h.b16 %v797
      %v1667 = vunpack.c.l.b16 %v798
      %v1668 = vunpack.c.h.b16 %v798
      %v1669 = vunpack.c.l.b16 %v799
      %v1670 = vunpack.c.h.b16 %v799
      %v1671 = vunpack.c.l.b16 %v800
      %v1672 = vunpack.c.h.b16 %v800
      %v1673 = vunpack.c.l.b16 %v801
      %v1674 = vunpack.c.h.b16 %v801
      %v1675 = vunpack.c.l.b16 %v802
      %v1676 = vunpack.c.h.b16 %v802
      %v1677 = vunpack.c.l.b16 %v803
      %v1678 = vunpack.c.h.b16 %v803
      %v1679 = vunpack.c.l.b16 %v804
      %v1680 = vunpack.c.h.b16 %v804
      %v1681 = vunpack.c.l.b16 %v805
      %v1682 = vunpack.c.h.b16 %v805
      %v1683 = vunpack.c.l.b16 %v806
      %v1684 = vunpack.c.h.b16 %v806
      %v1685 = vunpack.c.l.b16 %v807
      %v1686 = vunpack.c.h.b16 %v807
      %v1687 = vunpack.c.l.b16 %v808
      %v1688 = vunpack.c.h.b16 %v808
      %v1689 = vunpack.c.l.b16 %v809
      %v1690 = vunpack.c.h.b16 %v809
      %v1691 = vunpack.c.l.b16 %v810
      %v1692 = vunpack.c.h.b16 %v810
      %v1693 = vunpack.c.l.b16 %v811
      %v1694 = vunpack.c.h.b16 %v811
      %v1695 = vunpack.c.l.b16 %v812
      %v1696 = vunpack.c.h.b16 %v812
      %v1697 = vunpack.c.l.b16 %v813
      %v1698 = vunpack.c.h.b16 %v813
      %v1699 = vunpack.c.l.b16 %v814
      %v1700 = vunpack.c.h.b16 %v814
      %v1701 = vunpack.c.l.b16 %v815
      %v1702 = vunpack.c.h.b16 %v815
      %v1703 = vunpack.c.l.b16 %v816
      %v1704 = vunpack.c.h.b16 %v816
      %v1705 = vunpack.c.l.b16 %v817
      %v1706 = vunpack.c.h.b16 %v817
      %v1707 = vunpack.c.l.b16 %v818
      %v1708 = vunpack.c.h.b16 %v818
      %v1709 = vunpack.c.l.b16 %v819
      %v1710 = vunpack.c.h.b16 %v819
      %v1711 = vunpack.c.l.b16 %v820
      %v1712 = vunpack.c.h.b16 %v820
      %v1713 = vunpack.c.l.b16 %v821
      %v1714 = vunpack.c.h.b16 %v821
      %v1715 = vunpack.c.l.b16 %v822
      %v1716 = vunpack.c.h.b16 %v822
      %v1717 = vunpack.c.l.b16 %v823
      %v1718 = vunpack.c.h.b16 %v823
      %v1719 = vunpack.c.l.b16 %v824
      %v1720 = vunpack.c.h.b16 %v824
      %v1721 = vunpack.c.l.b16 %v825
      %v1722 = vunpack.c.h.b16 %v825
      %v1723 = vunpack.c.l.b16 %v826
      %v1724 = vunpack.c.h.b16 %v826
      %v1725 = vunpack.c.l.b16 %v827
      %v1726 = vunpack.c.h.b16 %v827
      %v1727 = vunpack.c.l.b16 %v828
      %v1728 = vunpack.c.h.b16 %v828
      %v1729 = vunpack.c.l.b16 %v829
      %v1730 = vunpack.c.h.b16 %v829
      %v1731 = vunpack.c.l.b16 %v830
      %v1732 = vunpack.c.h.b16 %v830
      %v1733 = vunpack.c.l.b16 %v831
      %v1734 = vunpack.c.h.b16 %v831
      %v1735 = vunpack.c.l.b16 %v832
      %v1736 = vunpack.c.h.b16 %v832
      %v1737 = vunpack.c.l.b16 %v833
      %v1738 = vunpack.c.h.b16 %v833
      %v1739 = vunpack.c.l.b16 %v834
      %v1740 = vunpack.c.h.b16 %v834
      %v1741 = vunpack.c.l.b16 %v835
      %v1742 = vunpack.c.h.b16 %v835
      %v1743 = vunpack.c.l.b16 %v836
      %v1744 = vunpack.c.h.b16 %v836
      %v1745 = vunpack.c.l.b16 %v837
      %v1746 = vunpack.c.h.b16 %v837
      %v1747 = vunpack.c.l.b16 %v838
      %v1748 = vunpack.c.h.b16 %v838
      %v1749 = vunpack.c.l.b16 %v839
      %v1750 = vunpack.c.h.b16 %v839
      %v1751 = vunpack.c.l.b16 %v840
      %v1752 = vunpack.c.h.b16 %v840
      %v1753 = vunpack.c.l.b16 %v841
      %v1754 = vunpack.c.h.b16 %v841
      %v1755 = vunpack.c.l.b16 %v842
      %v1756 = vunpack.c.h.b16 %v842
      %v1757 = vunpack.c.l.b16 %v843
      %v1758 = vunpack.c.h.b16 %v843
      %v1759 = vunpack.c.l.b16 %v844
      %v1760 = vunpack.c.h.b16 %v844
      %v1761 = vunpack.c.l.b16 %v845
      %v1762 = vunpack.c.h.b16 %v845
      %v1763 = vunpack.c.l.b16 %v846
      %v1764 = vunpack.c.h.b16 %v846
      %v1765 = vunpack.c.l.b16 %v847
      %v1766 = vunpack.c.h.b16 %v847
      %v1767 = vunpack.c.l.b16 %v848
      %v1768 = vunpack.c.h.b16 %v848
      %v1769 = vunpack.c.l.b16 %v849
      %v1770 = vunpack.c.h.b16 %v849
      %v1771 = vunpack.c.l.b16 %v850
      %v1772 = vunpack.c.h.b16 %v850
      %v1773 = vunpack.c.l.b16 %v851
      %v1774 = vunpack.c.h.b16 %v851
      %v1775 = vunpack.c.l.b16 %v852
      %v1776 = vunpack.c.h.b16 %v852
      %v1777 = vunpack.c.l.b16 %v853
      %v1778 = vunpack.c.h.b16 %v853
      %v1779 = vunpack.c.l.b16 %v854
      %v1780 = vunpack.c.h.b16 %v854
      %v1781 = vunpack.c.l.b16 %v855
      %v1782 = vunpack.c.h.b16 %v855
      %v1783 = vunpack.c.l.b16 %v856
      %v1784 = vunpack.c.h.b16 %v856
      %v1785 = vunpack.c.l.b16 %v857
      %v1786 = vunpack.c.h.b16 %v857
      %v1787 = vunpack.c.l.b16 %v858
      %v1788 = vunpack.c.h.b16 %v858
      %v1789 = vunpack.c.l.b16 %v859
      %v1790 = vunpack.c.h.b16 %v859
      %v1791 = vunpack.c.l.b16 %v860
      %v1792 = vunpack.c.h.b16 %v860
      %v1793 = vunpack.c.l.b16 %v861
      %v1794 = vunpack.c.h.b16 %v861
      %v1795 = vunpack.c.l.b16 %v862
      %v1796 = vunpack.c.h.b16 %v862
      %v1797 = vunpack.c.l.b16 %v863
      %v1798 = vunpack.c.h.b16 %v863
      %v1799 = vunpack.c.l.b16 %v864
      %v1800 = vunpack.c.h.b16 %v864
      %v1801 = vunpack.c.l.b16 %v865
      %v1802 = vunpack.c.h.b16 %v865
      %v1803 = vunpack.c.l.b16 %v866
      %v1804 = vunpack.c.h.b16 %v866
      %v1805 = vunpack.c.l.b16 %v867
      %v1806 = vunpack.c.h.b16 %v867
      %v1807 = vunpack.c.l.b16 %v868
      %v1808 = vunpack.c.h.b16 %v868
      %v1809 = vunpack.c.l.b16 %v869
      %v1810 = vunpack.c.h.b16 %v869
      %v1811 = vunpack.c.l.b16 %v870
      %v1812 = vunpack.c.h.b16 %v870
      %v1813 = vunpack.c.l.b16 %v871
      %v1814 = vunpack.c.h.b16 %v871
      %v1815 = vunpack.c.l.b16 %v872
      %v1816 = vunpack.c.h.b16 %v872
      %v1817 = vunpack.c.l.b16 %v873
      %v1818 = vunpack.c.h.b16 %v873
      %v1819 = vunpack.c.l.b16 %v874
      %v1820 = vunpack.c.h.b16 %v874
      %v1821 = vunpack.c.l.b16 %v875
      %v1822 = vunpack.c.h.b16 %v875
      %v1823 = vunpack.c.l.b16 %v876
      %v1824 = vunpack.c.h.b16 %v876
      %v1825 = vunpack.c.l.b16 %v877
      %v1826 = vunpack.c.h.b16 %v877
      %v1827 = vunpack.c.l.b16 %v878
      %v1828 = vunpack.c.h.b16 %v878
      %v1829 = vunpack.c.l.b16 %v879
      %v1830 = vunpack.c.h.b16 %v879
      %v1831 = vunpack.c.l.b16 %v880
      %v1832 = vunpack.c.h.b16 %v880
      %v1833 = vunpack.c.l.b16 %v881
      %v1834 = vunpack.c.h.b16 %v881
      %v1835 = vunpack.c.l.b16 %v882
      %v1836 = vunpack.c.h.b16 %v882
      %v1837 = vunpack.c.l.b16 %v883
      %v1838 = vunpack.c.h.b16 %v883
      %v1839 = vunpack.c.l.b16 %v884
      %v1840 = vunpack.c.h.b16 %v884
      %v1841 = vunpack.c.l.b16 %v885
      %v1842 = vunpack.c.h.b16 %v885
      %v1843 = vunpack.c.l.b16 %v886
      %v1844 = vunpack.c.h.b16 %v886
      %v1845 = vunpack.c.l.b16 %v887
      %v1846 = vunpack.c.h.b16 %v887
      %v1847 = vunpack.c.l.b16 %v888
      %v1848 = vunpack.c.h.b16 %v888
      %v1849 = vunpack.c.l.b16 %v889
      %v1850 = vunpack.c.h.b16 %v889
      %v1851 = vunpack.c.l.b16 %v890
      %v1852 = vunpack.c.h.b16 %v890
      %v1853 = vunpack.c.l.b16 %v891
      %v1854 = vunpack.c.h.b16 %v891
      %v1855 = vunpack.c.l.b16 %v892
      %v1856 = vunpack.c.h.b16 %v892
      %v1857 = vunpack.c.l.b16 %v893
      %v1858 = vunpack.c.h.b16 %v893
      %v1859 = vunpack.c.l.b16 %v894
      %v1860 = vunpack.c.h.b16 %v894
      %v1861 = vunpack.c.l.b16 %v895
      %v1862 = vunpack.c.h.b16 %v895
      %v1863 = vunpack.c.l.b16 %v896
      %v1864 = vunpack.c.h.b16 %v896
      %v1865 = vunpack.c.l.b16 %v897
      %v1866 = vunpack.c.h.b16 %v897
      %v1867 = vunpack.c.l.b16 %v898
      %v1868 = vunpack.c.h.b16 %v898
      %v1869 = vunpack.c.l.b16 %v899
      %v1870 = vunpack.c.h.b16 %v899
      %v1871 = vunpack.c.l.b16 %v900
      %v1872 = vunpack.c.h.b16 %v900
      %v1873 = vunpack.c.l.b16 %v901
      %v1874 = vunpack.c.h.b16 %v901
      %v1875 = vunpack.c.l.b16 %v902
      %v1876 = vunpack.c.h.b16 %v902
      %v1877 = vunpack.c.l.b16 %v903
      %v1878 = vunpack.c.h.b16 %v903
      %v1879 = vunpack.c.l.b16 %v904
      %v1880 = vunpack.c.h.b16 %v904
      %v1881 = vunpack.c.l.b16 %v905
      %v1882 = vunpack.c.h.b16 %v905
      %v1883 = vunpack.c.l.b16 %v906
      %v1884 = vunpack.c.h.b16 %v906
      %v1885 = vunpack.c.l.b16 %v907
      %v1886 = vunpack.c.h.b16 %v907
      %v1887 = vunpack.c.l.b16 %v908
      %v1888 = vunpack.c.h.b16 %v908
      %v1889 = vunpack.c.l.b16 %v909
      %v1890 = vunpack.c.h.b16 %v909
      %v1891 = vunpack.c.l.b16 %v910
      %v1892 = vunpack.c.h.b16 %v910
      %v1893 = vunpack.c.l.b16 %v911
      %v1894 = vunpack.c.h.b16 %v911
      %v1895 = vunpack.c.l.b16 %v912
      %v1896 = vunpack.c.h.b16 %v912
      %v1897 = vunpack.c.l.b16 %v913
      %v1898 = vunpack.c.h.b16 %v913
      %v1899 = vunpack.c.l.b16 %v914
      %v1900 = vunpack.c.h.b16 %v914
      %v1901 = vunpack.c.l.b16 %v915
      %v1902 = vunpack.c.h.b16 %v915
      %v1903 = vunpack.c.l.b16 %v916
      %v1904 = vunpack.c.h.b16 %v916
      %v1905 = vunpack.c.l.b16 %v917
      %v1906 = vunpack.c.h.b16 %v917
      %v1907 = vunpack.c.l.b16 %v918
      %v1908 = vunpack.c.h.b16 %v918
      %v1909 = vunpack.c.l.b16 %v919
      %v1910 = vunpack.c.h.b16 %v919
      %v1911 = vunpack.c.l.b16 %v920
      %v1912 = vunpack.c.h.b16 %v920
      %v1913 = vunpack.c.l.b16 %v921
      %v1914 = vunpack.c.h.b16 %v921
      %v1915 = vunpack.c.l.b16 %v922
      %v1916 = vunpack.c.h.b16 %v922
      %v1917 = vunpack.c.l.b16 %v923
      %v1918 = vunpack.c.h.b16 %v923
      %v1919 = vunpack.c.l.b16 %v924
      %v1920 = vunpack.c.h.b16 %v924
      %v1921 = vunpack.c.l.b16 %v925
      %v1922 = vunpack.c.h.b16 %v925
      %v1923 = vunpack.c.l.b16 %v926
      %v1924 = vunpack.c.h.b16 %v926
      %v1925 = vunpack.c.l.b16 %v927
      %v1926 = vunpack.c.h.b16 %v927
      %v1927 = vunpack.c.l.b16 %v928
      %v1928 = vunpack.c.h.b16 %v928
      %v1929 = vunpack.c.l.b16 %v929
      %v1930 = vunpack.c.h.b16 %v929
      %v1931 = vunpack.c.l.b16 %v930
      %v1932 = vunpack.c.h.b16 %v930
      %v1933 = vunpack.c.l.b16 %v931
      %v1934 = vunpack.c.h.b16 %v931
      %v1935 = vunpack.c.l.b16 %v932
      %v1936 = vunpack.c.h.b16 %v932
      %v1937 = vunpack.c.l.b16 %v933
      %v1938 = vunpack.c.h.b16 %v933
      %v1939 = vunpack.c.l.b16 %v934
      %v1940 = vunpack.c.h.b16 %v934
      %v1941 = vunpack.c.l.b16 %v935
      %v1942 = vunpack.c.h.b16 %v935
      %v1943 = vunpack.c.l.b16 %v936
      %v1944 = vunpack.c.h.b16 %v936
      %v1945 = vunpack.c.l.b16 %v937
      %v1946 = vunpack.c.h.b16 %v937
      %v1947 = vunpack.c.l.b16 %v938
      %v1948 = vunpack.c.h.b16 %v938
      %v1949 = vunpack.c.l.b16 %v939
      %v1950 = vunpack.c.h.b16 %v939
      %v1951 = vunpack.c.l.b16 %v940
      %v1952 = vunpack.c.h.b16 %v940
      %v1953 = vunpack.c.l.b16 %v941
      %v1954 = vunpack.c.h.b16 %v941
      %v1955 = vunpack.c.l.b16 %v942
      %v1956 = vunpack.c.h.b16 %v942
      %v1957 = vunpack.c.l.b16 %v943
      %v1958 = vunpack.c.h.b16 %v943
      %v1959 = vunpack.c.l.b16 %v944
      %v1960 = vunpack.c.h.b16 %v944
      %v1961 = vunpack.c.l.b16 %v945
      %v1962 = vunpack.c.h.b16 %v945
      %v1963 = vunpack.c.l.b16 %v946
      %v1964 = vunpack.c.h.b16 %v946
      %v1965 = vunpack.c.l.b16 %v947
      %v1966 = vunpack.c.h.b16 %v947
      %v1967 = vunpack.c.l.b16 %v948
      %v1968 = vunpack.c.h.b16 %v948
      %v1969 = vunpack.c.l.b16 %v949
      %v1970 = vunpack.c.h.b16 %v949
      %v1971 = vunpack.c.l.b16 %v950
      %v1972 = vunpack.c.h.b16 %v950
      %v1973 = vunpack.c.l.b16 %v951
      %v1974 = vunpack.c.h.b16 %v951
      %v1975 = vunpack.c.l.b16 %v952
      %v1976 = vunpack.c.h.b16 %v952
      %v1977 = vunpack.c.l.b16 %v953
      %v1978 = vunpack.c.h.b16 %v953
      %v1979 = vunpack.c.l.b16 %v954
      %v1980 = vunpack.c.h.b16 %v954
      %v1981 = vunpack.c.l.b16 %v955
      %v1982 = vunpack.c.h.b16 %v955
      %v1983 = vunpack.c.l.b16 %v956
      %v1984 = vunpack.c.h.b16 %v956
      %v1985 = vunpack.c.l.b16 %v957
      %v1986 = vunpack.c.h.b16 %v957
      %v1987 = vunpack.c.l.b16 %v958
      %v1988 = vunpack.c.h.b16 %v958
      %v1989 = vunpack.c.l.b16 %v959
      %v1990 = vunpack.c.h.b16 %v959
      %v1991 = vunpack.c.l.b16 %v960
      %v1992 = vunpack.c.h.b16 %v960
      %v1993 = vunpack.c.l.b16 %v961
      %v1994 = vunpack.c.h.b16 %v961
      %v1995 = vunpack.c.l.b16 %v962
      %v1996 = vunpack.c.h.b16 %v962
      %v1997 = vunpack.c.l.b16 %v963
      %v1998 = vunpack.c.h.b16 %v963
      %v1999 = vunpack.c.l.b16 %v964
      %v2000 = vunpack.c.h.b16 %v964
      %v2001 = vunpack.c.l.b16 %v965
      %v2002 = vunpack.c.h.b16 %v965
      %v2003 = vunpack.c.l.b16 %v966
      %v2004 = vunpack.c.h.b16 %v966
      %v2005 = vunpack.c.l.b16 %v967
      %v2006 = vunpack.c.h.b16 %v967
      %v2007 = vunpack.c.l.b16 %v968
      %v2008 = vunpack.c.h.b16 %v968
      %v2009 = vunpack.c.l.b16 %v969
      %v2010 = vunpack.c.h.b16 %v969
      %v2011 = vunpack.c.l.b16 %v970
      %v2012 = vunpack.c.h.b16 %v970
      %v2013 = vunpack.c.l.b16 %v971
      %v2014 = vunpack.c.h.b16 %v971
      %v2015 = vunpack.c.l.b16 %v972
      %v2016 = vunpack.c.h.b16 %v972
      %v2017 = vunpack.c.l.b16 %v973
      %v2018 = vunpack.c.h.b16 %v973
      %v2019 = vunpack.c.l.b16 %v974
      %v2020 = vunpack.c.h.b16 %v974
      %v2021 = vunpack.c.l.b16 %v975
      %v2022 = vunpack.c.h.b16 %v975
      %v2023 = vunpack.c.l.b16 %v976
      %v2024 = vunpack.c.h.b16 %v976
      %v2025 = vunpack.c.l.b16 %v977
      %v2026 = vunpack.c.h.b16 %v977
      %v2027 = vunpack.c.l.b16 %v978
      %v2028 = vunpack.c.h.b16 %v978
      %v2029 = vunpack.c.l.b16 %v979
      %v2030 = vunpack.c.h.b16 %v979
      %v2031 = vunpack.c.l.b16 %v980
      %v2032 = vunpack.c.h.b16 %v980
      %v2033 = vunpack.c.l.b16 %v981
      %v2034 = vunpack.c.h.b16 %v981
      %v2035 = vunpack.c.l.b16 %v982
      %v2036 = vunpack.c.h.b16 %v982
      %v2037 = vunpack.c.l.b16 %v983
      %v2038 = vunpack.c.h.b16 %v983
      %v2039 = vunpack.c.l.b16 %v984
      %v2040 = vunpack.c.h.b16 %v984
      %v2041 = vunpack.c.l.b16 %v985
      %v2042 = vunpack.c.h.b16 %v985
      %v2043 = vunpack.c.l.b16 %v986
      %v2044 = vunpack.c.h.b16 %v986
      %v2045 = vunpack.c.l.b16 %v987
      %v2046 = vunpack.c.h.b16 %v987
      %v2047 = vunpack.c.l.b16 %v988
      %v2048 = vunpack.c.h.b16 %v988
      %v2049 = vunpack.c.l.b16 %v989
      %v2050 = vunpack.c.h.b16 %v989
      %v2051 = vunpack.c.l.b16 %v990
      %v2052 = vunpack.c.h.b16 %v990
      %v2053 = vunpack.c.l.b16 %v991
      %v2054 = vunpack.c.h.b16 %v991
      %v2055 = vunpack.c.l.b16 %v992
      %v2056 = vunpack.c.h.b16 %v992
      %v2057 = vunpack.c.l.b16 %v993
      %v2058 = vunpack.c.h.b16 %v993
      %v2059 = vunpack.c.l.b16 %v994
      %v2060 = vunpack.c.h.b16 %v994
      %v2061 = vunpack.c.l.b16 %v995
      %v2062 = vunpack.c.h.b16 %v995
      %v2063 = vunpack.c.l.b16 %v996
      %v2064 = vunpack.c.h.b16 %v996
      %v2065 = vunpack.c.l.b16 %v997
      %v2066 = vunpack.c.h.b16 %v997
      %v2067 = vunpack.c.l.b16 %v998
      %v2068 = vunpack.c.h.b16 %v998
      %v2069 = vunpack.c.l.b16 %v999
      %v2070 = vunpack.c.h.b16 %v999
      %v2071 = vunpack.c.l.b16 %v1000
      %v2072 = vunpack.c.h.b16 %v1000
      %v2073 = vunpack.c.l.b16 %v1001
      %v2074 = vunpack.c.h.b16 %v1001
      %v2075 = vunpack.c.l.b16 %v1002
      %v2076 = vunpack.c.h.b16 %v1002
      %v2077 = vunpack.c.l.b16 %v1003
      %v2078 = vunpack.c.h.b16 %v1003
      %v2079 = vunpack.c.l.b16 %v1004
      %v2080 = vunpack.c.h.b16 %v1004
      %v2081 = vunpack.c.l.b16 %v1005
      %v2082 = vunpack.c.h.b16 %v1005
      %v2083 = vunpack.c.l.b16 %v1006
      %v2084 = vunpack.c.h.b16 %v1006
      %v2085 = vunpack.c.l.b16 %v1007
      %v2086 = vunpack.c.h.b16 %v1007
      %v2087 = vunpack.c.l.b16 %v1008
      %v2088 = vunpack.c.h.b16 %v1008
      %v2089 = vunpack.c.l.b16 %v1009
      %v2090 = vunpack.c.h.b16 %v1009
      %v2091 = vunpack.c.l.b16 %v1010
      %v2092 = vunpack.c.h.b16 %v1010
      %v2093 = vunpack.c.l.b16 %v1011
      %v2094 = vunpack.c.h.b16 %v1011
      %v2095 = vunpack.c.l.b16 %v1012
      %v2096 = vunpack.c.h.b16 %v1012
      %v2097 = vunpack.c.l.b16 %v1013
      %v2098 = vunpack.c.h.b16 %v1013
      %v2099 = vunpack.c.l.b16 %v1014
      %v2100 = vunpack.c.h.b16 %v1014
      %v2101 = vunpack.c.l.b16 %v1015
      %v2102 = vunpack.c.h.b16 %v1015
      %v2103 = vunpack.c.l.b16 %v1016
      %v2104 = vunpack.c.h.b16 %v1016
      %v2105 = vunpack.c.l.b16 %v1017
      %v2106 = vunpack.c.h.b16 %v1017
      %v2107 = vunpack.c.l.b16 %v1018
      %v2108 = vunpack.c.h.b16 %v1018
      %v2109 = vunpack.c.l.b16 %v1019
      %v2110 = vunpack.c.h.b16 %v1019
      %v2111 = vunpack.c.l.b16 %v1020
      %v2112 = vunpack.c.h.b16 %v1020
      %v2113 = vunpack.c.l.b16 %v1021
      %v2114 = vunpack.c.h.b16 %v1021
      %v2115 = vunpack.c.l.b16 %v1022
      %v2116 = vunpack.c.h.b16 %v1022
      %v2117 = vunpack.c.l.b16 %v1023
      %v2118 = vunpack.c.h.b16 %v1023
      %v2119 = vunpack.c.l.b16 %v1024
      %v2120 = vunpack.c.h.b16 %v1024
      %v2121 = vunpack.c.l.b16 %v1025
      %v2122 = vunpack.c.h.b16 %v1025
      %v2123 = vunpack.c.l.b16 %v1026
      %v2124 = vunpack.c.h.b16 %v1026
      %v2125 = vunpack.c.l.b16 %v1027
      %v2126 = vunpack.c.h.b16 %v1027
      %v2127 = vunpack.c.l.b16 %v1028
      %v2128 = vunpack.c.h.b16 %v1028
      %v2129 = vunpack.c.l.b16 %v1029
      %v2130 = vunpack.c.h.b16 %v1029
      %v2131 = vunpack.c.l.b16 %v1030
      %v2132 = vunpack.c.h.b16 %v1030
      %v2133 = vunpack.c.l.b16 %v1031
      %v2134 = vunpack.c.h.b16 %v1031
      %v2135 = vunpack.c.l.b16 %v1032
      %v2136 = vunpack.c.h.b16 %v1032
      %v2137 = vunpack.c.l.b16 %v1033
      %v2138 = vunpack.c.h.b16 %v1033
      %v2139 = vunpack.c.l.b16 %v1034
      %v2140 = vunpack.c.h.b16 %v1034
      %v2141 = vunpack.c.l.b16 %v1035
      %v2142 = vunpack.c.h.b16 %v1035
      %v2143 = vpack.c.b16 %v1569, %v1567
      %v2144 = vpack.c.b16 %v1570, %v1568
      %v2145 = vpack.c.b16 %v1573, %v1571
      %v2146 = vpack.c.b16 %v1574, %v1572
      %v2147 = vpack.c.b16 %v1577, %v1575
      %v2148 = vpack.c.b16 %v1578, %v1576
      %v2149 = vpack.c.b16 %v1581, %v1579
      %v2150 = vpack.c.b16 %v1582, %v1580
      %v2151 = vpack.c.b16 %v1585, %v1583
      %v2152 = vpack.c.b16 %v1586, %v1584
      %v2153 = vpack.c.b16 %v1589, %v1587
      %v2154 = vpack.c.b16 %v1590, %v1588
      %v2155 = vpack.c.b16 %v1593, %v1591
      %v2156 = vpack.c.b16 %v1594, %v1592
      %v2157 = vpack.c.b16 %v1597, %v1595
      %v2158 = vpack.c.b16 %v1598, %v1596
      %v2159 = vpack.c.b16 %v1601, %v1599
      %v2160 = vpack.c.b16 %v1602, %v1600
      %v2161 = vpack.c.b16 %v1605, %v1603
      %v2162 = vpack.c.b16 %v1606, %v1604
      %v2163 = vpack.c.b16 %v1609, %v1607
      %v2164 = vpack.c.b16 %v1610, %v1608
      %v2165 = vpack.c.b16 %v1613, %v1611
      %v2166 = vpack.c.b16 %v1614, %v1612
      %v2167 = vpack.c.b16 %v1617, %v1615
      %v2168 = vpack.c.b16 %v1618, %v1616
      %v2169 = vpack.c.b16 %v1621, %v1619
      %v2170 = vpack.c.b16 %v1622, %v1620
      %v2171 = vpack.c.b16 %v1625, %v1623
      %v2172 = vpack.c.b16 %v1626, %v1624
      %v2173 = vpack.c.b16 %v1629, %v1627
      %v2174 = vpack.c.b16 %v1630, %v1628
      %v2175 = vpack.c.b16 %v1633, %v1631
      %v2176 = vpack.c.b16 %v1634, %v1632
      %v2177 = vpack.c.b16 %v1637, %v1635
      %v2178 = vpack.c.b16 %v1638, %v1636
      %v2179 = vpack.c.b16 %v1641, %v1639
      %v2180 = vpack.c.b16 %v1642, %v1640
      %v2181 = vpack.c.b16 %v1645, %v1643
      %v2182 = vpack.c.b16 %v1646, %v1644
      %v2183 = vpack.c.b16 %v1649, %v1647
      %v2184 = vpack.c.b16 %v1650, %v1648
      %v2185 = vpack.c.b16 %v1653, %v1651
      %v2186 = vpack.c.b16 %v1654, %v1652
      %v2187 = vpack.c.b16 %v1657, %v1655
      %v2188 = vpack.c.b16 %v1658, %v1656
      %v2189 = vpack.c.b16 %v1661, %v1659
      %v2190 = vpack.c.b16 %v1662, %v1660
      %v2191 = vpack.c.b16 %v1665, %v1663
      %v2192 = vpack.c.b16 %v1666, %v1664
      %v2193 = vpack.c.b16 %v1669, %v1667
      %v2194 = vpack.c.b16 %v1670, %v1668
      %v2195 = vpack.c.b16 %v1673, %v1671
      %v2196 = vpack.c.b16 %v1674, %v1672
      %v2197 = vpack.c.b16 %v1677, %v1675
      %v2198 = vpack.c.b16 %v1678, %v1676
      %v2199 = vpack.c.b16 %v1681, %v1679
      %v2200 = vpack.c.b16 %v1682, %v1680
      %v2201 = vpack.c.b16 %v1685, %v1683
      %v2202 = vpack.c.b16 %v1686, %v1684
      %v2203 = vpack.c.b16 %v1689, %v1687
      %v2204 = vpack.c.b16 %v1690, %v1688
      %v2205 = vpack.c.b16 %v1693, %v1691
      %v2206 = vpack.c.b16 %v1694, %v1692
      %v2207 = vpack.c.b16 %v1697, %v1695
      %v2208 = vpack.c.b16 %v1698, %v1696
      %v2209 = vpack.c.b16 %v1701, %v1699
      %v2210 = vpack.c.b16 %v1702, %v1700
      %v2211 = vpack.c.b16 %v1705, %v1703
      %v2212 = vpack.c.b16 %v1706, %v1704
      %v2213 = vpack.c.b16 %v1709, %v1707
      %v2214 = vpack.c.b16 %v1710, %v1708
      %v2215 = vpack.c.b16 %v1713, %v1711
      %v2216 = vpack.c.b16 %v1714, %v1712
      %v2217 = vpack.c.b16 %v1717, %v1715
      %v2218 = vpack.c.b16 %v1718, %v1716
      %v2219 = vpack.c.b16 %v1721, %v1719
      %v2220 = vpack.c.b16 %v1722, %v1720
      %v2221 = vpack.c.b16 %v1725, %v1723
      %v2222 = vpack.c.b16 %v1726, %v1724
      %v2223 = vpack.c.b16 %v1729, %v1727
      %v2224 = vpack.c.b16 %v1730, %v1728
      %v2225 = vpack.c.b16 %v1733, %v1731
      %v2226 = vpack.c.b16 %v1734, %v1732
      %v2227 = vpack.c.b16 %v1737, %v1735
      %v2228 = vpack.c.b16 %v1738, %v1736
      %v2229 = vpack.c.b16 %v1741, %v1739
      %v2230 = vpack.c.b16 %v1742, %v1740
      %v2231 = vpack.c.b16 %v1745, %v1743
      %v2232 = vpack.c.b16 %v1746, %v1744
      %v2233 = vpack.c.b16 %v1749, %v1747
      %v2234 = vpack.c.b16 %v1750, %v1748
      %v2235 = vpack.c.b16 %v1753, %v1751
      %v2236 = vpack.c.b16 %v1754, %v1752
      %v2237 = vpack.c.b16 %v1757, %v1755
      %v2238 = vpack.c.b16 %v1758, %v1756
      %v2239 = vpack.c.b16 %v1761, %v1759
      %v2240 = vpack.c.b16 %v1762, %v1760
      %v2241 = vpack.c.b16 %v1765, %v1763
      %v2242 = vpack.c.b16 %v1766, %v1764
      %v2243 = vpack.c.b16 %v1769, %v1767
      %v2244 = vpack.c.b16 %v1770, %v1768
      %v2245 = vpack.c.b16 %v1773, %v1771
      %v2246 = vpack.c.b16 %v1774, %v1772
      %v2247 = vpack.c.b16 %v1777, %v1775
      %v2248 = vpack.c.b16 %v1778, %v1776
      %v2249 = vpack.c.b16 %v1781, %v1779
      %v2250 = vpack.c.b16 %v1782, %v1780
      %v2251 = vpack.c.b16 %v1785, %v1783
      %v2252 = vpack.c.b16 %v1786, %v1784
      %v2253 = vpack.c.b16 %v1789, %v1787
      %v2254 = vpack.c.b16 %v1790, %v1788
      %v2255 = vpack.c.b16 %v1793, %v1791
      %v2256 = vpack.c.b16 %v1794, %v1792
      %v2257 = vpack.c.b16 %v1797, %v1795
      %v2258 = vpack.c.b16 %v1798, %v1796
      %v2259 = vpack.c.b16 %v1801, %v1799
      %v2260 = vpack.c.b16 %v1802, %v1800
      %v2261 = vpack.c.b16 %v1805, %v1803
      %v2262 = vpack.c.b16 %v1806, %v1804
      %v2263 = vpack.c.b16 %v1809, %v1807
      %v2264 = vpack.c.b16 %v1810, %v1808
      %v2265 = vpack.c.b16 %v1813, %v1811
      %v2266 = vpack.c.b16 %v1814, %v1812
      %v2267 = vpack.c.b16 %v1817, %v1815
      %v2268 = vpack.c.b16 %v1818, %v1816
      %v2269 = vpack.c.b16 %v1821, %v1819
      %v2270 = vpack.c.b16 %v1822, %v1820
      %v2271 = vpack.c.b16 %v1825, %v1823
      %v2272 = vpack.c.b16 %v1826, %v1824
      %v2273 = vpack.c.b16 %v1829, %v1827
      %v2274 = vpack.c.b16 %v1830, %v1828
      %v2275 = vpack.c.b16 %v1833, %v1831
      %v2276 = vpack.c.b16 %v1834, %v1832
      %v2277 = vpack.c.b16 %v1837, %v1835
      %v2278 = vpack.c.b16 %v1838, %v1836
      %v2279 = vpack.c.b16 %v1841, %v1839
      %v2280 = vpack.c.b16 %v1842, %v1840
      %v2281 = vpack.c.b16 %v1845, %v1843
      %v2282 = vpack.c.b16 %v1846, %v1844
      %v2283 = vpack.c.b16 %v1849, %v1847
      %v2284 = vpack.c.b16 %v1850, %v1848
      %v2285 = vpack.c.b16 %v1853, %v1851
      %v2286 = vpack.c.b16 %v1854, %v1852
      %v2287 = vpack.c.b16 %v1857, %v1855
      %v2288 = vpack.c.b16 %v1858, %v1856
      %v2289 = vpack.c.b16 %v1861, %v1859
      %v2290 = vpack.c.b16 %v1862, %v1860
      %v2291 = vpack.c.b16 %v1865, %v1863
      %v2292 = vpack.c.b16 %v1866, %v1864
      %v2293 = vpack.c.b16 %v1869, %v1867
      %v2294 = vpack.c.b16 %v1870, %v1868
      %v2295 = vpack.c.b16 %v1873, %v1871
      %v2296 = vpack.c.b16 %v1874, %v1872
      %v2297 = vpack.c.b16 %v1877, %v1875
      %v2298 = vpack.c.b16 %v1878, %v1876
      %v2299 = vpack.c.b16 %v1881, %v1879
      %v2300 = vpack.c.b16 %v1882, %v1880
      %v2301 = vpack.c.b16 %v1885, %v1883
      %v2302 = vpack.c.b16 %v1886, %v1884
      %v2303 = vpack.c.b16 %v1889, %v1887
      %v2304 = vpack.c.b16 %v1890, %v1888
      %v2305 = vpack.c.b16 %v1893, %v1891
      %v2306 = vpack.c.b16 %v1894, %v1892
      %v2307 = vpack.c.b16 %v1897, %v1895
      %v2308 = vpack.c.b16 %v1898, %v1896
      %v2309 = vpack.c.b16 %v1901, %v1899
      %v2310 = vpack.c.b16 %v1902, %v1900
      %v2311 = vpack.c.b16 %v1905, %v1903
      %v2312 = vpack.c.b16 %v1906, %v1904
      %v2313 = vpack.c.b16 %v1909, %v1907
      %v2314 = vpack.c.b16 %v1910, %v1908
      %v2315 = vpack.c.b16 %v1913, %v1911
      %v2316 = vpack.c.b16 %v1914, %v1912
      %v2317 = vpack.c.b16 %v1917, %v1915
      %v2318 = vpack.c.b16 %v1918, %v1916
      %v2319 = vpack.c.b16 %v1921, %v1919
      %v2320 = vpack.c.b16 %v1922, %v1920
      %v2321 = vpack.c.b16 %v1925, %v1923
      %v2322 = vpack.c.b16 %v1926, %v1924
      %v2323 = vpack.c.b16 %v1929, %v1927
      %v2324 = vpack.c.b16 %v1930, %v1928
      %v2325 = vpack.c.b16 %v1933, %v1931
      %v2326 = vpack.c.b16 %v1934, %v1932
      %v2327 = vpack.c.b16 %v1937, %v1935
      %v2328 = vpack.c.b16 %v1938, %v1936
      %v2329 = vpack.c.b16 %v1941, %v1939
      %v2330 = vpack.c.b16 %v1942, %v1940
      %v2331 = vpack.c.b16 %v1945, %v1943
      %v2332 = vpack.c.b16 %v1946, %v1944
      %v2333 = vpack.c.b16 %v1949, %v1947
      %v2334 = vpack.c.b16 %v1950, %v1948
      %v2335 = vpack.c.b16 %v1953, %v1951
      %v2336 = vpack.c.b16 %v1954, %v1952
      %v2337 = vpack.c.b16 %v1957, %v1955
      %v2338 = vpack.c.b16 %v1958, %v1956
      %v2339 = vpack.c.b16 %v1961, %v1959
      %v2340 = vpack.c.b16 %v1962, %v1960
      %v2341 = vpack.c.b16 %v1965, %v1963
      %v2342 = vpack.c.b16 %v1966, %v1964
      %v2343 = vpack.c.b16 %v1969, %v1967
      %v2344 = vpack.c.b16 %v1970, %v1968
      %v2345 = vpack.c.b16 %v1973, %v1971
      %v2346 = vpack.c.b16 %v1974, %v1972
      %v2347 = vpack.c.b16 %v1977, %v1975
      %v2348 = vpack.c.b16 %v1978, %v1976
      %v2349 = vpack.c.b16 %v1981, %v1979
      %v2350 = vpack.c.b16 %v1982, %v1980
      %v2351 = vpack.c.b16 %v1985, %v1983
      %v2352 = vpack.c.b16 %v1986, %v1984
      %v2353 = vpack.c.b16 %v1989, %v1987
      %v2354 = vpack.c.b16 %v1990, %v1988
      %v2355 = vpack.c.b16 %v1993, %v1991
      %v2356 = vpack.c.b16 %v1994, %v1992
      %v2357 = vpack.c.b16 %v1997, %v1995
      %v2358 = vpack.c.b16 %v1998, %v1996
      %v2359 = vpack.c.b16 %v2001, %v1999
      %v2360 = vpack.c.b16 %v2002, %v2000
      %v2361 = vpack.c.b16 %v2005, %v2003
      %v2362 = vpack.c.b16 %v2006, %v2004
      %v2363 = vpack.c.b16 %v2009, %v2007
      %v2364 = vpack.c.b16 %v2010, %v2008
      %v2365 = vpack.c.b16 %v2013, %v2011
      %v2366 = vpack.c.b16 %v2014, %v2012
      %v2367 = vpack.c.b16 %v2017, %v2015
      %v2368 = vpack.c.b16 %v2018, %v2016
      %v2369 = vpack.c.b16 %v2021, %v2019
      %v2370 = vpack.c.b16 %v2022, %v2020
      %v2371 = vpack.c.b16 %v2025, %v2023
      %v2372 = vpack.c.b16 %v2026, %v2024
      %v2373 = vpack.c.b16 %v2029, %v2027
      %v2374 = vpack.c.b16 %v2030, %v2028
      %v2375 = vpack.c.b16 %v2033, %v2031
      %v2376 = vpack.c.b16 %v2034, %v2032
      %v2377 = vpack.c.b16 %v2037, %v2035
      %v2378 = vpack.c.b16 %v2038, %v2036
      %v2379 = vpack.c.b16 %v2041, %v2039
      %v2380 = vpack.c.b16 %v2042, %v2040
      %v2381 = vpack.c.b16 %v2045, %v2043
      %v2382 = vpack.c.b16 %v2046, %v2044
      %v2383 = vpack.c.b16 %v2049, %v2047
      %v2384 = vpack.c.b16 %v2050, %v2048
      %v2385 = vpack.c.b16 %v2053, %v2051
      %v2386 = vpack.c.b16 %v2054, %v2052
      %v2387 = vpack.c.b16 %v2057, %v2055
      %v2388 = vpack.c.b16 %v2058, %v2056
      %v2389 = vpack.c.b16 %v2061, %v2059
      %v2390 = vpack.c.b16 %v2062, %v2060
      %v2391 = vpack.c.b16 %v2065, %v2063
      %v2392 = vpack.c.b16 %v2066, %v2064
      %v2393 = vpack.c.b16 %v2069, %v2067
      %v2394 = vpack.c.b16 %v2070, %v2068
      %v2395 = vpack.c.b16 %v2073, %v2071
      %v2396 = vpack.c.b16 %v2074, %v2072
      %v2397 = vpack.c.b16 %v2077, %v2075
      %v2398 = vpack.c.b16 %v2078, %v2076
      %v2399 = vpack.c.b16 %v2081, %v2079
      %v2400 = vpack.c.b16 %v2082, %v2080
      %v2401 = vpack.c.b16 %v2085, %v2083
      %v2402 = vpack.c.b16 %v2086, %v2084
      %v2403 = vpack.c.b16 %v2089, %v2087
      %v2404 = vpack.c.b16 %v2090, %v2088
      %v2405 = vpack.c.b16 %v2093, %v2091
      %v2406 = vpack.c.b16 %v2094, %v2092
      %v2407 = vpack.c.b16 %v2097, %v2095
      %v2408 = vpack.c.b16 %v2098, %v2096
      %v2409 = vpack.c.b16 %v2101, %v2099
      %v2410 = vpack.c.b16 %v2102, %v2100
      %v2411 = vpack.c.b16 %v2105, %v2103
      %v2412 = vpack.c.b16 %v2106, %v2104
      %v2413 = vpack.c.b16 %v2109, %v2107
      %v2414 = vpack.c.b16 %v2110, %v2108
      %v2415 = vpack.c.b16 %v2113, %v2111
      %v2416 = vpack.c.b16 %v2114, %v2112
      %v2417 = vpack.c.b16 %v2117, %v2115
      %v2418 = vpack.c.b16 %v2118, %v2116
      %v2419 = vpack.c.b16 %v2121, %v2119
      %v2420 = vpack.c.b16 %v2122, %v2120
      %v2421 = vpack.c.b16 %v2125, %v2123
      %v2422 = vpack.c.b16 %v2126, %v2124
      %v2423 = vpack.c.b16 %v2129, %v2127
      %v2424 = vpack.c.b16 %v2130, %v2128
      %v2425 = vpack.c.b16 %v2133, %v2131
      %v2426 = vpack.c.b16 %v2134, %v2132
      %v2427 = vpack.c.b16 %v2137, %v2135
      %v2428 = vpack.c.b16 %v2138, %v2136
      %v2429 = vpack.c.b16 %v2141, %v2139
      %v2430 = vpack.c.b16 %v2142, %v2140
      %2719 = vmatprep.subr.bf16.mxu0 %v2144
      %2720 = vmatpush1.bf16.msra.mxu0 %v2143
      %2721 = vmatprep.subr.bf16.mxu0 %v2146
      %2722 = vmatpush1.bf16.msra.mxu0 %v2145
      %2723 = vmatprep.subr.bf16.mxu0 %v2148
      %2724 = vmatpush1.bf16.msra.mxu0 %v2147
      %2725 = vmatprep.subr.bf16.mxu0 %v2150
      %2726 = vmatpush1.bf16.msra.mxu0 %v2149
      %2727 = vmatprep.subr.bf16.mxu0 %v2152
      %2728 = vmatpush1.bf16.msra.mxu0 %v2151
      %2729 = vmatprep.subr.bf16.mxu0 %v2154
      %2730 = vmatpush1.bf16.msra.mxu0 %v2153
      %2731 = vmatprep.subr.bf16.mxu0 %v2156
      %2732 = vmatpush1.bf16.msra.mxu0 %v2155
      %2733 = vmatprep.subr.bf16.mxu0 %v2158
      %2734 = vmatpush1.bf16.msra.mxu0 %v2157
      %2735 = vmatprep.subr.bf16.mxu0 %v2160
      %2736 = vmatpush1.bf16.msra.mxu0 %v2159
      %2737 = vmatprep.subr.bf16.mxu0 %v2162
      %2738 = vmatpush1.bf16.msra.mxu0 %v2161
      %2739 = vmatprep.subr.bf16.mxu0 %v2164
      %2740 = vmatpush1.bf16.msra.mxu0 %v2163
      %2741 = vmatprep.subr.bf16.mxu0 %v2166
      %2742 = vmatpush1.bf16.msra.mxu0 %v2165
      %2743 = vmatprep.subr.bf16.mxu0 %v2168
      %2744 = vmatpush1.bf16.msra.mxu0 %v2167
      %2745 = vmatprep.subr.bf16.mxu0 %v2170
      %2746 = vmatpush1.bf16.msra.mxu0 %v2169
      %2747 = vmatprep.subr.bf16.mxu0 %v2172
      %2748 = vmatpush1.bf16.msra.mxu0 %v2171
      %2749 = vmatprep.subr.bf16.mxu0 %v2174
      %2750 = vmatpush1.bf16.msra.mxu0 %v2173
      %2751 = vmatprep.mubr.bf16.mxu0 %v1172
      %2752 = vmatmul.mubr.bf16.gmra.mrb[0].mxu0 %v1171
      %v2753 = vpop.f32.mrb[0].mxu0
      %v2754 = vadd.f32 0.0, %v2753
      %v2755 = vpop.f32.mrb[0].mxu0
      %v2756 = vadd.f32 0.0, %v2755
      %v2757 = vpop.f32.mrb[0].mxu0
      %v2758 = vadd.f32 0.0, %v2757
      %v2759 = vpop.f32.mrb[0].mxu0
      %v2760 = vadd.f32 0.0, %v2759
      %2761 = vmatprep.mubr.bf16.mxu0 %v1190
      %2762 = vmatmul.mubr.bf16.gmra.mrb[0].mxu0 %v1189
      %v2763 = vpop.f32.mrb[0].mxu0
      %v2764 = vadd.f32 0.0, %v2763
      %v2765 = vpop.f32.mrb[0].mxu0
      %v2766 = vadd.f32 0.0, %v2765
      %v2767 = vpop.f32.mrb[0].mxu0
      %v2768 = vadd.f32 0.0, %v2767
      %v2769 = vpop.f32.mrb[0].mxu0
      %v2770 = vadd.f32 0.0, %v2769
      %2771 = vmatprep.mubr.bf16.mxu0 %v1208
      %2772 = vmatmul.mubr.bf16.gmra.mrb[0].mxu0 %v1207
      %v2773 = vpop.f32.mrb[0].mxu0
      %v2774 = vadd.f32 0.0, %v2773
      %v2775 = vpop.f32.mrb[0].mxu0
      %v2776 = vadd.f32 0.0, %v2775
      %v2777 = vpop.f32.mrb[0].mxu0
      %v2778 = vpop.f32.mrb[0].mxu0
      %2779 = vdwg.mxu0
      %2780 = vmatprep.subr.bf16.mxu0 %v2176
      %2781 = vmatpush1.bf16.msra.mxu0 %v2175
      %2782 = vmatprep.subr.bf16.mxu0 %v2178
      %2783 = vmatpush1.bf16.msra.mxu0 %v2177
      %2784 = vmatprep.subr.bf16.mxu0 %v2180
      %2785 = vmatpush1.bf16.msra.mxu0 %v2179
      %2786 = vmatprep.subr.bf16.mxu0 %v2182
      %2787 = vmatpush1.bf16.msra.mxu0 %v2181
      %2788 = vmatprep.subr.bf16.mxu0 %v2184
      %2789 = vmatpush1.bf16.msra.mxu0 %v2183
      %2790 = vmatprep.subr.bf16.mxu0 %v2186
      %2791 = vmatpush1.bf16.msra.mxu0 %v2185
      %2792 = vmatprep.subr.bf16.mxu0 %v2188
      %2793 = vmatpush1.bf16.msra.mxu0 %v2187
      %2794 = vmatprep.subr.bf16.mxu0 %v2190
      %2795 = vmatpush1.bf16.msra.mxu0 %v2189
      %2796 = vmatprep.subr.bf16.mxu0 %v2192
      %2797 = vmatpush1.bf16.msra.mxu0 %v2191
      %2798 = vmatprep.subr.bf16.mxu0 %v2194
      %2799 = vmatpush1.bf16.msra.mxu0 %v2193
      %2800 = vmatprep.subr.bf16.mxu0 %v2196
      %2801 = vmatpush1.bf16.msra.mxu0 %v2195
      %2802 = vmatprep.subr.bf16.mxu0 %v2198
      %2803 = vmatpush1.bf16.msra.mxu0 %v2197
      %2804 = vmatprep.subr.bf16.mxu0 %v2200
      %2805 = vmatpush1.bf16.msra.mxu0 %v2199
      %2806 = vmatprep.subr.bf16.mxu0 %v2202
      %2807 = vmatpush1.bf16.msra.mxu0 %v2201
      %2808 = vmatprep.subr.bf16.mxu0 %v2204
      %2809 = vmatpush1.bf16.msra.mxu0 %v2203
      %2810 = vmatprep.subr.bf16.mxu0 %v2206
      %2811 = vmatpush1.bf16.msra.mxu0 %v2205
      %2812 = vmatprep.mubr.bf16.mxu0 %v1174
      %2813 = vmatmul.mubr.bf16.gmra.mrb[0].mxu0 %v1173
      %v2814 = vpop.f32.mrb[0].mxu0
      %v2815 = vadd.f32 %v2754, %v2814
      %v2816 = vpop.f32.mrb[0].mxu0
      %v2817 = vadd.f32 %v2756, %v2816
      %v2818 = vpop.f32.mrb[0].mxu0
      %v2819 = vadd.f32 %v2758, %v2818
      %v2820 = vpop.f32.mrb[0].mxu0
      %v2821 = vadd.f32 %v2760, %v2820
      %2822 = vmatprep.mubr.bf16.mxu0 %v1192
      %2823 = vmatmul.mubr.bf16.gmra.mrb[0].mxu0 %v1191
      %v2824 = vpop.f32.mrb[0].mxu0
      %v2825 = vadd.f32 %v2764, %v2824
      %v2826 = vpop.f32.mrb[0].mxu0
      %v2827 = vadd.f32 %v2766, %v2826
      %v2828 = vpop.f32.mrb[0].mxu0
      %v2829 = vadd.f32 %v2768, %v2828
      %v2830 = vpop.f32.mrb[0].mxu0
      %v2831 = vadd.f32 %v2770, %v2830
      %2832 = vmatprep.mubr.bf16.mxu0 %v1210
      %2833 = vmatmul.mubr.bf16.gmra.mrb[0].mxu0 %v1209
      %v2834 = vpop.f32.mrb[0].mxu0
      %v2835 = vadd.f32 %v2774, %v2834
      %v2836 = vpop.f32.mrb[0].mxu0
      %v2837 = vadd.f32 %v2776, %v2836
      %v2838 = vpop.f32.mrb[0].mxu0
      %v2839 = vpop.f32.mrb[0].mxu0
      %2840 = vdwg.mxu0
      %2841 = vmatprep.subr.bf16.mxu0 %v2208
      %2842 = vmatpush1.bf16.msra.mxu0 %v2207
      %2843 = vmatprep.subr.bf16.mxu0 %v2210
      %2844 = vmatpush1.bf16.msra.mxu0 %v2209
      %2845 = vmatprep.subr.bf16.mxu0 %v2212
      %2846 = vmatpush1.bf16.msra.mxu0 %v2211
      %2847 = vmatprep.subr.bf16.mxu0 %v2214
      %2848 = vmatpush1.bf16.msra.mxu0 %v2213
      %2849 = vmatprep.subr.bf16.mxu0 %v2216
      %2850 = vmatpush1.bf16.msra.mxu0 %v2215
      %2851 = vmatprep.subr.bf16.mxu0 %v2218
      %2852 = vmatpush1.bf16.msra.mxu0 %v2217
      %2853 = vmatprep.subr.bf16.mxu0 %v2220
      %2854 = vmatpush1.bf16.msra.mxu0 %v2219
      %2855 = vmatprep.subr.bf16.mxu0 %v2222
      %2856 = vmatpush1.bf16.msra.mxu0 %v2221
      %2857 = vmatprep.subr.bf16.mxu0 %v2224
      %2858 = vmatpush1.bf16.msra.mxu0 %v2223
      %2859 = vmatprep.subr.bf16.mxu0 %v2226
      %2860 = vmatpush1.bf16.msra.mxu0 %v2225
      %2861 = vmatprep.subr.bf16.mxu0 %v2228
      %2862 = vmatpush1.bf16.msra.mxu0 %v2227
      %2863 = vmatprep.subr.bf16.mxu0 %v2230
      %2864 = vmatpush1.bf16.msra.mxu0 %v2229
      %2865 = vmatprep.subr.bf16.mxu0 %v2232
      %2866 = vmatpush1.bf16.msra.mxu0 %v2231
      %2867 = vmatprep.subr.bf16.mxu0 %v2234
      %2868 = vmatpush1.bf16.msra.mxu0 %v2233
      %2869 = vmatprep.subr.bf16.mxu0 %v2236
      %2870 = vmatpush1.bf16.msra.mxu0 %v2235
      %2871 = vmatprep.subr.bf16.mxu0 %v2238
      %2872 = vmatpush1.bf16.msra.mxu0 %v2237
      %2873 = vmatprep.mubr.bf16.mxu0 %v1176
      %2874 = vmatmul.mubr.bf16.gmra.mrb[0].mxu0 %v1175
      %v2875 = vpop.f32.mrb[0].mxu0
      %v2876 = vadd.f32 %v2815, %v2875
      %v2877 = vpop.f32.mrb[0].mxu0
      %v2878 = vadd.f32 %v2817, %v2877
      %v2879 = vpop.f32.mrb[0].mxu0
      %v2880 = vadd.f32 %v2819, %v2879
      %v2881 = vpop.f32.mrb[0].mxu0
      %v2882 = vadd.f32 %v2821, %v2881
      %2883 = vmatprep.mubr.bf16.mxu0 %v1194
      %2884 = vmatmul.mubr.bf16.gmra.mrb[0].mxu0 %v1193
      %v2885 = vpop.f32.mrb[0].mxu0
      %v2886 = vadd.f32 %v2825, %v2885
      %v2887 = vpop.f32.mrb[0].mxu0
      %v2888 = vadd.f32 %v2827, %v2887
      %v2889 = vpop.f32.mrb[0].mxu0
      %v2890 = vadd.f32 %v2829, %v2889
      %v2891 = vpop.f32.mrb[0].mxu0
      %v2892 = vadd.f32 %v2831, %v2891
      %2893 = vmatprep.mubr.bf16.mxu0 %v1212
      %2894 = vmatmul.mubr.bf16.gmra.mrb[0].mxu0 %v1211
      %v2895 = vpop.f32.mrb[0].mxu0
      %v2896 = vadd.f32 %v2835, %v2895
      %v2897 = vpop.f32.mrb[0].mxu0
      %v2898 = vadd.f32 %v2837, %v2897
      %v2899 = vpop.f32.mrb[0].mxu0
      %v2900 = vpop.f32.mrb[0].mxu0
      %2901 = vdwg.mxu0
      %2902 = vmatprep.subr.bf16.mxu0 %v2240
      %2903 = vmatpush1.bf16.msra.mxu0 %v2239
      %2904 = vmatprep.subr.bf16.mxu0 %v2242
      %2905 = vmatpush1.bf16.msra.mxu0 %v2241
      %2906 = vmatprep.subr.bf16.mxu0 %v2244
      %2907 = vmatpush1.bf16.msra.mxu0 %v2243
      %2908 = vmatprep.subr.bf16.mxu0 %v2246
      %2909 = vmatpush1.bf16.msra.mxu0 %v2245
      %2910 = vmatprep.subr.bf16.mxu0 %v2248
      %2911 = vmatpush1.bf16.msra.mxu0 %v2247
      %2912 = vmatprep.subr.bf16.mxu0 %v2250
      %2913 = vmatpush1.bf16.msra.mxu0 %v2249
      %2914 = vmatprep.subr.bf16.mxu0 %v2252
      %2915 = vmatpush1.bf16.msra.mxu0 %v2251
      %2916 = vmatprep.subr.bf16.mxu0 %v2254
      %2917 = vmatpush1.bf16.msra.mxu0 %v2253
      %2918 = vmatprep.subr.bf16.mxu0 %v2256
      %2919 = vmatpush1.bf16.msra.mxu0 %v2255
      %2920 = vmatprep.subr.bf16.mxu0 %v2258
      %2921 = vmatpush1.bf16.msra.mxu0 %v2257
      %2922 = vmatprep.subr.bf16.mxu0 %v2260
      %2923 = vmatpush1.bf16.msra.mxu0 %v2259
      %2924 = vmatprep.subr.bf16.mxu0 %v2262
      %2925 = vmatpush1.bf16.msra.mxu0 %v2261
      %2926 = vmatprep.subr.bf16.mxu0 %v2264
      %2927 = vmatpush1.bf16.msra.mxu0 %v2263
      %2928 = vmatprep.subr.bf16.mxu0 %v2266
      %2929 = vmatpush1.bf16.msra.mxu0 %v2265
      %2930 = vmatprep.subr.bf16.mxu0 %v2268
      %2931 = vmatpush1.bf16.msra.mxu0 %v2267
      %2932 = vmatprep.subr.bf16.mxu0 %v2270
      %2933 = vmatpush1.bf16.msra.mxu0 %v2269
      %2934 = vmatprep.mubr.bf16.mxu0 %v1178
      %2935 = vmatmul.mubr.bf16.gmra.mrb[0].mxu0 %v1177
      %v2936 = vpop.f32.mrb[0].mxu0
      %v2937 = vadd.f32 %v2876, %v2936
      %v2938 = vpop.f32.mrb[0].mxu0
      %v2939 = vadd.f32 %v2878, %v2938
      %v2940 = vpop.f32.mrb[0].mxu0
      %v2941 = vadd.f32 %v2880, %v2940
      %v2942 = vpop.f32.mrb[0].mxu0
      %v2943 = vadd.f32 %v2882, %v2942
      %2944 = vmatprep.mubr.bf16.mxu0 %v1196
      %2945 = vmatmul.mubr.bf16.gmra.mrb[0].mxu0 %v1195
      %v2946 = vpop.f32.mrb[0].mxu0
      %v2947 = vadd.f32 %v2886, %v2946
      %v2948 = vpop.f32.mrb[0].mxu0
      %v2949 = vadd.f32 %v2888, %v2948
      %v2950 = vpop.f32.mrb[0].mxu0
      %v2951 = vadd.f32 %v2890, %v2950
      %v2952 = vpop.f32.mrb[0].mxu0
      %v2953 = vadd.f32 %v2892, %v2952
      %2954 = vmatprep.mubr.bf16.mxu0 %v1214
      %2955 = vmatmul.mubr.bf16.gmra.mrb[0].mxu0 %v1213
      %v2956 = vpop.f32.mrb[0].mxu0
      %v2957 = vadd.f32 %v2896, %v2956
      %v2958 = vpop.f32.mrb[0].mxu0
      %v2959 = vadd.f32 %v2898, %v2958
      %v2960 = vpop.f32.mrb[0].mxu0
      %v2961 = vpop.f32.mrb[0].mxu0
      %2962 = vdwg.mxu0
      %2963 = vmatprep.subr.bf16.mxu0 %v2272
      %2964 = vmatpush1.bf16.msra.mxu0 %v2271
      %2965 = vmatprep.subr.bf16.mxu0 %v2274
      %2966 = vmatpush1.bf16.msra.mxu0 %v2273
      %2967 = vmatprep.subr.bf16.mxu0 %v2276
      %2968 = vmatpush1.bf16.msra.mxu0 %v2275
      %2969 = vmatprep.subr.bf16.mxu0 %v2278
      %2970 = vmatpush1.bf16.msra.mxu0 %v2277
      %2971 = vmatprep.subr.bf16.mxu0 %v2280
      %2972 = vmatpush1.bf16.msra.mxu0 %v2279
      %2973 = vmatprep.subr.bf16.mxu0 %v2282
      %2974 = vmatpush1.bf16.msra.mxu0 %v2281
      %2975 = vmatprep.subr.bf16.mxu0 %v2284
      %2976 = vmatpush1.bf16.msra.mxu0 %v2283
      %2977 = vmatprep.subr.bf16.mxu0 %v2286
      %2978 = vmatpush1.bf16.msra.mxu0 %v2285
      %2979 = vmatprep.subr.bf16.mxu0 %v2288
      %2980 = vmatpush1.bf16.msra.mxu0 %v2287
      %2981 = vmatprep.subr.bf16.mxu0 %v2290
      %2982 = vmatpush1.bf16.msra.mxu0 %v2289
      %2983 = vmatprep.subr.bf16.mxu0 %v2292
      %2984 = vmatpush1.bf16.msra.mxu0 %v2291
      %2985 = vmatprep.subr.bf16.mxu0 %v2294
      %2986 = vmatpush1.bf16.msra.mxu0 %v2293
      %2987 = vmatprep.subr.bf16.mxu0 %v2296
      %2988 = vmatpush1.bf16.msra.mxu0 %v2295
      %2989 = vmatprep.subr.bf16.mxu0 %v2298
      %2990 = vmatpush1.bf16.msra.mxu0 %v2297
      %2991 = vmatprep.subr.bf16.mxu0 %v2300
      %2992 = vmatpush1.bf16.msra.mxu0 %v2299
      %2993 = vmatprep.subr.bf16.mxu0 %v2302
      %2994 = vmatpush1.bf16.msra.mxu0 %v2301
      %2995 = vmatprep.mubr.bf16.mxu0 %v1180
      %2996 = vmatmul.mubr.bf16.gmra.mrb[0].mxu0 %v1179
      %v2997 = vpop.f32.mrb[0].mxu0
      %v2998 = vadd.f32 %v2937, %v2997
      %v2999 = vpop.f32.mrb[0].mxu0
      %v3000 = vadd.f32 %v2939, %v2999
      %v3001 = vpop.f32.mrb[0].mxu0
      %v3002 = vadd.f32 %v2941, %v3001
      %v3003 = vpop.f32.mrb[0].mxu0
      %v3004 = vadd.f32 %v2943, %v3003
      %3005 = vmatprep.mubr.bf16.mxu0 %v1198
      %3006 = vmatmul.mubr.bf16.gmra.mrb[0].mxu0 %v1197
      %v3007 = vpop.f32.mrb[0].mxu0
      %v3008 = vadd.f32 %v2947, %v3007
      %v3009 = vpop.f32.mrb[0].mxu0
      %v3010 = vadd.f32 %v2949, %v3009
      %v3011 = vpop.f32.mrb[0].mxu0
      %v3012 = vadd.f32 %v2951, %v3011
      %v3013 = vpop.f32.mrb[0].mxu0
      %v3014 = vadd.f32 %v2953, %v3013
      %3015 = vmatprep.mubr.bf16.mxu0 %v1216
      %3016 = vmatmul.mubr.bf16.gmra.mrb[0].mxu0 %v1215
      %v3017 = vpop.f32.mrb[0].mxu0
      %v3018 = vadd.f32 %v2957, %v3017
      %v3019 = vpop.f32.mrb[0].mxu0
      %v3020 = vadd.f32 %v2959, %v3019
      %v3021 = vpop.f32.mrb[0].mxu0
      %v3022 = vpop.f32.mrb[0].mxu0
      %3023 = vdwg.mxu0
      %3024 = vmatprep.subr.bf16.mxu0 %v2304
      %3025 = vmatpush1.bf16.msra.mxu0 %v2303
      %3026 = vmatprep.subr.bf16.mxu0 %v2306
      %3027 = vmatpush1.bf16.msra.mxu0 %v2305
      %3028 = vmatprep.subr.bf16.mxu0 %v2308
      %3029 = vmatpush1.bf16.msra.mxu0 %v2307
      %3030 = vmatprep.subr.bf16.mxu0 %v2310
      %3031 = vmatpush1.bf16.msra.mxu0 %v2309
      %3032 = vmatprep.subr.bf16.mxu0 %v2312
      %3033 = vmatpush1.bf16.msra.mxu0 %v2311
      %3034 = vmatprep.subr.bf16.mxu0 %v2314
      %3035 = vmatpush1.bf16.msra.mxu0 %v2313
      %3036 = vmatprep.subr.bf16.mxu0 %v2316
      %3037 = vmatpush1.bf16.msra.mxu0 %v2315
      %3038 = vmatprep.subr.bf16.mxu0 %v2318
      %3039 = vmatpush1.bf16.msra.mxu0 %v2317
      %3040 = vmatprep.subr.bf16.mxu0 %v2320
      %3041 = vmatpush1.bf16.msra.mxu0 %v2319
      %3042 = vmatprep.subr.bf16.mxu0 %v2322
      %3043 = vmatpush1.bf16.msra.mxu0 %v2321
      %3044 = vmatprep.subr.bf16.mxu0 %v2324
      %3045 = vmatpush1.bf16.msra.mxu0 %v2323
      %3046 = vmatprep.subr.bf16.mxu0 %v2326
      %3047 = vmatpush1.bf16.msra.mxu0 %v2325
      %3048 = vmatprep.subr.bf16.mxu0 %v2328
      %3049 = vmatpush1.bf16.msra.mxu0 %v2327
      %3050 = vmatprep.subr.bf16.mxu0 %v2330
      %3051 = vmatpush1.bf16.msra.mxu0 %v2329
      %3052 = vmatprep.subr.bf16.mxu0 %v2332
      %3053 = vmatpush1.bf16.msra.mxu0 %v2331
      %3054 = vmatprep.subr.bf16.mxu0 %v2334
      %3055 = vmatpush1.bf16.msra.mxu0 %v2333
      %3056 = vmatprep.mubr.bf16.mxu0 %v1182
      %3057 = vmatmul.mubr.bf16.gmra.mrb[0].mxu0 %v1181
      %v3058 = vpop.f32.mrb[0].mxu0
      %v3059 = vadd.f32 %v2998, %v3058
      %v3060 = vpop.f32.mrb[0].mxu0
      %v3061 = vadd.f32 %v3000, %v3060
      %v3062 = vpop.f32.mrb[0].mxu0
      %v3063 = vadd.f32 %v3002, %v3062
      %v3064 = vpop.f32.mrb[0].mxu0
      %v3065 = vadd.f32 %v3004, %v3064
      %3066 = vmatprep.mubr.bf16.mxu0 %v1200
      %3067 = vmatmul.mubr.bf16.gmra.mrb[0].mxu0 %v1199
      %v3068 = vpop.f32.mrb[0].mxu0
      %v3069 = vadd.f32 %v3008, %v3068
      %v3070 = vpop.f32.mrb[0].mxu0
      %v3071 = vadd.f32 %v3010, %v3070
      %v3072 = vpop.f32.mrb[0].mxu0
      %v3073 = vadd.f32 %v3012, %v3072
      %v3074 = vpop.f32.mrb[0].mxu0
      %v3075 = vadd.f32 %v3014, %v3074
      %3076 = vmatprep.mubr.bf16.mxu0 %v1218
      %3077 = vmatmul.mubr.bf16.gmra.mrb[0].mxu0 %v1217
      %v3078 = vpop.f32.mrb[0].mxu0
      %v3079 = vadd.f32 %v3018, %v3078
      %v3080 = vpop.f32.mrb[0].mxu0
      %v3081 = vadd.f32 %v3020, %v3080
      %v3082 = vpop.f32.mrb[0].mxu0
      %v3083 = vpop.f32.mrb[0].mxu0
      %3084 = vdwg.mxu0
      %3085 = vmatprep.subr.bf16.mxu0 %v2336
      %3086 = vmatpush1.bf16.msra.mxu0 %v2335
      %3087 = vmatprep.subr.bf16.mxu0 %v2338
      %3088 = vmatpush1.bf16.msra.mxu0 %v2337
      %3089 = vmatprep.subr.bf16.mxu0 %v2340
      %3090 = vmatpush1.bf16.msra.mxu0 %v2339
      %3091 = vmatprep.subr.bf16.mxu0 %v2342
      %3092 = vmatpush1.bf16.msra.mxu0 %v2341
      %3093 = vmatprep.subr.bf16.mxu0 %v2344
      %3094 = vmatpush1.bf16.msra.mxu0 %v2343
      %3095 = vmatprep.subr.bf16.mxu0 %v2346
      %3096 = vmatpush1.bf16.msra.mxu0 %v2345
      %3097 = vmatprep.subr.bf16.mxu0 %v2348
      %3098 = vmatpush1.bf16.msra.mxu0 %v2347
      %3099 = vmatprep.subr.bf16.mxu0 %v2350
      %3100 = vmatpush1.bf16.msra.mxu0 %v2349
      %3101 = vmatprep.subr.bf16.mxu0 %v2352
      %3102 = vmatpush1.bf16.msra.mxu0 %v2351
      %3103 = vmatprep.subr.bf16.mxu0 %v2354
      %3104 = vmatpush1.bf16.msra.mxu0 %v2353
      %3105 = vmatprep.subr.bf16.mxu0 %v2356
      %3106 = vmatpush1.bf16.msra.mxu0 %v2355
      %3107 = vmatprep.subr.bf16.mxu0 %v2358
      %3108 = vmatpush1.bf16.msra.mxu0 %v2357
      %3109 = vmatprep.subr.bf16.mxu0 %v2360
      %3110 = vmatpush1.bf16.msra.mxu0 %v2359
      %3111 = vmatprep.subr.bf16.mxu0 %v2362
      %3112 = vmatpush1.bf16.msra.mxu0 %v2361
      %3113 = vmatprep.subr.bf16.mxu0 %v2364
      %3114 = vmatpush1.bf16.msra.mxu0 %v2363
      %3115 = vmatprep.subr.bf16.mxu0 %v2366
      %3116 = vmatpush1.bf16.msra.mxu0 %v2365
      %3117 = vmatprep.mubr.bf16.mxu0 %v1184
      %3118 = vmatmul.mubr.bf16.gmra.mrb[0].mxu0 %v1183
      %v3119 = vpop.f32.mrb[0].mxu0
      %v3120 = vadd.f32 %v3059, %v3119
      %v3121 = vpop.f32.mrb[0].mxu0
      %v3122 = vadd.f32 %v3061, %v3121
      %v3123 = vpop.f32.mrb[0].mxu0
      %v3124 = vadd.f32 %v3063, %v3123
      %v3125 = vpop.f32.mrb[0].mxu0
      %v3126 = vadd.f32 %v3065, %v3125
      %3127 = vmatprep.mubr.bf16.mxu0 %v1202
      %3128 = vmatmul.mubr.bf16.gmra.mrb[0].mxu0 %v1201
      %v3129 = vpop.f32.mrb[0].mxu0
      %v3130 = vadd.f32 %v3069, %v3129
      %v3131 = vpop.f32.mrb[0].mxu0
      %v3132 = vadd.f32 %v3071, %v3131
      %v3133 = vpop.f32.mrb[0].mxu0
      %v3134 = vadd.f32 %v3073, %v3133
      %v3135 = vpop.f32.mrb[0].mxu0
      %v3136 = vadd.f32 %v3075, %v3135
      %3137 = vmatprep.mubr.bf16.mxu0 %v1220
      %3138 = vmatmul.mubr.bf16.gmra.mrb[0].mxu0 %v1219
      %v3139 = vpop.f32.mrb[0].mxu0
      %v3140 = vadd.f32 %v3079, %v3139
      %v3141 = vpop.f32.mrb[0].mxu0
      %v3142 = vadd.f32 %v3081, %v3141
      %v3143 = vpop.f32.mrb[0].mxu0
      %v3144 = vpop.f32.mrb[0].mxu0
      %3145 = vdwg.mxu0
      %3146 = vmatprep.subr.bf16.mxu0 %v2368
      %3147 = vmatpush1.bf16.msra.mxu0 %v2367
      %3148 = vmatprep.subr.bf16.mxu0 %v2370
      %3149 = vmatpush1.bf16.msra.mxu0 %v2369
      %3150 = vmatprep.subr.bf16.mxu0 %v2372
      %3151 = vmatpush1.bf16.msra.mxu0 %v2371
      %3152 = vmatprep.subr.bf16.mxu0 %v2374
      %3153 = vmatpush1.bf16.msra.mxu0 %v2373
      %3154 = vmatprep.subr.bf16.mxu0 %v2376
      %3155 = vmatpush1.bf16.msra.mxu0 %v2375
      %3156 = vmatprep.subr.bf16.mxu0 %v2378
      %3157 = vmatpush1.bf16.msra.mxu0 %v2377
      %3158 = vmatprep.subr.bf16.mxu0 %v2380
      %3159 = vmatpush1.bf16.msra.mxu0 %v2379
      %3160 = vmatprep.subr.bf16.mxu0 %v2382
      %3161 = vmatpush1.bf16.msra.mxu0 %v2381
      %3162 = vmatprep.subr.bf16.mxu0 %v2384
      %3163 = vmatpush1.bf16.msra.mxu0 %v2383
      %3164 = vmatprep.subr.bf16.mxu0 %v2386
      %3165 = vmatpush1.bf16.msra.mxu0 %v2385
      %3166 = vmatprep.subr.bf16.mxu0 %v2388
      %3167 = vmatpush1.bf16.msra.mxu0 %v2387
      %3168 = vmatprep.subr.bf16.mxu0 %v2390
      %3169 = vmatpush1.bf16.msra.mxu0 %v2389
      %3170 = vmatprep.subr.bf16.mxu0 %v2392
      %3171 = vmatpush1.bf16.msra.mxu0 %v2391
      %3172 = vmatprep.subr.bf16.mxu0 %v2394
      %3173 = vmatpush1.bf16.msra.mxu0 %v2393
      %3174 = vmatprep.subr.bf16.mxu0 %v2396
      %3175 = vmatpush1.bf16.msra.mxu0 %v2395
      %3176 = vmatprep.subr.bf16.mxu0 %v2398
      %3177 = vmatpush1.bf16.msra.mxu0 %v2397
      %3178 = vmatprep.mubr.bf16.mxu0 %v1186
      %3179 = vmatmul.mubr.bf16.gmra.mrb[0].mxu0 %v1185
      %v3180 = vpop.f32.mrb[0].mxu0
      %v3181 = vadd.f32 %v3120, %v3180
      %v3182 = vpop.f32.mrb[0].mxu0
      %v3183 = vadd.f32 %v3122, %v3182
      %v3184 = vpop.f32.mrb[0].mxu0
      %v3185 = vadd.f32 %v3124, %v3184
      %v3186 = vpop.f32.mrb[0].mxu0
      %v3187 = vadd.f32 %v3126, %v3186
      %3188 = vmatprep.mubr.bf16.mxu0 %v1204
      %3189 = vmatmul.mubr.bf16.gmra.mrb[0].mxu0 %v1203
      %v3190 = vpop.f32.mrb[0].mxu0
      %v3191 = vadd.f32 %v3130, %v3190
      %v3192 = vpop.f32.mrb[0].mxu0
      %v3193 = vadd.f32 %v3132, %v3192
      %v3194 = vpop.f32.mrb[0].mxu0
      %v3195 = vadd.f32 %v3134, %v3194
      %v3196 = vpop.f32.mrb[0].mxu0
      %v3197 = vadd.f32 %v3136, %v3196
      %3198 = vmatprep.mubr.bf16.mxu0 %v1222
      %3199 = vmatmul.mubr.bf16.gmra.mrb[0].mxu0 %v1221
      %v3200 = vpop.f32.mrb[0].mxu0
      %v3201 = vadd.f32 %v3140, %v3200
      %v3202 = vpop.f32.mrb[0].mxu0
      %v3203 = vadd.f32 %v3142, %v3202
      %v3204 = vpop.f32.mrb[0].mxu0
      %v3205 = vpop.f32.mrb[0].mxu0
      %3206 = vdwg.mxu0
      %3207 = vmatprep.subr.bf16.mxu0 %v2400
      %3208 = vmatpush1.bf16.msra.mxu0 %v2399
      %3209 = vmatprep.subr.bf16.mxu0 %v2402
      %3210 = vmatpush1.bf16.msra.mxu0 %v2401
      %3211 = vmatprep.subr.bf16.mxu0 %v2404
      %3212 = vmatpush1.bf16.msra.mxu0 %v2403
      %3213 = vmatprep.subr.bf16.mxu0 %v2406
      %3214 = vmatpush1.bf16.msra.mxu0 %v2405
      %3215 = vmatprep.subr.bf16.mxu0 %v2408
      %3216 = vmatpush1.bf16.msra.mxu0 %v2407
      %3217 = vmatprep.subr.bf16.mxu0 %v2410
      %3218 = vmatpush1.bf16.msra.mxu0 %v2409
      %3219 = vmatprep.subr.bf16.mxu0 %v2412
      %3220 = vmatpush1.bf16.msra.mxu0 %v2411
      %3221 = vmatprep.subr.bf16.mxu0 %v2414
      %3222 = vmatpush1.bf16.msra.mxu0 %v2413
      %3223 = vmatprep.subr.bf16.mxu0 %v2416
      %3224 = vmatpush1.bf16.msra.mxu0 %v2415
      %3225 = vmatprep.subr.bf16.mxu0 %v2418
      %3226 = vmatpush1.bf16.msra.mxu0 %v2417
      %3227 = vmatprep.subr.bf16.mxu0 %v2420
      %3228 = vmatpush1.bf16.msra.mxu0 %v2419
      %3229 = vmatprep.subr.bf16.mxu0 %v2422
      %3230 = vmatpush1.bf16.msra.mxu0 %v2421
      %3231 = vmatprep.subr.bf16.mxu0 %v2424
      %3232 = vmatpush1.bf16.msra.mxu0 %v2423
      %3233 = vmatprep.subr.bf16.mxu0 %v2426
      %3234 = vmatpush1.bf16.msra.mxu0 %v2425
      %3235 = vmatprep.subr.bf16.mxu0 %v2428
      %3236 = vmatpush1.bf16.msra.mxu0 %v2427
      %3237 = vmatprep.subr.bf16.mxu0 %v2430
      %3238 = vmatpush1.bf16.msra.mxu0 %v2429
      %3239 = vmatprep.mubr.bf16.mxu0 %v1188
      %3240 = vmatmul.mubr.bf16.gmra.mrb[0].mxu0 %v1187
      %v3241 = vpop.f32.mrb[0].mxu0
      %v3242 = vadd.f32 %v3181, %v3241
      %v3243 = vpop.f32.mrb[0].mxu0
      %v3244 = vadd.f32 %v3183, %v3243
      %v3245 = vpop.f32.mrb[0].mxu0
      %v3246 = vadd.f32 %v3185, %v3245
      %v3247 = vpop.f32.mrb[0].mxu0
      %v3248 = vadd.f32 %v3187, %v3247
      %3249 = vmatprep.mubr.bf16.mxu0 %v1206
      %3250 = vmatmul.mubr.bf16.gmra.mrb[0].mxu0 %v1205
      %v3251 = vpop.f32.mrb[0].mxu0
      %v3252 = vadd.f32 %v3191, %v3251
      %v3253 = vpop.f32.mrb[0].mxu0
      %v3254 = vadd.f32 %v3193, %v3253
      %v3255 = vpop.f32.mrb[0].mxu0
      %v3256 = vadd.f32 %v3195, %v3255
      %v3257 = vpop.f32.mrb[0].mxu0
      %v3258 = vadd.f32 %v3197, %v3257
      %3259 = vmatprep.mubr.bf16.mxu0 %v1224
      %3260 = vmatmul.mubr.bf16.gmra.mrb[0].mxu0 %v1223
      %v3261 = vpop.f32.mrb[0].mxu0
      %v3262 = vadd.f32 %v3201, %v3261
      %v3263 = vpop.f32.mrb[0].mxu0
      %v3264 = vadd.f32 %v3203, %v3263
      %v3265 = vpop.f32.mrb[0].mxu0
      %v3266 = vpop.f32.mrb[0].mxu0
      %3267 = vdwg.mxu0
      %v3268 = vld [vmem:[%s2] sm:$0x3]
      %v3270 = vlaneseq
      %v3271 = vshrl.u32 %v3270, 7
      %v3272 = vsub.s32 0, %v3271
      %v3273 = vrot.slane %v3268, %v3272
      %v3274 = vlaneseq
      %v3275 = vshrl.u32 %v3274, 7
      %v3276 = vsub.s32 1, %v3275
      %v3277 = vrot.slane %v3268, %v3276
      %v3280 = vmul.f32 %v3242, %v3273
      %v3281 = vmul.f32 %v3244, %v3277
      %v3282 = vmul.f32 %v3246, %v3273
      %v3283 = vmul.f32 %v3248, %v3277
      %v3284 = vmul.f32 %v3252, %v3273
      %v3285 = vmul.f32 %v3254, %v3277
      %v3286 = vmul.f32 %v3256, %v3273
      %v3287 = vmul.f32 %v3258, %v3277
      %v3288 = vmul.f32 %v3262, %v3273
      %v3289 = vmul.f32 %v3264, %v3277
      %v3290 = vld [vmem:[%s3] sm:$0x3]
      %v3292 = vlaneseq
      %v3293 = vshrl.u32 %v3292, 7
      %v3294 = vsub.s32 0, %v3293
      %v3295 = vrot.slane %v3290, %v3294
      %v3296 = vlaneseq
      %v3297 = vshrl.u32 %v3296, 7
      %v3298 = vsub.s32 1, %v3297
      %v3299 = vrot.slane %v3290, %v3298
      %v3302 = vadd.f32 %v3280, %v3295
      %v3303 = vadd.f32 %v3281, %v3299
      %v3304 = vadd.f32 %v3282, %v3295
      %v3305 = vadd.f32 %v3283, %v3299
      %v3306 = vadd.f32 %v3284, %v3295
      %v3307 = vadd.f32 %v3285, %v3299
      %v3308 = vadd.f32 %v3286, %v3295
      %v3309 = vadd.f32 %v3287, %v3299
      %v3310 = vadd.f32 %v3288, %v3295
      %v3311 = vadd.f32 %v3289, %v3299
      %v3312 = vld [vmem:[%s4] sm:$0xff]
      %v3313 = vld [vmem:[%s4 + $0x8] sm:$0xff]
      %v3314 = vld [vmem:[%s4 + $0x10] sm:$0xff]
      %v3315 = vld [vmem:[%s4 + $0x18] sm:$0xff]
      %v3316 = vld [vmem:[%s4 + $0x20] sm:$0xf]
      %3318 = vset.pattern.permute.xlu0 0
      %3319 = vperm.xlu0 %3318, %v3312
      %v3320 = vpop.permute.xlu0 %3319
      %3323 = vset.pattern.permute.xlu0 0
      %3324 = vperm.xlu0 %3323, %v3313
      %v3325 = vpop.permute.xlu0 %3324
      %3328 = vset.pattern.permute.xlu0 0
      %3329 = vperm.xlu0 %3328, %v3314
      %v3330 = vpop.permute.xlu0 %3329
      %3333 = vset.pattern.permute.xlu0 0
      %3334 = vperm.xlu0 %3333, %v3315
      %v3335 = vpop.permute.xlu0 %3334
      %3338 = vset.pattern.permute.xlu0 0
      %3339 = vperm.xlu0 %3338, %v3316
      %v3340 = vpop.permute.xlu0 %3339
      %v3342 = vmul.f32 %v3302, %v3320
      %v3343 = vmul.f32 %v3303, %v3320
      %v3344 = vmul.f32 %v3304, %v3325
      %v3345 = vmul.f32 %v3305, %v3325
      %v3346 = vmul.f32 %v3306, %v3330
      %v3347 = vmul.f32 %v3307, %v3330
      %v3348 = vmul.f32 %v3308, %v3335
      %v3349 = vmul.f32 %v3309, %v3335
      %v3350 = vmul.f32 %v3310, %v3340
      %v3351 = vmul.f32 %v3311, %v3340
      %v3352 = vpack.c.bf16 %v3344, %v3342
      %v3353 = vpack.c.bf16 %v3345, %v3343
      %v3354 = vpack.c.bf16 %v3348, %v3346
      %v3355 = vpack.c.bf16 %v3349, %v3347
      %v3356 = vpack.c.bf16 %v3350, %v3350
      %v3357 = vpack.c.bf16 %v3351, %v3351
      %v3364 = vunpack.c.l.b16 %v3352
      %v3365 = vunpack.c.l.b16 %v3353
      %v3366 = vunpack.c.h.b16 %v3352
      %v3367 = vunpack.c.h.b16 %v3353
      %v3368 = vunpack.c.l.b16 %v3354
      %v3369 = vunpack.c.l.b16 %v3355
      %v3370 = vunpack.c.h.b16 %v3354
      %v3371 = vunpack.c.h.b16 %v3355
      %v3372 = vunpack.c.l.b16 %v3356
      %v3373 = vunpack.c.l.b16 %v3357
      %v3374 = vpack.c.b16 %v3365, %v3364
      %v3375 = vpack.c.b16 %v3367, %v3366
      %v3376 = vpack.c.b16 %v3369, %v3368
      %v3377 = vpack.c.b16 %v3371, %v3370
      %v3378 = vpack.c.b16 %v3373, %v3372
      %3384 = vst [vmem:[#allocation3] sm:$0xff] %v3374
      %3385 = vst [vmem:[#allocation3 + $0x8] sm:$0xff] %v3375
      %3386 = vst [vmem:[#allocation3 + $0x10] sm:$0xff] %v3376
      %3387 = vst [vmem:[#allocation3 + $0x18] sm:$0xff] %v3377
      %3388 = vst [vmem:[#allocation3 + $0x20] sm:$0x33] %v3378
      %v3389 = vld [vmem:[#allocation3] sm:$0xff]
      %v3390 = vld [vmem:[#allocation3 + $0x8] sm:$0xff]
      %v3391 = vld [vmem:[#allocation3 + $0x10] sm:$0xff]
      %v3392 = vld [vmem:[#allocation3 + $0x18] sm:$0xff]
      %v3393 = vld [vmem:[#allocation3 + $0x20] sm:$0x33]
      %3394 = vst [vmem:[#allocation2] sm:$0xff] %v3389
      %3395 = vst [vmem:[#allocation2 + $0x48] sm:$0xff] %v3390
      %3396 = vst [vmem:[#allocation2 + $0x90] sm:$0xff] %v3391
      %3397 = vst [vmem:[#allocation2 + $0xd8] sm:$0xff] %v3392
      %3398 = vst [vmem:[#allocation2 + $0x120] sm:$0x33] %v3393
      %v3399 = vld [vmem:[#allocation3] sm:$0xff]
      %v3400 = vld [vmem:[#allocation3 + $0x8] sm:$0xff]
      %v3401 = vld [vmem:[#allocation3 + $0x10] sm:$0xff]
      %v3402 = vld [vmem:[#allocation3 + $0x18] sm:$0xff]
      %v3403 = vld [vmem:[#allocation3 + $0x20] sm:$0x77]
      %v3405 = vshrl.u32 %v3399, 16
      %v3407 = vrot.slane %v3405, 4
      %v3408 = vshll.u32 %v3399, 16
      %v3410 = vrot.slane %v3408, 5
      %v3411 = vor.u32 %v3407, %v3410
      %v3412 = vrot.slane %v3411, 4
      %v3414 = vshll.u32 %v3400, 16
      %v3416 = vrot.slane %v3414, 5
      %v3417 = vsel %vm389, %v3412, %v3416
      %v3418 = vshrl.u32 %v3400, 16
      %v3420 = vrot.slane %v3418, 4
      %v3421 = vor.u32 %v3420, %v3416
      %v3422 = vrot.slane %v3421, 4
      %v3424 = vshll.u32 %v3401, 16
      %v3426 = vrot.slane %v3424, 5
      %v3427 = vsel %vm389, %v3422, %v3426
      %v3428 = vshrl.u32 %v3401, 16
      %v3430 = vrot.slane %v3428, 4
      %v3431 = vor.u32 %v3430, %v3426
      %v3432 = vrot.slane %v3431, 4
      %v3434 = vshll.u32 %v3402, 16
      %v3436 = vrot.slane %v3434, 5
      %v3437 = vsel %vm389, %v3432, %v3436
      %v3438 = vshrl.u32 %v3402, 16
      %v3440 = vrot.slane %v3438, 4
      %v3441 = vor.u32 %v3440, %v3436
      %v3442 = vrot.slane %v3441, 4
      %v3444 = vshll.u32 %v3403, 16
      %v3446 = vrot.slane %v3444, 5
      %v3447 = vsel %vm389, %v3442, %v3446
      %v3448 = vshrl.u32 %v3403, 16
      %v3450 = vrot.slane %v3448, 4
      %v3451 = vor.u32 %v3450, %v3446
      %v3452 = vrot.slane %v3451, 4
      %3458 = vst [vmem:[#allocation2 + $0x8] sm:$0xff] %v3417
      %3459 = vst [vmem:[#allocation2 + $0x50] sm:$0xff] %v3427
      %3460 = vst [vmem:[#allocation2 + $0x98] sm:$0xff] %v3437
      %3461 = vst [vmem:[#allocation2 + $0xe0] sm:$0xff] %v3447
      %3462 = vst [vmem:[#allocation2 + $0x128] sm:$0x33] %v3452
      %v3463 = vld [vmem:[#allocation3] sm:$0xee]
      %v3464 = vld [vmem:[#allocation3 + $0x8] sm:$0xff]
      %v3465 = vld [vmem:[#allocation3 + $0x10] sm:$0xff]
      %v3466 = vld [vmem:[#allocation3 + $0x18] sm:$0xff]
      %v3467 = vld [vmem:[#allocation3 + $0x20] sm:$0x77]
      %v3473 = vrot.slane %v3463, 5
      %v3474 = vrot.slane %v3473, 4
      %v3475 = vrot.slane %v3464, 5
      %v3476 = vsel %vm610, %v3474, %v3475
      %v3477 = vrot.slane %v3475, 4
      %v3478 = vrot.slane %v3465, 5
      %v3479 = vsel %vm610, %v3477, %v3478
      %v3480 = vrot.slane %v3478, 4
      %v3481 = vrot.slane %v3466, 5
      %v3482 = vsel %vm610, %v3480, %v3481
      %v3483 = vrot.slane %v3481, 4
      %v3484 = vrot.slane %v3467, 5
      %v3485 = vsel %vm610, %v3483, %v3484
      %v3486 = vrot.slane %v3484, 4
      %3492 = vst [vmem:[#allocation2 + $0x10] sm:$0xff] %v3476
      %3493 = vst [vmem:[#allocation2 + $0x58] sm:$0xff] %v3479
      %3494 = vst [vmem:[#allocation2 + $0xa0] sm:$0xff] %v3482
      %3495 = vst [vmem:[#allocation2 + $0xe8] sm:$0xff] %v3485
      %3496 = vst [vmem:[#allocation2 + $0x130] sm:$0x33] %v3486
      %v3497 = vld [vmem:[#allocation3] sm:$0x88]
      %v3498 = vld [vmem:[#allocation3 + $0x8] sm:$0xff]
      %v3499 = vld [vmem:[#allocation3 + $0x10] sm:$0xff]
      %v3500 = vld [vmem:[#allocation3 + $0x18] sm:$0xff]
      %v3501 = vld [vmem:[#allocation3 + $0x20] sm:$0xff]
      %v3502 = vld [vmem:[#allocation3 + $0x28] sm:$0x11]
      %v3509 = vrot.slane %v3497, 7
      %v3510 = vrot.slane %v3509, 4
      %v3511 = vrot.slane %v3498, 7
      %v3512 = vsel %vm571, %v3510, %v3511
      %v3513 = vrot.slane %v3511, 4
      %v3514 = vrot.slane %v3499, 7
      %v3515 = vsel %vm571, %v3513, %v3514
      %v3516 = vrot.slane %v3514, 4
      %v3517 = vrot.slane %v3500, 7
      %v3518 = vsel %vm571, %v3516, %v3517
      %v3519 = vrot.slane %v3517, 4
      %v3520 = vrot.slane %v3501, 7
      %v3521 = vsel %vm571, %v3519, %v3520
      %v3522 = vrot.slane %v3520, 4
      %v3523 = vrot.slane %v3502, 7
      %v3524 = vsel %vm571, %v3522, %v3523
      %3530 = vst [vmem:[#allocation2 + $0x18] sm:$0xff] %v3512
      %3531 = vst [vmem:[#allocation2 + $0x60] sm:$0xff] %v3515
      %3532 = vst [vmem:[#allocation2 + $0xa8] sm:$0xff] %v3518
      %3533 = vst [vmem:[#allocation2 + $0xf0] sm:$0xff] %v3521
      %3534 = vst [vmem:[#allocation2 + $0x138] sm:$0x33] %v3524
      %v3535 = vld [vmem:[#allocation3] sm:$0x88]
      %v3536 = vld [vmem:[#allocation3 + $0x8] sm:$0xff]
      %v3537 = vld [vmem:[#allocation3 + $0x10] sm:$0xff]
      %v3538 = vld [vmem:[#allocation3 + $0x18] sm:$0xff]
      %v3539 = vld [vmem:[#allocation3 + $0x20] sm:$0xff]
      %v3540 = vld [vmem:[#allocation3 + $0x28] sm:$0x33]
      %v3542 = vshrl.u32 %v3535, 16
      %v3544 = vrot.slane %v3542, 7
      %v3545 = vrot.slane %v3544, 4
      %v3547 = vshrl.u32 %v3536, 16
      %v3549 = vrot.slane %v3547, 7
      %v3550 = vshll.u32 %v3536, 16
      %v3552 = vor.u32 %v3549, %v3550
      %v3553 = vsel %vm643, %v3545, %v3552
      %v3554 = vrot.slane %v3549, 4
      %v3556 = vshrl.u32 %v3537, 16
      %v3558 = vrot.slane %v3556, 7
      %v3559 = vshll.u32 %v3537, 16
      %v3561 = vor.u32 %v3558, %v3559
      %v3562 = vsel %vm643, %v3554, %v3561
      %v3563 = vrot.slane %v3558, 4
      %v3565 = vshrl.u32 %v3538, 16
      %v3567 = vrot.slane %v3565, 7
      %v3568 = vshll.u32 %v3538, 16
      %v3570 = vor.u32 %v3567, %v3568
      %v3571 = vsel %vm643, %v3563, %v3570
      %v3572 = vrot.slane %v3567, 4
      %v3574 = vshrl.u32 %v3539, 16
      %v3576 = vrot.slane %v3574, 7
      %v3577 = vshll.u32 %v3539, 16
      %v3579 = vor.u32 %v3576, %v3577
      %v3580 = vsel %vm643, %v3572, %v3579
      %v3581 = vrot.slane %v3576, 4
      %v3583 = vshrl.u32 %v3540, 16
      %v3585 = vrot.slane %v3583, 7
      %v3586 = vshll.u32 %v3540, 16
      %v3588 = vor.u32 %v3585, %v3586
      %v3589 = vsel %vm643, %v3581, %v3588
      %3595 = vst [vmem:[#allocation2 + $0x20] sm:$0xff] %v3553
      %3596 = vst [vmem:[#allocation2 + $0x68] sm:$0xff] %v3562
      %3597 = vst [vmem:[#allocation2 + $0xb0] sm:$0xff] %v3571
      %3598 = vst [vmem:[#allocation2 + $0xf8] sm:$0xff] %v3580
      %3599 = vst [vmem:[#allocation2 + $0x140] sm:$0x33] %v3589
      %v3600 = vld [vmem:[#allocation3 + $0x8] sm:$0xff]
      %v3601 = vld [vmem:[#allocation3 + $0x10] sm:$0xff]
      %v3602 = vld [vmem:[#allocation3 + $0x18] sm:$0xff]
      %v3603 = vld [vmem:[#allocation3 + $0x20] sm:$0xff]
      %v3604 = vld [vmem:[#allocation3 + $0x28] sm:$0x33]
      %3605 = vst [vmem:[#allocation2 + $0x28] sm:$0xff] %v3600
      %3606 = vst [vmem:[#allocation2 + $0x70] sm:$0xff] %v3601
      %3607 = vst [vmem:[#allocation2 + $0xb8] sm:$0xff] %v3602
      %3608 = vst [vmem:[#allocation2 + $0x100] sm:$0xff] %v3603
      %3609 = vst [vmem:[#allocation2 + $0x148] sm:$0x33] %v3604
      %v3610 = vld [vmem:[#allocation3 + $0x8] sm:$0xcc]
      %v3611 = vld [vmem:[#allocation3 + $0x10] sm:$0xff]
      %v3612 = vld [vmem:[#allocation3 + $0x18] sm:$0xff]
      %v3613 = vld [vmem:[#allocation3 + $0x20] sm:$0xff]
      %v3614 = vld [vmem:[#allocation3 + $0x28] sm:$0xff]
      %v3620 = vrot.slane %v3610, 6
      %v3621 = vrot.slane %v3620, 4
      %v3622 = vrot.slane %v3611, 6
      %v3623 = vsel %vm357, %v3621, %v3622
      %v3624 = vrot.slane %v3622, 4
      %v3625 = vrot.slane %v3612, 6
      %v3626 = vsel %vm357, %v3624, %v3625
      %v3627 = vrot.slane %v3625, 4
      %v3628 = vrot.slane %v3613, 6
      %v3629 = vsel %vm357, %v3627, %v3628
      %v3630 = vrot.slane %v3628, 4
      %v3631 = vrot.slane %v3614, 6
      %v3632 = vsel %vm357, %v3630, %v3631
      %v3633 = vrot.slane %v3631, 4
      %3639 = vst [vmem:[#allocation2 + $0x30] sm:$0xff] %v3623
      %3640 = vst [vmem:[#allocation2 + $0x78] sm:$0xff] %v3626
      %3641 = vst [vmem:[#allocation2 + $0xc0] sm:$0xff] %v3629
      %3642 = vst [vmem:[#allocation2 + $0x108] sm:$0xff] %v3632
      %3643 = vst [vmem:[#allocation2 + $0x150] sm:$0x33] %v3633
      %v3644 = vld [vmem:[#allocation3 + $0x8] sm:$0xcc]
      %v3645 = vld [vmem:[#allocation3 + $0x10] sm:$0xff]
      %v3646 = vld [vmem:[#allocation3 + $0x18] sm:$0xff]
      %v3647 = vld [vmem:[#allocation3 + $0x20] sm:$0xff]
      %v3648 = vld [vmem:[#allocation3 + $0x28] sm:$0xff]
      %v3649 = vld [vmem:[#allocation3 + $0x30] sm:$0x11]
      %vm3650 = vsmask.f32 1280
      %vm3651 = vsmask.f32 5392
      %vm3652 = vmor %vm3650, %vm3651
      %v3654 = vshrl.u32 %v3644, 16
      %v3656 = vrot.slane %v3654, 6
      %v3657 = vshll.u32 %v3644, 16
      %v3659 = vrot.slane %v3657, 7
      %v3660 = vor.u32 %v3656, %v3659
      %v3661 = vrot.slane %v3660, 4
      %v3663 = vshrl.u32 %v3645, 16
      %v3665 = vrot.slane %v3663, 6
      %v3666 = vshll.u32 %v3645, 16
      %v3668 = vrot.slane %v3666, 7
      %v3669 = vor.u32 %v3665, %v3668
      %v3670 = vsel %vm3652, %v3661, %v3669
      %v3671 = vrot.slane %v3669, 4
      %v3673 = vshrl.u32 %v3646, 16
      %v3675 = vrot.slane %v3673, 6
      %v3676 = vshll.u32 %v3646, 16
      %v3678 = vrot.slane %v3676, 7
      %v3679 = vor.u32 %v3675, %v3678
      %v3680 = vsel %vm3652, %v3671, %v3679
      %v3681 = vrot.slane %v3679, 4
      %v3683 = vshrl.u32 %v3647, 16
      %v3685 = vrot.slane %v3683, 6
      %v3686 = vshll.u32 %v3647, 16
      %v3688 = vrot.slane %v3686, 7
      %v3689 = vor.u32 %v3685, %v3688
      %v3690 = vsel %vm3652, %v3681, %v3689
      %v3691 = vrot.slane %v3689, 4
      %v3693 = vshrl.u32 %v3648, 16
      %v3695 = vrot.slane %v3693, 6
      %v3696 = vshll.u32 %v3648, 16
      %v3698 = vrot.slane %v3696, 7
      %v3699 = vor.u32 %v3695, %v3698
      %v3700 = vsel %vm3652, %v3691, %v3699
      %v3701 = vrot.slane %v3699, 4
      %v3703 = vshll.u32 %v3649, 16
      %v3705 = vrot.slane %v3703, 7
      %v3706 = vsel %vm3652, %v3701, %v3705
      %3712 = vst [vmem:[#allocation2 + $0x38] sm:$0xff] %v3670
      %3713 = vst [vmem:[#allocation2 + $0x80] sm:$0xff] %v3680
      %3714 = vst [vmem:[#allocation2 + $0xc8] sm:$0xff] %v3690
      %3715 = vst [vmem:[#allocation2 + $0x110] sm:$0xff] %v3700
      %3716 = vst [vmem:[#allocation2 + $0x158] sm:$0x33] %v3706
      %v3717 = vld [vmem:[#allocation3 + $0x8] sm:$0x88]
      %v3718 = vld [vmem:[#allocation3 + $0x10] sm:$0xff]
      %v3719 = vld [vmem:[#allocation3 + $0x18] sm:$0xff]
      %v3720 = vld [vmem:[#allocation3 + $0x20] sm:$0xff]
      %v3721 = vld [vmem:[#allocation3 + $0x28] sm:$0xff]
      %v3722 = vld [vmem:[#allocation3 + $0x30] sm:$0x11]
      %v3729 = vrot.slane %v3717, 7
      %v3730 = vrot.slane %v3729, 4
      %v3731 = vrot.slane %v3718, 7
      %v3732 = vsel %vm571, %v3730, %v3731
      %v3733 = vrot.slane %v3731, 4
      %v3734 = vrot.slane %v3719, 7
      %v3735 = vsel %vm571, %v3733, %v3734
      %v3736 = vrot.slane %v3734, 4
      %v3737 = vrot.slane %v3720, 7
      %v3738 = vsel %vm571, %v3736, %v3737
      %v3739 = vrot.slane %v3737, 4
      %v3740 = vrot.slane %v3721, 7
      %v3741 = vsel %vm571, %v3739, %v3740
      %v3742 = vrot.slane %v3740, 4
      %v3743 = vrot.slane %v3722, 7
      %v3744 = vsel %vm571, %v3742, %v3743
      %3750 = vst [vmem:[#allocation2 + $0x40] sm:$0xff] %v3732
      %3751 = vst [vmem:[#allocation2 + $0x88] sm:$0xff] %v3735
      %3752 = vst [vmem:[#allocation2 + $0xd0] sm:$0xff] %v3738
      %3753 = vst [vmem:[#allocation2 + $0x118] sm:$0xff] %v3741
      %3754 = vst [vmem:[#allocation2 + $0x160] sm:$0x33] %v3744
      %v3755 = vld [vmem:[#allocation2] sm:$0xff]
      %v3756 = vld [vmem:[#allocation2 + $0x8] sm:$0xff]
      %v3757 = vld [vmem:[#allocation2 + $0x10] sm:$0xff]
      %v3758 = vld [vmem:[#allocation2 + $0x18] sm:$0xff]
      %v3759 = vld [vmem:[#allocation2 + $0x20] sm:$0xff]
      %v3760 = vld [vmem:[#allocation2 + $0x28] sm:$0xff]
      %v3761 = vld [vmem:[#allocation2 + $0x30] sm:$0xff]
      %v3762 = vld [vmem:[#allocation2 + $0x38] sm:$0xff]
      %v3763 = vld [vmem:[#allocation2 + $0x40] sm:$0xff]
      %v3764 = vld [vmem:[#allocation2 + $0x48] sm:$0xff]
      %v3765 = vld [vmem:[#allocation2 + $0x50] sm:$0xff]
      %v3766 = vld [vmem:[#allocation2 + $0x58] sm:$0xff]
      %v3767 = vld [vmem:[#allocation2 + $0x60] sm:$0xff]
      %v3768 = vld [vmem:[#allocation2 + $0x68] sm:$0xff]
      %v3769 = vld [vmem:[#allocation2 + $0x70] sm:$0xff]
      %v3770 = vld [vmem:[#allocation2 + $0x78] sm:$0xff]
      %v3771 = vld [vmem:[#allocation2 + $0x80] sm:$0xff]
      %v3772 = vld [vmem:[#allocation2 + $0x88] sm:$0xff]
      %v3773 = vld [vmem:[#allocation2 + $0x90] sm:$0xff]
      %v3774 = vld [vmem:[#allocation2 + $0x98] sm:$0xff]
      %v3775 = vld [vmem:[#allocation2 + $0xa0] sm:$0xff]
      %v3776 = vld [vmem:[#allocation2 + $0xa8] sm:$0xff]
      %v3777 = vld [vmem:[#allocation2 + $0xb0] sm:$0xff]
      %v3778 = vld [vmem:[#allocation2 + $0xb8] sm:$0xff]
      %v3779 = vld [vmem:[#allocation2 + $0xc0] sm:$0xff]
      %v3780 = vld [vmem:[#allocation2 + $0xc8] sm:$0xff]
      %v3781 = vld [vmem:[#allocation2 + $0xd0] sm:$0xff]
      %v3782 = vld [vmem:[#allocation2 + $0xd8] sm:$0xff]
      %v3783 = vld [vmem:[#allocation2 + $0xe0] sm:$0xff]
      %v3784 = vld [vmem:[#allocation2 + $0xe8] sm:$0xff]
      %v3785 = vld [vmem:[#allocation2 + $0xf0] sm:$0xff]
      %v3786 = vld [vmem:[#allocation2 + $0xf8] sm:$0xff]
      %v3787 = vld [vmem:[#allocation2 + $0x100] sm:$0xff]
      %v3788 = vld [vmem:[#allocation2 + $0x108] sm:$0xff]
      %v3789 = vld [vmem:[#allocation2 + $0x110] sm:$0xff]
      %v3790 = vld [vmem:[#allocation2 + $0x118] sm:$0xff]
      %v3791 = vld [vmem:[#allocation2 + $0x120] sm:$0x33]
      %v3792 = vld [vmem:[#allocation2 + $0x128] sm:$0x33]
      %v3793 = vld [vmem:[#allocation2 + $0x130] sm:$0x33]
      %v3794 = vld [vmem:[#allocation2 + $0x138] sm:$0x33]
      %v3795 = vld [vmem:[#allocation2 + $0x140] sm:$0x33]
      %v3796 = vld [vmem:[#allocation2 + $0x148] sm:$0x33]
      %v3797 = vld [vmem:[#allocation2 + $0x150] sm:$0x33]
      %v3798 = vld [vmem:[#allocation2 + $0x158] sm:$0x33]
      %v3799 = vld [vmem:[#allocation2 + $0x160] sm:$0x33]
      %v3800 = vld [vmem:[%s5] sm:$0xff]
      %v3801 = vld [vmem:[%s5 + $0x8] sm:$0xff]
      %v3802 = vld [vmem:[%s5 + $0x10] sm:$0xff]
      %v3803 = vld [vmem:[%s5 + $0x18] sm:$0xff]
      %v3804 = vld [vmem:[%s5 + $0x20] sm:$0xff]
      %v3805 = vld [vmem:[%s5 + $0x28] sm:$0xff]
      %v3806 = vld [vmem:[%s5 + $0x30] sm:$0xff]
      %v3807 = vld [vmem:[%s5 + $0x38] sm:$0xff]
      %v3808 = vld [vmem:[%s5 + $0x40] sm:$0xff]
      %v3809 = vld [vmem:[%s5 + $0x48] sm:$0xff]
      %v3810 = vld [vmem:[%s5 + $0x50] sm:$0xff]
      %v3811 = vld [vmem:[%s5 + $0x58] sm:$0xff]
      %v3812 = vld [vmem:[%s5 + $0x60] sm:$0xff]
      %v3813 = vld [vmem:[%s5 + $0x68] sm:$0xff]
      %v3814 = vld [vmem:[%s5 + $0x70] sm:$0xff]
      %v3815 = vld [vmem:[%s5 + $0x78] sm:$0xff]
      %v3816 = vld [vmem:[%s5 + $0x80] sm:$0xff]
      %v3817 = vld [vmem:[%s5 + $0x88] sm:$0xff]
      %v3818 = vld [vmem:[%s5 + $0x90] sm:$0xff]
      %v3819 = vld [vmem:[%s5 + $0x98] sm:$0xff]
      %v3820 = vld [vmem:[%s5 + $0xa0] sm:$0xff]
      %v3821 = vld [vmem:[%s5 + $0xa8] sm:$0xff]
      %v3822 = vld [vmem:[%s5 + $0xb0] sm:$0xff]
      %v3823 = vld [vmem:[%s5 + $0xb8] sm:$0xff]
      %v3824 = vld [vmem:[%s5 + $0xc0] sm:$0xff]
      %v3825 = vld [vmem:[%s5 + $0xc8] sm:$0xff]
      %v3826 = vld [vmem:[%s5 + $0xd0] sm:$0xff]
      %v3827 = vld [vmem:[%s5 + $0xd8] sm:$0xff]
      %v3828 = vld [vmem:[%s5 + $0xe0] sm:$0xff]
      %v3829 = vld [vmem:[%s5 + $0xe8] sm:$0xff]
      %v3830 = vld [vmem:[%s5 + $0xf0] sm:$0xff]
      %v3831 = vld [vmem:[%s5 + $0xf8] sm:$0xff]
      %v3832 = vld [vmem:[%s5 + $0x100] sm:$0xff]
      %v3833 = vld [vmem:[%s5 + $0x108] sm:$0xff]
      %v3834 = vld [vmem:[%s5 + $0x110] sm:$0xff]
      %v3835 = vld [vmem:[%s5 + $0x118] sm:$0xff]
      %v3836 = vld [vmem:[%s5 + $0x120] sm:$0xff]
      %v3837 = vld [vmem:[%s5 + $0x128] sm:$0xff]
      %v3838 = vld [vmem:[%s5 + $0x130] sm:$0xff]
      %v3839 = vld [vmem:[%s5 + $0x138] sm:$0xff]
      %v3840 = vld [vmem:[%s5 + $0x140] sm:$0xff]
      %v3841 = vld [vmem:[%s5 + $0x148] sm:$0xff]
      %v3842 = vld [vmem:[%s5 + $0x150] sm:$0xff]
      %v3843 = vld [vmem:[%s5 + $0x158] sm:$0xff]
      %v3844 = vld [vmem:[%s5 + $0x160] sm:$0xff]
      %v3845 = vld [vmem:[%s5 + $0x168] sm:$0xff]
      %v3846 = vld [vmem:[%s5 + $0x170] sm:$0xff]
      %v3847 = vld [vmem:[%s5 + $0x178] sm:$0xff]
      %v3848 = vld [vmem:[%s5 + $0x180] sm:$0xff]
      %v3849 = vld [vmem:[%s5 + $0x188] sm:$0xff]
      %v3850 = vld [vmem:[%s5 + $0x190] sm:$0xff]
      %v3851 = vld [vmem:[%s5 + $0x198] sm:$0xff]
      %v3852 = vld [vmem:[%s5 + $0x1a0] sm:$0xff]
      %v3853 = vld [vmem:[%s5 + $0x1a8] sm:$0xff]
      %v3854 = vld [vmem:[%s5 + $0x1b0] sm:$0xff]
      %v3855 = vld [vmem:[%s5 + $0x1b8] sm:$0xff]
      %v3856 = vld [vmem:[%s5 + $0x1c0] sm:$0xff]
      %v3857 = vld [vmem:[%s5 + $0x1c8] sm:$0xff]
      %v3858 = vld [vmem:[%s5 + $0x1d0] sm:$0xff]
      %v3859 = vld [vmem:[%s5 + $0x1d8] sm:$0xff]
      %v3860 = vld [vmem:[%s5 + $0x1e0] sm:$0xff]
      %v3861 = vld [vmem:[%s5 + $0x1e8] sm:$0xff]
      %v3862 = vld [vmem:[%s5 + $0x1f0] sm:$0xff]
      %v3863 = vld [vmem:[%s5 + $0x1f8] sm:$0xff]
      %v3864 = vld [vmem:[%s5 + $0x200] sm:$0xff]
      %v3865 = vld [vmem:[%s5 + $0x208] sm:$0xff]
      %v3866 = vld [vmem:[%s5 + $0x210] sm:$0xff]
      %v3867 = vld [vmem:[%s5 + $0x218] sm:$0xff]
      %v3868 = vld [vmem:[%s5 + $0x220] sm:$0xff]
      %v3869 = vld [vmem:[%s5 + $0x228] sm:$0xff]
      %v3870 = vld [vmem:[%s5 + $0x230] sm:$0xff]
      %v3871 = vld [vmem:[%s5 + $0x238] sm:$0xff]
      %v3872 = vld [vmem:[%s5 + $0x240] sm:$0xff]
      %v3873 = vld [vmem:[%s5 + $0x248] sm:$0xff]
      %v3874 = vld [vmem:[%s5 + $0x250] sm:$0xff]
      %v3875 = vld [vmem:[%s5 + $0x258] sm:$0xff]
      %v3876 = vld [vmem:[%s5 + $0x260] sm:$0xff]
      %v3877 = vld [vmem:[%s5 + $0x268] sm:$0xff]
      %v3878 = vld [vmem:[%s5 + $0x270] sm:$0xff]
      %v3879 = vld [vmem:[%s5 + $0x278] sm:$0xff]
      %v3880 = vld [vmem:[%s5 + $0x280] sm:$0xff]
      %v3881 = vld [vmem:[%s5 + $0x288] sm:$0xff]
      %v3882 = vld [vmem:[%s5 + $0x290] sm:$0xff]
      %v3883 = vld [vmem:[%s5 + $0x298] sm:$0xff]
      %v3884 = vld [vmem:[%s5 + $0x2a0] sm:$0xff]
      %v3885 = vld [vmem:[%s5 + $0x2a8] sm:$0xff]
      %v3886 = vld [vmem:[%s5 + $0x2b0] sm:$0xff]
      %v3887 = vld [vmem:[%s5 + $0x2b8] sm:$0xff]
      %v3888 = vld [vmem:[%s5 + $0x2c0] sm:$0xff]
      %v3889 = vld [vmem:[%s5 + $0x2c8] sm:$0xff]
      %v3890 = vld [vmem:[%s5 + $0x2d0] sm:$0xff]
      %v3891 = vld [vmem:[%s5 + $0x2d8] sm:$0xff]
      %v3892 = vld [vmem:[%s5 + $0x2e0] sm:$0xff]
      %v3893 = vld [vmem:[%s5 + $0x2e8] sm:$0xff]
      %v3894 = vld [vmem:[%s5 + $0x2f0] sm:$0xff]
      %v3895 = vld [vmem:[%s5 + $0x2f8] sm:$0xff]
      %v3896 = vld [vmem:[%s5 + $0x300] sm:$0xff]
      %v3897 = vld [vmem:[%s5 + $0x308] sm:$0xff]
      %v3898 = vld [vmem:[%s5 + $0x310] sm:$0xff]
      %v3899 = vld [vmem:[%s5 + $0x318] sm:$0xff]
      %v3900 = vld [vmem:[%s5 + $0x320] sm:$0xff]
      %v3901 = vld [vmem:[%s5 + $0x328] sm:$0xff]
      %v3902 = vld [vmem:[%s5 + $0x330] sm:$0xff]
      %v3903 = vld [vmem:[%s5 + $0x338] sm:$0xff]
      %v3904 = vld [vmem:[%s5 + $0x340] sm:$0xff]
      %v3905 = vld [vmem:[%s5 + $0x348] sm:$0xff]
      %v3906 = vld [vmem:[%s5 + $0x350] sm:$0xff]
      %v3907 = vld [vmem:[%s5 + $0x358] sm:$0xff]
      %v3908 = vld [vmem:[%s5 + $0x360] sm:$0xff]
      %v3909 = vld [vmem:[%s5 + $0x368] sm:$0xff]
      %v3910 = vld [vmem:[%s5 + $0x370] sm:$0xff]
      %v3911 = vld [vmem:[%s5 + $0x378] sm:$0xff]
      %v3912 = vld [vmem:[%s5 + $0x380] sm:$0xff]
      %v3913 = vld [vmem:[%s5 + $0x388] sm:$0xff]
      %v3914 = vld [vmem:[%s5 + $0x390] sm:$0xff]
      %v3915 = vld [vmem:[%s5 + $0x398] sm:$0xff]
      %v3916 = vld [vmem:[%s5 + $0x3a0] sm:$0xff]
      %v3917 = vld [vmem:[%s5 + $0x3a8] sm:$0xff]
      %v3918 = vld [vmem:[%s5 + $0x3b0] sm:$0xff]
      %v3919 = vld [vmem:[%s5 + $0x3b8] sm:$0xff]
      %v3920 = vld [vmem:[%s5 + $0x3c0] sm:$0xff]
      %v3921 = vld [vmem:[%s5 + $0x3c8] sm:$0xff]
      %v3922 = vld [vmem:[%s5 + $0x3d0] sm:$0xff]
      %v3923 = vld [vmem:[%s5 + $0x3d8] sm:$0xff]
      %v3924 = vld [vmem:[%s5 + $0x3e0] sm:$0xff]
      %v3925 = vld [vmem:[%s5 + $0x3e8] sm:$0xff]
      %v3926 = vld [vmem:[%s5 + $0x3f0] sm:$0xff]
      %v3927 = vld [vmem:[%s5 + $0x3f8] sm:$0xff]
      %v3928 = vld [vmem:[%s5 + $0x400] sm:$0xff]
      %v3929 = vld [vmem:[%s5 + $0x408] sm:$0xff]
      %v3930 = vld [vmem:[%s5 + $0x410] sm:$0xff]
      %v3931 = vld [vmem:[%s5 + $0x418] sm:$0xff]
      %v3932 = vld [vmem:[%s5 + $0x420] sm:$0xff]
      %v3933 = vld [vmem:[%s5 + $0x428] sm:$0xff]
      %v3934 = vld [vmem:[%s5 + $0x430] sm:$0xff]
      %v3935 = vld [vmem:[%s5 + $0x438] sm:$0xff]
      %v3936 = vld [vmem:[%s5 + $0x440] sm:$0xff]
      %v3937 = vld [vmem:[%s5 + $0x448] sm:$0xff]
      %v3938 = vld [vmem:[%s5 + $0x450] sm:$0xff]
      %v3939 = vld [vmem:[%s5 + $0x458] sm:$0xff]
      %v3940 = vld [vmem:[%s5 + $0x460] sm:$0xff]
      %v3941 = vld [vmem:[%s5 + $0x468] sm:$0xff]
      %v3942 = vld [vmem:[%s5 + $0x470] sm:$0xff]
      %v3943 = vld [vmem:[%s5 + $0x478] sm:$0xff]
      %v3944 = vld [vmem:[%s5 + $0x480] sm:$0xff]
      %v3945 = vld [vmem:[%s5 + $0x488] sm:$0xff]
      %v3946 = vld [vmem:[%s5 + $0x490] sm:$0xff]
      %v3947 = vld [vmem:[%s5 + $0x498] sm:$0xff]
      %v3948 = vld [vmem:[%s5 + $0x4a0] sm:$0xff]
      %v3949 = vld [vmem:[%s5 + $0x4a8] sm:$0xff]
      %v3950 = vld [vmem:[%s5 + $0x4b0] sm:$0xff]
      %v3951 = vld [vmem:[%s5 + $0x4b8] sm:$0xff]
      %v3952 = vld [vmem:[%s5 + $0x4c0] sm:$0xff]
      %v3953 = vld [vmem:[%s5 + $0x4c8] sm:$0xff]
      %v3954 = vld [vmem:[%s5 + $0x4d0] sm:$0xff]
      %v3955 = vld [vmem:[%s5 + $0x4d8] sm:$0xff]
      %v3956 = vld [vmem:[%s5 + $0x4e0] sm:$0xff]
      %v3957 = vld [vmem:[%s5 + $0x4e8] sm:$0xff]
      %v3958 = vld [vmem:[%s5 + $0x4f0] sm:$0xff]
      %v3959 = vld [vmem:[%s5 + $0x4f8] sm:$0xff]
      %v3960 = vld [vmem:[%s5 + $0x500] sm:$0xff]
      %v3961 = vld [vmem:[%s5 + $0x508] sm:$0xff]
      %v3962 = vld [vmem:[%s5 + $0x510] sm:$0xff]
      %v3963 = vld [vmem:[%s5 + $0x518] sm:$0xff]
      %v3964 = vld [vmem:[%s5 + $0x520] sm:$0xff]
      %v3965 = vld [vmem:[%s5 + $0x528] sm:$0xff]
      %v3966 = vld [vmem:[%s5 + $0x530] sm:$0xff]
      %v3967 = vld [vmem:[%s5 + $0x538] sm:$0xff]
      %v3968 = vld [vmem:[%s5 + $0x540] sm:$0xff]
      %v3969 = vld [vmem:[%s5 + $0x548] sm:$0xff]
      %v3970 = vld [vmem:[%s5 + $0x550] sm:$0xff]
      %v3971 = vld [vmem:[%s5 + $0x558] sm:$0xff]
      %v3972 = vld [vmem:[%s5 + $0x560] sm:$0xff]
      %v3973 = vld [vmem:[%s5 + $0x568] sm:$0xff]
      %v3974 = vld [vmem:[%s5 + $0x570] sm:$0xff]
      %v3975 = vld [vmem:[%s5 + $0x578] sm:$0xff]
      %v3976 = vld [vmem:[%s5 + $0x580] sm:$0xff]
      %v3977 = vld [vmem:[%s5 + $0x588] sm:$0xff]
      %v3978 = vld [vmem:[%s5 + $0x590] sm:$0xff]
      %v3979 = vld [vmem:[%s5 + $0x598] sm:$0xff]
      %v3980 = vld [vmem:[%s5 + $0x5a0] sm:$0xff]
      %v3981 = vld [vmem:[%s5 + $0x5a8] sm:$0xff]
      %v3982 = vld [vmem:[%s5 + $0x5b0] sm:$0xff]
      %v3983 = vld [vmem:[%s5 + $0x5b8] sm:$0xff]
      %v3984 = vld [vmem:[%s5 + $0x5c0] sm:$0xff]
      %v3985 = vld [vmem:[%s5 + $0x5c8] sm:$0xff]
      %v3986 = vld [vmem:[%s5 + $0x5d0] sm:$0xff]
      %v3987 = vld [vmem:[%s5 + $0x5d8] sm:$0xff]
      %v3988 = vld [vmem:[%s5 + $0x5e0] sm:$0xff]
      %v3989 = vld [vmem:[%s5 + $0x5e8] sm:$0xff]
      %v3990 = vld [vmem:[%s5 + $0x5f0] sm:$0xff]
      %v3991 = vld [vmem:[%s5 + $0x5f8] sm:$0xff]
      %v3992 = vld [vmem:[%s5 + $0x600] sm:$0xff]
      %v3993 = vld [vmem:[%s5 + $0x608] sm:$0xff]
      %v3994 = vld [vmem:[%s5 + $0x610] sm:$0xff]
      %v3995 = vld [vmem:[%s5 + $0x618] sm:$0xff]
      %v3996 = vld [vmem:[%s5 + $0x620] sm:$0xff]
      %v3997 = vld [vmem:[%s5 + $0x628] sm:$0xff]
      %v3998 = vld [vmem:[%s5 + $0x630] sm:$0xff]
      %v3999 = vld [vmem:[%s5 + $0x638] sm:$0xff]
      %v4000 = vld [vmem:[%s5 + $0x640] sm:$0xff]
      %v4001 = vld [vmem:[%s5 + $0x648] sm:$0xff]
      %v4002 = vld [vmem:[%s5 + $0x650] sm:$0xff]
      %v4003 = vld [vmem:[%s5 + $0x658] sm:$0xff]
      %v4004 = vld [vmem:[%s5 + $0x660] sm:$0xff]
      %v4005 = vld [vmem:[%s5 + $0x668] sm:$0xff]
      %v4006 = vld [vmem:[%s5 + $0x670] sm:$0xff]
      %v4007 = vld [vmem:[%s5 + $0x678] sm:$0xff]
      %v4008 = vld [vmem:[%s5 + $0x680] sm:$0xff]
      %v4009 = vld [vmem:[%s5 + $0x688] sm:$0xff]
      %v4010 = vld [vmem:[%s5 + $0x690] sm:$0xff]
      %v4011 = vld [vmem:[%s5 + $0x698] sm:$0xff]
      %v4012 = vld [vmem:[%s5 + $0x6a0] sm:$0xff]
      %v4013 = vld [vmem:[%s5 + $0x6a8] sm:$0xff]
      %v4014 = vld [vmem:[%s5 + $0x6b0] sm:$0xff]
      %v4015 = vld [vmem:[%s5 + $0x6b8] sm:$0xff]
      %v4016 = vld [vmem:[%s5 + $0x6c0] sm:$0xff]
      %v4017 = vld [vmem:[%s5 + $0x6c8] sm:$0xff]
      %v4018 = vld [vmem:[%s5 + $0x6d0] sm:$0xff]
      %v4019 = vld [vmem:[%s5 + $0x6d8] sm:$0xff]
      %v4020 = vld [vmem:[%s5 + $0x6e0] sm:$0xff]
      %v4021 = vld [vmem:[%s5 + $0x6e8] sm:$0xff]
      %v4022 = vld [vmem:[%s5 + $0x6f0] sm:$0xff]
      %v4023 = vld [vmem:[%s5 + $0x6f8] sm:$0xff]
      %v4024 = vld [vmem:[%s5 + $0x700] sm:$0xff]
      %v4025 = vld [vmem:[%s5 + $0x708] sm:$0xff]
      %v4026 = vld [vmem:[%s5 + $0x710] sm:$0xff]
      %v4027 = vld [vmem:[%s5 + $0x718] sm:$0xff]
      %v4028 = vld [vmem:[%s5 + $0x720] sm:$0xff]
      %v4029 = vld [vmem:[%s5 + $0x728] sm:$0xff]
      %v4030 = vld [vmem:[%s5 + $0x730] sm:$0xff]
      %v4031 = vld [vmem:[%s5 + $0x738] sm:$0xff]
      %v4032 = vld [vmem:[%s5 + $0x740] sm:$0xff]
      %v4033 = vld [vmem:[%s5 + $0x748] sm:$0xff]
      %v4034 = vld [vmem:[%s5 + $0x750] sm:$0xff]
      %v4035 = vld [vmem:[%s5 + $0x758] sm:$0xff]
      %v4036 = vld [vmem:[%s5 + $0x760] sm:$0xff]
      %v4037 = vld [vmem:[%s5 + $0x768] sm:$0xff]
      %v4038 = vld [vmem:[%s5 + $0x770] sm:$0xff]
      %v4039 = vld [vmem:[%s5 + $0x778] sm:$0xff]
      %v4040 = vld [vmem:[%s5 + $0x780] sm:$0xff]
      %v4041 = vld [vmem:[%s5 + $0x788] sm:$0xff]
      %v4042 = vld [vmem:[%s5 + $0x790] sm:$0xff]
      %v4043 = vld [vmem:[%s5 + $0x798] sm:$0xff]
      %v4044 = vld [vmem:[%s5 + $0x7a0] sm:$0xff]
      %v4045 = vld [vmem:[%s5 + $0x7a8] sm:$0xff]
      %v4046 = vld [vmem:[%s5 + $0x7b0] sm:$0xff]
      %v4047 = vld [vmem:[%s5 + $0x7b8] sm:$0xff]
      %v4048 = vld [vmem:[%s5 + $0x7c0] sm:$0xff]
      %v4049 = vld [vmem:[%s5 + $0x7c8] sm:$0xff]
      %v4050 = vld [vmem:[%s5 + $0x7d0] sm:$0xff]
      %v4051 = vld [vmem:[%s5 + $0x7d8] sm:$0xff]
      %v4052 = vld [vmem:[%s5 + $0x7e0] sm:$0xff]
      %v4053 = vld [vmem:[%s5 + $0x7e8] sm:$0xff]
      %v4054 = vld [vmem:[%s5 + $0x7f0] sm:$0xff]
      %v4055 = vld [vmem:[%s5 + $0x7f8] sm:$0xff]
      %v4056 = vld [vmem:[%s5 + $0x800] sm:$0xff]
      %v4057 = vld [vmem:[%s5 + $0x808] sm:$0xff]
      %v4058 = vld [vmem:[%s5 + $0x810] sm:$0xff]
      %v4059 = vld [vmem:[%s5 + $0x818] sm:$0xff]
      %v4060 = vld [vmem:[%s5 + $0x820] sm:$0xff]
      %v4061 = vld [vmem:[%s5 + $0x828] sm:$0xff]
      %v4062 = vld [vmem:[%s5 + $0x830] sm:$0xff]
      %v4063 = vld [vmem:[%s5 + $0x838] sm:$0xff]
      %v4064 = vld [vmem:[%s5 + $0x840] sm:$0xff]
      %v4065 = vld [vmem:[%s5 + $0x848] sm:$0xff]
      %v4066 = vld [vmem:[%s5 + $0x850] sm:$0xff]
      %v4067 = vld [vmem:[%s5 + $0x858] sm:$0xff]
      %v4068 = vld [vmem:[%s5 + $0x860] sm:$0xff]
      %v4069 = vld [vmem:[%s5 + $0x868] sm:$0xff]
      %v4070 = vld [vmem:[%s5 + $0x870] sm:$0xff]
      %v4071 = vld [vmem:[%s5 + $0x878] sm:$0xff]
      %v4072 = vld [vmem:[%s5 + $0x880] sm:$0xff]
      %v4073 = vld [vmem:[%s5 + $0x888] sm:$0xff]
      %v4074 = vld [vmem:[%s5 + $0x890] sm:$0xff]
      %v4075 = vld [vmem:[%s5 + $0x898] sm:$0xff]
      %v4076 = vld [vmem:[%s5 + $0x8a0] sm:$0xff]
      %v4077 = vld [vmem:[%s5 + $0x8a8] sm:$0xff]
      %v4078 = vld [vmem:[%s5 + $0x8b0] sm:$0xff]
      %v4079 = vld [vmem:[%s5 + $0x8b8] sm:$0xff]
      %v4080 = vld [vmem:[%s5 + $0x8c0] sm:$0xff]
      %v4081 = vld [vmem:[%s5 + $0x8c8] sm:$0xff]
      %v4082 = vld [vmem:[%s5 + $0x8d0] sm:$0xff]
      %v4083 = vld [vmem:[%s5 + $0x8d8] sm:$0xff]
      %v4084 = vld [vmem:[%s5 + $0x8e0] sm:$0xff]
      %v4085 = vld [vmem:[%s5 + $0x8e8] sm:$0xff]
      %v4086 = vld [vmem:[%s5 + $0x8f0] sm:$0xff]
      %v4087 = vld [vmem:[%s5 + $0x8f8] sm:$0xff]
      %v4133 = vunpack.c.l.b16 %v3755
      %v4134 = vunpack.c.h.b16 %v3755
      %v4135 = vunpack.c.l.b16 %v3756
      %v4136 = vunpack.c.h.b16 %v3756
      %v4137 = vunpack.c.l.b16 %v3757
      %v4138 = vunpack.c.h.b16 %v3757
      %v4139 = vunpack.c.l.b16 %v3758
      %v4140 = vunpack.c.h.b16 %v3758
      %v4141 = vunpack.c.l.b16 %v3759
      %v4142 = vunpack.c.h.b16 %v3759
      %v4143 = vunpack.c.l.b16 %v3760
      %v4144 = vunpack.c.h.b16 %v3760
      %v4145 = vunpack.c.l.b16 %v3761
      %v4146 = vunpack.c.h.b16 %v3761
      %v4147 = vunpack.c.l.b16 %v3762
      %v4148 = vunpack.c.h.b16 %v3762
      %v4149 = vunpack.c.l.b16 %v3763
      %v4150 = vunpack.c.h.b16 %v3763
      %v4151 = vunpack.c.l.b16 %v3764
      %v4152 = vunpack.c.h.b16 %v3764
      %v4153 = vunpack.c.l.b16 %v3765
      %v4154 = vunpack.c.h.b16 %v3765
      %v4155 = vunpack.c.l.b16 %v3766
      %v4156 = vunpack.c.h.b16 %v3766
      %v4157 = vunpack.c.l.b16 %v3767
      %v4158 = vunpack.c.h.b16 %v3767
      %v4159 = vunpack.c.l.b16 %v3768
      %v4160 = vunpack.c.h.b16 %v3768
      %v4161 = vunpack.c.l.b16 %v3769
      %v4162 = vunpack.c.h.b16 %v3769
      %v4163 = vunpack.c.l.b16 %v3770
      %v4164 = vunpack.c.h.b16 %v3770
      %v4165 = vunpack.c.l.b16 %v3771
      %v4166 = vunpack.c.h.b16 %v3771
      %v4167 = vunpack.c.l.b16 %v3772
      %v4168 = vunpack.c.h.b16 %v3772
      %v4169 = vunpack.c.l.b16 %v3773
      %v4170 = vunpack.c.h.b16 %v3773
      %v4171 = vunpack.c.l.b16 %v3774
      %v4172 = vunpack.c.h.b16 %v3774
      %v4173 = vunpack.c.l.b16 %v3775
      %v4174 = vunpack.c.h.b16 %v3775
      %v4175 = vunpack.c.l.b16 %v3776
      %v4176 = vunpack.c.h.b16 %v3776
      %v4177 = vunpack.c.l.b16 %v3777
      %v4178 = vunpack.c.h.b16 %v3777
      %v4179 = vunpack.c.l.b16 %v3778
      %v4180 = vunpack.c.h.b16 %v3778
      %v4181 = vunpack.c.l.b16 %v3779
      %v4182 = vunpack.c.h.b16 %v3779
      %v4183 = vunpack.c.l.b16 %v3780
      %v4184 = vunpack.c.h.b16 %v3780
      %v4185 = vunpack.c.l.b16 %v3781
      %v4186 = vunpack.c.h.b16 %v3781
      %v4187 = vunpack.c.l.b16 %v3782
      %v4188 = vunpack.c.h.b16 %v3782
      %v4189 = vunpack.c.l.b16 %v3783
      %v4190 = vunpack.c.h.b16 %v3783
      %v4191 = vunpack.c.l.b16 %v3784
      %v4192 = vunpack.c.h.b16 %v3784
      %v4193 = vunpack.c.l.b16 %v3785
      %v4194 = vunpack.c.h.b16 %v3785
      %v4195 = vunpack.c.l.b16 %v3786
      %v4196 = vunpack.c.h.b16 %v3786
      %v4197 = vunpack.c.l.b16 %v3787
      %v4198 = vunpack.c.h.b16 %v3787
      %v4199 = vunpack.c.l.b16 %v3788
      %v4200 = vunpack.c.h.b16 %v3788
      %v4201 = vunpack.c.l.b16 %v3789
      %v4202 = vunpack.c.h.b16 %v3789
      %v4203 = vunpack.c.l.b16 %v3790
      %v4204 = vunpack.c.h.b16 %v3790
      %v4205 = vunpack.c.l.b16 %v3791
      %v4206 = vunpack.c.h.b16 %v3791
      %v4207 = vunpack.c.l.b16 %v3792
      %v4208 = vunpack.c.h.b16 %v3792
      %v4209 = vunpack.c.l.b16 %v3793
      %v4210 = vunpack.c.h.b16 %v3793
      %v4211 = vunpack.c.l.b16 %v3794
      %v4212 = vunpack.c.h.b16 %v3794
      %v4213 = vunpack.c.l.b16 %v3795
      %v4214 = vunpack.c.h.b16 %v3795
      %v4215 = vunpack.c.l.b16 %v3796
      %v4216 = vunpack.c.h.b16 %v3796
      %v4217 = vunpack.c.l.b16 %v3797
      %v4218 = vunpack.c.h.b16 %v3797
      %v4219 = vunpack.c.l.b16 %v3798
      %v4220 = vunpack.c.h.b16 %v3798
      %v4221 = vunpack.c.l.b16 %v3799
      %v4222 = vunpack.c.h.b16 %v3799
      %v4223 = vpack.c.b16 %v4151, %v4133
      %v4224 = vpack.c.b16 %v4152, %v4134
      %v4225 = vpack.c.b16 %v4153, %v4135
      %v4226 = vpack.c.b16 %v4154, %v4136
      %v4227 = vpack.c.b16 %v4155, %v4137
      %v4228 = vpack.c.b16 %v4156, %v4138
      %v4229 = vpack.c.b16 %v4157, %v4139
      %v4230 = vpack.c.b16 %v4158, %v4140
      %v4231 = vpack.c.b16 %v4159, %v4141
      %v4232 = vpack.c.b16 %v4160, %v4142
      %v4233 = vpack.c.b16 %v4161, %v4143
      %v4234 = vpack.c.b16 %v4162, %v4144
      %v4235 = vpack.c.b16 %v4163, %v4145
      %v4236 = vpack.c.b16 %v4164, %v4146
      %v4237 = vpack.c.b16 %v4165, %v4147
      %v4238 = vpack.c.b16 %v4166, %v4148
      %v4239 = vpack.c.b16 %v4167, %v4149
      %v4240 = vpack.c.b16 %v4168, %v4150
      %v4241 = vpack.c.b16 %v4187, %v4169
      %v4242 = vpack.c.b16 %v4188, %v4170
      %v4243 = vpack.c.b16 %v4189, %v4171
      %v4244 = vpack.c.b16 %v4190, %v4172
      %v4245 = vpack.c.b16 %v4191, %v4173
      %v4246 = vpack.c.b16 %v4192, %v4174
      %v4247 = vpack.c.b16 %v4193, %v4175
      %v4248 = vpack.c.b16 %v4194, %v4176
      %v4249 = vpack.c.b16 %v4195, %v4177
      %v4250 = vpack.c.b16 %v4196, %v4178
      %v4251 = vpack.c.b16 %v4197, %v4179
      %v4252 = vpack.c.b16 %v4198, %v4180
      %v4253 = vpack.c.b16 %v4199, %v4181
      %v4254 = vpack.c.b16 %v4200, %v4182
      %v4255 = vpack.c.b16 %v4201, %v4183
      %v4256 = vpack.c.b16 %v4202, %v4184
      %v4257 = vpack.c.b16 %v4203, %v4185
      %v4258 = vpack.c.b16 %v4204, %v4186
      %v4259 = vpack.c.b16 %v4205, %v4205
      %v4260 = vpack.c.b16 %v4206, %v4206
      %v4261 = vpack.c.b16 %v4207, %v4207
      %v4262 = vpack.c.b16 %v4208, %v4208
      %v4263 = vpack.c.b16 %v4209, %v4209
      %v4264 = vpack.c.b16 %v4210, %v4210
      %v4265 = vpack.c.b16 %v4211, %v4211
      %v4266 = vpack.c.b16 %v4212, %v4212
      %v4267 = vpack.c.b16 %v4213, %v4213
      %v4268 = vpack.c.b16 %v4214, %v4214
      %v4269 = vpack.c.b16 %v4215, %v4215
      %v4270 = vpack.c.b16 %v4216, %v4216
      %v4271 = vpack.c.b16 %v4217, %v4217
      %v4272 = vpack.c.b16 %v4218, %v4218
      %v4273 = vpack.c.b16 %v4219, %v4219
      %v4274 = vpack.c.b16 %v4220, %v4220
      %v4275 = vpack.c.b16 %v4221, %v4221
      %v4276 = vpack.c.b16 %v4222, %v4222
      %v4619 = vunpack.c.l.b16 %v3800
      %v4620 = vunpack.c.h.b16 %v3800
      %v4621 = vunpack.c.l.b16 %v3801
      %v4622 = vunpack.c.h.b16 %v3801
      %v4623 = vunpack.c.l.b16 %v3802
      %v4624 = vunpack.c.h.b16 %v3802
      %v4625 = vunpack.c.l.b16 %v3803
      %v4626 = vunpack.c.h.b16 %v3803
      %v4627 = vunpack.c.l.b16 %v3804
      %v4628 = vunpack.c.h.b16 %v3804
      %v4629 = vunpack.c.l.b16 %v3805
      %v4630 = vunpack.c.h.b16 %v3805
      %v4631 = vunpack.c.l.b16 %v3806
      %v4632 = vunpack.c.h.b16 %v3806
      %v4633 = vunpack.c.l.b16 %v3807
      %v4634 = vunpack.c.h.b16 %v3807
      %v4635 = vunpack.c.l.b16 %v3808
      %v4636 = vunpack.c.h.b16 %v3808
      %v4637 = vunpack.c.l.b16 %v3809
      %v4638 = vunpack.c.h.b16 %v3809
      %v4639 = vunpack.c.l.b16 %v3810
      %v4640 = vunpack.c.h.b16 %v3810
      %v4641 = vunpack.c.l.b16 %v3811
      %v4642 = vunpack.c.h.b16 %v3811
      %v4643 = vunpack.c.l.b16 %v3812
      %v4644 = vunpack.c.h.b16 %v3812
      %v4645 = vunpack.c.l.b16 %v3813
      %v4646 = vunpack.c.h.b16 %v3813
      %v4647 = vunpack.c.l.b16 %v3814
      %v4648 = vunpack.c.h.b16 %v3814
      %v4649 = vunpack.c.l.b16 %v3815
      %v4650 = vunpack.c.h.b16 %v3815
      %v4651 = vunpack.c.l.b16 %v3816
      %v4652 = vunpack.c.h.b16 %v3816
      %v4653 = vunpack.c.l.b16 %v3817
      %v4654 = vunpack.c.h.b16 %v3817
      %v4655 = vunpack.c.l.b16 %v3818
      %v4656 = vunpack.c.h.b16 %v3818
      %v4657 = vunpack.c.l.b16 %v3819
      %v4658 = vunpack.c.h.b16 %v3819
      %v4659 = vunpack.c.l.b16 %v3820
      %v4660 = vunpack.c.h.b16 %v3820
      %v4661 = vunpack.c.l.b16 %v3821
      %v4662 = vunpack.c.h.b16 %v3821
      %v4663 = vunpack.c.l.b16 %v3822
      %v4664 = vunpack.c.h.b16 %v3822
      %v4665 = vunpack.c.l.b16 %v3823
      %v4666 = vunpack.c.h.b16 %v3823
      %v4667 = vunpack.c.l.b16 %v3824
      %v4668 = vunpack.c.h.b16 %v3824
      %v4669 = vunpack.c.l.b16 %v3825
      %v4670 = vunpack.c.h.b16 %v3825
      %v4671 = vunpack.c.l.b16 %v3826
      %v4672 = vunpack.c.h.b16 %v3826
      %v4673 = vunpack.c.l.b16 %v3827
      %v4674 = vunpack.c.h.b16 %v3827
      %v4675 = vunpack.c.l.b16 %v3828
      %v4676 = vunpack.c.h.b16 %v3828
      %v4677 = vunpack.c.l.b16 %v3829
      %v4678 = vunpack.c.h.b16 %v3829
      %v4679 = vunpack.c.l.b16 %v3830
      %v4680 = vunpack.c.h.b16 %v3830
      %v4681 = vunpack.c.l.b16 %v3831
      %v4682 = vunpack.c.h.b16 %v3831
      %v4683 = vunpack.c.l.b16 %v3832
      %v4684 = vunpack.c.h.b16 %v3832
      %v4685 = vunpack.c.l.b16 %v3833
      %v4686 = vunpack.c.h.b16 %v3833
      %v4687 = vunpack.c.l.b16 %v3834
      %v4688 = vunpack.c.h.b16 %v3834
      %v4689 = vunpack.c.l.b16 %v3835
      %v4690 = vunpack.c.h.b16 %v3835
      %v4691 = vunpack.c.l.b16 %v3836
      %v4692 = vunpack.c.h.b16 %v3836
      %v4693 = vunpack.c.l.b16 %v3837
      %v4694 = vunpack.c.h.b16 %v3837
      %v4695 = vunpack.c.l.b16 %v3838
      %v4696 = vunpack.c.h.b16 %v3838
      %v4697 = vunpack.c.l.b16 %v3839
      %v4698 = vunpack.c.h.b16 %v3839
      %v4699 = vunpack.c.l.b16 %v3840
      %v4700 = vunpack.c.h.b16 %v3840
      %v4701 = vunpack.c.l.b16 %v3841
      %v4702 = vunpack.c.h.b16 %v3841
      %v4703 = vunpack.c.l.b16 %v3842
      %v4704 = vunpack.c.h.b16 %v3842
      %v4705 = vunpack.c.l.b16 %v3843
      %v4706 = vunpack.c.h.b16 %v3843
      %v4707 = vunpack.c.l.b16 %v3844
      %v4708 = vunpack.c.h.b16 %v3844
      %v4709 = vunpack.c.l.b16 %v3845
      %v4710 = vunpack.c.h.b16 %v3845
      %v4711 = vunpack.c.l.b16 %v3846
      %v4712 = vunpack.c.h.b16 %v3846
      %v4713 = vunpack.c.l.b16 %v3847
      %v4714 = vunpack.c.h.b16 %v3847
      %v4715 = vunpack.c.l.b16 %v3848
      %v4716 = vunpack.c.h.b16 %v3848
      %v4717 = vunpack.c.l.b16 %v3849
      %v4718 = vunpack.c.h.b16 %v3849
      %v4719 = vunpack.c.l.b16 %v3850
      %v4720 = vunpack.c.h.b16 %v3850
      %v4721 = vunpack.c.l.b16 %v3851
      %v4722 = vunpack.c.h.b16 %v3851
      %v4723 = vunpack.c.l.b16 %v3852
      %v4724 = vunpack.c.h.b16 %v3852
      %v4725 = vunpack.c.l.b16 %v3853
      %v4726 = vunpack.c.h.b16 %v3853
      %v4727 = vunpack.c.l.b16 %v3854
      %v4728 = vunpack.c.h.b16 %v3854
      %v4729 = vunpack.c.l.b16 %v3855
      %v4730 = vunpack.c.h.b16 %v3855
      %v4731 = vunpack.c.l.b16 %v3856
      %v4732 = vunpack.c.h.b16 %v3856
      %v4733 = vunpack.c.l.b16 %v3857
      %v4734 = vunpack.c.h.b16 %v3857
      %v4735 = vunpack.c.l.b16 %v3858
      %v4736 = vunpack.c.h.b16 %v3858
      %v4737 = vunpack.c.l.b16 %v3859
      %v4738 = vunpack.c.h.b16 %v3859
      %v4739 = vunpack.c.l.b16 %v3860
      %v4740 = vunpack.c.h.b16 %v3860
      %v4741 = vunpack.c.l.b16 %v3861
      %v4742 = vunpack.c.h.b16 %v3861
      %v4743 = vunpack.c.l.b16 %v3862
      %v4744 = vunpack.c.h.b16 %v3862
      %v4745 = vunpack.c.l.b16 %v3863
      %v4746 = vunpack.c.h.b16 %v3863
      %v4747 = vunpack.c.l.b16 %v3864
      %v4748 = vunpack.c.h.b16 %v3864
      %v4749 = vunpack.c.l.b16 %v3865
      %v4750 = vunpack.c.h.b16 %v3865
      %v4751 = vunpack.c.l.b16 %v3866
      %v4752 = vunpack.c.h.b16 %v3866
      %v4753 = vunpack.c.l.b16 %v3867
      %v4754 = vunpack.c.h.b16 %v3867
      %v4755 = vunpack.c.l.b16 %v3868
      %v4756 = vunpack.c.h.b16 %v3868
      %v4757 = vunpack.c.l.b16 %v3869
      %v4758 = vunpack.c.h.b16 %v3869
      %v4759 = vunpack.c.l.b16 %v3870
      %v4760 = vunpack.c.h.b16 %v3870
      %v4761 = vunpack.c.l.b16 %v3871
      %v4762 = vunpack.c.h.b16 %v3871
      %v4763 = vunpack.c.l.b16 %v3872
      %v4764 = vunpack.c.h.b16 %v3872
      %v4765 = vunpack.c.l.b16 %v3873
      %v4766 = vunpack.c.h.b16 %v3873
      %v4767 = vunpack.c.l.b16 %v3874
      %v4768 = vunpack.c.h.b16 %v3874
      %v4769 = vunpack.c.l.b16 %v3875
      %v4770 = vunpack.c.h.b16 %v3875
      %v4771 = vunpack.c.l.b16 %v3876
      %v4772 = vunpack.c.h.b16 %v3876
      %v4773 = vunpack.c.l.b16 %v3877
      %v4774 = vunpack.c.h.b16 %v3877
      %v4775 = vunpack.c.l.b16 %v3878
      %v4776 = vunpack.c.h.b16 %v3878
      %v4777 = vunpack.c.l.b16 %v3879
      %v4778 = vunpack.c.h.b16 %v3879
      %v4779 = vunpack.c.l.b16 %v3880
      %v4780 = vunpack.c.h.b16 %v3880
      %v4781 = vunpack.c.l.b16 %v3881
      %v4782 = vunpack.c.h.b16 %v3881
      %v4783 = vunpack.c.l.b16 %v3882
      %v4784 = vunpack.c.h.b16 %v3882
      %v4785 = vunpack.c.l.b16 %v3883
      %v4786 = vunpack.c.h.b16 %v3883
      %v4787 = vunpack.c.l.b16 %v3884
      %v4788 = vunpack.c.h.b16 %v3884
      %v4789 = vunpack.c.l.b16 %v3885
      %v4790 = vunpack.c.h.b16 %v3885
      %v4791 = vunpack.c.l.b16 %v3886
      %v4792 = vunpack.c.h.b16 %v3886
      %v4793 = vunpack.c.l.b16 %v3887
      %v4794 = vunpack.c.h.b16 %v3887
      %v4795 = vunpack.c.l.b16 %v3888
      %v4796 = vunpack.c.h.b16 %v3888
      %v4797 = vunpack.c.l.b16 %v3889
      %v4798 = vunpack.c.h.b16 %v3889
      %v4799 = vunpack.c.l.b16 %v3890
      %v4800 = vunpack.c.h.b16 %v3890
      %v4801 = vunpack.c.l.b16 %v3891
      %v4802 = vunpack.c.h.b16 %v3891
      %v4803 = vunpack.c.l.b16 %v3892
      %v4804 = vunpack.c.h.b16 %v3892
      %v4805 = vunpack.c.l.b16 %v3893
      %v4806 = vunpack.c.h.b16 %v3893
      %v4807 = vunpack.c.l.b16 %v3894
      %v4808 = vunpack.c.h.b16 %v3894
      %v4809 = vunpack.c.l.b16 %v3895
      %v4810 = vunpack.c.h.b16 %v3895
      %v4811 = vunpack.c.l.b16 %v3896
      %v4812 = vunpack.c.h.b16 %v3896
      %v4813 = vunpack.c.l.b16 %v3897
      %v4814 = vunpack.c.h.b16 %v3897
      %v4815 = vunpack.c.l.b16 %v3898
      %v4816 = vunpack.c.h.b16 %v3898
      %v4817 = vunpack.c.l.b16 %v3899
      %v4818 = vunpack.c.h.b16 %v3899
      %v4819 = vunpack.c.l.b16 %v3900
      %v4820 = vunpack.c.h.b16 %v3900
      %v4821 = vunpack.c.l.b16 %v3901
      %v4822 = vunpack.c.h.b16 %v3901
      %v4823 = vunpack.c.l.b16 %v3902
      %v4824 = vunpack.c.h.b16 %v3902
      %v4825 = vunpack.c.l.b16 %v3903
      %v4826 = vunpack.c.h.b16 %v3903
      %v4827 = vunpack.c.l.b16 %v3904
      %v4828 = vunpack.c.h.b16 %v3904
      %v4829 = vunpack.c.l.b16 %v3905
      %v4830 = vunpack.c.h.b16 %v3905
      %v4831 = vunpack.c.l.b16 %v3906
      %v4832 = vunpack.c.h.b16 %v3906
      %v4833 = vunpack.c.l.b16 %v3907
      %v4834 = vunpack.c.h.b16 %v3907
      %v4835 = vunpack.c.l.b16 %v3908
      %v4836 = vunpack.c.h.b16 %v3908
      %v4837 = vunpack.c.l.b16 %v3909
      %v4838 = vunpack.c.h.b16 %v3909
      %v4839 = vunpack.c.l.b16 %v3910
      %v4840 = vunpack.c.h.b16 %v3910
      %v4841 = vunpack.c.l.b16 %v3911
      %v4842 = vunpack.c.h.b16 %v3911
      %v4843 = vunpack.c.l.b16 %v3912
      %v4844 = vunpack.c.h.b16 %v3912
      %v4845 = vunpack.c.l.b16 %v3913
      %v4846 = vunpack.c.h.b16 %v3913
      %v4847 = vunpack.c.l.b16 %v3914
      %v4848 = vunpack.c.h.b16 %v3914
      %v4849 = vunpack.c.l.b16 %v3915
      %v4850 = vunpack.c.h.b16 %v3915
      %v4851 = vunpack.c.l.b16 %v3916
      %v4852 = vunpack.c.h.b16 %v3916
      %v4853 = vunpack.c.l.b16 %v3917
      %v4854 = vunpack.c.h.b16 %v3917
      %v4855 = vunpack.c.l.b16 %v3918
      %v4856 = vunpack.c.h.b16 %v3918
      %v4857 = vunpack.c.l.b16 %v3919
      %v4858 = vunpack.c.h.b16 %v3919
      %v4859 = vunpack.c.l.b16 %v3920
      %v4860 = vunpack.c.h.b16 %v3920
      %v4861 = vunpack.c.l.b16 %v3921
      %v4862 = vunpack.c.h.b16 %v3921
      %v4863 = vunpack.c.l.b16 %v3922
      %v4864 = vunpack.c.h.b16 %v3922
      %v4865 = vunpack.c.l.b16 %v3923
      %v4866 = vunpack.c.h.b16 %v3923
      %v4867 = vunpack.c.l.b16 %v3924
      %v4868 = vunpack.c.h.b16 %v3924
      %v4869 = vunpack.c.l.b16 %v3925
      %v4870 = vunpack.c.h.b16 %v3925
      %v4871 = vunpack.c.l.b16 %v3926
      %v4872 = vunpack.c.h.b16 %v3926
      %v4873 = vunpack.c.l.b16 %v3927
      %v4874 = vunpack.c.h.b16 %v3927
      %v4875 = vunpack.c.l.b16 %v3928
      %v4876 = vunpack.c.h.b16 %v3928
      %v4877 = vunpack.c.l.b16 %v3929
      %v4878 = vunpack.c.h.b16 %v3929
      %v4879 = vunpack.c.l.b16 %v3930
      %v4880 = vunpack.c.h.b16 %v3930
      %v4881 = vunpack.c.l.b16 %v3931
      %v4882 = vunpack.c.h.b16 %v3931
      %v4883 = vunpack.c.l.b16 %v3932
      %v4884 = vunpack.c.h.b16 %v3932
      %v4885 = vunpack.c.l.b16 %v3933
      %v4886 = vunpack.c.h.b16 %v3933
      %v4887 = vunpack.c.l.b16 %v3934
      %v4888 = vunpack.c.h.b16 %v3934
      %v4889 = vunpack.c.l.b16 %v3935
      %v4890 = vunpack.c.h.b16 %v3935
      %v4891 = vunpack.c.l.b16 %v3936
      %v4892 = vunpack.c.h.b16 %v3936
      %v4893 = vunpack.c.l.b16 %v3937
      %v4894 = vunpack.c.h.b16 %v3937
      %v4895 = vunpack.c.l.b16 %v3938
      %v4896 = vunpack.c.h.b16 %v3938
      %v4897 = vunpack.c.l.b16 %v3939
      %v4898 = vunpack.c.h.b16 %v3939
      %v4899 = vunpack.c.l.b16 %v3940
      %v4900 = vunpack.c.h.b16 %v3940
      %v4901 = vunpack.c.l.b16 %v3941
      %v4902 = vunpack.c.h.b16 %v3941
      %v4903 = vunpack.c.l.b16 %v3942
      %v4904 = vunpack.c.h.b16 %v3942
      %v4905 = vunpack.c.l.b16 %v3943
      %v4906 = vunpack.c.h.b16 %v3943
      %v4907 = vunpack.c.l.b16 %v3944
      %v4908 = vunpack.c.h.b16 %v3944
      %v4909 = vunpack.c.l.b16 %v3945
      %v4910 = vunpack.c.h.b16 %v3945
      %v4911 = vunpack.c.l.b16 %v3946
      %v4912 = vunpack.c.h.b16 %v3946
      %v4913 = vunpack.c.l.b16 %v3947
      %v4914 = vunpack.c.h.b16 %v3947
      %v4915 = vunpack.c.l.b16 %v3948
      %v4916 = vunpack.c.h.b16 %v3948
      %v4917 = vunpack.c.l.b16 %v3949
      %v4918 = vunpack.c.h.b16 %v3949
      %v4919 = vunpack.c.l.b16 %v3950
      %v4920 = vunpack.c.h.b16 %v3950
      %v4921 = vunpack.c.l.b16 %v3951
      %v4922 = vunpack.c.h.b16 %v3951
      %v4923 = vunpack.c.l.b16 %v3952
      %v4924 = vunpack.c.h.b16 %v3952
      %v4925 = vunpack.c.l.b16 %v3953
      %v4926 = vunpack.c.h.b16 %v3953
      %v4927 = vunpack.c.l.b16 %v3954
      %v4928 = vunpack.c.h.b16 %v3954
      %v4929 = vunpack.c.l.b16 %v3955
      %v4930 = vunpack.c.h.b16 %v3955
      %v4931 = vunpack.c.l.b16 %v3956
      %v4932 = vunpack.c.h.b16 %v3956
      %v4933 = vunpack.c.l.b16 %v3957
      %v4934 = vunpack.c.h.b16 %v3957
      %v4935 = vunpack.c.l.b16 %v3958
      %v4936 = vunpack.c.h.b16 %v3958
      %v4937 = vunpack.c.l.b16 %v3959
      %v4938 = vunpack.c.h.b16 %v3959
      %v4939 = vunpack.c.l.b16 %v3960
      %v4940 = vunpack.c.h.b16 %v3960
      %v4941 = vunpack.c.l.b16 %v3961
      %v4942 = vunpack.c.h.b16 %v3961
      %v4943 = vunpack.c.l.b16 %v3962
      %v4944 = vunpack.c.h.b16 %v3962
      %v4945 = vunpack.c.l.b16 %v3963
      %v4946 = vunpack.c.h.b16 %v3963
      %v4947 = vunpack.c.l.b16 %v3964
      %v4948 = vunpack.c.h.b16 %v3964
      %v4949 = vunpack.c.l.b16 %v3965
      %v4950 = vunpack.c.h.b16 %v3965
      %v4951 = vunpack.c.l.b16 %v3966
      %v4952 = vunpack.c.h.b16 %v3966
      %v4953 = vunpack.c.l.b16 %v3967
      %v4954 = vunpack.c.h.b16 %v3967
      %v4955 = vunpack.c.l.b16 %v3968
      %v4956 = vunpack.c.h.b16 %v3968
      %v4957 = vunpack.c.l.b16 %v3969
      %v4958 = vunpack.c.h.b16 %v3969
      %v4959 = vunpack.c.l.b16 %v3970
      %v4960 = vunpack.c.h.b16 %v3970
      %v4961 = vunpack.c.l.b16 %v3971
      %v4962 = vunpack.c.h.b16 %v3971
      %v4963 = vunpack.c.l.b16 %v3972
      %v4964 = vunpack.c.h.b16 %v3972
      %v4965 = vunpack.c.l.b16 %v3973
      %v4966 = vunpack.c.h.b16 %v3973
      %v4967 = vunpack.c.l.b16 %v3974
      %v4968 = vunpack.c.h.b16 %v3974
      %v4969 = vunpack.c.l.b16 %v3975
      %v4970 = vunpack.c.h.b16 %v3975
      %v4971 = vunpack.c.l.b16 %v3976
      %v4972 = vunpack.c.h.b16 %v3976
      %v4973 = vunpack.c.l.b16 %v3977
      %v4974 = vunpack.c.h.b16 %v3977
      %v4975 = vunpack.c.l.b16 %v3978
      %v4976 = vunpack.c.h.b16 %v3978
      %v4977 = vunpack.c.l.b16 %v3979
      %v4978 = vunpack.c.h.b16 %v3979
      %v4979 = vunpack.c.l.b16 %v3980
      %v4980 = vunpack.c.h.b16 %v3980
      %v4981 = vunpack.c.l.b16 %v3981
      %v4982 = vunpack.c.h.b16 %v3981
      %v4983 = vunpack.c.l.b16 %v3982
      %v4984 = vunpack.c.h.b16 %v3982
      %v4985 = vunpack.c.l.b16 %v3983
      %v4986 = vunpack.c.h.b16 %v3983
      %v4987 = vunpack.c.l.b16 %v3984
      %v4988 = vunpack.c.h.b16 %v3984
      %v4989 = vunpack.c.l.b16 %v3985
      %v4990 = vunpack.c.h.b16 %v3985
      %v4991 = vunpack.c.l.b16 %v3986
      %v4992 = vunpack.c.h.b16 %v3986
      %v4993 = vunpack.c.l.b16 %v3987
      %v4994 = vunpack.c.h.b16 %v3987
      %v4995 = vunpack.c.l.b16 %v3988
      %v4996 = vunpack.c.h.b16 %v3988
      %v4997 = vunpack.c.l.b16 %v3989
      %v4998 = vunpack.c.h.b16 %v3989
      %v4999 = vunpack.c.l.b16 %v3990
      %v5000 = vunpack.c.h.b16 %v3990
      %v5001 = vunpack.c.l.b16 %v3991
      %v5002 = vunpack.c.h.b16 %v3991
      %v5003 = vunpack.c.l.b16 %v3992
      %v5004 = vunpack.c.h.b16 %v3992
      %v5005 = vunpack.c.l.b16 %v3993
      %v5006 = vunpack.c.h.b16 %v3993
      %v5007 = vunpack.c.l.b16 %v3994
      %v5008 = vunpack.c.h.b16 %v3994
      %v5009 = vunpack.c.l.b16 %v3995
      %v5010 = vunpack.c.h.b16 %v3995
      %v5011 = vunpack.c.l.b16 %v3996
      %v5012 = vunpack.c.h.b16 %v3996
      %v5013 = vunpack.c.l.b16 %v3997
      %v5014 = vunpack.c.h.b16 %v3997
      %v5015 = vunpack.c.l.b16 %v3998
      %v5016 = vunpack.c.h.b16 %v3998
      %v5017 = vunpack.c.l.b16 %v3999
      %v5018 = vunpack.c.h.b16 %v3999
      %v5019 = vunpack.c.l.b16 %v4000
      %v5020 = vunpack.c.h.b16 %v4000
      %v5021 = vunpack.c.l.b16 %v4001
      %v5022 = vunpack.c.h.b16 %v4001
      %v5023 = vunpack.c.l.b16 %v4002
      %v5024 = vunpack.c.h.b16 %v4002
      %v5025 = vunpack.c.l.b16 %v4003
      %v5026 = vunpack.c.h.b16 %v4003
      %v5027 = vunpack.c.l.b16 %v4004
      %v5028 = vunpack.c.h.b16 %v4004
      %v5029 = vunpack.c.l.b16 %v4005
      %v5030 = vunpack.c.h.b16 %v4005
      %v5031 = vunpack.c.l.b16 %v4006
      %v5032 = vunpack.c.h.b16 %v4006
      %v5033 = vunpack.c.l.b16 %v4007
      %v5034 = vunpack.c.h.b16 %v4007
      %v5035 = vunpack.c.l.b16 %v4008
      %v5036 = vunpack.c.h.b16 %v4008
      %v5037 = vunpack.c.l.b16 %v4009
      %v5038 = vunpack.c.h.b16 %v4009
      %v5039 = vunpack.c.l.b16 %v4010
      %v5040 = vunpack.c.h.b16 %v4010
      %v5041 = vunpack.c.l.b16 %v4011
      %v5042 = vunpack.c.h.b16 %v4011
      %v5043 = vunpack.c.l.b16 %v4012
      %v5044 = vunpack.c.h.b16 %v4012
      %v5045 = vunpack.c.l.b16 %v4013
      %v5046 = vunpack.c.h.b16 %v4013
      %v5047 = vunpack.c.l.b16 %v4014
      %v5048 = vunpack.c.h.b16 %v4014
      %v5049 = vunpack.c.l.b16 %v4015
      %v5050 = vunpack.c.h.b16 %v4015
      %v5051 = vunpack.c.l.b16 %v4016
      %v5052 = vunpack.c.h.b16 %v4016
      %v5053 = vunpack.c.l.b16 %v4017
      %v5054 = vunpack.c.h.b16 %v4017
      %v5055 = vunpack.c.l.b16 %v4018
      %v5056 = vunpack.c.h.b16 %v4018
      %v5057 = vunpack.c.l.b16 %v4019
      %v5058 = vunpack.c.h.b16 %v4019
      %v5059 = vunpack.c.l.b16 %v4020
      %v5060 = vunpack.c.h.b16 %v4020
      %v5061 = vunpack.c.l.b16 %v4021
      %v5062 = vunpack.c.h.b16 %v4021
      %v5063 = vunpack.c.l.b16 %v4022
      %v5064 = vunpack.c.h.b16 %v4022
      %v5065 = vunpack.c.l.b16 %v4023
      %v5066 = vunpack.c.h.b16 %v4023
      %v5067 = vunpack.c.l.b16 %v4024
      %v5068 = vunpack.c.h.b16 %v4024
      %v5069 = vunpack.c.l.b16 %v4025
      %v5070 = vunpack.c.h.b16 %v4025
      %v5071 = vunpack.c.l.b16 %v4026
      %v5072 = vunpack.c.h.b16 %v4026
      %v5073 = vunpack.c.l.b16 %v4027
      %v5074 = vunpack.c.h.b16 %v4027
      %v5075 = vunpack.c.l.b16 %v4028
      %v5076 = vunpack.c.h.b16 %v4028
      %v5077 = vunpack.c.l.b16 %v4029
      %v5078 = vunpack.c.h.b16 %v4029
      %v5079 = vunpack.c.l.b16 %v4030
      %v5080 = vunpack.c.h.b16 %v4030
      %v5081 = vunpack.c.l.b16 %v4031
      %v5082 = vunpack.c.h.b16 %v4031
      %v5083 = vunpack.c.l.b16 %v4032
      %v5084 = vunpack.c.h.b16 %v4032
      %v5085 = vunpack.c.l.b16 %v4033
      %v5086 = vunpack.c.h.b16 %v4033
      %v5087 = vunpack.c.l.b16 %v4034
      %v5088 = vunpack.c.h.b16 %v4034
      %v5089 = vunpack.c.l.b16 %v4035
      %v5090 = vunpack.c.h.b16 %v4035
      %v5091 = vunpack.c.l.b16 %v4036
      %v5092 = vunpack.c.h.b16 %v4036
      %v5093 = vunpack.c.l.b16 %v4037
      %v5094 = vunpack.c.h.b16 %v4037
      %v5095 = vunpack.c.l.b16 %v4038
      %v5096 = vunpack.c.h.b16 %v4038
      %v5097 = vunpack.c.l.b16 %v4039
      %v5098 = vunpack.c.h.b16 %v4039
      %v5099 = vunpack.c.l.b16 %v4040
      %v5100 = vunpack.c.h.b16 %v4040
      %v5101 = vunpack.c.l.b16 %v4041
      %v5102 = vunpack.c.h.b16 %v4041
      %v5103 = vunpack.c.l.b16 %v4042
      %v5104 = vunpack.c.h.b16 %v4042
      %v5105 = vunpack.c.l.b16 %v4043
      %v5106 = vunpack.c.h.b16 %v4043
      %v5107 = vunpack.c.l.b16 %v4044
      %v5108 = vunpack.c.h.b16 %v4044
      %v5109 = vunpack.c.l.b16 %v4045
      %v5110 = vunpack.c.h.b16 %v4045
      %v5111 = vunpack.c.l.b16 %v4046
      %v5112 = vunpack.c.h.b16 %v4046
      %v5113 = vunpack.c.l.b16 %v4047
      %v5114 = vunpack.c.h.b16 %v4047
      %v5115 = vunpack.c.l.b16 %v4048
      %v5116 = vunpack.c.h.b16 %v4048
      %v5117 = vunpack.c.l.b16 %v4049
      %v5118 = vunpack.c.h.b16 %v4049
      %v5119 = vunpack.c.l.b16 %v4050
      %v5120 = vunpack.c.h.b16 %v4050
      %v5121 = vunpack.c.l.b16 %v4051
      %v5122 = vunpack.c.h.b16 %v4051
      %v5123 = vunpack.c.l.b16 %v4052
      %v5124 = vunpack.c.h.b16 %v4052
      %v5125 = vunpack.c.l.b16 %v4053
      %v5126 = vunpack.c.h.b16 %v4053
      %v5127 = vunpack.c.l.b16 %v4054
      %v5128 = vunpack.c.h.b16 %v4054
      %v5129 = vunpack.c.l.b16 %v4055
      %v5130 = vunpack.c.h.b16 %v4055
      %v5131 = vunpack.c.l.b16 %v4056
      %v5132 = vunpack.c.h.b16 %v4056
      %v5133 = vunpack.c.l.b16 %v4057
      %v5134 = vunpack.c.h.b16 %v4057
      %v5135 = vunpack.c.l.b16 %v4058
      %v5136 = vunpack.c.h.b16 %v4058
      %v5137 = vunpack.c.l.b16 %v4059
      %v5138 = vunpack.c.h.b16 %v4059
      %v5139 = vunpack.c.l.b16 %v4060
      %v5140 = vunpack.c.h.b16 %v4060
      %v5141 = vunpack.c.l.b16 %v4061
      %v5142 = vunpack.c.h.b16 %v4061
      %v5143 = vunpack.c.l.b16 %v4062
      %v5144 = vunpack.c.h.b16 %v4062
      %v5145 = vunpack.c.l.b16 %v4063
      %v5146 = vunpack.c.h.b16 %v4063
      %v5147 = vunpack.c.l.b16 %v4064
      %v5148 = vunpack.c.h.b16 %v4064
      %v5149 = vunpack.c.l.b16 %v4065
      %v5150 = vunpack.c.h.b16 %v4065
      %v5151 = vunpack.c.l.b16 %v4066
      %v5152 = vunpack.c.h.b16 %v4066
      %v5153 = vunpack.c.l.b16 %v4067
      %v5154 = vunpack.c.h.b16 %v4067
      %v5155 = vunpack.c.l.b16 %v4068
      %v5156 = vunpack.c.h.b16 %v4068
      %v5157 = vunpack.c.l.b16 %v4069
      %v5158 = vunpack.c.h.b16 %v4069
      %v5159 = vunpack.c.l.b16 %v4070
      %v5160 = vunpack.c.h.b16 %v4070
      %v5161 = vunpack.c.l.b16 %v4071
      %v5162 = vunpack.c.h.b16 %v4071
      %v5163 = vunpack.c.l.b16 %v4072
      %v5164 = vunpack.c.h.b16 %v4072
      %v5165 = vunpack.c.l.b16 %v4073
      %v5166 = vunpack.c.h.b16 %v4073
      %v5167 = vunpack.c.l.b16 %v4074
      %v5168 = vunpack.c.h.b16 %v4074
      %v5169 = vunpack.c.l.b16 %v4075
      %v5170 = vunpack.c.h.b16 %v4075
      %v5171 = vunpack.c.l.b16 %v4076
      %v5172 = vunpack.c.h.b16 %v4076
      %v5173 = vunpack.c.l.b16 %v4077
      %v5174 = vunpack.c.h.b16 %v4077
      %v5175 = vunpack.c.l.b16 %v4078
      %v5176 = vunpack.c.h.b16 %v4078
      %v5177 = vunpack.c.l.b16 %v4079
      %v5178 = vunpack.c.h.b16 %v4079
      %v5179 = vunpack.c.l.b16 %v4080
      %v5180 = vunpack.c.h.b16 %v4080
      %v5181 = vunpack.c.l.b16 %v4081
      %v5182 = vunpack.c.h.b16 %v4081
      %v5183 = vunpack.c.l.b16 %v4082
      %v5184 = vunpack.c.h.b16 %v4082
      %v5185 = vunpack.c.l.b16 %v4083
      %v5186 = vunpack.c.h.b16 %v4083
      %v5187 = vunpack.c.l.b16 %v4084
      %v5188 = vunpack.c.h.b16 %v4084
      %v5189 = vunpack.c.l.b16 %v4085
      %v5190 = vunpack.c.h.b16 %v4085
      %v5191 = vunpack.c.l.b16 %v4086
      %v5192 = vunpack.c.h.b16 %v4086
      %v5193 = vunpack.c.l.b16 %v4087
      %v5194 = vunpack.c.h.b16 %v4087
      %v5195 = vpack.c.b16 %v4621, %v4619
      %v5196 = vpack.c.b16 %v4622, %v4620
      %v5197 = vpack.c.b16 %v4625, %v4623
      %v5198 = vpack.c.b16 %v4626, %v4624
      %v5199 = vpack.c.b16 %v4629, %v4627
      %v5200 = vpack.c.b16 %v4630, %v4628
      %v5201 = vpack.c.b16 %v4633, %v4631
      %v5202 = vpack.c.b16 %v4634, %v4632
      %v5203 = vpack.c.b16 %v4637, %v4635
      %v5204 = vpack.c.b16 %v4638, %v4636
      %v5205 = vpack.c.b16 %v4641, %v4639
      %v5206 = vpack.c.b16 %v4642, %v4640
      %v5207 = vpack.c.b16 %v4645, %v4643
      %v5208 = vpack.c.b16 %v4646, %v4644
      %v5209 = vpack.c.b16 %v4649, %v4647
      %v5210 = vpack.c.b16 %v4650, %v4648
      %v5211 = vpack.c.b16 %v4653, %v4651
      %v5212 = vpack.c.b16 %v4654, %v4652
      %v5213 = vpack.c.b16 %v4657, %v4655
      %v5214 = vpack.c.b16 %v4658, %v4656
      %v5215 = vpack.c.b16 %v4661, %v4659
      %v5216 = vpack.c.b16 %v4662, %v4660
      %v5217 = vpack.c.b16 %v4665, %v4663
      %v5218 = vpack.c.b16 %v4666, %v4664
      %v5219 = vpack.c.b16 %v4669, %v4667
      %v5220 = vpack.c.b16 %v4670, %v4668
      %v5221 = vpack.c.b16 %v4673, %v4671
      %v5222 = vpack.c.b16 %v4674, %v4672
      %v5223 = vpack.c.b16 %v4677, %v4675
      %v5224 = vpack.c.b16 %v4678, %v4676
      %v5225 = vpack.c.b16 %v4681, %v4679
      %v5226 = vpack.c.b16 %v4682, %v4680
      %v5227 = vpack.c.b16 %v4685, %v4683
      %v5228 = vpack.c.b16 %v4686, %v4684
      %v5229 = vpack.c.b16 %v4689, %v4687
      %v5230 = vpack.c.b16 %v4690, %v4688
      %v5231 = vpack.c.b16 %v4693, %v4691
      %v5232 = vpack.c.b16 %v4694, %v4692
      %v5233 = vpack.c.b16 %v4697, %v4695
      %v5234 = vpack.c.b16 %v4698, %v4696
      %v5235 = vpack.c.b16 %v4701, %v4699
      %v5236 = vpack.c.b16 %v4702, %v4700
      %v5237 = vpack.c.b16 %v4705, %v4703
      %v5238 = vpack.c.b16 %v4706, %v4704
      %v5239 = vpack.c.b16 %v4709, %v4707
      %v5240 = vpack.c.b16 %v4710, %v4708
      %v5241 = vpack.c.b16 %v4713, %v4711
      %v5242 = vpack.c.b16 %v4714, %v4712
      %v5243 = vpack.c.b16 %v4717, %v4715
      %v5244 = vpack.c.b16 %v4718, %v4716
      %v5245 = vpack.c.b16 %v4721, %v4719
      %v5246 = vpack.c.b16 %v4722, %v4720
      %v5247 = vpack.c.b16 %v4725, %v4723
      %v5248 = vpack.c.b16 %v4726, %v4724
      %v5249 = vpack.c.b16 %v4729, %v4727
      %v5250 = vpack.c.b16 %v4730, %v4728
      %v5251 = vpack.c.b16 %v4733, %v4731
      %v5252 = vpack.c.b16 %v4734, %v4732
      %v5253 = vpack.c.b16 %v4737, %v4735
      %v5254 = vpack.c.b16 %v4738, %v4736
      %v5255 = vpack.c.b16 %v4741, %v4739
      %v5256 = vpack.c.b16 %v4742, %v4740
      %v5257 = vpack.c.b16 %v4745, %v4743
      %v5258 = vpack.c.b16 %v4746, %v4744
      %v5259 = vpack.c.b16 %v4749, %v4747
      %v5260 = vpack.c.b16 %v4750, %v4748
      %v5261 = vpack.c.b16 %v4753, %v4751
      %v5262 = vpack.c.b16 %v4754, %v4752
      %v5263 = vpack.c.b16 %v4757, %v4755
      %v5264 = vpack.c.b16 %v4758, %v4756
      %v5265 = vpack.c.b16 %v4761, %v4759
      %v5266 = vpack.c.b16 %v4762, %v4760
      %v5267 = vpack.c.b16 %v4765, %v4763
      %v5268 = vpack.c.b16 %v4766, %v4764
      %v5269 = vpack.c.b16 %v4769, %v4767
      %v5270 = vpack.c.b16 %v4770, %v4768
      %v5271 = vpack.c.b16 %v4773, %v4771
      %v5272 = vpack.c.b16 %v4774, %v4772
      %v5273 = vpack.c.b16 %v4777, %v4775
      %v5274 = vpack.c.b16 %v4778, %v4776
      %v5275 = vpack.c.b16 %v4781, %v4779
      %v5276 = vpack.c.b16 %v4782, %v4780
      %v5277 = vpack.c.b16 %v4785, %v4783
      %v5278 = vpack.c.b16 %v4786, %v4784
      %v5279 = vpack.c.b16 %v4789, %v4787
      %v5280 = vpack.c.b16 %v4790, %v4788
      %v5281 = vpack.c.b16 %v4793, %v4791
      %v5282 = vpack.c.b16 %v4794, %v4792
      %v5283 = vpack.c.b16 %v4797, %v4795
      %v5284 = vpack.c.b16 %v4798, %v4796
      %v5285 = vpack.c.b16 %v4801, %v4799
      %v5286 = vpack.c.b16 %v4802, %v4800
      %v5287 = vpack.c.b16 %v4805, %v4803
      %v5288 = vpack.c.b16 %v4806, %v4804
      %v5289 = vpack.c.b16 %v4809, %v4807
      %v5290 = vpack.c.b16 %v4810, %v4808
      %v5291 = vpack.c.b16 %v4813, %v4811
      %v5292 = vpack.c.b16 %v4814, %v4812
      %v5293 = vpack.c.b16 %v4817, %v4815
      %v5294 = vpack.c.b16 %v4818, %v4816
      %v5295 = vpack.c.b16 %v4821, %v4819
      %v5296 = vpack.c.b16 %v4822, %v4820
      %v5297 = vpack.c.b16 %v4825, %v4823
      %v5298 = vpack.c.b16 %v4826, %v4824
      %v5299 = vpack.c.b16 %v4829, %v4827
      %v5300 = vpack.c.b16 %v4830, %v4828
      %v5301 = vpack.c.b16 %v4833, %v4831
      %v5302 = vpack.c.b16 %v4834, %v4832
      %v5303 = vpack.c.b16 %v4837, %v4835
      %v5304 = vpack.c.b16 %v4838, %v4836
      %v5305 = vpack.c.b16 %v4841, %v4839
      %v5306 = vpack.c.b16 %v4842, %v4840
      %v5307 = vpack.c.b16 %v4845, %v4843
      %v5308 = vpack.c.b16 %v4846, %v4844
      %v5309 = vpack.c.b16 %v4849, %v4847
      %v5310 = vpack.c.b16 %v4850, %v4848
      %v5311 = vpack.c.b16 %v4853, %v4851
      %v5312 = vpack.c.b16 %v4854, %v4852
      %v5313 = vpack.c.b16 %v4857, %v4855
      %v5314 = vpack.c.b16 %v4858, %v4856
      %v5315 = vpack.c.b16 %v4861, %v4859
      %v5316 = vpack.c.b16 %v4862, %v4860
      %v5317 = vpack.c.b16 %v4865, %v4863
      %v5318 = vpack.c.b16 %v4866, %v4864
      %v5319 = vpack.c.b16 %v4869, %v4867
      %v5320 = vpack.c.b16 %v4870, %v4868
      %v5321 = vpack.c.b16 %v4873, %v4871
      %v5322 = vpack.c.b16 %v4874, %v4872
      %v5323 = vpack.c.b16 %v4877, %v4875
      %v5324 = vpack.c.b16 %v4878, %v4876
      %v5325 = vpack.c.b16 %v4881, %v4879
      %v5326 = vpack.c.b16 %v4882, %v4880
      %v5327 = vpack.c.b16 %v4885, %v4883
      %v5328 = vpack.c.b16 %v4886, %v4884
      %v5329 = vpack.c.b16 %v4889, %v4887
      %v5330 = vpack.c.b16 %v4890, %v4888
      %v5331 = vpack.c.b16 %v4893, %v4891
      %v5332 = vpack.c.b16 %v4894, %v4892
      %v5333 = vpack.c.b16 %v4897, %v4895
      %v5334 = vpack.c.b16 %v4898, %v4896
      %v5335 = vpack.c.b16 %v4901, %v4899
      %v5336 = vpack.c.b16 %v4902, %v4900
      %v5337 = vpack.c.b16 %v4905, %v4903
      %v5338 = vpack.c.b16 %v4906, %v4904
      %v5339 = vpack.c.b16 %v4909, %v4907
      %v5340 = vpack.c.b16 %v4910, %v4908
      %v5341 = vpack.c.b16 %v4913, %v4911
      %v5342 = vpack.c.b16 %v4914, %v4912
      %v5343 = vpack.c.b16 %v4917, %v4915
      %v5344 = vpack.c.b16 %v4918, %v4916
      %v5345 = vpack.c.b16 %v4921, %v4919
      %v5346 = vpack.c.b16 %v4922, %v4920
      %v5347 = vpack.c.b16 %v4925, %v4923
      %v5348 = vpack.c.b16 %v4926, %v4924
      %v5349 = vpack.c.b16 %v4929, %v4927
      %v5350 = vpack.c.b16 %v4930, %v4928
      %v5351 = vpack.c.b16 %v4933, %v4931
      %v5352 = vpack.c.b16 %v4934, %v4932
      %v5353 = vpack.c.b16 %v4937, %v4935
      %v5354 = vpack.c.b16 %v4938, %v4936
      %v5355 = vpack.c.b16 %v4941, %v4939
      %v5356 = vpack.c.b16 %v4942, %v4940
      %v5357 = vpack.c.b16 %v4945, %v4943
      %v5358 = vpack.c.b16 %v4946, %v4944
      %v5359 = vpack.c.b16 %v4949, %v4947
      %v5360 = vpack.c.b16 %v4950, %v4948
      %v5361 = vpack.c.b16 %v4953, %v4951
      %v5362 = vpack.c.b16 %v4954, %v4952
      %v5363 = vpack.c.b16 %v4957, %v4955
      %v5364 = vpack.c.b16 %v4958, %v4956
      %v5365 = vpack.c.b16 %v4961, %v4959
      %v5366 = vpack.c.b16 %v4962, %v4960
      %v5367 = vpack.c.b16 %v4965, %v4963
      %v5368 = vpack.c.b16 %v4966, %v4964
      %v5369 = vpack.c.b16 %v4969, %v4967
      %v5370 = vpack.c.b16 %v4970, %v4968
      %v5371 = vpack.c.b16 %v4973, %v4971
      %v5372 = vpack.c.b16 %v4974, %v4972
      %v5373 = vpack.c.b16 %v4977, %v4975
      %v5374 = vpack.c.b16 %v4978, %v4976
      %v5375 = vpack.c.b16 %v4981, %v4979
      %v5376 = vpack.c.b16 %v4982, %v4980
      %v5377 = vpack.c.b16 %v4985, %v4983
      %v5378 = vpack.c.b16 %v4986, %v4984
      %v5379 = vpack.c.b16 %v4989, %v4987
      %v5380 = vpack.c.b16 %v4990, %v4988
      %v5381 = vpack.c.b16 %v4993, %v4991
      %v5382 = vpack.c.b16 %v4994, %v4992
      %v5383 = vpack.c.b16 %v4997, %v4995
      %v5384 = vpack.c.b16 %v4998, %v4996
      %v5385 = vpack.c.b16 %v5001, %v4999
      %v5386 = vpack.c.b16 %v5002, %v5000
      %v5387 = vpack.c.b16 %v5005, %v5003
      %v5388 = vpack.c.b16 %v5006, %v5004
      %v5389 = vpack.c.b16 %v5009, %v5007
      %v5390 = vpack.c.b16 %v5010, %v5008
      %v5391 = vpack.c.b16 %v5013, %v5011
      %v5392 = vpack.c.b16 %v5014, %v5012
      %v5393 = vpack.c.b16 %v5017, %v5015
      %v5394 = vpack.c.b16 %v5018, %v5016
      %v5395 = vpack.c.b16 %v5021, %v5019
      %v5396 = vpack.c.b16 %v5022, %v5020
      %v5397 = vpack.c.b16 %v5025, %v5023
      %v5398 = vpack.c.b16 %v5026, %v5024
      %v5399 = vpack.c.b16 %v5029, %v5027
      %v5400 = vpack.c.b16 %v5030, %v5028
      %v5401 = vpack.c.b16 %v5033, %v5031
      %v5402 = vpack.c.b16 %v5034, %v5032
      %v5403 = vpack.c.b16 %v5037, %v5035
      %v5404 = vpack.c.b16 %v5038, %v5036
      %v5405 = vpack.c.b16 %v5041, %v5039
      %v5406 = vpack.c.b16 %v5042, %v5040
      %v5407 = vpack.c.b16 %v5045, %v5043
      %v5408 = vpack.c.b16 %v5046, %v5044
      %v5409 = vpack.c.b16 %v5049, %v5047
      %v5410 = vpack.c.b16 %v5050, %v5048
      %v5411 = vpack.c.b16 %v5053, %v5051
      %v5412 = vpack.c.b16 %v5054, %v5052
      %v5413 = vpack.c.b16 %v5057, %v5055
      %v5414 = vpack.c.b16 %v5058, %v5056
      %v5415 = vpack.c.b16 %v5061, %v5059
      %v5416 = vpack.c.b16 %v5062, %v5060
      %v5417 = vpack.c.b16 %v5065, %v5063
      %v5418 = vpack.c.b16 %v5066, %v5064
      %v5419 = vpack.c.b16 %v5069, %v5067
      %v5420 = vpack.c.b16 %v5070, %v5068
      %v5421 = vpack.c.b16 %v5073, %v5071
      %v5422 = vpack.c.b16 %v5074, %v5072
      %v5423 = vpack.c.b16 %v5077, %v5075
      %v5424 = vpack.c.b16 %v5078, %v5076
      %v5425 = vpack.c.b16 %v5081, %v5079
      %v5426 = vpack.c.b16 %v5082, %v5080
      %v5427 = vpack.c.b16 %v5085, %v5083
      %v5428 = vpack.c.b16 %v5086, %v5084
      %v5429 = vpack.c.b16 %v5089, %v5087
      %v5430 = vpack.c.b16 %v5090, %v5088
      %v5431 = vpack.c.b16 %v5093, %v5091
      %v5432 = vpack.c.b16 %v5094, %v5092
      %v5433 = vpack.c.b16 %v5097, %v5095
      %v5434 = vpack.c.b16 %v5098, %v5096
      %v5435 = vpack.c.b16 %v5101, %v5099
      %v5436 = vpack.c.b16 %v5102, %v5100
      %v5437 = vpack.c.b16 %v5105, %v5103
      %v5438 = vpack.c.b16 %v5106, %v5104
      %v5439 = vpack.c.b16 %v5109, %v5107
      %v5440 = vpack.c.b16 %v5110, %v5108
      %v5441 = vpack.c.b16 %v5113, %v5111
      %v5442 = vpack.c.b16 %v5114, %v5112
      %v5443 = vpack.c.b16 %v5117, %v5115
      %v5444 = vpack.c.b16 %v5118, %v5116
      %v5445 = vpack.c.b16 %v5121, %v5119
      %v5446 = vpack.c.b16 %v5122, %v5120
      %v5447 = vpack.c.b16 %v5125, %v5123
      %v5448 = vpack.c.b16 %v5126, %v5124
      %v5449 = vpack.c.b16 %v5129, %v5127
      %v5450 = vpack.c.b16 %v5130, %v5128
      %v5451 = vpack.c.b16 %v5133, %v5131
      %v5452 = vpack.c.b16 %v5134, %v5132
      %v5453 = vpack.c.b16 %v5137, %v5135
      %v5454 = vpack.c.b16 %v5138, %v5136
      %v5455 = vpack.c.b16 %v5141, %v5139
      %v5456 = vpack.c.b16 %v5142, %v5140
      %v5457 = vpack.c.b16 %v5145, %v5143
      %v5458 = vpack.c.b16 %v5146, %v5144
      %v5459 = vpack.c.b16 %v5149, %v5147
      %v5460 = vpack.c.b16 %v5150, %v5148
      %v5461 = vpack.c.b16 %v5153, %v5151
      %v5462 = vpack.c.b16 %v5154, %v5152
      %v5463 = vpack.c.b16 %v5157, %v5155
      %v5464 = vpack.c.b16 %v5158, %v5156
      %v5465 = vpack.c.b16 %v5161, %v5159
      %v5466 = vpack.c.b16 %v5162, %v5160
      %v5467 = vpack.c.b16 %v5165, %v5163
      %v5468 = vpack.c.b16 %v5166, %v5164
      %v5469 = vpack.c.b16 %v5169, %v5167
      %v5470 = vpack.c.b16 %v5170, %v5168
      %v5471 = vpack.c.b16 %v5173, %v5171
      %v5472 = vpack.c.b16 %v5174, %v5172
      %v5473 = vpack.c.b16 %v5177, %v5175
      %v5474 = vpack.c.b16 %v5178, %v5176
      %v5475 = vpack.c.b16 %v5181, %v5179
      %v5476 = vpack.c.b16 %v5182, %v5180
      %v5477 = vpack.c.b16 %v5185, %v5183
      %v5478 = vpack.c.b16 %v5186, %v5184
      %v5479 = vpack.c.b16 %v5189, %v5187
      %v5480 = vpack.c.b16 %v5190, %v5188
      %v5481 = vpack.c.b16 %v5193, %v5191
      %v5482 = vpack.c.b16 %v5194, %v5192
      %5771 = vmatprep.subr.bf16.mxu0 %v5196
      %5772 = vmatpush1.bf16.msra.mxu0 %v5195
      %5773 = vmatprep.subr.bf16.mxu0 %v5198
      %5774 = vmatpush1.bf16.msra.mxu0 %v5197
      %5775 = vmatprep.subr.bf16.mxu0 %v5200
      %5776 = vmatpush1.bf16.msra.mxu0 %v5199
      %5777 = vmatprep.subr.bf16.mxu0 %v5202
      %5778 = vmatpush1.bf16.msra.mxu0 %v5201
      %5779 = vmatprep.subr.bf16.mxu0 %v5204
      %5780 = vmatpush1.bf16.msra.mxu0 %v5203
      %5781 = vmatprep.subr.bf16.mxu0 %v5206
      %5782 = vmatpush1.bf16.msra.mxu0 %v5205
      %5783 = vmatprep.subr.bf16.mxu0 %v5208
      %5784 = vmatpush1.bf16.msra.mxu0 %v5207
      %5785 = vmatprep.subr.bf16.mxu0 %v5210
      %5786 = vmatpush1.bf16.msra.mxu0 %v5209
      %5787 = vmatprep.subr.bf16.mxu0 %v5212
      %5788 = vmatpush1.bf16.msra.mxu0 %v5211
      %5789 = vmatprep.subr.bf16.mxu0 %v5214
      %5790 = vmatpush1.bf16.msra.mxu0 %v5213
      %5791 = vmatprep.subr.bf16.mxu0 %v5216
      %5792 = vmatpush1.bf16.msra.mxu0 %v5215
      %5793 = vmatprep.subr.bf16.mxu0 %v5218
      %5794 = vmatpush1.bf16.msra.mxu0 %v5217
      %5795 = vmatprep.subr.bf16.mxu0 %v5220
      %5796 = vmatpush1.bf16.msra.mxu0 %v5219
      %5797 = vmatprep.subr.bf16.mxu0 %v5222
      %5798 = vmatpush1.bf16.msra.mxu0 %v5221
      %5799 = vmatprep.subr.bf16.mxu0 %v5224
      %5800 = vmatpush1.bf16.msra.mxu0 %v5223
      %5801 = vmatprep.subr.bf16.mxu0 %v5226
      %5802 = vmatpush1.bf16.msra.mxu0 %v5225
      %5803 = vmatprep.mubr.bf16.mxu0 %v4224
      %5804 = vmatmul.mubr.bf16.gmra.mrb[0].mxu0 %v4223
      %v5805 = vpop.f32.mrb[0].mxu0
      %v5806 = vadd.f32 0.0, %v5805
      %v5807 = vpop.f32.mrb[0].mxu0
      %v5808 = vadd.f32 0.0, %v5807
      %v5809 = vpop.f32.mrb[0].mxu0
      %v5810 = vadd.f32 0.0, %v5809
      %v5811 = vpop.f32.mrb[0].mxu0
      %v5812 = vadd.f32 0.0, %v5811
      %5813 = vmatprep.mubr.bf16.mxu0 %v4242
      %5814 = vmatmul.mubr.bf16.gmra.mrb[0].mxu0 %v4241
      %v5815 = vpop.f32.mrb[0].mxu0
      %v5816 = vadd.f32 0.0, %v5815
      %v5817 = vpop.f32.mrb[0].mxu0
      %v5818 = vadd.f32 0.0, %v5817
      %v5819 = vpop.f32.mrb[0].mxu0
      %v5820 = vadd.f32 0.0, %v5819
      %v5821 = vpop.f32.mrb[0].mxu0
      %v5822 = vadd.f32 0.0, %v5821
      %5823 = vmatprep.mubr.bf16.mxu0 %v4260
      %5824 = vmatmul.mubr.bf16.gmra.mrb[0].mxu0 %v4259
      %v5825 = vpop.f32.mrb[0].mxu0
      %v5826 = vadd.f32 0.0, %v5825
      %v5827 = vpop.f32.mrb[0].mxu0
      %v5828 = vadd.f32 0.0, %v5827
      %v5829 = vpop.f32.mrb[0].mxu0
      %v5830 = vpop.f32.mrb[0].mxu0
      %5831 = vdwg.mxu0
      %5832 = vmatprep.subr.bf16.mxu0 %v5228
      %5833 = vmatpush1.bf16.msra.mxu0 %v5227
      %5834 = vmatprep.subr.bf16.mxu0 %v5230
      %5835 = vmatpush1.bf16.msra.mxu0 %v5229
      %5836 = vmatprep.subr.bf16.mxu0 %v5232
      %5837 = vmatpush1.bf16.msra.mxu0 %v5231
      %5838 = vmatprep.subr.bf16.mxu0 %v5234
      %5839 = vmatpush1.bf16.msra.mxu0 %v5233
      %5840 = vmatprep.subr.bf16.mxu0 %v5236
      %5841 = vmatpush1.bf16.msra.mxu0 %v5235
      %5842 = vmatprep.subr.bf16.mxu0 %v5238
      %5843 = vmatpush1.bf16.msra.mxu0 %v5237
      %5844 = vmatprep.subr.bf16.mxu0 %v5240
      %5845 = vmatpush1.bf16.msra.mxu0 %v5239
      %5846 = vmatprep.subr.bf16.mxu0 %v5242
      %5847 = vmatpush1.bf16.msra.mxu0 %v5241
      %5848 = vmatprep.subr.bf16.mxu0 %v5244
      %5849 = vmatpush1.bf16.msra.mxu0 %v5243
      %5850 = vmatprep.subr.bf16.mxu0 %v5246
      %5851 = vmatpush1.bf16.msra.mxu0 %v5245
      %5852 = vmatprep.subr.bf16.mxu0 %v5248
      %5853 = vmatpush1.bf16.msra.mxu0 %v5247
      %5854 = vmatprep.subr.bf16.mxu0 %v5250
      %5855 = vmatpush1.bf16.msra.mxu0 %v5249
      %5856 = vmatprep.subr.bf16.mxu0 %v5252
      %5857 = vmatpush1.bf16.msra.mxu0 %v5251
      %5858 = vmatprep.subr.bf16.mxu0 %v5254
      %5859 = vmatpush1.bf16.msra.mxu0 %v5253
      %5860 = vmatprep.subr.bf16.mxu0 %v5256
      %5861 = vmatpush1.bf16.msra.mxu0 %v5255
      %5862 = vmatprep.subr.bf16.mxu0 %v5258
      %5863 = vmatpush1.bf16.msra.mxu0 %v5257
      %5864 = vmatprep.mubr.bf16.mxu0 %v4226
      %5865 = vmatmul.mubr.bf16.gmra.mrb[0].mxu0 %v4225
      %v5866 = vpop.f32.mrb[0].mxu0
      %v5867 = vadd.f32 %v5806, %v5866
      %v5868 = vpop.f32.mrb[0].mxu0
      %v5869 = vadd.f32 %v5808, %v5868
      %v5870 = vpop.f32.mrb[0].mxu0
      %v5871 = vadd.f32 %v5810, %v5870
      %v5872 = vpop.f32.mrb[0].mxu0
      %v5873 = vadd.f32 %v5812, %v5872
      %5874 = vmatprep.mubr.bf16.mxu0 %v4244
      %5875 = vmatmul.mubr.bf16.gmra.mrb[0].mxu0 %v4243
      %v5876 = vpop.f32.mrb[0].mxu0
      %v5877 = vadd.f32 %v5816, %v5876
      %v5878 = vpop.f32.mrb[0].mxu0
      %v5879 = vadd.f32 %v5818, %v5878
      %v5880 = vpop.f32.mrb[0].mxu0
      %v5881 = vadd.f32 %v5820, %v5880
      %v5882 = vpop.f32.mrb[0].mxu0
      %v5883 = vadd.f32 %v5822, %v5882
      %5884 = vmatprep.mubr.bf16.mxu0 %v4262
      %5885 = vmatmul.mubr.bf16.gmra.mrb[0].mxu0 %v4261
      %v5886 = vpop.f32.mrb[0].mxu0
      %v5887 = vadd.f32 %v5826, %v5886
      %v5888 = vpop.f32.mrb[0].mxu0
      %v5889 = vadd.f32 %v5828, %v5888
      %v5890 = vpop.f32.mrb[0].mxu0
      %v5891 = vpop.f32.mrb[0].mxu0
      %5892 = vdwg.mxu0
      %5893 = vmatprep.subr.bf16.mxu0 %v5260
      %5894 = vmatpush1.bf16.msra.mxu0 %v5259
      %5895 = vmatprep.subr.bf16.mxu0 %v5262
      %5896 = vmatpush1.bf16.msra.mxu0 %v5261
      %5897 = vmatprep.subr.bf16.mxu0 %v5264
      %5898 = vmatpush1.bf16.msra.mxu0 %v5263
      %5899 = vmatprep.subr.bf16.mxu0 %v5266
      %5900 = vmatpush1.bf16.msra.mxu0 %v5265
      %5901 = vmatprep.subr.bf16.mxu0 %v5268
      %5902 = vmatpush1.bf16.msra.mxu0 %v5267
      %5903 = vmatprep.subr.bf16.mxu0 %v5270
      %5904 = vmatpush1.bf16.msra.mxu0 %v5269
      %5905 = vmatprep.subr.bf16.mxu0 %v5272
      %5906 = vmatpush1.bf16.msra.mxu0 %v5271
      %5907 = vmatprep.subr.bf16.mxu0 %v5274
      %5908 = vmatpush1.bf16.msra.mxu0 %v5273
      %5909 = vmatprep.subr.bf16.mxu0 %v5276
      %5910 = vmatpush1.bf16.msra.mxu0 %v5275
      %5911 = vmatprep.subr.bf16.mxu0 %v5278
      %5912 = vmatpush1.bf16.msra.mxu0 %v5277
      %5913 = vmatprep.subr.bf16.mxu0 %v5280
      %5914 = vmatpush1.bf16.msra.mxu0 %v5279
      %5915 = vmatprep.subr.bf16.mxu0 %v5282
      %5916 = vmatpush1.bf16.msra.mxu0 %v5281
      %5917 = vmatprep.subr.bf16.mxu0 %v5284
      %5918 = vmatpush1.bf16.msra.mxu0 %v5283
      %5919 = vmatprep.subr.bf16.mxu0 %v5286
      %5920 = vmatpush1.bf16.msra.mxu0 %v5285
      %5921 = vmatprep.subr.bf16.mxu0 %v5288
      %5922 = vmatpush1.bf16.msra.mxu0 %v5287
      %5923 = vmatprep.subr.bf16.mxu0 %v5290
      %5924 = vmatpush1.bf16.msra.mxu0 %v5289
      %5925 = vmatprep.mubr.bf16.mxu0 %v4228
      %5926 = vmatmul.mubr.bf16.gmra.mrb[0].mxu0 %v4227
      %v5927 = vpop.f32.mrb[0].mxu0
      %v5928 = vadd.f32 %v5867, %v5927
      %v5929 = vpop.f32.mrb[0].mxu0
      %v5930 = vadd.f32 %v5869, %v5929
      %v5931 = vpop.f32.mrb[0].mxu0
      %v5932 = vadd.f32 %v5871, %v5931
      %v5933 = vpop.f32.mrb[0].mxu0
      %v5934 = vadd.f32 %v5873, %v5933
      %5935 = vmatprep.mubr.bf16.mxu0 %v4246
      %5936 = vmatmul.mubr.bf16.gmra.mrb[0].mxu0 %v4245
      %v5937 = vpop.f32.mrb[0].mxu0
      %v5938 = vadd.f32 %v5877, %v5937
      %v5939 = vpop.f32.mrb[0].mxu0
      %v5940 = vadd.f32 %v5879, %v5939
      %v5941 = vpop.f32.mrb[0].mxu0
      %v5942 = vadd.f32 %v5881, %v5941
      %v5943 = vpop.f32.mrb[0].mxu0
      %v5944 = vadd.f32 %v5883, %v5943
      %5945 = vmatprep.mubr.bf16.mxu0 %v4264
      %5946 = vmatmul.mubr.bf16.gmra.mrb[0].mxu0 %v4263
      %v5947 = vpop.f32.mrb[0].mxu0
      %v5948 = vadd.f32 %v5887, %v5947
      %v5949 = vpop.f32.mrb[0].mxu0
      %v5950 = vadd.f32 %v5889, %v5949
      %v5951 = vpop.f32.mrb[0].mxu0
      %v5952 = vpop.f32.mrb[0].mxu0
      %5953 = vdwg.mxu0
      %5954 = vmatprep.subr.bf16.mxu0 %v5292
      %5955 = vmatpush1.bf16.msra.mxu0 %v5291
      %5956 = vmatprep.subr.bf16.mxu0 %v5294
      %5957 = vmatpush1.bf16.msra.mxu0 %v5293
      %5958 = vmatprep.subr.bf16.mxu0 %v5296
      %5959 = vmatpush1.bf16.msra.mxu0 %v5295
      %5960 = vmatprep.subr.bf16.mxu0 %v5298
      %5961 = vmatpush1.bf16.msra.mxu0 %v5297
      %5962 = vmatprep.subr.bf16.mxu0 %v5300
      %5963 = vmatpush1.bf16.msra.mxu0 %v5299
      %5964 = vmatprep.subr.bf16.mxu0 %v5302
      %5965 = vmatpush1.bf16.msra.mxu0 %v5301
      %5966 = vmatprep.subr.bf16.mxu0 %v5304
      %5967 = vmatpush1.bf16.msra.mxu0 %v5303
      %5968 = vmatprep.subr.bf16.mxu0 %v5306
      %5969 = vmatpush1.bf16.msra.mxu0 %v5305
      %5970 = vmatprep.subr.bf16.mxu0 %v5308
      %5971 = vmatpush1.bf16.msra.mxu0 %v5307
      %5972 = vmatprep.subr.bf16.mxu0 %v5310
      %5973 = vmatpush1.bf16.msra.mxu0 %v5309
      %5974 = vmatprep.subr.bf16.mxu0 %v5312
      %5975 = vmatpush1.bf16.msra.mxu0 %v5311
      %5976 = vmatprep.subr.bf16.mxu0 %v5314
      %5977 = vmatpush1.bf16.msra.mxu0 %v5313
      %5978 = vmatprep.subr.bf16.mxu0 %v5316
      %5979 = vmatpush1.bf16.msra.mxu0 %v5315
      %5980 = vmatprep.subr.bf16.mxu0 %v5318
      %5981 = vmatpush1.bf16.msra.mxu0 %v5317
      %5982 = vmatprep.subr.bf16.mxu0 %v5320
      %5983 = vmatpush1.bf16.msra.mxu0 %v5319
      %5984 = vmatprep.subr.bf16.mxu0 %v5322
      %5985 = vmatpush1.bf16.msra.mxu0 %v5321
      %5986 = vmatprep.mubr.bf16.mxu0 %v4230
      %5987 = vmatmul.mubr.bf16.gmra.mrb[0].mxu0 %v4229
      %v5988 = vpop.f32.mrb[0].mxu0
      %v5989 = vadd.f32 %v5928, %v5988
      %v5990 = vpop.f32.mrb[0].mxu0
      %v5991 = vadd.f32 %v5930, %v5990
      %v5992 = vpop.f32.mrb[0].mxu0
      %v5993 = vadd.f32 %v5932, %v5992
      %v5994 = vpop.f32.mrb[0].mxu0
      %v5995 = vadd.f32 %v5934, %v5994
      %5996 = vmatprep.mubr.bf16.mxu0 %v4248
      %5997 = vmatmul.mubr.bf16.gmra.mrb[0].mxu0 %v4247
      %v5998 = vpop.f32.mrb[0].mxu0
      %v5999 = vadd.f32 %v5938, %v5998
      %v6000 = vpop.f32.mrb[0].mxu0
      %v6001 = vadd.f32 %v5940, %v6000
      %v6002 = vpop.f32.mrb[0].mxu0
      %v6003 = vadd.f32 %v5942, %v6002
      %v6004 = vpop.f32.mrb[0].mxu0
      %v6005 = vadd.f32 %v5944, %v6004
      %6006 = vmatprep.mubr.bf16.mxu0 %v4266
      %6007 = vmatmul.mubr.bf16.gmra.mrb[0].mxu0 %v4265
      %v6008 = vpop.f32.mrb[0].mxu0
      %v6009 = vadd.f32 %v5948, %v6008
      %v6010 = vpop.f32.mrb[0].mxu0
      %v6011 = vadd.f32 %v5950, %v6010
      %v6012 = vpop.f32.mrb[0].mxu0
      %v6013 = vpop.f32.mrb[0].mxu0
      %6014 = vdwg.mxu0
      %6015 = vmatprep.subr.bf16.mxu0 %v5324
      %6016 = vmatpush1.bf16.msra.mxu0 %v5323
      %6017 = vmatprep.subr.bf16.mxu0 %v5326
      %6018 = vmatpush1.bf16.msra.mxu0 %v5325
      %6019 = vmatprep.subr.bf16.mxu0 %v5328
      %6020 = vmatpush1.bf16.msra.mxu0 %v5327
      %6021 = vmatprep.subr.bf16.mxu0 %v5330
      %6022 = vmatpush1.bf16.msra.mxu0 %v5329
      %6023 = vmatprep.subr.bf16.mxu0 %v5332
      %6024 = vmatpush1.bf16.msra.mxu0 %v5331
      %6025 = vmatprep.subr.bf16.mxu0 %v5334
      %6026 = vmatpush1.bf16.msra.mxu0 %v5333
      %6027 = vmatprep.subr.bf16.mxu0 %v5336
      %6028 = vmatpush1.bf16.msra.mxu0 %v5335
      %6029 = vmatprep.subr.bf16.mxu0 %v5338
      %6030 = vmatpush1.bf16.msra.mxu0 %v5337
      %6031 = vmatprep.subr.bf16.mxu0 %v5340
      %6032 = vmatpush1.bf16.msra.mxu0 %v5339
      %6033 = vmatprep.subr.bf16.mxu0 %v5342
      %6034 = vmatpush1.bf16.msra.mxu0 %v5341
      %6035 = vmatprep.subr.bf16.mxu0 %v5344
      %6036 = vmatpush1.bf16.msra.mxu0 %v5343
      %6037 = vmatprep.subr.bf16.mxu0 %v5346
      %6038 = vmatpush1.bf16.msra.mxu0 %v5345
      %6039 = vmatprep.subr.bf16.mxu0 %v5348
      %6040 = vmatpush1.bf16.msra.mxu0 %v5347
      %6041 = vmatprep.subr.bf16.mxu0 %v5350
      %6042 = vmatpush1.bf16.msra.mxu0 %v5349
      %6043 = vmatprep.subr.bf16.mxu0 %v5352
      %6044 = vmatpush1.bf16.msra.mxu0 %v5351
      %6045 = vmatprep.subr.bf16.mxu0 %v5354
      %6046 = vmatpush1.bf16.msra.mxu0 %v5353
      %6047 = vmatprep.mubr.bf16.mxu0 %v4232
      %6048 = vmatmul.mubr.bf16.gmra.mrb[0].mxu0 %v4231
      %v6049 = vpop.f32.mrb[0].mxu0
      %v6050 = vadd.f32 %v5989, %v6049
      %v6051 = vpop.f32.mrb[0].mxu0
      %v6052 = vadd.f32 %v5991, %v6051
      %v6053 = vpop.f32.mrb[0].mxu0
      %v6054 = vadd.f32 %v5993, %v6053
      %v6055 = vpop.f32.mrb[0].mxu0
      %v6056 = vadd.f32 %v5995, %v6055
      %6057 = vmatprep.mubr.bf16.mxu0 %v4250
      %6058 = vmatmul.mubr.bf16.gmra.mrb[0].mxu0 %v4249
      %v6059 = vpop.f32.mrb[0].mxu0
      %v6060 = vadd.f32 %v5999, %v6059
      %v6061 = vpop.f32.mrb[0].mxu0
      %v6062 = vadd.f32 %v6001, %v6061
      %v6063 = vpop.f32.mrb[0].mxu0
      %v6064 = vadd.f32 %v6003, %v6063
      %v6065 = vpop.f32.mrb[0].mxu0
      %v6066 = vadd.f32 %v6005, %v6065
      %6067 = vmatprep.mubr.bf16.mxu0 %v4268
      %6068 = vmatmul.mubr.bf16.gmra.mrb[0].mxu0 %v4267
      %v6069 = vpop.f32.mrb[0].mxu0
      %v6070 = vadd.f32 %v6009, %v6069
      %v6071 = vpop.f32.mrb[0].mxu0
      %v6072 = vadd.f32 %v6011, %v6071
      %v6073 = vpop.f32.mrb[0].mxu0
      %v6074 = vpop.f32.mrb[0].mxu0
      %6075 = vdwg.mxu0
      %6076 = vmatprep.subr.bf16.mxu0 %v5356
      %6077 = vmatpush1.bf16.msra.mxu0 %v5355
      %6078 = vmatprep.subr.bf16.mxu0 %v5358
      %6079 = vmatpush1.bf16.msra.mxu0 %v5357
      %6080 = vmatprep.subr.bf16.mxu0 %v5360
      %6081 = vmatpush1.bf16.msra.mxu0 %v5359
      %6082 = vmatprep.subr.bf16.mxu0 %v5362
      %6083 = vmatpush1.bf16.msra.mxu0 %v5361
      %6084 = vmatprep.subr.bf16.mxu0 %v5364
      %6085 = vmatpush1.bf16.msra.mxu0 %v5363
      %6086 = vmatprep.subr.bf16.mxu0 %v5366
      %6087 = vmatpush1.bf16.msra.mxu0 %v5365
      %6088 = vmatprep.subr.bf16.mxu0 %v5368
      %6089 = vmatpush1.bf16.msra.mxu0 %v5367
      %6090 = vmatprep.subr.bf16.mxu0 %v5370
      %6091 = vmatpush1.bf16.msra.mxu0 %v5369
      %6092 = vmatprep.subr.bf16.mxu0 %v5372
      %6093 = vmatpush1.bf16.msra.mxu0 %v5371
      %6094 = vmatprep.subr.bf16.mxu0 %v5374
      %6095 = vmatpush1.bf16.msra.mxu0 %v5373
      %6096 = vmatprep.subr.bf16.mxu0 %v5376
      %6097 = vmatpush1.bf16.msra.mxu0 %v5375
      %6098 = vmatprep.subr.bf16.mxu0 %v5378
      %6099 = vmatpush1.bf16.msra.mxu0 %v5377
      %6100 = vmatprep.subr.bf16.mxu0 %v5380
      %6101 = vmatpush1.bf16.msra.mxu0 %v5379
      %6102 = vmatprep.subr.bf16.mxu0 %v5382
      %6103 = vmatpush1.bf16.msra.mxu0 %v5381
      %6104 = vmatprep.subr.bf16.mxu0 %v5384
      %6105 = vmatpush1.bf16.msra.mxu0 %v5383
      %6106 = vmatprep.subr.bf16.mxu0 %v5386
      %6107 = vmatpush1.bf16.msra.mxu0 %v5385
      %6108 = vmatprep.mubr.bf16.mxu0 %v4234
      %6109 = vmatmul.mubr.bf16.gmra.mrb[0].mxu0 %v4233
      %v6110 = vpop.f32.mrb[0].mxu0
      %v6111 = vadd.f32 %v6050, %v6110
      %v6112 = vpop.f32.mrb[0].mxu0
      %v6113 = vadd.f32 %v6052, %v6112
      %v6114 = vpop.f32.mrb[0].mxu0
      %v6115 = vadd.f32 %v6054, %v6114
      %v6116 = vpop.f32.mrb[0].mxu0
      %v6117 = vadd.f32 %v6056, %v6116
      %6118 = vmatprep.mubr.bf16.mxu0 %v4252
      %6119 = vmatmul.mubr.bf16.gmra.mrb[0].mxu0 %v4251
      %v6120 = vpop.f32.mrb[0].mxu0
      %v6121 = vadd.f32 %v6060, %v6120
      %v6122 = vpop.f32.mrb[0].mxu0
      %v6123 = vadd.f32 %v6062, %v6122
      %v6124 = vpop.f32.mrb[0].mxu0
      %v6125 = vadd.f32 %v6064, %v6124
      %v6126 = vpop.f32.mrb[0].mxu0
      %v6127 = vadd.f32 %v6066, %v6126
      %6128 = vmatprep.mubr.bf16.mxu0 %v4270
      %6129 = vmatmul.mubr.bf16.gmra.mrb[0].mxu0 %v4269
      %v6130 = vpop.f32.mrb[0].mxu0
      %v6131 = vadd.f32 %v6070, %v6130
      %v6132 = vpop.f32.mrb[0].mxu0
      %v6133 = vadd.f32 %v6072, %v6132
      %v6134 = vpop.f32.mrb[0].mxu0
      %v6135 = vpop.f32.mrb[0].mxu0
      %6136 = vdwg.mxu0
      %6137 = vmatprep.subr.bf16.mxu0 %v5388
      %6138 = vmatpush1.bf16.msra.mxu0 %v5387
      %6139 = vmatprep.subr.bf16.mxu0 %v5390
      %6140 = vmatpush1.bf16.msra.mxu0 %v5389
      %6141 = vmatprep.subr.bf16.mxu0 %v5392
      %6142 = vmatpush1.bf16.msra.mxu0 %v5391
      %6143 = vmatprep.subr.bf16.mxu0 %v5394
      %6144 = vmatpush1.bf16.msra.mxu0 %v5393
      %6145 = vmatprep.subr.bf16.mxu0 %v5396
      %6146 = vmatpush1.bf16.msra.mxu0 %v5395
      %6147 = vmatprep.subr.bf16.mxu0 %v5398
      %6148 = vmatpush1.bf16.msra.mxu0 %v5397
      %6149 = vmatprep.subr.bf16.mxu0 %v5400
      %6150 = vmatpush1.bf16.msra.mxu0 %v5399
      %6151 = vmatprep.subr.bf16.mxu0 %v5402
      %6152 = vmatpush1.bf16.msra.mxu0 %v5401
      %6153 = vmatprep.subr.bf16.mxu0 %v5404
      %6154 = vmatpush1.bf16.msra.mxu0 %v5403
      %6155 = vmatprep.subr.bf16.mxu0 %v5406
      %6156 = vmatpush1.bf16.msra.mxu0 %v5405
      %6157 = vmatprep.subr.bf16.mxu0 %v5408
      %6158 = vmatpush1.bf16.msra.mxu0 %v5407
      %6159 = vmatprep.subr.bf16.mxu0 %v5410
      %6160 = vmatpush1.bf16.msra.mxu0 %v5409
      %6161 = vmatprep.subr.bf16.mxu0 %v5412
      %6162 = vmatpush1.bf16.msra.mxu0 %v5411
      %6163 = vmatprep.subr.bf16.mxu0 %v5414
      %6164 = vmatpush1.bf16.msra.mxu0 %v5413
      %6165 = vmatprep.subr.bf16.mxu0 %v5416
      %6166 = vmatpush1.bf16.msra.mxu0 %v5415
      %6167 = vmatprep.subr.bf16.mxu0 %v5418
      %6168 = vmatpush1.bf16.msra.mxu0 %v5417
      %6169 = vmatprep.mubr.bf16.mxu0 %v4236
      %6170 = vmatmul.mubr.bf16.gmra.mrb[0].mxu0 %v4235
      %v6171 = vpop.f32.mrb[0].mxu0
      %v6172 = vadd.f32 %v6111, %v6171
      %v6173 = vpop.f32.mrb[0].mxu0
      %v6174 = vadd.f32 %v6113, %v6173
      %v6175 = vpop.f32.mrb[0].mxu0
      %v6176 = vadd.f32 %v6115, %v6175
      %v6177 = vpop.f32.mrb[0].mxu0
      %v6178 = vadd.f32 %v6117, %v6177
      %6179 = vmatprep.mubr.bf16.mxu0 %v4254
      %6180 = vmatmul.mubr.bf16.gmra.mrb[0].mxu0 %v4253
      %v6181 = vpop.f32.mrb[0].mxu0
      %v6182 = vadd.f32 %v6121, %v6181
      %v6183 = vpop.f32.mrb[0].mxu0
      %v6184 = vadd.f32 %v6123, %v6183
      %v6185 = vpop.f32.mrb[0].mxu0
      %v6186 = vadd.f32 %v6125, %v6185
      %v6187 = vpop.f32.mrb[0].mxu0
      %v6188 = vadd.f32 %v6127, %v6187
      %6189 = vmatprep.mubr.bf16.mxu0 %v4272
      %6190 = vmatmul.mubr.bf16.gmra.mrb[0].mxu0 %v4271
      %v6191 = vpop.f32.mrb[0].mxu0
      %v6192 = vadd.f32 %v6131, %v6191
      %v6193 = vpop.f32.mrb[0].mxu0
      %v6194 = vadd.f32 %v6133, %v6193
      %v6195 = vpop.f32.mrb[0].mxu0
      %v6196 = vpop.f32.mrb[0].mxu0
      %6197 = vdwg.mxu0
      %6198 = vmatprep.subr.bf16.mxu0 %v5420
      %6199 = vmatpush1.bf16.msra.mxu0 %v5419
      %6200 = vmatprep.subr.bf16.mxu0 %v5422
      %6201 = vmatpush1.bf16.msra.mxu0 %v5421
      %6202 = vmatprep.subr.bf16.mxu0 %v5424
      %6203 = vmatpush1.bf16.msra.mxu0 %v5423
      %6204 = vmatprep.subr.bf16.mxu0 %v5426
      %6205 = vmatpush1.bf16.msra.mxu0 %v5425
      %6206 = vmatprep.subr.bf16.mxu0 %v5428
      %6207 = vmatpush1.bf16.msra.mxu0 %v5427
      %6208 = vmatprep.subr.bf16.mxu0 %v5430
      %6209 = vmatpush1.bf16.msra.mxu0 %v5429
      %6210 = vmatprep.subr.bf16.mxu0 %v5432
      %6211 = vmatpush1.bf16.msra.mxu0 %v5431
      %6212 = vmatprep.subr.bf16.mxu0 %v5434
      %6213 = vmatpush1.bf16.msra.mxu0 %v5433
      %6214 = vmatprep.subr.bf16.mxu0 %v5436
      %6215 = vmatpush1.bf16.msra.mxu0 %v5435
      %6216 = vmatprep.subr.bf16.mxu0 %v5438
      %6217 = vmatpush1.bf16.msra.mxu0 %v5437
      %6218 = vmatprep.subr.bf16.mxu0 %v5440
      %6219 = vmatpush1.bf16.msra.mxu0 %v5439
      %6220 = vmatprep.subr.bf16.mxu0 %v5442
      %6221 = vmatpush1.bf16.msra.mxu0 %v5441
      %6222 = vmatprep.subr.bf16.mxu0 %v5444
      %6223 = vmatpush1.bf16.msra.mxu0 %v5443
      %6224 = vmatprep.subr.bf16.mxu0 %v5446
      %6225 = vmatpush1.bf16.msra.mxu0 %v5445
      %6226 = vmatprep.subr.bf16.mxu0 %v5448
      %6227 = vmatpush1.bf16.msra.mxu0 %v5447
      %6228 = vmatprep.subr.bf16.mxu0 %v5450
      %6229 = vmatpush1.bf16.msra.mxu0 %v5449
      %6230 = vmatprep.mubr.bf16.mxu0 %v4238
      %6231 = vmatmul.mubr.bf16.gmra.mrb[0].mxu0 %v4237
      %v6232 = vpop.f32.mrb[0].mxu0
      %v6233 = vadd.f32 %v6172, %v6232
      %v6234 = vpop.f32.mrb[0].mxu0
      %v6235 = vadd.f32 %v6174, %v6234
      %v6236 = vpop.f32.mrb[0].mxu0
      %v6237 = vadd.f32 %v6176, %v6236
      %v6238 = vpop.f32.mrb[0].mxu0
      %v6239 = vadd.f32 %v6178, %v6238
      %6240 = vmatprep.mubr.bf16.mxu0 %v4256
      %6241 = vmatmul.mubr.bf16.gmra.mrb[0].mxu0 %v4255
      %v6242 = vpop.f32.mrb[0].mxu0
      %v6243 = vadd.f32 %v6182, %v6242
      %v6244 = vpop.f32.mrb[0].mxu0
      %v6245 = vadd.f32 %v6184, %v6244
      %v6246 = vpop.f32.mrb[0].mxu0
      %v6247 = vadd.f32 %v6186, %v6246
      %v6248 = vpop.f32.mrb[0].mxu0
      %v6249 = vadd.f32 %v6188, %v6248
      %6250 = vmatprep.mubr.bf16.mxu0 %v4274
      %6251 = vmatmul.mubr.bf16.gmra.mrb[0].mxu0 %v4273
      %v6252 = vpop.f32.mrb[0].mxu0
      %v6253 = vadd.f32 %v6192, %v6252
      %v6254 = vpop.f32.mrb[0].mxu0
      %v6255 = vadd.f32 %v6194, %v6254
      %v6256 = vpop.f32.mrb[0].mxu0
      %v6257 = vpop.f32.mrb[0].mxu0
      %6258 = vdwg.mxu0
      %6259 = vmatprep.subr.bf16.mxu0 %v5452
      %6260 = vmatpush1.bf16.msra.mxu0 %v5451
      %6261 = vmatprep.subr.bf16.mxu0 %v5454
      %6262 = vmatpush1.bf16.msra.mxu0 %v5453
      %6263 = vmatprep.subr.bf16.mxu0 %v5456
      %6264 = vmatpush1.bf16.msra.mxu0 %v5455
      %6265 = vmatprep.subr.bf16.mxu0 %v5458
      %6266 = vmatpush1.bf16.msra.mxu0 %v5457
      %6267 = vmatprep.subr.bf16.mxu0 %v5460
      %6268 = vmatpush1.bf16.msra.mxu0 %v5459
      %6269 = vmatprep.subr.bf16.mxu0 %v5462
      %6270 = vmatpush1.bf16.msra.mxu0 %v5461
      %6271 = vmatprep.subr.bf16.mxu0 %v5464
      %6272 = vmatpush1.bf16.msra.mxu0 %v5463
      %6273 = vmatprep.subr.bf16.mxu0 %v5466
      %6274 = vmatpush1.bf16.msra.mxu0 %v5465
      %6275 = vmatprep.subr.bf16.mxu0 %v5468
      %6276 = vmatpush1.bf16.msra.mxu0 %v5467
      %6277 = vmatprep.subr.bf16.mxu0 %v5470
      %6278 = vmatpush1.bf16.msra.mxu0 %v5469
      %6279 = vmatprep.subr.bf16.mxu0 %v5472
      %6280 = vmatpush1.bf16.msra.mxu0 %v5471
      %6281 = vmatprep.subr.bf16.mxu0 %v5474
      %6282 = vmatpush1.bf16.msra.mxu0 %v5473
      %6283 = vmatprep.subr.bf16.mxu0 %v5476
      %6284 = vmatpush1.bf16.msra.mxu0 %v5475
      %6285 = vmatprep.subr.bf16.mxu0 %v5478
      %6286 = vmatpush1.bf16.msra.mxu0 %v5477
      %6287 = vmatprep.subr.bf16.mxu0 %v5480
      %6288 = vmatpush1.bf16.msra.mxu0 %v5479
      %6289 = vmatprep.subr.bf16.mxu0 %v5482
      %6290 = vmatpush1.bf16.msra.mxu0 %v5481
      %6291 = vmatprep.mubr.bf16.mxu0 %v4240
      %6292 = vmatmul.mubr.bf16.gmra.mrb[0].mxu0 %v4239
      %v6293 = vpop.f32.mrb[0].mxu0
      %v6294 = vadd.f32 %v6233, %v6293
      %v6295 = vpop.f32.mrb[0].mxu0
      %v6296 = vadd.f32 %v6235, %v6295
      %v6297 = vpop.f32.mrb[0].mxu0
      %v6298 = vadd.f32 %v6237, %v6297
      %v6299 = vpop.f32.mrb[0].mxu0
      %v6300 = vadd.f32 %v6239, %v6299
      %6301 = vmatprep.mubr.bf16.mxu0 %v4258
      %6302 = vmatmul.mubr.bf16.gmra.mrb[0].mxu0 %v4257
      %v6303 = vpop.f32.mrb[0].mxu0
      %v6304 = vadd.f32 %v6243, %v6303
      %v6305 = vpop.f32.mrb[0].mxu0
      %v6306 = vadd.f32 %v6245, %v6305
      %v6307 = vpop.f32.mrb[0].mxu0
      %v6308 = vadd.f32 %v6247, %v6307
      %v6309 = vpop.f32.mrb[0].mxu0
      %v6310 = vadd.f32 %v6249, %v6309
      %6311 = vmatprep.mubr.bf16.mxu0 %v4276
      %6312 = vmatmul.mubr.bf16.gmra.mrb[0].mxu0 %v4275
      %v6313 = vpop.f32.mrb[0].mxu0
      %v6314 = vadd.f32 %v6253, %v6313
      %v6315 = vpop.f32.mrb[0].mxu0
      %v6316 = vadd.f32 %v6255, %v6315
      %v6317 = vpop.f32.mrb[0].mxu0
      %v6318 = vpop.f32.mrb[0].mxu0
      %6319 = vdwg.mxu0
      %v6320 = vld [vmem:[%s6] sm:$0x3]
      %v6322 = vlaneseq
      %v6323 = vshrl.u32 %v6322, 7
      %v6324 = vsub.s32 0, %v6323
      %v6325 = vrot.slane %v6320, %v6324
      %v6326 = vlaneseq
      %v6327 = vshrl.u32 %v6326, 7
      %v6328 = vsub.s32 1, %v6327
      %v6329 = vrot.slane %v6320, %v6328
      %v6332 = vmul.f32 %v6294, %v6325
      %v6333 = vmul.f32 %v6296, %v6329
      %v6334 = vmul.f32 %v6298, %v6325
      %v6335 = vmul.f32 %v6300, %v6329
      %v6336 = vmul.f32 %v6304, %v6325
      %v6337 = vmul.f32 %v6306, %v6329
      %v6338 = vmul.f32 %v6308, %v6325
      %v6339 = vmul.f32 %v6310, %v6329
      %v6340 = vmul.f32 %v6314, %v6325
      %v6341 = vmul.f32 %v6316, %v6329
      %v6342 = vld [vmem:[%s7] sm:$0x3]
      %v6344 = vlaneseq
      %v6345 = vshrl.u32 %v6344, 7
      %v6346 = vsub.s32 0, %v6345
      %v6347 = vrot.slane %v6342, %v6346
      %v6348 = vlaneseq
      %v6349 = vshrl.u32 %v6348, 7
      %v6350 = vsub.s32 1, %v6349
      %v6351 = vrot.slane %v6342, %v6350
      %v6354 = vadd.f32 %v6332, %v6347
      %v6355 = vadd.f32 %v6333, %v6351
      %v6356 = vadd.f32 %v6334, %v6347
      %v6357 = vadd.f32 %v6335, %v6351
      %v6358 = vadd.f32 %v6336, %v6347
      %v6359 = vadd.f32 %v6337, %v6351
      %v6360 = vadd.f32 %v6338, %v6347
      %v6361 = vadd.f32 %v6339, %v6351
      %v6362 = vadd.f32 %v6340, %v6347
      %v6363 = vadd.f32 %v6341, %v6351
      %v6364 = vmax.f32 %v6354, 0.0
      %v6365 = vmax.f32 %v6355, 0.0
      %v6366 = vmax.f32 %v6356, 0.0
      %v6367 = vmax.f32 %v6357, 0.0
      %v6368 = vmax.f32 %v6358, 0.0
      %v6369 = vmax.f32 %v6359, 0.0
      %v6370 = vmax.f32 %v6360, 0.0
      %v6371 = vmax.f32 %v6361, 0.0
      %v6372 = vmax.f32 %v6362, 0.0
      %v6373 = vmax.f32 %v6363, 0.0
      %v6374 = vld [vmem:[%s8] sm:$0x1]
      %v6375 = vpack.c.bf16 %v6366, %v6364
      %v6376 = vpack.c.bf16 %v6367, %v6365
      %v6377 = vpack.c.bf16 %v6370, %v6368
      %v6378 = vpack.c.bf16 %v6371, %v6369
      %v6379 = vpack.c.bf16 %v6372, %v6372
      %v6380 = vpack.c.bf16 %v6373, %v6373
      %vm6381 = vcmask 293888
      %v6383 = vsel %vm6381, %v6374, 0
      %vm6385 = vcmask 1041408
      %v6387 = vsel %vm6385, %v6379, 0
      %v6390 = vsel %vm6385, %v6380, 0
      %6392 = vmatprep.subr.bf16.mxu0 %v6376
      %6393 = vmatpush1.bf16.msra.mxu0 %v6375
      %6394 = vmatprep.subr.bf16.mxu0 %v6378
      %6395 = vmatpush1.bf16.msra.mxu0 %v6377
      %6396 = vmatprep.subr.bf16.mxu0 %v6390
      %6397 = vmatpush1.bf16.msra.mxu0 %v6387
      %6398 = vmatprep.subr.bf16.mxu0 0
      %6399 = vmatpush1.bf16.msra.mxu0 0
      %6400 = vmatprep.subr.bf16.mxu0 0
      %6401 = vmatpush1.bf16.msra.mxu0 0
      %6402 = vmatprep.subr.bf16.mxu0 0
      %6403 = vmatpush1.bf16.msra.mxu0 0
      %6404 = vmatprep.subr.bf16.mxu0 0
      %6405 = vmatpush1.bf16.msra.mxu0 0
      %6406 = vmatprep.subr.bf16.mxu0 0
      %6407 = vmatpush1.bf16.msra.mxu0 0
      %6408 = vmatprep.subr.bf16.mxu0 0
      %6409 = vmatpush1.bf16.msra.mxu0 0
      %6410 = vmatprep.subr.bf16.mxu0 0
      %6411 = vmatpush1.bf16.msra.mxu0 0
      %6412 = vmatprep.subr.bf16.mxu0 0
      %6413 = vmatpush1.bf16.msra.mxu0 0
      %6414 = vmatprep.subr.bf16.mxu0 0
      %6415 = vmatpush1.bf16.msra.mxu0 0
      %6416 = vmatprep.subr.bf16.mxu0 0
      %6417 = vmatpush1.bf16.msra.mxu0 0
      %6418 = vmatprep.subr.bf16.mxu0 0
      %6419 = vmatpush1.bf16.msra.mxu0 0
      %6420 = vmatprep.subr.bf16.mxu0 0
      %6421 = vmatpush1.bf16.msra.mxu0 0
      %6422 = vmatprep.subr.bf16.mxu0 0
      %6423 = vmatpush1.bf16.msra.mxu0 0
      %6424 = vmatprep.mubr.bf16.mxu0 0
      %6425 = vmatmul.mubr.bf16.gmra.mrb[0].mxu0 %v6383
      %v6426 = vpop.f32.mrb[0].mxu0
      %v6427 = vadd.f32 0.0, %v6426
      %v6428 = vpop.f32.mrb[0].mxu0
      %v6429 = vadd.f32 0.0, %v6428
      %v6430 = vpop.f32.mrb[0].mxu0
      %v6431 = vpop.f32.mrb[0].mxu0
      %6432 = vdwg.mxu0
      %v6433 = vmul.f32 %v6427, 0.0625
      %v6434 = vmul.f32 %v6429, 0.0625
      %v6435 = vpack.c.bf16 %v6433, %v6433
      %v6436 = vpack.c.bf16 %v6434, %v6434
      %v6439 = vcombine.low %v6435, %v6436
      %v6441 = vunpack.c.l.s4 1966171168
      %v6442 = vunpack.c.0.s8 %v6441
      %v6443 = vlaneseq
      %v6444 = vshrl.u32 %v6443, 7
      %v6445 = vsub.s32 %v6442, %v6444
      %v6446 = vrot.slane %v6439, %v6445
      %v6448 = vunpack.c.l.s4 1966171168
      %v6449 = vunpack.c.0.s8 %v6448
      %v6450 = vlaneseq
      %v6451 = vshrl.u32 %v6450, 7
      %v6452 = vsub.s32 %v6449, %v6451
      %v6453 = vrot.slane %v6446, %v6452
      %vm6455 = vmand %vm569, %vm641
      %vm6456 = vcmask 1041409
      %vm6457 = vmand %vm6456, %vm3650
      %vm6458 = vmor %vm6457, %vm6455
      %v6459 = vld [vmem:[%s330] sm:$0x3]
      %v6460 = vsel %vm6458, %v6453, %v6459
      %6461 = vst [vmem:[%s330] sm:$0x3] %v6460
      %p6462 = scmp.lt.s32.totalorder %s20, 1
      %s6463 = scalar_select %p6462, %s20, 1
      %s6464 = smul.addr %s6463, 2
      %s6465 = scalar_lea.vmem %s9, %s6464
      // Predicated region
      $region57: #{auxiliary_classifier_forward.4} parent=55 // pred_check
        %p6466 = pneg %p232
      $region58: #{auxiliary_classifier_forward.4} parent=55 // pred_check_branch
        %6468 = sbr.rel (%p6466) target = $region60
      $region59: #{auxiliary_classifier_forward.4} parent=55 // pred_region
        _
      $region60: #{auxiliary_classifier_forward.4} parent=55 // pred_fallthru
        _
    $region56: #{auxiliary_classifier_forward.4} parent=5 // pred_fallthru
      _
    %p6469 = scmp.le.s32.totalorder 2, %s15
    // Predicated region
    $region61: #{auxiliary_classifier_forward.4} parent=5 // pred_check
      %p6470 = pneg %p6469
    $region62: #{auxiliary_classifier_forward.4} parent=5 // pred_check_branch
      %6472 = sbr.rel (%p6470) target = $region64
    $region63: #{auxiliary_classifier_forward.4} parent=5 // pred_region
      %s6473 = ssub.s32 %s15, 2
      // Predicated region
      $region65: #{auxiliary_classifier_forward.4} parent=63 // pred_check
        %p6474 = pneg %p238
      $region66: #{auxiliary_classifier_forward.4} parent=63 // pred_check_branch
        %6476 = sbr.rel (%p6474) target = $region68
      $region67: #{auxiliary_classifier_forward.4} parent=63 // pred_region
        %p6477 = scmp.lt.s32.totalorder %s21, 1
        %s6478 = scalar_select %p6477, %s21, 1
        %s6479 = smul.addr %s6478, 2
        %s6480 = scalar_lea.vmem %s9, %s6479
      $region68: #{auxiliary_classifier_forward.4} parent=63 // pred_fallthru
        _
    $region64: #{auxiliary_classifier_forward.4} parent=5 // pred_fallthru
      _
  $region6: #{auxiliary_classifier_forward.4} parent=0 // loop_footer
    %s19 = sadd.s32 1, %s15
  $region7: #{auxiliary_classifier_forward.4} parent=0 // loop_footer_branch
    %14 = sbr.rel target = $region3
  $region8: #{auxiliary_classifier_forward.4} parent=0 // loop_exit
    _

</llo_original>
